<compile_context>
chip_gen: v7x
topology: tpu7x:2x2x1
jax: 0.10.0
libtpu: 0.0.40
codegen_flags: <defaults>
</compile_context>

<pallas_src>
import jax
import jax.numpy as jnp
import numpy as np
from jax import lax
from jax.experimental import pallas as pl
from jax.experimental.pallas import tpu as pltpu

# ---- problem sizes (small, consistent with the module's forward) ----
B = 2          # batch
T = 6          # target max_len
S = 8          # encoder sequence length
EMB = 16       # embedding dim
H = 32         # hidden size
E = 48         # enc_out_dim
V = 64         # output vocab size
VOCAB_IN = 50  # embedding table rows

NEG_BIG = -1e18   # masked attention positions (same constant as the PyTorch module)
PAD_BIAS = -1e9   # bias for padded vocab columns (exp() underflows to 0)


def attn_decoder_kernel(
    # inputs
    ids_ref,                      # (T*B, 1) int32   target ids, step-major
    emb_ref,                      # (VOCAB_IN, EMB)  embedding table
    enc_ref,                      # (B, S, E)        encoder outputs
    enct_ref,                     # (B, E, S)        encoder outputs, transposed
    maskb_ref,                    # (B, S)           additive mask bias (0 / -1e18)
    h0_ref, c0_ref,               # (3, B, H)        initial states per layer
    wih1_ref, b1_ref, whh1_ref,   # (EMB,4H), (1,4H), (H,4H)
    w2_ref, b2_ref,               # (2H,4H) = [Wih2;Whh2], (1,4H)
    w3_ref, b3_ref,               # (2H,4H) = [Wih3;Whh3], (1,4H)
    wattnt_ref, battnt_ref,       # (H, E), (H, 1)   attn Linear, pre-transposed
    wcat_ctx_ref, wcat_h_ref, bcat_ref,   # (E,H), (H,H), (1,H)
    wout_ref, bout_ref,           # (H, Vpad), (1, Vpad)
    # output
    out_ref,                      # (T, B, Vpad)
):
    t_len, b_sz, _ = out_ref.shape
    vocab_in = emb_ref.shape[0]
    hid = whh1_ref.shape[0]

    # ---------------- pre-loop: everything not on the recurrence path ----------------
    # (1) Embedding gather fused with layer-1's (step-invariant) input projection:
    #     one_hot(target) @ (embedding @ W_ih1 + b1)  ->  (T*B, 4H) fused gate pre-acts.
    proj_table = jnp.dot(emb_ref[...], wih1_ref[...],
                         preferred_element_type=jnp.float32) + b1_ref[...]     # (Vin, 4H)
    n_rows = t_len * b_sz
    onehot = (ids_ref[...] ==
              lax.broadcasted_iota(jnp.int32, (n_rows, vocab_in), 1)).astype(jnp.float32)
    xproj = jnp.dot(onehot, proj_table, preferred_element_type=jnp.float32)    # (T*B, 4H)

    # (2) Step-invariant attention keys, pre-transposed per batch row: (H, S).
    wattn_t = wattnt_ref[...]
    battn_t = battnt_ref[...]
    keys_t = [jnp.dot(wattn_t, enct_ref[b], preferred_element_type=jnp.float32) + battn_t
              for b in range(b_sz)]                                            # B x (H, S)

    # (3) Hoisted loop-invariant values / weights.
    enc = enc_ref[...]              # (B, S, E) -- used for the context matmuls
    mask_bias = maskb_ref[...]      # (B, S)    -- already 0 / -1e18
    whh1 = whh1_ref[...]
    w2, b2 = w2_ref[...], b2_ref[...]
    w3, b3 = w3_ref[...], b3_ref[...]
    wcat_ctx, wcat_h, bcat = wcat_ctx_ref[...], wcat_h_ref[...], bcat_ref[...]
    wout, bout = wout_ref[...], bout_ref[...]

    def lstm_gates(gates, c):
        # gates: (B, 4H) fused pre-activation block, PyTorch gate order i|f|g|o.
        sig = jax.nn.sigmoid(gates)                      # one wide EUP pass (i, f, o)
        i = sig[:, 0 * hid:1 * hid]
        f = sig[:, 1 * hid:2 * hid]
        o = sig[:, 3 * hid:4 * hid]
        g = jnp.tanh(gates[:, 2 * hid:3 * hid])
        c_new = f * c + i * g
        return o * jnp.tanh(c_new), c_new

    h1, c1 = h0_ref[0], c0_ref[0]
    h2, c2 = h0_ref[1], c0_ref[1]
    h3, c3 = h0_ref[2], c0_ref[2]

    # T is tiny and static -> fully unrolled at trace time; all indices are static.
    for t in range(t_len):
        # ----- serial recurrence: one fused-gate (lane-dense N=4H=128) matmul per cell -----
        g1 = xproj[t * b_sz:(t + 1) * b_sz, :] + jnp.dot(
            h1, whh1, preferred_element_type=jnp.float32)
        h1, c1 = lstm_gates(g1, c1)

        g2 = jnp.dot(jnp.concatenate([h1, h2], axis=1), w2,
                     preferred_element_type=jnp.float32) + b2
        h2, c2 = lstm_gates(g2, c2)

        g3 = jnp.dot(jnp.concatenate([h2, h3], axis=1), w3,
                     preferred_element_type=jnp.float32) + b3
        h3, c3 = lstm_gates(g3, c3)

        # ----- attention + output head (independent of the next step's carry) -----
        ctx_rows = []
        for b in range(b_sz):
            sc = jnp.dot(h3[b:b + 1, :], keys_t[b],
                         preferred_element_type=jnp.float32) + mask_bias[b:b + 1, :]  # (1,S)
            sc = sc - jnp.max(sc, axis=1, keepdims=True)
            ex = jnp.exp(sc)
            pr = ex * pl.reciprocal(jnp.sum(ex, axis=1, keepdims=True), approx=True)
            ctx_rows.append(jnp.dot(pr, enc[b], preferred_element_type=jnp.float32))  # (1,E)
        context = jnp.concatenate(ctx_rows, axis=0)                                   # (B,E)

        # "concat([context, h3]) -> tanh(Linear)" as a split matmul (no lane concat)
        concat_out = jnp.tanh(
            jnp.dot(context, wcat_ctx, preferred_element_type=jnp.float32)
            + jnp.dot(h3, wcat_h, preferred_element_type=jnp.float32) + bcat)         # (B,H)

        # output linear + log_softmax over the padded, lane-dense vocab
        lin = jnp.dot(concat_out, wout, preferred_element_type=jnp.float32) + bout    # (B,Vpad)
        shifted = lin - jnp.max(lin, axis=-1, keepdims=True)
        lse = jnp.log(jnp.sum(jnp.exp(shifted), axis=-1, keepdims=True))
        out_ref[t] = (shifted - lse).astype(out_ref.dtype)


@jax.jit
def attn_decoder_forward(params, target, init_states, enc_outs, attn_mask):
    """target: (B, T) int32; init_states: 3 (h, c) pairs of (B, H); enc_outs: (S, B, E)
    like PyTorch; attn_mask: (B, S) int.  Returns (B, T, V) log-probs."""
    b_sz, t_len = target.shape
    enc_bse = jnp.transpose(enc_outs, (1, 0, 2)).astype(jnp.float32)      # (B, S, E)
    enc_bes = jnp.transpose(enc_outs, (1, 2, 0)).astype(jnp.float32)      # (B, E, S)
    mask_bias = jnp.where(attn_mask == 0, NEG_BIG, 0.0).astype(jnp.float32)  # (B, S)
    ids = jnp.transpose(target).reshape(t_len * b_sz, 1).astype(jnp.int32)   # step-major
    h0 = jnp.stack([s[0] for s in init_states]).astype(jnp.float32)       # (3, B, H)
    c0 = jnp.stack([s[1] for s in init_states]).astype(jnp.float32)       # (3, B, H)

    e_sz = enc_bse.shape[-1]
    v_out = params["w_out"].shape[-1]
    v_pad = max(128, ((v_out + 127) // 128) * 128)

    # Fused gate weights stay as-is (in, 4H=128); layers 2/3 get [Wih; Whh] stacked
    # along K so each cell is a single (B, 2H) x (2H, 4H) matmul in the kernel.
    w2 = jnp.concatenate([params["w_ih2"], params["w_hh2"]], axis=0)      # (2H, 4H)
    w3 = jnp.concatenate([params["w_ih3"], params["w_hh3"]], axis=0)      # (2H, 4H)

    wcat_ctx = params["w_cat"][:e_sz]            # (E, H)
    wcat_h = params["w_cat"][e_sz:]              # (H, H)
    wattn_t = jnp.transpose(params["w_attn"])    # (H, E)
    battn_t = jnp.transpose(params["b_attn"])    # (H, 1)

    # Vocab padded to a lane-dense 128; padded columns get a huge negative bias so the
    # log_softmax over the real columns is unaffected.
    wout_pad = jnp.pad(params["w_out"], ((0, 0), (0, v_pad - v_out)))
    bout_pad = jnp.concatenate(
        [params["b_out"], jnp.full((1, v_pad - v_out), PAD_BIAS, jnp.float32)], axis=1)

    inputs = [
        ids, params["embedding"], enc_bse, enc_bes, mask_bias, h0, c0,
        params["w_ih1"], params["b1"], params["w_hh1"],
        w2, params["b2"], w3, params["b3"],
        wattn_t, battn_t,
        wcat_ctx, wcat_h, params["b_cat"],
        wout_pad, bout_pad,
    ]

    out = pl.pallas_call(
        attn_decoder_kernel,
        out_shape=jax.ShapeDtypeStruct((t_len, b_sz, v_pad), jnp.float32),
        in_specs=[pl.BlockSpec(memory_space=pltpu.MemorySpace.VMEM) for _ in inputs],
        out_specs=pl.BlockSpec(memory_space=pltpu.MemorySpace.VMEM),
    )(*inputs)

    logits_tbv = out[:, :, :v_out]                       # drop vocab padding
    return jnp.transpose(logits_tbv, (1, 0, 2))          # (B, T, V) like PyTorch


# ---------------- pure-JAX reference (mirrors the PyTorch forward) ----------------
def _lstm_ref(x, h, c, w_ih, w_hh, b, prec):
    gates = jnp.dot(x, w_ih, precision=prec) + jnp.dot(h, w_hh, precision=prec) + b
    i, f, g, o = jnp.split(gates, 4, axis=1)
    c2 = jax.nn.sigmoid(f) * c + jax.nn.sigmoid(i) * jnp.tanh(g)
    h2 = jax.nn.sigmoid(o) * jnp.tanh(c2)
    return h2, c2


def reference_forward(params, target, init_states, enc_outs, attn_mask):
    prec = jax.lax.Precision.HIGHEST
    h = [s[0] for s in init_states]
    c = [s[1] for s in init_states]
    keys_proj = jnp.einsum("sbe,eh->sbh", enc_outs, params["w_attn"],
                           precision=prec) + params["b_attn"]
    logits = []
    for t in range(target.shape[1]):
        x = params["embedding"][target[:, t]]
        h1, c1 = _lstm_ref(x,  h[0], c[0], params["w_ih1"], params["w_hh1"], params["b1"], prec)
        h2, c2 = _lstm_ref(h1, h[1], c[1], params["w_ih2"], params["w_hh2"], params["b2"], prec)
        h3, c3 = _lstm_ref(h2, h[2], c[2], params["w_ih3"], params["w_hh3"], params["b3"], prec)
        h, c = [h1, h2, h3], [c1, c2, c3]
        w = jnp.sum(h3[None, :, :] * keys_proj, axis=2).T          # (B, S)
        w = jnp.where(attn_mask == 0, NEG_BIG, w)
        scores = jax.nn.softmax(w, axis=1)
        context = jnp.einsum("bs,sbe->be", scores, enc_outs, precision=prec)
        cat = jnp.concatenate([context, h3], axis=1)
        co = jnp.tanh(jnp.dot(cat, params["w_cat"], precision=prec) + params["b_cat"])
        lg = jnp.dot(co, params["w_out"], precision=prec) + params["b_out"]
        logits.append(jax.nn.log_softmax(lg, axis=-1))
    return jnp.stack(logits, axis=1)                               # (B, T, V)


# ---------------- deterministic parameter / input construction ----------------
def _linear_init(key, fan_in, fan_out):
    k1, k2 = jax.random.split(key)
    bound = 1.0 / np.sqrt(fan_in)
    w = jax.random.uniform(k1, (fan_in, fan_out), jnp.float32, -bound, bound)
    b = jax.random.uniform(k2, (1, fan_out), jnp.float32, -bound, bound)
    return w, b


def make_params(key):
    ks = jax.random.split(key, 10)
    params = {}
    params["embedding"] = 0.1 * jax.random.normal(ks[0], (VOCAB_IN, EMB), jnp.float32)
    params["w_ih1"], b_a = _linear_init(ks[1], EMB, 4 * H)
    params["w_hh1"], b_b = _linear_init(ks[2], H, 4 * H)
    params["b1"] = b_a + b_b                          # b_ih + b_hh folded together
    params["w_ih2"], b_a = _linear_init(ks[3], H, 4 * H)
    params["w_hh2"], b_b = _linear_init(ks[4], H, 4 * H)
    params["b2"] = b_a + b_b
    params["w_ih3"], b_a = _linear_init(ks[5], H, 4 * H)
    params["w_hh3"], b_b = _linear_init(ks[6], H, 4 * H)
    params["b3"] = b_a + b_b
    params["w_attn"], params["b_attn"] = _linear_init(ks[7], E, H)
    params["w_cat"],  params["b_cat"] = _linear_init(ks[8], E + H, H)
    params["w_out"],  params["b_out"] = _linear_init(ks[9], H, V)
    return params


if __name__ == "__main__":
    root = jax.random.PRNGKey(0)
    k_par, k_tgt, k_enc, k_h = jax.random.split(root, 4)

    params = make_params(k_par)

    target = jax.random.randint(k_tgt, (B, T), 0, VOCAB_IN, dtype=jnp.int32)
    enc_outs = 0.5 * jax.random.normal(k_enc, (S, B, E), jnp.float32)
    # attn_mask: batch 0 attends to all 8 positions, batch 1 to the first 5
    lengths = jnp.array([8, 5], dtype=jnp.int32)
    attn_mask = (jnp.arange(S)[None, :] < lengths[:, None]).astype(jnp.int32)  # (B, S)

    hk = jax.random.split(k_h, 6)
    init_states = [
        (0.1 * jax.random.normal(hk[2 * i], (B, H), jnp.float32),
         0.1 * jax.random.normal(hk[2 * i + 1], (B, H), jnp.float32))
        for i in range(3)
    ]

    logits = attn_decoder_forward(params, target, init_states, enc_outs, attn_mask)
    logits = jax.block_until_ready(logits)

    ref = reference_forward(params, target, init_states, enc_outs, attn_mask)
    ref = jax.block_until_ready(ref)

    assert logits.shape == (B, T, V), logits.shape
    np.testing.assert_allclose(np.asarray(logits), np.asarray(ref), rtol=1e-2, atol=1e-2)

    print("KERNEL_OK")
</pallas_src>

<mosaic_0001>
module attributes {stable_mosaic.version = 11 : i64} {
  func.func @attn_decoder_kernel(%arg0: memref<12x1xi32, #tpu.memory_space<vmem>>, %arg1: memref<50x16xf32, #tpu.memory_space<vmem>>, %arg2: memref<2x8x48xf32, #tpu.memory_space<vmem>>, %arg3: memref<2x48x8xf32, #tpu.memory_space<vmem>>, %arg4: memref<2x8xf32, #tpu.memory_space<vmem>>, %arg5: memref<3x2x32xf32, #tpu.memory_space<vmem>>, %arg6: memref<3x2x32xf32, #tpu.memory_space<vmem>>, %arg7: memref<16x128xf32, #tpu.memory_space<vmem>>, %arg8: memref<1x128xf32, #tpu.memory_space<vmem>>, %arg9: memref<32x128xf32, #tpu.memory_space<vmem>>, %arg10: memref<64x128xf32, #tpu.memory_space<vmem>>, %arg11: memref<1x128xf32, #tpu.memory_space<vmem>>, %arg12: memref<64x128xf32, #tpu.memory_space<vmem>>, %arg13: memref<1x128xf32, #tpu.memory_space<vmem>>, %arg14: memref<32x48xf32, #tpu.memory_space<vmem>>, %arg15: memref<32x1xf32, #tpu.memory_space<vmem>>, %arg16: memref<48x32xf32, #tpu.memory_space<vmem>>, %arg17: memref<32x32xf32, #tpu.memory_space<vmem>>, %arg18: memref<1x32xf32, #tpu.memory_space<vmem>>, %arg19: memref<32x128xf32, #tpu.memory_space<vmem>>, %arg20: memref<1x128xf32, #tpu.memory_space<vmem>>, %arg21: memref<6x2x128xf32, #tpu.memory_space<vmem>>) attributes {dimension_semantics = [], scalar_prefetch = 0 : i64, scratch_operands = 0 : i64, tpu.core_type = #tpu.core_type<tc>} {
    %c0 = arith.constant 0 : index
    %c0_0 = arith.constant 0 : index
    %0 = vector.load %arg1[%c0, %c0_0] : memref<50x16xf32, #tpu.memory_space<vmem>>, vector<50x16xf32>
    %c0_1 = arith.constant 0 : index
    %c0_2 = arith.constant 0 : index
    %1 = vector.load %arg7[%c0_1, %c0_2] : memref<16x128xf32, #tpu.memory_space<vmem>>, vector<16x128xf32>
    %cst = arith.constant dense<0.000000e+00> : vector<50x128xf32>
    %2 = tpu.matmul %0, %1, %cst {dimension_numbers = #tpu.dot_dimension_numbers<[1], [0], [0], [1], [0, 0, 1, 1], [], []>} : vector<50x16xf32>, vector<16x128xf32>, vector<50x128xf32> -> vector<50x128xf32>
    %c0_3 = arith.constant 0 : index
    %c0_4 = arith.constant 0 : index
    %3 = vector.load %arg8[%c0_3, %c0_4] : memref<1x128xf32, #tpu.memory_space<vmem>>, vector<1x128xf32>
    %4 = vector.broadcast %3 : vector<1x128xf32> to vector<50x128xf32>
    %5 = arith.addf %2, %4 : vector<50x128xf32>
    %c0_5 = arith.constant 0 : index
    %c0_6 = arith.constant 0 : index
    %6 = vector.load %arg0[%c0_5, %c0_6] : memref<12x1xi32, #tpu.memory_space<vmem>>, vector<12x1xi32>
    %7 = tpu.iota {dimensions = array<i32: 1>} : vector<12x50xi32>
    %8 = vector.broadcast %6 : vector<12x1xi32> to vector<12x50xi32>
    %9 = arith.cmpi eq, %8, %7 : vector<12x50xi32>
    %10 = arith.extui %9 : vector<12x50xi1> to vector<12x50xi32>
    %11 = arith.sitofp %10 : vector<12x50xi32> to vector<12x50xf32>
    %cst_7 = arith.constant dense<0.000000e+00> : vector<12x128xf32>
    %12 = tpu.matmul %11, %5, %cst_7 {dimension_numbers = #tpu.dot_dimension_numbers<[1], [0], [0], [1], [0, 0, 1, 1], [], []>} : vector<12x50xf32>, vector<50x128xf32>, vector<12x128xf32> -> vector<12x128xf32>
    %c0_8 = arith.constant 0 : index
    %c0_9 = arith.constant 0 : index
    %13 = vector.load %arg14[%c0_8, %c0_9] : memref<32x48xf32, #tpu.memory_space<vmem>>, vector<32x48xf32>
    %c0_10 = arith.constant 0 : index
    %c0_11 = arith.constant 0 : index
    %14 = vector.load %arg15[%c0_10, %c0_11] : memref<32x1xf32, #tpu.memory_space<vmem>>, vector<32x1xf32>
    %c0_12 = arith.constant 0 : index
    %c0_13 = arith.constant 0 : index
    %c0_14 = arith.constant 0 : index
    %15 = vector.load %arg3[%c0_12, %c0_13, %c0_14] : memref<2x48x8xf32, #tpu.memory_space<vmem>>, vector<1x48x8xf32>
    %16 = vector.shape_cast %15 : vector<1x48x8xf32> to vector<48x8xf32>
    %cst_15 = arith.constant dense<0.000000e+00> : vector<32x8xf32>
    %17 = tpu.matmul %13, %16, %cst_15 {dimension_numbers = #tpu.dot_dimension_numbers<[1], [0], [0], [1], [0, 0, 1, 1], [], []>} : vector<32x48xf32>, vector<48x8xf32>, vector<32x8xf32> -> vector<32x8xf32>
    %18 = vector.broadcast %14 : vector<32x1xf32> to vector<32x8xf32>
    %19 = arith.addf %17, %18 : vector<32x8xf32>
    %c1 = arith.constant 1 : index
    %c0_16 = arith.constant 0 : index
    %c0_17 = arith.constant 0 : index
    %20 = vector.load %arg3[%c1, %c0_16, %c0_17] : memref<2x48x8xf32, #tpu.memory_space<vmem>>, vector<1x48x8xf32>
    %21 = vector.shape_cast %20 : vector<1x48x8xf32> to vector<48x8xf32>
    %cst_18 = arith.constant dense<0.000000e+00> : vector<32x8xf32>
    %22 = tpu.matmul %13, %21, %cst_18 {dimension_numbers = #tpu.dot_dimension_numbers<[1], [0], [0], [1], [0, 0, 1, 1], [], []>} : vector<32x48xf32>, vector<48x8xf32>, vector<32x8xf32> -> vector<32x8xf32>
    %23 = vector.broadcast %14 : vector<32x1xf32> to vector<32x8xf32>
    %24 = arith.addf %22, %23 : vector<32x8xf32>
    %c0_19 = arith.constant 0 : index
    %c0_20 = arith.constant 0 : index
    %c0_21 = arith.constant 0 : index
    %25 = vector.load %arg2[%c0_19, %c0_20, %c0_21] : memref<2x8x48xf32, #tpu.memory_space<vmem>>, vector<2x8x48xf32>
    %c0_22 = arith.constant 0 : index
    %c0_23 = arith.constant 0 : index
    %26 = vector.load %arg4[%c0_22, %c0_23] : memref<2x8xf32, #tpu.memory_space<vmem>>, vector<2x8xf32>
    %c0_24 = arith.constant 0 : index
    %c0_25 = arith.constant 0 : index
    %27 = vector.load %arg9[%c0_24, %c0_25] : memref<32x128xf32, #tpu.memory_space<vmem>>, vector<32x128xf32>
    %c0_26 = arith.constant 0 : index
    %c0_27 = arith.constant 0 : index
    %28 = vector.load %arg10[%c0_26, %c0_27] : memref<64x128xf32, #tpu.memory_space<vmem>>, vector<64x128xf32>
    %c0_28 = arith.constant 0 : index
    %c0_29 = arith.constant 0 : index
    %29 = vector.load %arg11[%c0_28, %c0_29] : memref<1x128xf32, #tpu.memory_space<vmem>>, vector<1x128xf32>
    %c0_30 = arith.constant 0 : index
    %c0_31 = arith.constant 0 : index
    %30 = vector.load %arg12[%c0_30, %c0_31] : memref<64x128xf32, #tpu.memory_space<vmem>>, vector<64x128xf32>
    %c0_32 = arith.constant 0 : index
    %c0_33 = arith.constant 0 : index
    %31 = vector.load %arg13[%c0_32, %c0_33] : memref<1x128xf32, #tpu.memory_space<vmem>>, vector<1x128xf32>
    %c0_34 = arith.constant 0 : index
    %c0_35 = arith.constant 0 : index
    %32 = vector.load %arg16[%c0_34, %c0_35] : memref<48x32xf32, #tpu.memory_space<vmem>>, vector<48x32xf32>
    %c0_36 = arith.constant 0 : index
    %c0_37 = arith.constant 0 : index
    %33 = vector.load %arg17[%c0_36, %c0_37] : memref<32x32xf32, #tpu.memory_space<vmem>>, vector<32x32xf32>
    %c0_38 = arith.constant 0 : index
    %c0_39 = arith.constant 0 : index
    %34 = vector.load %arg18[%c0_38, %c0_39] : memref<1x32xf32, #tpu.memory_space<vmem>>, vector<1x32xf32>
    %c0_40 = arith.constant 0 : index
    %c0_41 = arith.constant 0 : index
    %35 = vector.load %arg19[%c0_40, %c0_41] : memref<32x128xf32, #tpu.memory_space<vmem>>, vector<32x128xf32>
    %c0_42 = arith.constant 0 : index
    %c0_43 = arith.constant 0 : index
    %36 = vector.load %arg20[%c0_42, %c0_43] : memref<1x128xf32, #tpu.memory_space<vmem>>, vector<1x128xf32>
    %c0_44 = arith.constant 0 : index
    %c0_45 = arith.constant 0 : index
    %c0_46 = arith.constant 0 : index
    %37 = vector.load %arg5[%c0_44, %c0_45, %c0_46] : memref<3x2x32xf32, #tpu.memory_space<vmem>>, vector<1x2x32xf32>
    %38 = vector.shape_cast %37 : vector<1x2x32xf32> to vector<2x32xf32>
    %c0_47 = arith.constant 0 : index
    %c0_48 = arith.constant 0 : index
    %c0_49 = arith.constant 0 : index
    %39 = vector.load %arg6[%c0_47, %c0_48, %c0_49] : memref<3x2x32xf32, #tpu.memory_space<vmem>>, vector<1x2x32xf32>
    %40 = vector.shape_cast %39 : vector<1x2x32xf32> to vector<2x32xf32>
    %c1_50 = arith.constant 1 : index
    %c0_51 = arith.constant 0 : index
    %c0_52 = arith.constant 0 : index
    %41 = vector.load %arg5[%c1_50, %c0_51, %c0_52] : memref<3x2x32xf32, #tpu.memory_space<vmem>>, vector<1x2x32xf32>
    %42 = vector.shape_cast %41 : vector<1x2x32xf32> to vector<2x32xf32>
    %c1_53 = arith.constant 1 : index
    %c0_54 = arith.constant 0 : index
    %c0_55 = arith.constant 0 : index
    %43 = vector.load %arg6[%c1_53, %c0_54, %c0_55] : memref<3x2x32xf32, #tpu.memory_space<vmem>>, vector<1x2x32xf32>
    %44 = vector.shape_cast %43 : vector<1x2x32xf32> to vector<2x32xf32>
    %c2 = arith.constant 2 : index
    %c0_56 = arith.constant 0 : index
    %c0_57 = arith.constant 0 : index
    %45 = vector.load %arg5[%c2, %c0_56, %c0_57] : memref<3x2x32xf32, #tpu.memory_space<vmem>>, vector<1x2x32xf32>
    %46 = vector.shape_cast %45 : vector<1x2x32xf32> to vector<2x32xf32>
    %c2_58 = arith.constant 2 : index
    %c0_59 = arith.constant 0 : index
    %c0_60 = arith.constant 0 : index
    %47 = vector.load %arg6[%c2_58, %c0_59, %c0_60] : memref<3x2x32xf32, #tpu.memory_space<vmem>>, vector<1x2x32xf32>
    %48 = vector.shape_cast %47 : vector<1x2x32xf32> to vector<2x32xf32>
    %49 = vector.extract_strided_slice %12 {offsets = [0, 0], sizes = [2, 128], strides = [1, 1]} : vector<12x128xf32> to vector<2x128xf32>
    %cst_61 = arith.constant dense<0.000000e+00> : vector<2x128xf32>
    %50 = tpu.matmul %38, %27, %cst_61 {dimension_numbers = #tpu.dot_dimension_numbers<[1], [0], [0], [1], [0, 0, 1, 1], [], []>} : vector<2x32xf32>, vector<32x128xf32>, vector<2x128xf32> -> vector<2x128xf32>
    %51 = arith.addf %49, %50 : vector<2x128xf32>
    %52 = arith.negf %51 : vector<2x128xf32>
    %53 = math.exp %52 : vector<2x128xf32>
    %cst_62 = arith.constant 1.000000e+00 : f32
    %54 = vector.broadcast %cst_62 : f32 to vector<2x128xf32>
    %55 = arith.addf %54, %53 : vector<2x128xf32>
    %56 = arith.divf %54, %55 : vector<2x128xf32>
    %57 = vector.extract_strided_slice %56 {offsets = [0, 0], sizes = [2, 32], strides = [1, 1]} : vector<2x128xf32> to vector<2x32xf32>
    %58 = vector.extract_strided_slice %56 {offsets = [0, 32], sizes = [2, 32], strides = [1, 1]} : vector<2x128xf32> to vector<2x32xf32>
    %59 = vector.extract_strided_slice %56 {offsets = [0, 96], sizes = [2, 32], strides = [1, 1]} : vector<2x128xf32> to vector<2x32xf32>
    %60 = vector.extract_strided_slice %51 {offsets = [0, 64], sizes = [2, 32], strides = [1, 1]} : vector<2x128xf32> to vector<2x32xf32>
    %61 = math.tanh %60 : vector<2x32xf32>
    %62 = arith.mulf %58, %40 : vector<2x32xf32>
    %63 = arith.mulf %57, %61 : vector<2x32xf32>
    %64 = arith.addf %62, %63 : vector<2x32xf32>
    %65 = math.tanh %64 : vector<2x32xf32>
    %66 = arith.mulf %59, %65 : vector<2x32xf32>
    %67 = tpu.concatenate %66, %42 in 1 : vector<2x32xf32>, vector<2x32xf32> -> vector<2x64xf32>
    %cst_63 = arith.constant dense<0.000000e+00> : vector<2x128xf32>
    %68 = tpu.matmul %67, %28, %cst_63 {dimension_numbers = #tpu.dot_dimension_numbers<[1], [0], [0], [1], [0, 0, 1, 1], [], []>} : vector<2x64xf32>, vector<64x128xf32>, vector<2x128xf32> -> vector<2x128xf32>
    %69 = vector.broadcast %29 : vector<1x128xf32> to vector<2x128xf32>
    %70 = arith.addf %68, %69 : vector<2x128xf32>
    %71 = arith.negf %70 : vector<2x128xf32>
    %72 = math.exp %71 : vector<2x128xf32>
    %cst_64 = arith.constant 1.000000e+00 : f32
    %73 = vector.broadcast %cst_64 : f32 to vector<2x128xf32>
    %74 = arith.addf %73, %72 : vector<2x128xf32>
    %75 = arith.divf %73, %74 : vector<2x128xf32>
    %76 = vector.extract_strided_slice %75 {offsets = [0, 0], sizes = [2, 32], strides = [1, 1]} : vector<2x128xf32> to vector<2x32xf32>
    %77 = vector.extract_strided_slice %75 {offsets = [0, 32], sizes = [2, 32], strides = [1, 1]} : vector<2x128xf32> to vector<2x32xf32>
    %78 = vector.extract_strided_slice %75 {offsets = [0, 96], sizes = [2, 32], strides = [1, 1]} : vector<2x128xf32> to vector<2x32xf32>
    %79 = vector.extract_strided_slice %70 {offsets = [0, 64], sizes = [2, 32], strides = [1, 1]} : vector<2x128xf32> to vector<2x32xf32>
    %80 = math.tanh %79 : vector<2x32xf32>
    %81 = arith.mulf %77, %44 : vector<2x32xf32>
    %82 = arith.mulf %76, %80 : vector<2x32xf32>
    %83 = arith.addf %81, %82 : vector<2x32xf32>
    %84 = math.tanh %83 : vector<2x32xf32>
    %85 = arith.mulf %78, %84 : vector<2x32xf32>
    %86 = tpu.concatenate %85, %46 in 1 : vector<2x32xf32>, vector<2x32xf32> -> vector<2x64xf32>
    %cst_65 = arith.constant dense<0.000000e+00> : vector<2x128xf32>
    %87 = tpu.matmul %86, %30, %cst_65 {dimension_numbers = #tpu.dot_dimension_numbers<[1], [0], [0], [1], [0, 0, 1, 1], [], []>} : vector<2x64xf32>, vector<64x128xf32>, vector<2x128xf32> -> vector<2x128xf32>
    %88 = vector.broadcast %31 : vector<1x128xf32> to vector<2x128xf32>
    %89 = arith.addf %87, %88 : vector<2x128xf32>
    %90 = arith.negf %89 : vector<2x128xf32>
    %91 = math.exp %90 : vector<2x128xf32>
    %cst_66 = arith.constant 1.000000e+00 : f32
    %92 = vector.broadcast %cst_66 : f32 to vector<2x128xf32>
    %93 = arith.addf %92, %91 : vector<2x128xf32>
    %94 = arith.divf %92, %93 : vector<2x128xf32>
    %95 = vector.extract_strided_slice %94 {offsets = [0, 0], sizes = [2, 32], strides = [1, 1]} : vector<2x128xf32> to vector<2x32xf32>
    %96 = vector.extract_strided_slice %94 {offsets = [0, 32], sizes = [2, 32], strides = [1, 1]} : vector<2x128xf32> to vector<2x32xf32>
    %97 = vector.extract_strided_slice %94 {offsets = [0, 96], sizes = [2, 32], strides = [1, 1]} : vector<2x128xf32> to vector<2x32xf32>
    %98 = vector.extract_strided_slice %89 {offsets = [0, 64], sizes = [2, 32], strides = [1, 1]} : vector<2x128xf32> to vector<2x32xf32>
    %99 = math.tanh %98 : vector<2x32xf32>
    %100 = arith.mulf %96, %48 : vector<2x32xf32>
    %101 = arith.mulf %95, %99 : vector<2x32xf32>
    %102 = arith.addf %100, %101 : vector<2x32xf32>
    %103 = math.tanh %102 : vector<2x32xf32>
    %104 = arith.mulf %97, %103 : vector<2x32xf32>
    %105 = vector.extract_strided_slice %104 {offsets = [0, 0], sizes = [1, 32], strides = [1, 1]} : vector<2x32xf32> to vector<1x32xf32>
    %cst_67 = arith.constant dense<0.000000e+00> : vector<1x8xf32>
    %106 = tpu.matmul %105, %19, %cst_67 {dimension_numbers = #tpu.dot_dimension_numbers<[1], [0], [0], [1], [0, 0, 1, 1], [], []>} : vector<1x32xf32>, vector<32x8xf32>, vector<1x8xf32> -> vector<1x8xf32>
    %107 = vector.extract_strided_slice %26 {offsets = [0, 0], sizes = [1, 8], strides = [1, 1]} : vector<2x8xf32> to vector<1x8xf32>
    %108 = arith.addf %106, %107 : vector<1x8xf32>
    %cst_68 = arith.constant dense<0xFF800000> : vector<1xf32>
    %109 = vector.multi_reduction <maximumf>, %108, %cst_68 [1] : vector<1x8xf32> to vector<1xf32>
    %110 = vector.shape_cast %109 : vector<1xf32> to vector<1x1xf32>
    %111 = vector.broadcast %110 : vector<1x1xf32> to vector<1x8xf32>
    %112 = arith.subf %108, %111 : vector<1x8xf32>
    %113 = math.exp %112 : vector<1x8xf32>
    %cst_69 = arith.constant dense<0.000000e+00> : vector<1xf32>
    %114 = vector.multi_reduction <add>, %113, %cst_69 [1] : vector<1x8xf32> to vector<1xf32>
    %115 = vector.shape_cast %114 : vector<1xf32> to vector<1x1xf32>
    %116 = tpu.reciprocal %115 {approx = true} : vector<1x1xf32> -> vector<1x1xf32>
    %117 = vector.broadcast %116 : vector<1x1xf32> to vector<1x8xf32>
    %118 = arith.mulf %113, %117 : vector<1x8xf32>
    %119 = vector.extract_strided_slice %25 {offsets = [0, 0, 0], sizes = [1, 8, 48], strides = [1, 1, 1]} : vector<2x8x48xf32> to vector<1x8x48xf32>
    %120 = vector.shape_cast %119 : vector<1x8x48xf32> to vector<8x48xf32>
    %cst_70 = arith.constant dense<0.000000e+00> : vector<1x48xf32>
    %121 = tpu.matmul %118, %120, %cst_70 {dimension_numbers = #tpu.dot_dimension_numbers<[1], [0], [0], [1], [0, 0, 1, 1], [], []>} : vector<1x8xf32>, vector<8x48xf32>, vector<1x48xf32> -> vector<1x48xf32>
    %122 = vector.extract_strided_slice %104 {offsets = [1, 0], sizes = [1, 32], strides = [1, 1]} : vector<2x32xf32> to vector<1x32xf32>
    %cst_71 = arith.constant dense<0.000000e+00> : vector<1x8xf32>
    %123 = tpu.matmul %122, %24, %cst_71 {dimension_numbers = #tpu.dot_dimension_numbers<[1], [0], [0], [1], [0, 0, 1, 1], [], []>} : vector<1x32xf32>, vector<32x8xf32>, vector<1x8xf32> -> vector<1x8xf32>
    %124 = vector.extract_strided_slice %26 {offsets = [1, 0], sizes = [1, 8], strides = [1, 1]} : vector<2x8xf32> to vector<1x8xf32>
    %125 = arith.addf %123, %124 : vector<1x8xf32>
    %cst_72 = arith.constant dense<0xFF800000> : vector<1xf32>
    %126 = vector.multi_reduction <maximumf>, %125, %cst_72 [1] : vector<1x8xf32> to vector<1xf32>
    %127 = vector.shape_cast %126 : vector<1xf32> to vector<1x1xf32>
    %128 = vector.broadcast %127 : vector<1x1xf32> to vector<1x8xf32>
    %129 = arith.subf %125, %128 : vector<1x8xf32>
    %130 = math.exp %129 : vector<1x8xf32>
    %cst_73 = arith.constant dense<0.000000e+00> : vector<1xf32>
    %131 = vector.multi_reduction <add>, %130, %cst_73 [1] : vector<1x8xf32> to vector<1xf32>
    %132 = vector.shape_cast %131 : vector<1xf32> to vector<1x1xf32>
    %133 = tpu.reciprocal %132 {approx = true} : vector<1x1xf32> -> vector<1x1xf32>
    %134 = vector.broadcast %133 : vector<1x1xf32> to vector<1x8xf32>
    %135 = arith.mulf %130, %134 : vector<1x8xf32>
    %136 = vector.extract_strided_slice %25 {offsets = [1, 0, 0], sizes = [1, 8, 48], strides = [1, 1, 1]} : vector<2x8x48xf32> to vector<1x8x48xf32>
    %137 = vector.shape_cast %136 : vector<1x8x48xf32> to vector<8x48xf32>
    %cst_74 = arith.constant dense<0.000000e+00> : vector<1x48xf32>
    %138 = tpu.matmul %135, %137, %cst_74 {dimension_numbers = #tpu.dot_dimension_numbers<[1], [0], [0], [1], [0, 0, 1, 1], [], []>} : vector<1x8xf32>, vector<8x48xf32>, vector<1x48xf32> -> vector<1x48xf32>
    %139 = tpu.concatenate %121, %138 in 0 : vector<1x48xf32>, vector<1x48xf32> -> vector<2x48xf32>
    %cst_75 = arith.constant dense<0.000000e+00> : vector<2x32xf32>
    %140 = tpu.matmul %139, %32, %cst_75 {dimension_numbers = #tpu.dot_dimension_numbers<[1], [0], [0], [1], [0, 0, 1, 1], [], []>} : vector<2x48xf32>, vector<48x32xf32>, vector<2x32xf32> -> vector<2x32xf32>
    %cst_76 = arith.constant dense<0.000000e+00> : vector<2x32xf32>
    %141 = tpu.matmul %104, %33, %cst_76 {dimension_numbers = #tpu.dot_dimension_numbers<[1], [0], [0], [1], [0, 0, 1, 1], [], []>} : vector<2x32xf32>, vector<32x32xf32>, vector<2x32xf32> -> vector<2x32xf32>
    %142 = arith.addf %140, %141 : vector<2x32xf32>
    %143 = vector.broadcast %34 : vector<1x32xf32> to vector<2x32xf32>
    %144 = arith.addf %142, %143 : vector<2x32xf32>
    %145 = math.tanh %144 : vector<2x32xf32>
    %cst_77 = arith.constant dense<0.000000e+00> : vector<2x128xf32>
    %146 = tpu.matmul %145, %35, %cst_77 {dimension_numbers = #tpu.dot_dimension_numbers<[1], [0], [0], [1], [0, 0, 1, 1], [], []>} : vector<2x32xf32>, vector<32x128xf32>, vector<2x128xf32> -> vector<2x128xf32>
    %147 = vector.broadcast %36 : vector<1x128xf32> to vector<2x128xf32>
    %148 = arith.addf %146, %147 : vector<2x128xf32>
    %cst_78 = arith.constant dense<0xFF800000> : vector<2xf32>
    %149 = vector.multi_reduction <maximumf>, %148, %cst_78 [1] : vector<2x128xf32> to vector<2xf32>
    %150 = vector.shape_cast %149 : vector<2xf32> to vector<2x1xf32>
    %151 = vector.broadcast %150 : vector<2x1xf32> to vector<2x128xf32>
    %152 = arith.subf %148, %151 : vector<2x128xf32>
    %153 = math.exp %152 : vector<2x128xf32>
    %cst_79 = arith.constant dense<0.000000e+00> : vector<2xf32>
    %154 = vector.multi_reduction <add>, %153, %cst_79 [1] : vector<2x128xf32> to vector<2xf32>
    %155 = vector.shape_cast %154 : vector<2xf32> to vector<2x1xf32>
    %156 = math.log %155 : vector<2x1xf32>
    %157 = vector.broadcast %156 : vector<2x1xf32> to vector<2x128xf32>
    %158 = arith.subf %152, %157 : vector<2x128xf32>
    %c0_80 = arith.constant 0 : index
    %c0_81 = arith.constant 0 : index
    %c0_82 = arith.constant 0 : index
    %159 = vector.load %arg21[%c0_80, %c0_81, %c0_82] : memref<6x2x128xf32, #tpu.memory_space<vmem>>, vector<1x2x128xf32>
    %160 = vector.shape_cast %159 : vector<1x2x128xf32> to vector<2x128xf32>
    %161 = vector.shape_cast %158 : vector<2x128xf32> to vector<1x2x128xf32>
    tpu.vector_store %arg21[%c0_80, %c0_81, %c0_82], %161 {strides = array<i32>} : memref<6x2x128xf32, #tpu.memory_space<vmem>>, vector<1x2x128xf32>,
    %162 = vector.extract_strided_slice %12 {offsets = [2, 0], sizes = [2, 128], strides = [1, 1]} : vector<12x128xf32> to vector<2x128xf32>
    %cst_83 = arith.constant dense<0.000000e+00> : vector<2x128xf32>
    %163 = tpu.matmul %66, %27, %cst_83 {dimension_numbers = #tpu.dot_dimension_numbers<[1], [0], [0], [1], [0, 0, 1, 1], [], []>} : vector<2x32xf32>, vector<32x128xf32>, vector<2x128xf32> -> vector<2x128xf32>
    %164 = arith.addf %162, %163 : vector<2x128xf32>
    %165 = arith.negf %164 : vector<2x128xf32>
    %166 = math.exp %165 : vector<2x128xf32>
    %cst_84 = arith.constant 1.000000e+00 : f32
    %167 = vector.broadcast %cst_84 : f32 to vector<2x128xf32>
    %168 = arith.addf %167, %166 : vector<2x128xf32>
    %169 = arith.divf %167, %168 : vector<2x128xf32>
    %170 = vector.extract_strided_slice %169 {offsets = [0, 0], sizes = [2, 32], strides = [1, 1]} : vector<2x128xf32> to vector<2x32xf32>
    %171 = vector.extract_strided_slice %169 {offsets = [0, 32], sizes = [2, 32], strides = [1, 1]} : vector<2x128xf32> to vector<2x32xf32>
    %172 = vector.extract_strided_slice %169 {offsets = [0, 96], sizes = [2, 32], strides = [1, 1]} : vector<2x128xf32> to vector<2x32xf32>
    %173 = vector.extract_strided_slice %164 {offsets = [0, 64], sizes = [2, 32], strides = [1, 1]} : vector<2x128xf32> to vector<2x32xf32>
    %174 = math.tanh %173 : vector<2x32xf32>
    %175 = arith.mulf %171, %64 : vector<2x32xf32>
    %176 = arith.mulf %170, %174 : vector<2x32xf32>
    %177 = arith.addf %175, %176 : vector<2x32xf32>
    %178 = math.tanh %177 : vector<2x32xf32>
    %179 = arith.mulf %172, %178 : vector<2x32xf32>
    %180 = tpu.concatenate %179, %85 in 1 : vector<2x32xf32>, vector<2x32xf32> -> vector<2x64xf32>
    %cst_85 = arith.constant dense<0.000000e+00> : vector<2x128xf32>
    %181 = tpu.matmul %180, %28, %cst_85 {dimension_numbers = #tpu.dot_dimension_numbers<[1], [0], [0], [1], [0, 0, 1, 1], [], []>} : vector<2x64xf32>, vector<64x128xf32>, vector<2x128xf32> -> vector<2x128xf32>
    %182 = vector.broadcast %29 : vector<1x128xf32> to vector<2x128xf32>
    %183 = arith.addf %181, %182 : vector<2x128xf32>
    %184 = arith.negf %183 : vector<2x128xf32>
    %185 = math.exp %184 : vector<2x128xf32>
    %cst_86 = arith.constant 1.000000e+00 : f32
    %186 = vector.broadcast %cst_86 : f32 to vector<2x128xf32>
    %187 = arith.addf %186, %185 : vector<2x128xf32>
    %188 = arith.divf %186, %187 : vector<2x128xf32>
    %189 = vector.extract_strided_slice %188 {offsets = [0, 0], sizes = [2, 32], strides = [1, 1]} : vector<2x128xf32> to vector<2x32xf32>
    %190 = vector.extract_strided_slice %188 {offsets = [0, 32], sizes = [2, 32], strides = [1, 1]} : vector<2x128xf32> to vector<2x32xf32>
    %191 = vector.extract_strided_slice %188 {offsets = [0, 96], sizes = [2, 32], strides = [1, 1]} : vector<2x128xf32> to vector<2x32xf32>
    %192 = vector.extract_strided_slice %183 {offsets = [0, 64], sizes = [2, 32], strides = [1, 1]} : vector<2x128xf32> to vector<2x32xf32>
    %193 = math.tanh %192 : vector<2x32xf32>
    %194 = arith.mulf %190, %83 : vector<2x32xf32>
    %195 = arith.mulf %189, %193 : vector<2x32xf32>
    %196 = arith.addf %194, %195 : vector<2x32xf32>
    %197 = math.tanh %196 : vector<2x32xf32>
    %198 = arith.mulf %191, %197 : vector<2x32xf32>
    %199 = tpu.concatenate %198, %104 in 1 : vector<2x32xf32>, vector<2x32xf32> -> vector<2x64xf32>
    %cst_87 = arith.constant dense<0.000000e+00> : vector<2x128xf32>
    %200 = tpu.matmul %199, %30, %cst_87 {dimension_numbers = #tpu.dot_dimension_numbers<[1], [0], [0], [1], [0, 0, 1, 1], [], []>} : vector<2x64xf32>, vector<64x128xf32>, vector<2x128xf32> -> vector<2x128xf32>
    %201 = vector.broadcast %31 : vector<1x128xf32> to vector<2x128xf32>
    %202 = arith.addf %200, %201 : vector<2x128xf32>
    %203 = arith.negf %202 : vector<2x128xf32>
    %204 = math.exp %203 : vector<2x128xf32>
    %cst_88 = arith.constant 1.000000e+00 : f32
    %205 = vector.broadcast %cst_88 : f32 to vector<2x128xf32>
    %206 = arith.addf %205, %204 : vector<2x128xf32>
    %207 = arith.divf %205, %206 : vector<2x128xf32>
    %208 = vector.extract_strided_slice %207 {offsets = [0, 0], sizes = [2, 32], strides = [1, 1]} : vector<2x128xf32> to vector<2x32xf32>
    %209 = vector.extract_strided_slice %207 {offsets = [0, 32], sizes = [2, 32], strides = [1, 1]} : vector<2x128xf32> to vector<2x32xf32>
    %210 = vector.extract_strided_slice %207 {offsets = [0, 96], sizes = [2, 32], strides = [1, 1]} : vector<2x128xf32> to vector<2x32xf32>
    %211 = vector.extract_strided_slice %202 {offsets = [0, 64], sizes = [2, 32], strides = [1, 1]} : vector<2x128xf32> to vector<2x32xf32>
    %212 = math.tanh %211 : vector<2x32xf32>
    %213 = arith.mulf %209, %102 : vector<2x32xf32>
    %214 = arith.mulf %208, %212 : vector<2x32xf32>
    %215 = arith.addf %213, %214 : vector<2x32xf32>
    %216 = math.tanh %215 : vector<2x32xf32>
    %217 = arith.mulf %210, %216 : vector<2x32xf32>
    %218 = vector.extract_strided_slice %217 {offsets = [0, 0], sizes = [1, 32], strides = [1, 1]} : vector<2x32xf32> to vector<1x32xf32>
    %cst_89 = arith.constant dense<0.000000e+00> : vector<1x8xf32>
    %219 = tpu.matmul %218, %19, %cst_89 {dimension_numbers = #tpu.dot_dimension_numbers<[1], [0], [0], [1], [0, 0, 1, 1], [], []>} : vector<1x32xf32>, vector<32x8xf32>, vector<1x8xf32> -> vector<1x8xf32>
    %220 = vector.extract_strided_slice %26 {offsets = [0, 0], sizes = [1, 8], strides = [1, 1]} : vector<2x8xf32> to vector<1x8xf32>
    %221 = arith.addf %219, %220 : vector<1x8xf32>
    %cst_90 = arith.constant dense<0xFF800000> : vector<1xf32>
    %222 = vector.multi_reduction <maximumf>, %221, %cst_90 [1] : vector<1x8xf32> to vector<1xf32>
    %223 = vector.shape_cast %222 : vector<1xf32> to vector<1x1xf32>
    %224 = vector.broadcast %223 : vector<1x1xf32> to vector<1x8xf32>
    %225 = arith.subf %221, %224 : vector<1x8xf32>
    %226 = math.exp %225 : vector<1x8xf32>
    %cst_91 = arith.constant dense<0.000000e+00> : vector<1xf32>
    %227 = vector.multi_reduction <add>, %226, %cst_91 [1] : vector<1x8xf32> to vector<1xf32>
    %228 = vector.shape_cast %227 : vector<1xf32> to vector<1x1xf32>
    %229 = tpu.reciprocal %228 {approx = true} : vector<1x1xf32> -> vector<1x1xf32>
    %230 = vector.broadcast %229 : vector<1x1xf32> to vector<1x8xf32>
    %231 = arith.mulf %226, %230 : vector<1x8xf32>
    %232 = vector.extract_strided_slice %25 {offsets = [0, 0, 0], sizes = [1, 8, 48], strides = [1, 1, 1]} : vector<2x8x48xf32> to vector<1x8x48xf32>
    %233 = vector.shape_cast %232 : vector<1x8x48xf32> to vector<8x48xf32>
    %cst_92 = arith.constant dense<0.000000e+00> : vector<1x48xf32>
    %234 = tpu.matmul %231, %233, %cst_92 {dimension_numbers = #tpu.dot_dimension_numbers<[1], [0], [0], [1], [0, 0, 1, 1], [], []>} : vector<1x8xf32>, vector<8x48xf32>, vector<1x48xf32> -> vector<1x48xf32>
    %235 = vector.extract_strided_slice %217 {offsets = [1, 0], sizes = [1, 32], strides = [1, 1]} : vector<2x32xf32> to vector<1x32xf32>
    %cst_93 = arith.constant dense<0.000000e+00> : vector<1x8xf32>
    %236 = tpu.matmul %235, %24, %cst_93 {dimension_numbers = #tpu.dot_dimension_numbers<[1], [0], [0], [1], [0, 0, 1, 1], [], []>} : vector<1x32xf32>, vector<32x8xf32>, vector<1x8xf32> -> vector<1x8xf32>
    %237 = vector.extract_strided_slice %26 {offsets = [1, 0], sizes = [1, 8], strides = [1, 1]} : vector<2x8xf32> to vector<1x8xf32>
    %238 = arith.addf %236, %237 : vector<1x8xf32>
    %cst_94 = arith.constant dense<0xFF800000> : vector<1xf32>
    %239 = vector.multi_reduction <maximumf>, %238, %cst_94 [1] : vector<1x8xf32> to vector<1xf32>
    %240 = vector.shape_cast %239 : vector<1xf32> to vector<1x1xf32>
    %241 = vector.broadcast %240 : vector<1x1xf32> to vector<1x8xf32>
    %242 = arith.subf %238, %241 : vector<1x8xf32>
    %243 = math.exp %242 : vector<1x8xf32>
    %cst_95 = arith.constant dense<0.000000e+00> : vector<1xf32>
    %244 = vector.multi_reduction <add>, %243, %cst_95 [1] : vector<1x8xf32> to vector<1xf32>
    %245 = vector.shape_cast %244 : vector<1xf32> to vector<1x1xf32>
    %246 = tpu.reciprocal %245 {approx = true} : vector<1x1xf32> -> vector<1x1xf32>
    %247 = vector.broadcast %246 : vector<1x1xf32> to vector<1x8xf32>
    %248 = arith.mulf %243, %247 : vector<1x8xf32>
    %249 = vector.extract_strided_slice %25 {offsets = [1, 0, 0], sizes = [1, 8, 48], strides = [1, 1, 1]} : vector<2x8x48xf32> to vector<1x8x48xf32>
    %250 = vector.shape_cast %249 : vector<1x8x48xf32> to vector<8x48xf32>
    %cst_96 = arith.constant dense<0.000000e+00> : vector<1x48xf32>
    %251 = tpu.matmul %248, %250, %cst_96 {dimension_numbers = #tpu.dot_dimension_numbers<[1], [0], [0], [1], [0, 0, 1, 1], [], []>} : vector<1x8xf32>, vector<8x48xf32>, vector<1x48xf32> -> vector<1x48xf32>
    %252 = tpu.concatenate %234, %251 in 0 : vector<1x48xf32>, vector<1x48xf32> -> vector<2x48xf32>
    %cst_97 = arith.constant dense<0.000000e+00> : vector<2x32xf32>
    %253 = tpu.matmul %252, %32, %cst_97 {dimension_numbers = #tpu.dot_dimension_numbers<[1], [0], [0], [1], [0, 0, 1, 1], [], []>} : vector<2x48xf32>, vector<48x32xf32>, vector<2x32xf32> -> vector<2x32xf32>
    %cst_98 = arith.constant dense<0.000000e+00> : vector<2x32xf32>
    %254 = tpu.matmul %217, %33, %cst_98 {dimension_numbers = #tpu.dot_dimension_numbers<[1], [0], [0], [1], [0, 0, 1, 1], [], []>} : vector<2x32xf32>, vector<32x32xf32>, vector<2x32xf32> -> vector<2x32xf32>
    %255 = arith.addf %253, %254 : vector<2x32xf32>
    %256 = vector.broadcast %34 : vector<1x32xf32> to vector<2x32xf32>
    %257 = arith.addf %255, %256 : vector<2x32xf32>
    %258 = math.tanh %257 : vector<2x32xf32>
    %cst_99 = arith.constant dense<0.000000e+00> : vector<2x128xf32>
    %259 = tpu.matmul %258, %35, %cst_99 {dimension_numbers = #tpu.dot_dimension_numbers<[1], [0], [0], [1], [0, 0, 1, 1], [], []>} : vector<2x32xf32>, vector<32x128xf32>, vector<2x128xf32> -> vector<2x128xf32>
    %260 = vector.broadcast %36 : vector<1x128xf32> to vector<2x128xf32>
    %261 = arith.addf %259, %260 : vector<2x128xf32>
    %cst_100 = arith.constant dense<0xFF800000> : vector<2xf32>
    %262 = vector.multi_reduction <maximumf>, %261, %cst_100 [1] : vector<2x128xf32> to vector<2xf32>
    %263 = vector.shape_cast %262 : vector<2xf32> to vector<2x1xf32>
    %264 = vector.broadcast %263 : vector<2x1xf32> to vector<2x128xf32>
    %265 = arith.subf %261, %264 : vector<2x128xf32>
    %266 = math.exp %265 : vector<2x128xf32>
    %cst_101 = arith.constant dense<0.000000e+00> : vector<2xf32>
    %267 = vector.multi_reduction <add>, %266, %cst_101 [1] : vector<2x128xf32> to vector<2xf32>
    %268 = vector.shape_cast %267 : vector<2xf32> to vector<2x1xf32>
    %269 = math.log %268 : vector<2x1xf32>
    %270 = vector.broadcast %269 : vector<2x1xf32> to vector<2x128xf32>
    %271 = arith.subf %265, %270 : vector<2x128xf32>
    %c1_102 = arith.constant 1 : index
    %c0_103 = arith.constant 0 : index
    %c0_104 = arith.constant 0 : index
    %272 = vector.load %arg21[%c1_102, %c0_103, %c0_104] : memref<6x2x128xf32, #tpu.memory_space<vmem>>, vector<1x2x128xf32>
    %273 = vector.shape_cast %272 : vector<1x2x128xf32> to vector<2x128xf32>
    %274 = vector.shape_cast %271 : vector<2x128xf32> to vector<1x2x128xf32>
    tpu.vector_store %arg21[%c1_102, %c0_103, %c0_104], %274 {strides = array<i32>} : memref<6x2x128xf32, #tpu.memory_space<vmem>>, vector<1x2x128xf32>,
    %275 = vector.extract_strided_slice %12 {offsets = [4, 0], sizes = [2, 128], strides = [1, 1]} : vector<12x128xf32> to vector<2x128xf32>
    %cst_105 = arith.constant dense<0.000000e+00> : vector<2x128xf32>
    %276 = tpu.matmul %179, %27, %cst_105 {dimension_numbers = #tpu.dot_dimension_numbers<[1], [0], [0], [1], [0, 0, 1, 1], [], []>} : vector<2x32xf32>, vector<32x128xf32>, vector<2x128xf32> -> vector<2x128xf32>
    %277 = arith.addf %275, %276 : vector<2x128xf32>
    %278 = arith.negf %277 : vector<2x128xf32>
    %279 = math.exp %278 : vector<2x128xf32>
    %cst_106 = arith.constant 1.000000e+00 : f32
    %280 = vector.broadcast %cst_106 : f32 to vector<2x128xf32>
    %281 = arith.addf %280, %279 : vector<2x128xf32>
    %282 = arith.divf %280, %281 : vector<2x128xf32>
    %283 = vector.extract_strided_slice %282 {offsets = [0, 0], sizes = [2, 32], strides = [1, 1]} : vector<2x128xf32> to vector<2x32xf32>
    %284 = vector.extract_strided_slice %282 {offsets = [0, 32], sizes = [2, 32], strides = [1, 1]} : vector<2x128xf32> to vector<2x32xf32>
    %285 = vector.extract_strided_slice %282 {offsets = [0, 96], sizes = [2, 32], strides = [1, 1]} : vector<2x128xf32> to vector<2x32xf32>
    %286 = vector.extract_strided_slice %277 {offsets = [0, 64], sizes = [2, 32], strides = [1, 1]} : vector<2x128xf32> to vector<2x32xf32>
    %287 = math.tanh %286 : vector<2x32xf32>
    %288 = arith.mulf %284, %177 : vector<2x32xf32>
    %289 = arith.mulf %283, %287 : vector<2x32xf32>
    %290 = arith.addf %288, %289 : vector<2x32xf32>
    %291 = math.tanh %290 : vector<2x32xf32>
    %292 = arith.mulf %285, %291 : vector<2x32xf32>
    %293 = tpu.concatenate %292, %198 in 1 : vector<2x32xf32>, vector<2x32xf32> -> vector<2x64xf32>
    %cst_107 = arith.constant dense<0.000000e+00> : vector<2x128xf32>
    %294 = tpu.matmul %293, %28, %cst_107 {dimension_numbers = #tpu.dot_dimension_numbers<[1], [0], [0], [1], [0, 0, 1, 1], [], []>} : vector<2x64xf32>, vector<64x128xf32>, vector<2x128xf32> -> vector<2x128xf32>
    %295 = vector.broadcast %29 : vector<1x128xf32> to vector<2x128xf32>
    %296 = arith.addf %294, %295 : vector<2x128xf32>
    %297 = arith.negf %296 : vector<2x128xf32>
    %298 = math.exp %297 : vector<2x128xf32>
    %cst_108 = arith.constant 1.000000e+00 : f32
    %299 = vector.broadcast %cst_108 : f32 to vector<2x128xf32>
    %300 = arith.addf %299, %298 : vector<2x128xf32>
    %301 = arith.divf %299, %300 : vector<2x128xf32>
    %302 = vector.extract_strided_slice %301 {offsets = [0, 0], sizes = [2, 32], strides = [1, 1]} : vector<2x128xf32> to vector<2x32xf32>
    %303 = vector.extract_strided_slice %301 {offsets = [0, 32], sizes = [2, 32], strides = [1, 1]} : vector<2x128xf32> to vector<2x32xf32>
    %304 = vector.extract_strided_slice %301 {offsets = [0, 96], sizes = [2, 32], strides = [1, 1]} : vector<2x128xf32> to vector<2x32xf32>
    %305 = vector.extract_strided_slice %296 {offsets = [0, 64], sizes = [2, 32], strides = [1, 1]} : vector<2x128xf32> to vector<2x32xf32>
    %306 = math.tanh %305 : vector<2x32xf32>
    %307 = arith.mulf %303, %196 : vector<2x32xf32>
    %308 = arith.mulf %302, %306 : vector<2x32xf32>
    %309 = arith.addf %307, %308 : vector<2x32xf32>
    %310 = math.tanh %309 : vector<2x32xf32>
    %311 = arith.mulf %304, %310 : vector<2x32xf32>
    %312 = tpu.concatenate %311, %217 in 1 : vector<2x32xf32>, vector<2x32xf32> -> vector<2x64xf32>
    %cst_109 = arith.constant dense<0.000000e+00> : vector<2x128xf32>
    %313 = tpu.matmul %312, %30, %cst_109 {dimension_numbers = #tpu.dot_dimension_numbers<[1], [0], [0], [1], [0, 0, 1, 1], [], []>} : vector<2x64xf32>, vector<64x128xf32>, vector<2x128xf32> -> vector<2x128xf32>
    %314 = vector.broadcast %31 : vector<1x128xf32> to vector<2x128xf32>
    %315 = arith.addf %313, %314 : vector<2x128xf32>
    %316 = arith.negf %315 : vector<2x128xf32>
    %317 = math.exp %316 : vector<2x128xf32>
    %cst_110 = arith.constant 1.000000e+00 : f32
    %318 = vector.broadcast %cst_110 : f32 to vector<2x128xf32>
    %319 = arith.addf %318, %317 : vector<2x128xf32>
    %320 = arith.divf %318, %319 : vector<2x128xf32>
    %321 = vector.extract_strided_slice %320 {offsets = [0, 0], sizes = [2, 32], strides = [1, 1]} : vector<2x128xf32> to vector<2x32xf32>
    %322 = vector.extract_strided_slice %320 {offsets = [0, 32], sizes = [2, 32], strides = [1, 1]} : vector<2x128xf32> to vector<2x32xf32>
    %323 = vector.extract_strided_slice %320 {offsets = [0, 96], sizes = [2, 32], strides = [1, 1]} : vector<2x128xf32> to vector<2x32xf32>
    %324 = vector.extract_strided_slice %315 {offsets = [0, 64], sizes = [2, 32], strides = [1, 1]} : vector<2x128xf32> to vector<2x32xf32>
    %325 = math.tanh %324 : vector<2x32xf32>
    %326 = arith.mulf %322, %215 : vector<2x32xf32>
    %327 = arith.mulf %321, %325 : vector<2x32xf32>
    %328 = arith.addf %326, %327 : vector<2x32xf32>
    %329 = math.tanh %328 : vector<2x32xf32>
    %330 = arith.mulf %323, %329 : vector<2x32xf32>
    %331 = vector.extract_strided_slice %330 {offsets = [0, 0], sizes = [1, 32], strides = [1, 1]} : vector<2x32xf32> to vector<1x32xf32>
    %cst_111 = arith.constant dense<0.000000e+00> : vector<1x8xf32>
    %332 = tpu.matmul %331, %19, %cst_111 {dimension_numbers = #tpu.dot_dimension_numbers<[1], [0], [0], [1], [0, 0, 1, 1], [], []>} : vector<1x32xf32>, vector<32x8xf32>, vector<1x8xf32> -> vector<1x8xf32>
    %333 = vector.extract_strided_slice %26 {offsets = [0, 0], sizes = [1, 8], strides = [1, 1]} : vector<2x8xf32> to vector<1x8xf32>
    %334 = arith.addf %332, %333 : vector<1x8xf32>
    %cst_112 = arith.constant dense<0xFF800000> : vector<1xf32>
    %335 = vector.multi_reduction <maximumf>, %334, %cst_112 [1] : vector<1x8xf32> to vector<1xf32>
    %336 = vector.shape_cast %335 : vector<1xf32> to vector<1x1xf32>
    %337 = vector.broadcast %336 : vector<1x1xf32> to vector<1x8xf32>
    %338 = arith.subf %334, %337 : vector<1x8xf32>
    %339 = math.exp %338 : vector<1x8xf32>
    %cst_113 = arith.constant dense<0.000000e+00> : vector<1xf32>
    %340 = vector.multi_reduction <add>, %339, %cst_113 [1] : vector<1x8xf32> to vector<1xf32>
    %341 = vector.shape_cast %340 : vector<1xf32> to vector<1x1xf32>
    %342 = tpu.reciprocal %341 {approx = true} : vector<1x1xf32> -> vector<1x1xf32>
    %343 = vector.broadcast %342 : vector<1x1xf32> to vector<1x8xf32>
    %344 = arith.mulf %339, %343 : vector<1x8xf32>
    %345 = vector.extract_strided_slice %25 {offsets = [0, 0, 0], sizes = [1, 8, 48], strides = [1, 1, 1]} : vector<2x8x48xf32> to vector<1x8x48xf32>
    %346 = vector.shape_cast %345 : vector<1x8x48xf32> to vector<8x48xf32>
    %cst_114 = arith.constant dense<0.000000e+00> : vector<1x48xf32>
    %347 = tpu.matmul %344, %346, %cst_114 {dimension_numbers = #tpu.dot_dimension_numbers<[1], [0], [0], [1], [0, 0, 1, 1], [], []>} : vector<1x8xf32>, vector<8x48xf32>, vector<1x48xf32> -> vector<1x48xf32>
    %348 = vector.extract_strided_slice %330 {offsets = [1, 0], sizes = [1, 32], strides = [1, 1]} : vector<2x32xf32> to vector<1x32xf32>
    %cst_115 = arith.constant dense<0.000000e+00> : vector<1x8xf32>
    %349 = tpu.matmul %348, %24, %cst_115 {dimension_numbers = #tpu.dot_dimension_numbers<[1], [0], [0], [1], [0, 0, 1, 1], [], []>} : vector<1x32xf32>, vector<32x8xf32>, vector<1x8xf32> -> vector<1x8xf32>
    %350 = vector.extract_strided_slice %26 {offsets = [1, 0], sizes = [1, 8], strides = [1, 1]} : vector<2x8xf32> to vector<1x8xf32>
    %351 = arith.addf %349, %350 : vector<1x8xf32>
    %cst_116 = arith.constant dense<0xFF800000> : vector<1xf32>
    %352 = vector.multi_reduction <maximumf>, %351, %cst_116 [1] : vector<1x8xf32> to vector<1xf32>
    %353 = vector.shape_cast %352 : vector<1xf32> to vector<1x1xf32>
    %354 = vector.broadcast %353 : vector<1x1xf32> to vector<1x8xf32>
    %355 = arith.subf %351, %354 : vector<1x8xf32>
    %356 = math.exp %355 : vector<1x8xf32>
    %cst_117 = arith.constant dense<0.000000e+00> : vector<1xf32>
    %357 = vector.multi_reduction <add>, %356, %cst_117 [1] : vector<1x8xf32> to vector<1xf32>
    %358 = vector.shape_cast %357 : vector<1xf32> to vector<1x1xf32>
    %359 = tpu.reciprocal %358 {approx = true} : vector<1x1xf32> -> vector<1x1xf32>
    %360 = vector.broadcast %359 : vector<1x1xf32> to vector<1x8xf32>
    %361 = arith.mulf %356, %360 : vector<1x8xf32>
    %362 = vector.extract_strided_slice %25 {offsets = [1, 0, 0], sizes = [1, 8, 48], strides = [1, 1, 1]} : vector<2x8x48xf32> to vector<1x8x48xf32>
    %363 = vector.shape_cast %362 : vector<1x8x48xf32> to vector<8x48xf32>
    %cst_118 = arith.constant dense<0.000000e+00> : vector<1x48xf32>
    %364 = tpu.matmul %361, %363, %cst_118 {dimension_numbers = #tpu.dot_dimension_numbers<[1], [0], [0], [1], [0, 0, 1, 1], [], []>} : vector<1x8xf32>, vector<8x48xf32>, vector<1x48xf32> -> vector<1x48xf32>
    %365 = tpu.concatenate %347, %364 in 0 : vector<1x48xf32>, vector<1x48xf32> -> vector<2x48xf32>
    %cst_119 = arith.constant dense<0.000000e+00> : vector<2x32xf32>
    %366 = tpu.matmul %365, %32, %cst_119 {dimension_numbers = #tpu.dot_dimension_numbers<[1], [0], [0], [1], [0, 0, 1, 1], [], []>} : vector<2x48xf32>, vector<48x32xf32>, vector<2x32xf32> -> vector<2x32xf32>
    %cst_120 = arith.constant dense<0.000000e+00> : vector<2x32xf32>
    %367 = tpu.matmul %330, %33, %cst_120 {dimension_numbers = #tpu.dot_dimension_numbers<[1], [0], [0], [1], [0, 0, 1, 1], [], []>} : vector<2x32xf32>, vector<32x32xf32>, vector<2x32xf32> -> vector<2x32xf32>
    %368 = arith.addf %366, %367 : vector<2x32xf32>
    %369 = vector.broadcast %34 : vector<1x32xf32> to vector<2x32xf32>
    %370 = arith.addf %368, %369 : vector<2x32xf32>
    %371 = math.tanh %370 : vector<2x32xf32>
    %cst_121 = arith.constant dense<0.000000e+00> : vector<2x128xf32>
    %372 = tpu.matmul %371, %35, %cst_121 {dimension_numbers = #tpu.dot_dimension_numbers<[1], [0], [0], [1], [0, 0, 1, 1], [], []>} : vector<2x32xf32>, vector<32x128xf32>, vector<2x128xf32> -> vector<2x128xf32>
    %373 = vector.broadcast %36 : vector<1x128xf32> to vector<2x128xf32>
    %374 = arith.addf %372, %373 : vector<2x128xf32>
    %cst_122 = arith.constant dense<0xFF800000> : vector<2xf32>
    %375 = vector.multi_reduction <maximumf>, %374, %cst_122 [1] : vector<2x128xf32> to vector<2xf32>
    %376 = vector.shape_cast %375 : vector<2xf32> to vector<2x1xf32>
    %377 = vector.broadcast %376 : vector<2x1xf32> to vector<2x128xf32>
    %378 = arith.subf %374, %377 : vector<2x128xf32>
    %379 = math.exp %378 : vector<2x128xf32>
    %cst_123 = arith.constant dense<0.000000e+00> : vector<2xf32>
    %380 = vector.multi_reduction <add>, %379, %cst_123 [1] : vector<2x128xf32> to vector<2xf32>
    %381 = vector.shape_cast %380 : vector<2xf32> to vector<2x1xf32>
    %382 = math.log %381 : vector<2x1xf32>
    %383 = vector.broadcast %382 : vector<2x1xf32> to vector<2x128xf32>
    %384 = arith.subf %378, %383 : vector<2x128xf32>
    %c2_124 = arith.constant 2 : index
    %c0_125 = arith.constant 0 : index
    %c0_126 = arith.constant 0 : index
    %385 = vector.load %arg21[%c2_124, %c0_125, %c0_126] : memref<6x2x128xf32, #tpu.memory_space<vmem>>, vector<1x2x128xf32>
    %386 = vector.shape_cast %385 : vector<1x2x128xf32> to vector<2x128xf32>
    %387 = vector.shape_cast %384 : vector<2x128xf32> to vector<1x2x128xf32>
    tpu.vector_store %arg21[%c2_124, %c0_125, %c0_126], %387 {strides = array<i32>} : memref<6x2x128xf32, #tpu.memory_space<vmem>>, vector<1x2x128xf32>,
    %388 = vector.extract_strided_slice %12 {offsets = [6, 0], sizes = [2, 128], strides = [1, 1]} : vector<12x128xf32> to vector<2x128xf32>
    %cst_127 = arith.constant dense<0.000000e+00> : vector<2x128xf32>
    %389 = tpu.matmul %292, %27, %cst_127 {dimension_numbers = #tpu.dot_dimension_numbers<[1], [0], [0], [1], [0, 0, 1, 1], [], []>} : vector<2x32xf32>, vector<32x128xf32>, vector<2x128xf32> -> vector<2x128xf32>
    %390 = arith.addf %388, %389 : vector<2x128xf32>
    %391 = arith.negf %390 : vector<2x128xf32>
    %392 = math.exp %391 : vector<2x128xf32>
    %cst_128 = arith.constant 1.000000e+00 : f32
    %393 = vector.broadcast %cst_128 : f32 to vector<2x128xf32>
    %394 = arith.addf %393, %392 : vector<2x128xf32>
    %395 = arith.divf %393, %394 : vector<2x128xf32>
    %396 = vector.extract_strided_slice %395 {offsets = [0, 0], sizes = [2, 32], strides = [1, 1]} : vector<2x128xf32> to vector<2x32xf32>
    %397 = vector.extract_strided_slice %395 {offsets = [0, 32], sizes = [2, 32], strides = [1, 1]} : vector<2x128xf32> to vector<2x32xf32>
    %398 = vector.extract_strided_slice %395 {offsets = [0, 96], sizes = [2, 32], strides = [1, 1]} : vector<2x128xf32> to vector<2x32xf32>
    %399 = vector.extract_strided_slice %390 {offsets = [0, 64], sizes = [2, 32], strides = [1, 1]} : vector<2x128xf32> to vector<2x32xf32>
    %400 = math.tanh %399 : vector<2x32xf32>
    %401 = arith.mulf %397, %290 : vector<2x32xf32>
    %402 = arith.mulf %396, %400 : vector<2x32xf32>
    %403 = arith.addf %401, %402 : vector<2x32xf32>
    %404 = math.tanh %403 : vector<2x32xf32>
    %405 = arith.mulf %398, %404 : vector<2x32xf32>
    %406 = tpu.concatenate %405, %311 in 1 : vector<2x32xf32>, vector<2x32xf32> -> vector<2x64xf32>
    %cst_129 = arith.constant dense<0.000000e+00> : vector<2x128xf32>
    %407 = tpu.matmul %406, %28, %cst_129 {dimension_numbers = #tpu.dot_dimension_numbers<[1], [0], [0], [1], [0, 0, 1, 1], [], []>} : vector<2x64xf32>, vector<64x128xf32>, vector<2x128xf32> -> vector<2x128xf32>
    %408 = vector.broadcast %29 : vector<1x128xf32> to vector<2x128xf32>
    %409 = arith.addf %407, %408 : vector<2x128xf32>
    %410 = arith.negf %409 : vector<2x128xf32>
    %411 = math.exp %410 : vector<2x128xf32>
    %cst_130 = arith.constant 1.000000e+00 : f32
    %412 = vector.broadcast %cst_130 : f32 to vector<2x128xf32>
    %413 = arith.addf %412, %411 : vector<2x128xf32>
    %414 = arith.divf %412, %413 : vector<2x128xf32>
    %415 = vector.extract_strided_slice %414 {offsets = [0, 0], sizes = [2, 32], strides = [1, 1]} : vector<2x128xf32> to vector<2x32xf32>
    %416 = vector.extract_strided_slice %414 {offsets = [0, 32], sizes = [2, 32], strides = [1, 1]} : vector<2x128xf32> to vector<2x32xf32>
    %417 = vector.extract_strided_slice %414 {offsets = [0, 96], sizes = [2, 32], strides = [1, 1]} : vector<2x128xf32> to vector<2x32xf32>
    %418 = vector.extract_strided_slice %409 {offsets = [0, 64], sizes = [2, 32], strides = [1, 1]} : vector<2x128xf32> to vector<2x32xf32>
    %419 = math.tanh %418 : vector<2x32xf32>
    %420 = arith.mulf %416, %309 : vector<2x32xf32>
    %421 = arith.mulf %415, %419 : vector<2x32xf32>
    %422 = arith.addf %420, %421 : vector<2x32xf32>
    %423 = math.tanh %422 : vector<2x32xf32>
    %424 = arith.mulf %417, %423 : vector<2x32xf32>
    %425 = tpu.concatenate %424, %330 in 1 : vector<2x32xf32>, vector<2x32xf32> -> vector<2x64xf32>
    %cst_131 = arith.constant dense<0.000000e+00> : vector<2x128xf32>
    %426 = tpu.matmul %425, %30, %cst_131 {dimension_numbers = #tpu.dot_dimension_numbers<[1], [0], [0], [1], [0, 0, 1, 1], [], []>} : vector<2x64xf32>, vector<64x128xf32>, vector<2x128xf32> -> vector<2x128xf32>
    %427 = vector.broadcast %31 : vector<1x128xf32> to vector<2x128xf32>
    %428 = arith.addf %426, %427 : vector<2x128xf32>
    %429 = arith.negf %428 : vector<2x128xf32>
    %430 = math.exp %429 : vector<2x128xf32>
    %cst_132 = arith.constant 1.000000e+00 : f32
    %431 = vector.broadcast %cst_132 : f32 to vector<2x128xf32>
    %432 = arith.addf %431, %430 : vector<2x128xf32>
    %433 = arith.divf %431, %432 : vector<2x128xf32>
    %434 = vector.extract_strided_slice %433 {offsets = [0, 0], sizes = [2, 32], strides = [1, 1]} : vector<2x128xf32> to vector<2x32xf32>
    %435 = vector.extract_strided_slice %433 {offsets = [0, 32], sizes = [2, 32], strides = [1, 1]} : vector<2x128xf32> to vector<2x32xf32>
    %436 = vector.extract_strided_slice %433 {offsets = [0, 96], sizes = [2, 32], strides = [1, 1]} : vector<2x128xf32> to vector<2x32xf32>
    %437 = vector.extract_strided_slice %428 {offsets = [0, 64], sizes = [2, 32], strides = [1, 1]} : vector<2x128xf32> to vector<2x32xf32>
    %438 = math.tanh %437 : vector<2x32xf32>
    %439 = arith.mulf %435, %328 : vector<2x32xf32>
    %440 = arith.mulf %434, %438 : vector<2x32xf32>
    %441 = arith.addf %439, %440 : vector<2x32xf32>
    %442 = math.tanh %441 : vector<2x32xf32>
    %443 = arith.mulf %436, %442 : vector<2x32xf32>
    %444 = vector.extract_strided_slice %443 {offsets = [0, 0], sizes = [1, 32], strides = [1, 1]} : vector<2x32xf32> to vector<1x32xf32>
    %cst_133 = arith.constant dense<0.000000e+00> : vector<1x8xf32>
    %445 = tpu.matmul %444, %19, %cst_133 {dimension_numbers = #tpu.dot_dimension_numbers<[1], [0], [0], [1], [0, 0, 1, 1], [], []>} : vector<1x32xf32>, vector<32x8xf32>, vector<1x8xf32> -> vector<1x8xf32>
    %446 = vector.extract_strided_slice %26 {offsets = [0, 0], sizes = [1, 8], strides = [1, 1]} : vector<2x8xf32> to vector<1x8xf32>
    %447 = arith.addf %445, %446 : vector<1x8xf32>
    %cst_134 = arith.constant dense<0xFF800000> : vector<1xf32>
    %448 = vector.multi_reduction <maximumf>, %447, %cst_134 [1] : vector<1x8xf32> to vector<1xf32>
    %449 = vector.shape_cast %448 : vector<1xf32> to vector<1x1xf32>
    %450 = vector.broadcast %449 : vector<1x1xf32> to vector<1x8xf32>
    %451 = arith.subf %447, %450 : vector<1x8xf32>
    %452 = math.exp %451 : vector<1x8xf32>
    %cst_135 = arith.constant dense<0.000000e+00> : vector<1xf32>
    %453 = vector.multi_reduction <add>, %452, %cst_135 [1] : vector<1x8xf32> to vector<1xf32>
    %454 = vector.shape_cast %453 : vector<1xf32> to vector<1x1xf32>
    %455 = tpu.reciprocal %454 {approx = true} : vector<1x1xf32> -> vector<1x1xf32>
    %456 = vector.broadcast %455 : vector<1x1xf32> to vector<1x8xf32>
    %457 = arith.mulf %452, %456 : vector<1x8xf32>
    %458 = vector.extract_strided_slice %25 {offsets = [0, 0, 0], sizes = [1, 8, 48], strides = [1, 1, 1]} : vector<2x8x48xf32> to vector<1x8x48xf32>
    %459 = vector.shape_cast %458 : vector<1x8x48xf32> to vector<8x48xf32>
    %cst_136 = arith.constant dense<0.000000e+00> : vector<1x48xf32>
    %460 = tpu.matmul %457, %459, %cst_136 {dimension_numbers = #tpu.dot_dimension_numbers<[1], [0], [0], [1], [0, 0, 1, 1], [], []>} : vector<1x8xf32>, vector<8x48xf32>, vector<1x48xf32> -> vector<1x48xf32>
    %461 = vector.extract_strided_slice %443 {offsets = [1, 0], sizes = [1, 32], strides = [1, 1]} : vector<2x32xf32> to vector<1x32xf32>
    %cst_137 = arith.constant dense<0.000000e+00> : vector<1x8xf32>
    %462 = tpu.matmul %461, %24, %cst_137 {dimension_numbers = #tpu.dot_dimension_numbers<[1], [0], [0], [1], [0, 0, 1, 1], [], []>} : vector<1x32xf32>, vector<32x8xf32>, vector<1x8xf32> -> vector<1x8xf32>
    %463 = vector.extract_strided_slice %26 {offsets = [1, 0], sizes = [1, 8], strides = [1, 1]} : vector<2x8xf32> to vector<1x8xf32>
    %464 = arith.addf %462, %463 : vector<1x8xf32>
    %cst_138 = arith.constant dense<0xFF800000> : vector<1xf32>
    %465 = vector.multi_reduction <maximumf>, %464, %cst_138 [1] : vector<1x8xf32> to vector<1xf32>
    %466 = vector.shape_cast %465 : vector<1xf32> to vector<1x1xf32>
    %467 = vector.broadcast %466 : vector<1x1xf32> to vector<1x8xf32>
    %468 = arith.subf %464, %467 : vector<1x8xf32>
    %469 = math.exp %468 : vector<1x8xf32>
    %cst_139 = arith.constant dense<0.000000e+00> : vector<1xf32>
    %470 = vector.multi_reduction <add>, %469, %cst_139 [1] : vector<1x8xf32> to vector<1xf32>
    %471 = vector.shape_cast %470 : vector<1xf32> to vector<1x1xf32>
    %472 = tpu.reciprocal %471 {approx = true} : vector<1x1xf32> -> vector<1x1xf32>
    %473 = vector.broadcast %472 : vector<1x1xf32> to vector<1x8xf32>
    %474 = arith.mulf %469, %473 : vector<1x8xf32>
    %475 = vector.extract_strided_slice %25 {offsets = [1, 0, 0], sizes = [1, 8, 48], strides = [1, 1, 1]} : vector<2x8x48xf32> to vector<1x8x48xf32>
    %476 = vector.shape_cast %475 : vector<1x8x48xf32> to vector<8x48xf32>
    %cst_140 = arith.constant dense<0.000000e+00> : vector<1x48xf32>
    %477 = tpu.matmul %474, %476, %cst_140 {dimension_numbers = #tpu.dot_dimension_numbers<[1], [0], [0], [1], [0, 0, 1, 1], [], []>} : vector<1x8xf32>, vector<8x48xf32>, vector<1x48xf32> -> vector<1x48xf32>
    %478 = tpu.concatenate %460, %477 in 0 : vector<1x48xf32>, vector<1x48xf32> -> vector<2x48xf32>
    %cst_141 = arith.constant dense<0.000000e+00> : vector<2x32xf32>
    %479 = tpu.matmul %478, %32, %cst_141 {dimension_numbers = #tpu.dot_dimension_numbers<[1], [0], [0], [1], [0, 0, 1, 1], [], []>} : vector<2x48xf32>, vector<48x32xf32>, vector<2x32xf32> -> vector<2x32xf32>
    %cst_142 = arith.constant dense<0.000000e+00> : vector<2x32xf32>
    %480 = tpu.matmul %443, %33, %cst_142 {dimension_numbers = #tpu.dot_dimension_numbers<[1], [0], [0], [1], [0, 0, 1, 1], [], []>} : vector<2x32xf32>, vector<32x32xf32>, vector<2x32xf32> -> vector<2x32xf32>
    %481 = arith.addf %479, %480 : vector<2x32xf32>
    %482 = vector.broadcast %34 : vector<1x32xf32> to vector<2x32xf32>
    %483 = arith.addf %481, %482 : vector<2x32xf32>
    %484 = math.tanh %483 : vector<2x32xf32>
    %cst_143 = arith.constant dense<0.000000e+00> : vector<2x128xf32>
    %485 = tpu.matmul %484, %35, %cst_143 {dimension_numbers = #tpu.dot_dimension_numbers<[1], [0], [0], [1], [0, 0, 1, 1], [], []>} : vector<2x32xf32>, vector<32x128xf32>, vector<2x128xf32> -> vector<2x128xf32>
    %486 = vector.broadcast %36 : vector<1x128xf32> to vector<2x128xf32>
    %487 = arith.addf %485, %486 : vector<2x128xf32>
    %cst_144 = arith.constant dense<0xFF800000> : vector<2xf32>
    %488 = vector.multi_reduction <maximumf>, %487, %cst_144 [1] : vector<2x128xf32> to vector<2xf32>
    %489 = vector.shape_cast %488 : vector<2xf32> to vector<2x1xf32>
    %490 = vector.broadcast %489 : vector<2x1xf32> to vector<2x128xf32>
    %491 = arith.subf %487, %490 : vector<2x128xf32>
    %492 = math.exp %491 : vector<2x128xf32>
    %cst_145 = arith.constant dense<0.000000e+00> : vector<2xf32>
    %493 = vector.multi_reduction <add>, %492, %cst_145 [1] : vector<2x128xf32> to vector<2xf32>
    %494 = vector.shape_cast %493 : vector<2xf32> to vector<2x1xf32>
    %495 = math.log %494 : vector<2x1xf32>
    %496 = vector.broadcast %495 : vector<2x1xf32> to vector<2x128xf32>
    %497 = arith.subf %491, %496 : vector<2x128xf32>
    %c3 = arith.constant 3 : index
    %c0_146 = arith.constant 0 : index
    %c0_147 = arith.constant 0 : index
    %498 = vector.load %arg21[%c3, %c0_146, %c0_147] : memref<6x2x128xf32, #tpu.memory_space<vmem>>, vector<1x2x128xf32>
    %499 = vector.shape_cast %498 : vector<1x2x128xf32> to vector<2x128xf32>
    %500 = vector.shape_cast %497 : vector<2x128xf32> to vector<1x2x128xf32>
    tpu.vector_store %arg21[%c3, %c0_146, %c0_147], %500 {strides = array<i32>} : memref<6x2x128xf32, #tpu.memory_space<vmem>>, vector<1x2x128xf32>,
    %501 = vector.extract_strided_slice %12 {offsets = [8, 0], sizes = [2, 128], strides = [1, 1]} : vector<12x128xf32> to vector<2x128xf32>
    %cst_148 = arith.constant dense<0.000000e+00> : vector<2x128xf32>
    %502 = tpu.matmul %405, %27, %cst_148 {dimension_numbers = #tpu.dot_dimension_numbers<[1], [0], [0], [1], [0, 0, 1, 1], [], []>} : vector<2x32xf32>, vector<32x128xf32>, vector<2x128xf32> -> vector<2x128xf32>
    %503 = arith.addf %501, %502 : vector<2x128xf32>
    %504 = arith.negf %503 : vector<2x128xf32>
    %505 = math.exp %504 : vector<2x128xf32>
    %cst_149 = arith.constant 1.000000e+00 : f32
    %506 = vector.broadcast %cst_149 : f32 to vector<2x128xf32>
    %507 = arith.addf %506, %505 : vector<2x128xf32>
    %508 = arith.divf %506, %507 : vector<2x128xf32>
    %509 = vector.extract_strided_slice %508 {offsets = [0, 0], sizes = [2, 32], strides = [1, 1]} : vector<2x128xf32> to vector<2x32xf32>
    %510 = vector.extract_strided_slice %508 {offsets = [0, 32], sizes = [2, 32], strides = [1, 1]} : vector<2x128xf32> to vector<2x32xf32>
    %511 = vector.extract_strided_slice %508 {offsets = [0, 96], sizes = [2, 32], strides = [1, 1]} : vector<2x128xf32> to vector<2x32xf32>
    %512 = vector.extract_strided_slice %503 {offsets = [0, 64], sizes = [2, 32], strides = [1, 1]} : vector<2x128xf32> to vector<2x32xf32>
    %513 = math.tanh %512 : vector<2x32xf32>
    %514 = arith.mulf %510, %403 : vector<2x32xf32>
    %515 = arith.mulf %509, %513 : vector<2x32xf32>
    %516 = arith.addf %514, %515 : vector<2x32xf32>
    %517 = math.tanh %516 : vector<2x32xf32>
    %518 = arith.mulf %511, %517 : vector<2x32xf32>
    %519 = tpu.concatenate %518, %424 in 1 : vector<2x32xf32>, vector<2x32xf32> -> vector<2x64xf32>
    %cst_150 = arith.constant dense<0.000000e+00> : vector<2x128xf32>
    %520 = tpu.matmul %519, %28, %cst_150 {dimension_numbers = #tpu.dot_dimension_numbers<[1], [0], [0], [1], [0, 0, 1, 1], [], []>} : vector<2x64xf32>, vector<64x128xf32>, vector<2x128xf32> -> vector<2x128xf32>
    %521 = vector.broadcast %29 : vector<1x128xf32> to vector<2x128xf32>
    %522 = arith.addf %520, %521 : vector<2x128xf32>
    %523 = arith.negf %522 : vector<2x128xf32>
    %524 = math.exp %523 : vector<2x128xf32>
    %cst_151 = arith.constant 1.000000e+00 : f32
    %525 = vector.broadcast %cst_151 : f32 to vector<2x128xf32>
    %526 = arith.addf %525, %524 : vector<2x128xf32>
    %527 = arith.divf %525, %526 : vector<2x128xf32>
    %528 = vector.extract_strided_slice %527 {offsets = [0, 0], sizes = [2, 32], strides = [1, 1]} : vector<2x128xf32> to vector<2x32xf32>
    %529 = vector.extract_strided_slice %527 {offsets = [0, 32], sizes = [2, 32], strides = [1, 1]} : vector<2x128xf32> to vector<2x32xf32>
    %530 = vector.extract_strided_slice %527 {offsets = [0, 96], sizes = [2, 32], strides = [1, 1]} : vector<2x128xf32> to vector<2x32xf32>
    %531 = vector.extract_strided_slice %522 {offsets = [0, 64], sizes = [2, 32], strides = [1, 1]} : vector<2x128xf32> to vector<2x32xf32>
    %532 = math.tanh %531 : vector<2x32xf32>
    %533 = arith.mulf %529, %422 : vector<2x32xf32>
    %534 = arith.mulf %528, %532 : vector<2x32xf32>
    %535 = arith.addf %533, %534 : vector<2x32xf32>
    %536 = math.tanh %535 : vector<2x32xf32>
    %537 = arith.mulf %530, %536 : vector<2x32xf32>
    %538 = tpu.concatenate %537, %443 in 1 : vector<2x32xf32>, vector<2x32xf32> -> vector<2x64xf32>
    %cst_152 = arith.constant dense<0.000000e+00> : vector<2x128xf32>
    %539 = tpu.matmul %538, %30, %cst_152 {dimension_numbers = #tpu.dot_dimension_numbers<[1], [0], [0], [1], [0, 0, 1, 1], [], []>} : vector<2x64xf32>, vector<64x128xf32>, vector<2x128xf32> -> vector<2x128xf32>
    %540 = vector.broadcast %31 : vector<1x128xf32> to vector<2x128xf32>
    %541 = arith.addf %539, %540 : vector<2x128xf32>
    %542 = arith.negf %541 : vector<2x128xf32>
    %543 = math.exp %542 : vector<2x128xf32>
    %cst_153 = arith.constant 1.000000e+00 : f32
    %544 = vector.broadcast %cst_153 : f32 to vector<2x128xf32>
    %545 = arith.addf %544, %543 : vector<2x128xf32>
    %546 = arith.divf %544, %545 : vector<2x128xf32>
    %547 = vector.extract_strided_slice %546 {offsets = [0, 0], sizes = [2, 32], strides = [1, 1]} : vector<2x128xf32> to vector<2x32xf32>
    %548 = vector.extract_strided_slice %546 {offsets = [0, 32], sizes = [2, 32], strides = [1, 1]} : vector<2x128xf32> to vector<2x32xf32>
    %549 = vector.extract_strided_slice %546 {offsets = [0, 96], sizes = [2, 32], strides = [1, 1]} : vector<2x128xf32> to vector<2x32xf32>
    %550 = vector.extract_strided_slice %541 {offsets = [0, 64], sizes = [2, 32], strides = [1, 1]} : vector<2x128xf32> to vector<2x32xf32>
    %551 = math.tanh %550 : vector<2x32xf32>
    %552 = arith.mulf %548, %441 : vector<2x32xf32>
    %553 = arith.mulf %547, %551 : vector<2x32xf32>
    %554 = arith.addf %552, %553 : vector<2x32xf32>
    %555 = math.tanh %554 : vector<2x32xf32>
    %556 = arith.mulf %549, %555 : vector<2x32xf32>
    %557 = vector.extract_strided_slice %556 {offsets = [0, 0], sizes = [1, 32], strides = [1, 1]} : vector<2x32xf32> to vector<1x32xf32>
    %cst_154 = arith.constant dense<0.000000e+00> : vector<1x8xf32>
    %558 = tpu.matmul %557, %19, %cst_154 {dimension_numbers = #tpu.dot_dimension_numbers<[1], [0], [0], [1], [0, 0, 1, 1], [], []>} : vector<1x32xf32>, vector<32x8xf32>, vector<1x8xf32> -> vector<1x8xf32>
    %559 = vector.extract_strided_slice %26 {offsets = [0, 0], sizes = [1, 8], strides = [1, 1]} : vector<2x8xf32> to vector<1x8xf32>
    %560 = arith.addf %558, %559 : vector<1x8xf32>
    %cst_155 = arith.constant dense<0xFF800000> : vector<1xf32>
    %561 = vector.multi_reduction <maximumf>, %560, %cst_155 [1] : vector<1x8xf32> to vector<1xf32>
    %562 = vector.shape_cast %561 : vector<1xf32> to vector<1x1xf32>
    %563 = vector.broadcast %562 : vector<1x1xf32> to vector<1x8xf32>
    %564 = arith.subf %560, %563 : vector<1x8xf32>
    %565 = math.exp %564 : vector<1x8xf32>
    %cst_156 = arith.constant dense<0.000000e+00> : vector<1xf32>
    %566 = vector.multi_reduction <add>, %565, %cst_156 [1] : vector<1x8xf32> to vector<1xf32>
    %567 = vector.shape_cast %566 : vector<1xf32> to vector<1x1xf32>
    %568 = tpu.reciprocal %567 {approx = true} : vector<1x1xf32> -> vector<1x1xf32>
    %569 = vector.broadcast %568 : vector<1x1xf32> to vector<1x8xf32>
    %570 = arith.mulf %565, %569 : vector<1x8xf32>
    %571 = vector.extract_strided_slice %25 {offsets = [0, 0, 0], sizes = [1, 8, 48], strides = [1, 1, 1]} : vector<2x8x48xf32> to vector<1x8x48xf32>
    %572 = vector.shape_cast %571 : vector<1x8x48xf32> to vector<8x48xf32>
    %cst_157 = arith.constant dense<0.000000e+00> : vector<1x48xf32>
    %573 = tpu.matmul %570, %572, %cst_157 {dimension_numbers = #tpu.dot_dimension_numbers<[1], [0], [0], [1], [0, 0, 1, 1], [], []>} : vector<1x8xf32>, vector<8x48xf32>, vector<1x48xf32> -> vector<1x48xf32>
    %574 = vector.extract_strided_slice %556 {offsets = [1, 0], sizes = [1, 32], strides = [1, 1]} : vector<2x32xf32> to vector<1x32xf32>
    %cst_158 = arith.constant dense<0.000000e+00> : vector<1x8xf32>
    %575 = tpu.matmul %574, %24, %cst_158 {dimension_numbers = #tpu.dot_dimension_numbers<[1], [0], [0], [1], [0, 0, 1, 1], [], []>} : vector<1x32xf32>, vector<32x8xf32>, vector<1x8xf32> -> vector<1x8xf32>
    %576 = vector.extract_strided_slice %26 {offsets = [1, 0], sizes = [1, 8], strides = [1, 1]} : vector<2x8xf32> to vector<1x8xf32>
    %577 = arith.addf %575, %576 : vector<1x8xf32>
    %cst_159 = arith.constant dense<0xFF800000> : vector<1xf32>
    %578 = vector.multi_reduction <maximumf>, %577, %cst_159 [1] : vector<1x8xf32> to vector<1xf32>
    %579 = vector.shape_cast %578 : vector<1xf32> to vector<1x1xf32>
    %580 = vector.broadcast %579 : vector<1x1xf32> to vector<1x8xf32>
    %581 = arith.subf %577, %580 : vector<1x8xf32>
    %582 = math.exp %581 : vector<1x8xf32>
    %cst_160 = arith.constant dense<0.000000e+00> : vector<1xf32>
    %583 = vector.multi_reduction <add>, %582, %cst_160 [1] : vector<1x8xf32> to vector<1xf32>
    %584 = vector.shape_cast %583 : vector<1xf32> to vector<1x1xf32>
    %585 = tpu.reciprocal %584 {approx = true} : vector<1x1xf32> -> vector<1x1xf32>
    %586 = vector.broadcast %585 : vector<1x1xf32> to vector<1x8xf32>
    %587 = arith.mulf %582, %586 : vector<1x8xf32>
    %588 = vector.extract_strided_slice %25 {offsets = [1, 0, 0], sizes = [1, 8, 48], strides = [1, 1, 1]} : vector<2x8x48xf32> to vector<1x8x48xf32>
    %589 = vector.shape_cast %588 : vector<1x8x48xf32> to vector<8x48xf32>
    %cst_161 = arith.constant dense<0.000000e+00> : vector<1x48xf32>
    %590 = tpu.matmul %587, %589, %cst_161 {dimension_numbers = #tpu.dot_dimension_numbers<[1], [0], [0], [1], [0, 0, 1, 1], [], []>} : vector<1x8xf32>, vector<8x48xf32>, vector<1x48xf32> -> vector<1x48xf32>
    %591 = tpu.concatenate %573, %590 in 0 : vector<1x48xf32>, vector<1x48xf32> -> vector<2x48xf32>
    %cst_162 = arith.constant dense<0.000000e+00> : vector<2x32xf32>
    %592 = tpu.matmul %591, %32, %cst_162 {dimension_numbers = #tpu.dot_dimension_numbers<[1], [0], [0], [1], [0, 0, 1, 1], [], []>} : vector<2x48xf32>, vector<48x32xf32>, vector<2x32xf32> -> vector<2x32xf32>
    %cst_163 = arith.constant dense<0.000000e+00> : vector<2x32xf32>
    %593 = tpu.matmul %556, %33, %cst_163 {dimension_numbers = #tpu.dot_dimension_numbers<[1], [0], [0], [1], [0, 0, 1, 1], [], []>} : vector<2x32xf32>, vector<32x32xf32>, vector<2x32xf32> -> vector<2x32xf32>
    %594 = arith.addf %592, %593 : vector<2x32xf32>
    %595 = vector.broadcast %34 : vector<1x32xf32> to vector<2x32xf32>
    %596 = arith.addf %594, %595 : vector<2x32xf32>
    %597 = math.tanh %596 : vector<2x32xf32>
    %cst_164 = arith.constant dense<0.000000e+00> : vector<2x128xf32>
    %598 = tpu.matmul %597, %35, %cst_164 {dimension_numbers = #tpu.dot_dimension_numbers<[1], [0], [0], [1], [0, 0, 1, 1], [], []>} : vector<2x32xf32>, vector<32x128xf32>, vector<2x128xf32> -> vector<2x128xf32>
    %599 = vector.broadcast %36 : vector<1x128xf32> to vector<2x128xf32>
    %600 = arith.addf %598, %599 : vector<2x128xf32>
    %cst_165 = arith.constant dense<0xFF800000> : vector<2xf32>
    %601 = vector.multi_reduction <maximumf>, %600, %cst_165 [1] : vector<2x128xf32> to vector<2xf32>
    %602 = vector.shape_cast %601 : vector<2xf32> to vector<2x1xf32>
    %603 = vector.broadcast %602 : vector<2x1xf32> to vector<2x128xf32>
    %604 = arith.subf %600, %603 : vector<2x128xf32>
    %605 = math.exp %604 : vector<2x128xf32>
    %cst_166 = arith.constant dense<0.000000e+00> : vector<2xf32>
    %606 = vector.multi_reduction <add>, %605, %cst_166 [1] : vector<2x128xf32> to vector<2xf32>
    %607 = vector.shape_cast %606 : vector<2xf32> to vector<2x1xf32>
    %608 = math.log %607 : vector<2x1xf32>
    %609 = vector.broadcast %608 : vector<2x1xf32> to vector<2x128xf32>
    %610 = arith.subf %604, %609 : vector<2x128xf32>
    %c4 = arith.constant 4 : index
    %c0_167 = arith.constant 0 : index
    %c0_168 = arith.constant 0 : index
    %611 = vector.load %arg21[%c4, %c0_167, %c0_168] : memref<6x2x128xf32, #tpu.memory_space<vmem>>, vector<1x2x128xf32>
    %612 = vector.shape_cast %611 : vector<1x2x128xf32> to vector<2x128xf32>
    %613 = vector.shape_cast %610 : vector<2x128xf32> to vector<1x2x128xf32>
    tpu.vector_store %arg21[%c4, %c0_167, %c0_168], %613 {strides = array<i32>} : memref<6x2x128xf32, #tpu.memory_space<vmem>>, vector<1x2x128xf32>,
    %614 = vector.extract_strided_slice %12 {offsets = [10, 0], sizes = [2, 128], strides = [1, 1]} : vector<12x128xf32> to vector<2x128xf32>
    %cst_169 = arith.constant dense<0.000000e+00> : vector<2x128xf32>
    %615 = tpu.matmul %518, %27, %cst_169 {dimension_numbers = #tpu.dot_dimension_numbers<[1], [0], [0], [1], [0, 0, 1, 1], [], []>} : vector<2x32xf32>, vector<32x128xf32>, vector<2x128xf32> -> vector<2x128xf32>
    %616 = arith.addf %614, %615 : vector<2x128xf32>
    %617 = arith.negf %616 : vector<2x128xf32>
    %618 = math.exp %617 : vector<2x128xf32>
    %cst_170 = arith.constant 1.000000e+00 : f32
    %619 = vector.broadcast %cst_170 : f32 to vector<2x128xf32>
    %620 = arith.addf %619, %618 : vector<2x128xf32>
    %621 = arith.divf %619, %620 : vector<2x128xf32>
    %622 = vector.extract_strided_slice %621 {offsets = [0, 0], sizes = [2, 32], strides = [1, 1]} : vector<2x128xf32> to vector<2x32xf32>
    %623 = vector.extract_strided_slice %621 {offsets = [0, 32], sizes = [2, 32], strides = [1, 1]} : vector<2x128xf32> to vector<2x32xf32>
    %624 = vector.extract_strided_slice %621 {offsets = [0, 96], sizes = [2, 32], strides = [1, 1]} : vector<2x128xf32> to vector<2x32xf32>
    %625 = vector.extract_strided_slice %616 {offsets = [0, 64], sizes = [2, 32], strides = [1, 1]} : vector<2x128xf32> to vector<2x32xf32>
    %626 = math.tanh %625 : vector<2x32xf32>
    %627 = arith.mulf %623, %516 : vector<2x32xf32>
    %628 = arith.mulf %622, %626 : vector<2x32xf32>
    %629 = arith.addf %627, %628 : vector<2x32xf32>
    %630 = math.tanh %629 : vector<2x32xf32>
    %631 = arith.mulf %624, %630 : vector<2x32xf32>
    %632 = tpu.concatenate %631, %537 in 1 : vector<2x32xf32>, vector<2x32xf32> -> vector<2x64xf32>
    %cst_171 = arith.constant dense<0.000000e+00> : vector<2x128xf32>
    %633 = tpu.matmul %632, %28, %cst_171 {dimension_numbers = #tpu.dot_dimension_numbers<[1], [0], [0], [1], [0, 0, 1, 1], [], []>} : vector<2x64xf32>, vector<64x128xf32>, vector<2x128xf32> -> vector<2x128xf32>
    %634 = vector.broadcast %29 : vector<1x128xf32> to vector<2x128xf32>
    %635 = arith.addf %633, %634 : vector<2x128xf32>
    %636 = arith.negf %635 : vector<2x128xf32>
    %637 = math.exp %636 : vector<2x128xf32>
    %cst_172 = arith.constant 1.000000e+00 : f32
    %638 = vector.broadcast %cst_172 : f32 to vector<2x128xf32>
    %639 = arith.addf %638, %637 : vector<2x128xf32>
    %640 = arith.divf %638, %639 : vector<2x128xf32>
    %641 = vector.extract_strided_slice %640 {offsets = [0, 0], sizes = [2, 32], strides = [1, 1]} : vector<2x128xf32> to vector<2x32xf32>
    %642 = vector.extract_strided_slice %640 {offsets = [0, 32], sizes = [2, 32], strides = [1, 1]} : vector<2x128xf32> to vector<2x32xf32>
    %643 = vector.extract_strided_slice %640 {offsets = [0, 96], sizes = [2, 32], strides = [1, 1]} : vector<2x128xf32> to vector<2x32xf32>
    %644 = vector.extract_strided_slice %635 {offsets = [0, 64], sizes = [2, 32], strides = [1, 1]} : vector<2x128xf32> to vector<2x32xf32>
    %645 = math.tanh %644 : vector<2x32xf32>
    %646 = arith.mulf %642, %535 : vector<2x32xf32>
    %647 = arith.mulf %641, %645 : vector<2x32xf32>
    %648 = arith.addf %646, %647 : vector<2x32xf32>
    %649 = math.tanh %648 : vector<2x32xf32>
    %650 = arith.mulf %643, %649 : vector<2x32xf32>
    %651 = tpu.concatenate %650, %556 in 1 : vector<2x32xf32>, vector<2x32xf32> -> vector<2x64xf32>
    %cst_173 = arith.constant dense<0.000000e+00> : vector<2x128xf32>
    %652 = tpu.matmul %651, %30, %cst_173 {dimension_numbers = #tpu.dot_dimension_numbers<[1], [0], [0], [1], [0, 0, 1, 1], [], []>} : vector<2x64xf32>, vector<64x128xf32>, vector<2x128xf32> -> vector<2x128xf32>
    %653 = vector.broadcast %31 : vector<1x128xf32> to vector<2x128xf32>
    %654 = arith.addf %652, %653 : vector<2x128xf32>
    %655 = arith.negf %654 : vector<2x128xf32>
    %656 = math.exp %655 : vector<2x128xf32>
    %cst_174 = arith.constant 1.000000e+00 : f32
    %657 = vector.broadcast %cst_174 : f32 to vector<2x128xf32>
    %658 = arith.addf %657, %656 : vector<2x128xf32>
    %659 = arith.divf %657, %658 : vector<2x128xf32>
    %660 = vector.extract_strided_slice %659 {offsets = [0, 0], sizes = [2, 32], strides = [1, 1]} : vector<2x128xf32> to vector<2x32xf32>
    %661 = vector.extract_strided_slice %659 {offsets = [0, 32], sizes = [2, 32], strides = [1, 1]} : vector<2x128xf32> to vector<2x32xf32>
    %662 = vector.extract_strided_slice %659 {offsets = [0, 96], sizes = [2, 32], strides = [1, 1]} : vector<2x128xf32> to vector<2x32xf32>
    %663 = vector.extract_strided_slice %654 {offsets = [0, 64], sizes = [2, 32], strides = [1, 1]} : vector<2x128xf32> to vector<2x32xf32>
    %664 = math.tanh %663 : vector<2x32xf32>
    %665 = arith.mulf %661, %554 : vector<2x32xf32>
    %666 = arith.mulf %660, %664 : vector<2x32xf32>
    %667 = arith.addf %665, %666 : vector<2x32xf32>
    %668 = math.tanh %667 : vector<2x32xf32>
    %669 = arith.mulf %662, %668 : vector<2x32xf32>
    %670 = vector.extract_strided_slice %669 {offsets = [0, 0], sizes = [1, 32], strides = [1, 1]} : vector<2x32xf32> to vector<1x32xf32>
    %cst_175 = arith.constant dense<0.000000e+00> : vector<1x8xf32>
    %671 = tpu.matmul %670, %19, %cst_175 {dimension_numbers = #tpu.dot_dimension_numbers<[1], [0], [0], [1], [0, 0, 1, 1], [], []>} : vector<1x32xf32>, vector<32x8xf32>, vector<1x8xf32> -> vector<1x8xf32>
    %672 = vector.extract_strided_slice %26 {offsets = [0, 0], sizes = [1, 8], strides = [1, 1]} : vector<2x8xf32> to vector<1x8xf32>
    %673 = arith.addf %671, %672 : vector<1x8xf32>
    %cst_176 = arith.constant dense<0xFF800000> : vector<1xf32>
    %674 = vector.multi_reduction <maximumf>, %673, %cst_176 [1] : vector<1x8xf32> to vector<1xf32>
    %675 = vector.shape_cast %674 : vector<1xf32> to vector<1x1xf32>
    %676 = vector.broadcast %675 : vector<1x1xf32> to vector<1x8xf32>
    %677 = arith.subf %673, %676 : vector<1x8xf32>
    %678 = math.exp %677 : vector<1x8xf32>
    %cst_177 = arith.constant dense<0.000000e+00> : vector<1xf32>
    %679 = vector.multi_reduction <add>, %678, %cst_177 [1] : vector<1x8xf32> to vector<1xf32>
    %680 = vector.shape_cast %679 : vector<1xf32> to vector<1x1xf32>
    %681 = tpu.reciprocal %680 {approx = true} : vector<1x1xf32> -> vector<1x1xf32>
    %682 = vector.broadcast %681 : vector<1x1xf32> to vector<1x8xf32>
    %683 = arith.mulf %678, %682 : vector<1x8xf32>
    %684 = vector.extract_strided_slice %25 {offsets = [0, 0, 0], sizes = [1, 8, 48], strides = [1, 1, 1]} : vector<2x8x48xf32> to vector<1x8x48xf32>
    %685 = vector.shape_cast %684 : vector<1x8x48xf32> to vector<8x48xf32>
    %cst_178 = arith.constant dense<0.000000e+00> : vector<1x48xf32>
    %686 = tpu.matmul %683, %685, %cst_178 {dimension_numbers = #tpu.dot_dimension_numbers<[1], [0], [0], [1], [0, 0, 1, 1], [], []>} : vector<1x8xf32>, vector<8x48xf32>, vector<1x48xf32> -> vector<1x48xf32>
    %687 = vector.extract_strided_slice %669 {offsets = [1, 0], sizes = [1, 32], strides = [1, 1]} : vector<2x32xf32> to vector<1x32xf32>
    %cst_179 = arith.constant dense<0.000000e+00> : vector<1x8xf32>
    %688 = tpu.matmul %687, %24, %cst_179 {dimension_numbers = #tpu.dot_dimension_numbers<[1], [0], [0], [1], [0, 0, 1, 1], [], []>} : vector<1x32xf32>, vector<32x8xf32>, vector<1x8xf32> -> vector<1x8xf32>
    %689 = vector.extract_strided_slice %26 {offsets = [1, 0], sizes = [1, 8], strides = [1, 1]} : vector<2x8xf32> to vector<1x8xf32>
    %690 = arith.addf %688, %689 : vector<1x8xf32>
    %cst_180 = arith.constant dense<0xFF800000> : vector<1xf32>
    %691 = vector.multi_reduction <maximumf>, %690, %cst_180 [1] : vector<1x8xf32> to vector<1xf32>
    %692 = vector.shape_cast %691 : vector<1xf32> to vector<1x1xf32>
    %693 = vector.broadcast %692 : vector<1x1xf32> to vector<1x8xf32>
    %694 = arith.subf %690, %693 : vector<1x8xf32>
    %695 = math.exp %694 : vector<1x8xf32>
    %cst_181 = arith.constant dense<0.000000e+00> : vector<1xf32>
    %696 = vector.multi_reduction <add>, %695, %cst_181 [1] : vector<1x8xf32> to vector<1xf32>
    %697 = vector.shape_cast %696 : vector<1xf32> to vector<1x1xf32>
    %698 = tpu.reciprocal %697 {approx = true} : vector<1x1xf32> -> vector<1x1xf32>
    %699 = vector.broadcast %698 : vector<1x1xf32> to vector<1x8xf32>
    %700 = arith.mulf %695, %699 : vector<1x8xf32>
    %701 = vector.extract_strided_slice %25 {offsets = [1, 0, 0], sizes = [1, 8, 48], strides = [1, 1, 1]} : vector<2x8x48xf32> to vector<1x8x48xf32>
    %702 = vector.shape_cast %701 : vector<1x8x48xf32> to vector<8x48xf32>
    %cst_182 = arith.constant dense<0.000000e+00> : vector<1x48xf32>
    %703 = tpu.matmul %700, %702, %cst_182 {dimension_numbers = #tpu.dot_dimension_numbers<[1], [0], [0], [1], [0, 0, 1, 1], [], []>} : vector<1x8xf32>, vector<8x48xf32>, vector<1x48xf32> -> vector<1x48xf32>
    %704 = tpu.concatenate %686, %703 in 0 : vector<1x48xf32>, vector<1x48xf32> -> vector<2x48xf32>
    %cst_183 = arith.constant dense<0.000000e+00> : vector<2x32xf32>
    %705 = tpu.matmul %704, %32, %cst_183 {dimension_numbers = #tpu.dot_dimension_numbers<[1], [0], [0], [1], [0, 0, 1, 1], [], []>} : vector<2x48xf32>, vector<48x32xf32>, vector<2x32xf32> -> vector<2x32xf32>
    %cst_184 = arith.constant dense<0.000000e+00> : vector<2x32xf32>
    %706 = tpu.matmul %669, %33, %cst_184 {dimension_numbers = #tpu.dot_dimension_numbers<[1], [0], [0], [1], [0, 0, 1, 1], [], []>} : vector<2x32xf32>, vector<32x32xf32>, vector<2x32xf32> -> vector<2x32xf32>
    %707 = arith.addf %705, %706 : vector<2x32xf32>
    %708 = vector.broadcast %34 : vector<1x32xf32> to vector<2x32xf32>
    %709 = arith.addf %707, %708 : vector<2x32xf32>
    %710 = math.tanh %709 : vector<2x32xf32>
    %cst_185 = arith.constant dense<0.000000e+00> : vector<2x128xf32>
    %711 = tpu.matmul %710, %35, %cst_185 {dimension_numbers = #tpu.dot_dimension_numbers<[1], [0], [0], [1], [0, 0, 1, 1], [], []>} : vector<2x32xf32>, vector<32x128xf32>, vector<2x128xf32> -> vector<2x128xf32>
    %712 = vector.broadcast %36 : vector<1x128xf32> to vector<2x128xf32>
    %713 = arith.addf %711, %712 : vector<2x128xf32>
    %cst_186 = arith.constant dense<0xFF800000> : vector<2xf32>
    %714 = vector.multi_reduction <maximumf>, %713, %cst_186 [1] : vector<2x128xf32> to vector<2xf32>
    %715 = vector.shape_cast %714 : vector<2xf32> to vector<2x1xf32>
    %716 = vector.broadcast %715 : vector<2x1xf32> to vector<2x128xf32>
    %717 = arith.subf %713, %716 : vector<2x128xf32>
    %718 = math.exp %717 : vector<2x128xf32>
    %cst_187 = arith.constant dense<0.000000e+00> : vector<2xf32>
    %719 = vector.multi_reduction <add>, %718, %cst_187 [1] : vector<2x128xf32> to vector<2xf32>
    %720 = vector.shape_cast %719 : vector<2xf32> to vector<2x1xf32>
    %721 = math.log %720 : vector<2x1xf32>
    %722 = vector.broadcast %721 : vector<2x1xf32> to vector<2x128xf32>
    %723 = arith.subf %717, %722 : vector<2x128xf32>
    %c5 = arith.constant 5 : index
    %c0_188 = arith.constant 0 : index
    %c0_189 = arith.constant 0 : index
    %724 = vector.load %arg21[%c5, %c0_188, %c0_189] : memref<6x2x128xf32, #tpu.memory_space<vmem>>, vector<1x2x128xf32>
    %725 = vector.shape_cast %724 : vector<1x2x128xf32> to vector<2x128xf32>
    %726 = vector.shape_cast %723 : vector<2x128xf32> to vector<1x2x128xf32>
    tpu.vector_store %arg21[%c5, %c0_188, %c0_189], %726 {strides = array<i32>} : memref<6x2x128xf32, #tpu.memory_space<vmem>>, vector<1x2x128xf32>,
    return
  }
}

</mosaic_0001>

<llo_original>
// kernel: attn_decoder_forward.1
$region0: #{attn_decoder_forward.1}
  #allocation0 [shape = 'u32[]', space=smem, size = 0x4, offset = 0x4, fixed_abs, tag = 'smem constant byte address 0x4 - core index']
  #allocation1 [shape = 'u32[144,128]{1,0:T(1,128)}', space=vmem, size = 0x12000, scoped, tag = 'internal scratch']
  %s0 = inlined_call_operand.vmem [shape: s32[12,1], index: 0, kind: input, shape index: {}]
  %s1 = inlined_call_operand.vmem [shape: f32[50,16], index: 1, kind: input, shape index: {}]
  %s2 = inlined_call_operand.vmem [shape: f32[2,8,48], index: 2, kind: input, shape index: {}]
  %s3 = inlined_call_operand.vmem [shape: f32[2,48,8], index: 3, kind: input, shape index: {}]
  %s4 = inlined_call_operand.vmem [shape: f32[2,8], index: 4, kind: input, shape index: {}]
  %s5 = inlined_call_operand.vmem [shape: f32[3,2,32], index: 5, kind: input, shape index: {}]
  %s6 = inlined_call_operand.vmem [shape: f32[3,2,32], index: 6, kind: input, shape index: {}]
  %s7 = inlined_call_operand.vmem [shape: f32[16,128], index: 7, kind: input, shape index: {}]
  %s8 = inlined_call_operand.vmem [shape: f32[1,128], index: 8, kind: input, shape index: {}]
  %s9 = inlined_call_operand.vmem [shape: f32[32,128], index: 9, kind: input, shape index: {}]
  %s10 = inlined_call_operand.vmem [shape: f32[64,128], index: 10, kind: input, shape index: {}]
  %s11 = inlined_call_operand.vmem [shape: f32[1,128], index: 11, kind: input, shape index: {}]
  %s12 = inlined_call_operand.vmem [shape: f32[64,128], index: 12, kind: input, shape index: {}]
  %s13 = inlined_call_operand.vmem [shape: f32[1,128], index: 13, kind: input, shape index: {}]
  %s14 = inlined_call_operand.vmem [shape: f32[32,48], index: 14, kind: input, shape index: {}]
  %s15 = inlined_call_operand.vmem [shape: f32[32,1], index: 15, kind: input, shape index: {}]
  %s16 = inlined_call_operand.vmem [shape: f32[48,32], index: 16, kind: input, shape index: {}]
  %s17 = inlined_call_operand.vmem [shape: f32[32,32], index: 17, kind: input, shape index: {}]
  %s18 = inlined_call_operand.vmem [shape: f32[1,32], index: 18, kind: input, shape index: {}]
  %s19 = inlined_call_operand.vmem [shape: f32[32,128], index: 19, kind: input, shape index: {}]
  %s20 = inlined_call_operand.vmem [shape: f32[1,128], index: 20, kind: input, shape index: {}]
  %s21 = inlined_call_operand.vmem [shape: f32[6,2,128], index: 21, kind: output, shape index: {}]
  %s22 = sld [smem:[#allocation0]]
  $region94: #{attn_decoder_forward.1} parent=0
    _
  %s24 = ssub.s32 1, %s22
  %s25 = scalar_select 0, %s24, %s22
  // Predicated region
  $region2: #{attn_decoder_forward.1} parent=0 // pred_check
    _
  $region3: #{attn_decoder_forward.1} parent=0 // pred_check_branch
    %27 = sbr.rel (0) target = $region5
  $region4: #{attn_decoder_forward.1} parent=0 // pred_region
    _
  $region5: #{attn_decoder_forward.1} parent=0 // pred_fallthru
    _
  // Predicated region
  $region6: #{attn_decoder_forward.1} parent=0 // pred_check
    _
  $region7: #{attn_decoder_forward.1} parent=0 // pred_check_branch
    %29 = sbr.rel (0) target = $region9
  $region8: #{attn_decoder_forward.1} parent=0 // pred_region
    _
  $region9: #{attn_decoder_forward.1} parent=0 // pred_fallthru
    _
  // Predicated region
  $region10: #{attn_decoder_forward.1} parent=0 // pred_check
    _
  $region11: #{attn_decoder_forward.1} parent=0 // pred_check_branch
    %31 = sbr.rel (0) target = $region13
  $region12: #{attn_decoder_forward.1} parent=0 // pred_region
    _
  $region13: #{attn_decoder_forward.1} parent=0 // pred_fallthru
    _
  // Predicated region
  $region14: #{attn_decoder_forward.1} parent=0 // pred_check
    _
  $region15: #{attn_decoder_forward.1} parent=0 // pred_check_branch
    %33 = sbr.rel (0) target = $region17
  $region16: #{attn_decoder_forward.1} parent=0 // pred_region
    _
  $region17: #{attn_decoder_forward.1} parent=0 // pred_fallthru
    _
  // Predicated region
  $region18: #{attn_decoder_forward.1} parent=0 // pred_check
    _
  $region19: #{attn_decoder_forward.1} parent=0 // pred_check_branch
    %35 = sbr.rel (0) target = $region21
  $region20: #{attn_decoder_forward.1} parent=0 // pred_region
    _
  $region21: #{attn_decoder_forward.1} parent=0 // pred_fallthru
    _
  // Predicated region
  $region22: #{attn_decoder_forward.1} parent=0 // pred_check
    _
  $region23: #{attn_decoder_forward.1} parent=0 // pred_check_branch
    %37 = sbr.rel (0) target = $region25
  $region24: #{attn_decoder_forward.1} parent=0 // pred_region
    _
  $region25: #{attn_decoder_forward.1} parent=0 // pred_fallthru
    _
  // Predicated region
  $region26: #{attn_decoder_forward.1} parent=0 // pred_check
    _
  $region27: #{attn_decoder_forward.1} parent=0 // pred_check_branch
    %39 = sbr.rel (0) target = $region29
  $region28: #{attn_decoder_forward.1} parent=0 // pred_region
    _
  $region29: #{attn_decoder_forward.1} parent=0 // pred_fallthru
    _
  // Predicated region
  $region30: #{attn_decoder_forward.1} parent=0 // pred_check
    _
  $region31: #{attn_decoder_forward.1} parent=0 // pred_check_branch
    %41 = sbr.rel (0) target = $region33
  $region32: #{attn_decoder_forward.1} parent=0 // pred_region
    _
  $region33: #{attn_decoder_forward.1} parent=0 // pred_fallthru
    _
  // Predicated region
  $region34: #{attn_decoder_forward.1} parent=0 // pred_check
    _
  $region35: #{attn_decoder_forward.1} parent=0 // pred_check_branch
    %43 = sbr.rel (0) target = $region37
  $region36: #{attn_decoder_forward.1} parent=0 // pred_region
    _
  $region37: #{attn_decoder_forward.1} parent=0 // pred_fallthru
    _
  // Predicated region
  $region38: #{attn_decoder_forward.1} parent=0 // pred_check
    _
  $region39: #{attn_decoder_forward.1} parent=0 // pred_check_branch
    %45 = sbr.rel (0) target = $region41
  $region40: #{attn_decoder_forward.1} parent=0 // pred_region
    _
  $region41: #{attn_decoder_forward.1} parent=0 // pred_fallthru
    _
  // Predicated region
  $region42: #{attn_decoder_forward.1} parent=0 // pred_check
    _
  $region43: #{attn_decoder_forward.1} parent=0 // pred_check_branch
    %47 = sbr.rel (0) target = $region45
  $region44: #{attn_decoder_forward.1} parent=0 // pred_region
    _
  $region45: #{attn_decoder_forward.1} parent=0 // pred_fallthru
    _
  // Predicated region
  $region46: #{attn_decoder_forward.1} parent=0 // pred_check
    _
  $region47: #{attn_decoder_forward.1} parent=0 // pred_check_branch
    %49 = sbr.rel (0) target = $region49
  $region48: #{attn_decoder_forward.1} parent=0 // pred_region
    _
  $region49: #{attn_decoder_forward.1} parent=0 // pred_fallthru
    _
  // Predicated region
  $region50: #{attn_decoder_forward.1} parent=0 // pred_check
    _
  $region51: #{attn_decoder_forward.1} parent=0 // pred_check_branch
    %51 = sbr.rel (0) target = $region53
  $region52: #{attn_decoder_forward.1} parent=0 // pred_region
    _
  $region53: #{attn_decoder_forward.1} parent=0 // pred_fallthru
    _
  // Predicated region
  $region54: #{attn_decoder_forward.1} parent=0 // pred_check
    _
  $region55: #{attn_decoder_forward.1} parent=0 // pred_check_branch
    %53 = sbr.rel (0) target = $region57
  $region56: #{attn_decoder_forward.1} parent=0 // pred_region
    _
  $region57: #{attn_decoder_forward.1} parent=0 // pred_fallthru
    _
  // Predicated region
  $region58: #{attn_decoder_forward.1} parent=0 // pred_check
    _
  $region59: #{attn_decoder_forward.1} parent=0 // pred_check_branch
    %55 = sbr.rel (0) target = $region61
  $region60: #{attn_decoder_forward.1} parent=0 // pred_region
    _
  $region61: #{attn_decoder_forward.1} parent=0 // pred_fallthru
    _
  // Predicated region
  $region62: #{attn_decoder_forward.1} parent=0 // pred_check
    _
  $region63: #{attn_decoder_forward.1} parent=0 // pred_check_branch
    %57 = sbr.rel (0) target = $region65
  $region64: #{attn_decoder_forward.1} parent=0 // pred_region
    _
  $region65: #{attn_decoder_forward.1} parent=0 // pred_fallthru
    _
  // Predicated region
  $region66: #{attn_decoder_forward.1} parent=0 // pred_check
    _
  $region67: #{attn_decoder_forward.1} parent=0 // pred_check_branch
    %59 = sbr.rel (0) target = $region69
  $region68: #{attn_decoder_forward.1} parent=0 // pred_region
    _
  $region69: #{attn_decoder_forward.1} parent=0 // pred_fallthru
    _
  // Predicated region
  $region70: #{attn_decoder_forward.1} parent=0 // pred_check
    _
  $region71: #{attn_decoder_forward.1} parent=0 // pred_check_branch
    %61 = sbr.rel (0) target = $region73
  $region72: #{attn_decoder_forward.1} parent=0 // pred_region
    _
  $region73: #{attn_decoder_forward.1} parent=0 // pred_fallthru
    _
  // Predicated region
  $region74: #{attn_decoder_forward.1} parent=0 // pred_check
    _
  $region75: #{attn_decoder_forward.1} parent=0 // pred_check_branch
    %63 = sbr.rel (0) target = $region77
  $region76: #{attn_decoder_forward.1} parent=0 // pred_region
    _
  $region77: #{attn_decoder_forward.1} parent=0 // pred_fallthru
    _
  // Predicated region
  $region78: #{attn_decoder_forward.1} parent=0 // pred_check
    _
  $region79: #{attn_decoder_forward.1} parent=0 // pred_check_branch
    %65 = sbr.rel (0) target = $region81
  $region80: #{attn_decoder_forward.1} parent=0 // pred_region
    _
  $region81: #{attn_decoder_forward.1} parent=0 // pred_fallthru
    _
  // Predicated region
  $region82: #{attn_decoder_forward.1} parent=0 // pred_check
    _
  $region83: #{attn_decoder_forward.1} parent=0 // pred_check_branch
    %67 = sbr.rel (0) target = $region85
  $region84: #{attn_decoder_forward.1} parent=0 // pred_region
    _
  $region85: #{attn_decoder_forward.1} parent=0 // pred_fallthru
    _
  %v68 = vld [vmem:[%s1] sm:$0xff]
  %v69 = vld [vmem:[%s1 + $0x8] sm:$0xff]
  %v70 = vld [vmem:[%s1 + $0x10] sm:$0xff]
  %v71 = vld [vmem:[%s1 + $0x18] sm:$0xff]
  %v72 = vld [vmem:[%s1 + $0x20] sm:$0xff]
  %v73 = vld [vmem:[%s1 + $0x28] sm:$0xff]
  %v74 = vld [vmem:[%s1 + $0x30] sm:$0x3]
  %v75 = vld [vmem:[%s7] sm:$0xff]
  %v76 = vld [vmem:[%s7 + $0x8] sm:$0xff]
  %v77 = vld [vmem:[%s8] sm:$0x1]
  %v79 = vlaneseq
  %v80 = vshrl.u32 %v79, 7
  %v81 = vsub.s32 0, %v80
  %v82 = vrot.slane %v77, %v81
  %vm84 = vcmask 130048
  %v86 = vsel %vm84, %v68, 0
  %v89 = vsel %vm84, %v69, 0
  %v92 = vsel %vm84, %v70, 0
  %v95 = vsel %vm84, %v71, 0
  %v98 = vsel %vm84, %v72, 0
  %v101 = vsel %vm84, %v73, 0
  %v104 = vsel %vm84, %v74, 0
  %106 = vmatprep.subr.mxu0 0.0
  %107 = vmatpush1.msra.mxu0 %v75
  %108 = vmatprep.subr.mxu0 0.0
  %109 = vmatpush1.msra.mxu0 %v76
  %110 = vmatprep.subr.mxu0 0.0
  %111 = vmatpush1.msra.mxu0 0.0
  %112 = vmatprep.subr.mxu0 0.0
  %113 = vmatpush1.msra.mxu0 0.0
  %114 = vmatprep.subr.mxu0 0.0
  %115 = vmatpush1.msra.mxu0 0.0
  %116 = vmatprep.subr.mxu0 0.0
  %117 = vmatpush1.msra.mxu0 0.0
  %118 = vmatprep.subr.mxu0 0.0
  %119 = vmatpush1.msra.mxu0 0.0
  %120 = vmatprep.subr.mxu0 0.0
  %121 = vmatpush1.msra.mxu0 0.0
  %122 = vmatprep.subr.mxu0 0.0
  %123 = vmatpush1.msra.mxu0 0.0
  %124 = vmatprep.subr.mxu0 0.0
  %125 = vmatpush1.msra.mxu0 0.0
  %126 = vmatprep.subr.mxu0 0.0
  %127 = vmatpush1.msra.mxu0 0.0
  %128 = vmatprep.subr.mxu0 0.0
  %129 = vmatpush1.msra.mxu0 0.0
  %130 = vmatprep.subr.mxu0 0.0
  %131 = vmatpush1.msra.mxu0 0.0
  %132 = vmatprep.subr.mxu0 0.0
  %133 = vmatpush1.msra.mxu0 0.0
  %134 = vmatprep.subr.mxu0 0.0
  %135 = vmatpush1.msra.mxu0 0.0
  %136 = vmatprep.subr.mxu0 0.0
  %137 = vmatpush1.msra.mxu0 0.0
  %138 = vmatprep.subr.mxu0 0.0
  %139 = vmatpush1.msra.mxu0 0.0
  %140 = vmatprep.subr.mxu0 0.0
  %141 = vmatpush1.msra.mxu0 0.0
  %142 = vmatprep.subr.mxu0 0.0
  %143 = vmatpush1.msra.mxu0 0.0
  %144 = vmatprep.subr.mxu0 0.0
  %145 = vmatpush1.msra.mxu0 0.0
  %146 = vmatprep.subr.mxu0 0.0
  %147 = vmatpush1.msra.mxu0 0.0
  %148 = vmatprep.subr.mxu0 0.0
  %149 = vmatpush1.msra.mxu0 0.0
  %150 = vmatprep.subr.mxu0 0.0
  %151 = vmatpush1.msra.mxu0 0.0
  %152 = vmatprep.subr.mxu0 0.0
  %153 = vmatpush1.msra.mxu0 0.0
  %154 = vmatprep.subr.mxu0 0.0
  %155 = vmatpush1.msra.mxu0 0.0
  %156 = vmatprep.subr.mxu0 0.0
  %157 = vmatpush1.msra.mxu0 0.0
  %158 = vmatprep.subr.mxu0 0.0
  %159 = vmatpush1.msra.mxu0 0.0
  %160 = vmatprep.subr.mxu0 0.0
  %161 = vmatpush1.msra.mxu0 0.0
  %162 = vmatprep.subr.mxu0 0.0
  %163 = vmatpush1.msra.mxu0 0.0
  %164 = vmatprep.subr.mxu0 0.0
  %165 = vmatpush1.msra.mxu0 0.0
  %166 = vmatprep.subr.mxu0 0.0
  %167 = vmatpush1.msra.mxu0 0.0
  %168 = vmatprep.subr.mxu0 0.0
  %169 = vmatpush1.msra.mxu0 0.0
  %170 = vmatprep.mubr.f32.mxu0 0.0
  %171 = vmatmul.mubr.f32.gmra.mrb[0].mxu0 %v86
  %v172 = vpop.f32.mrb[0].mxu0
  %v173 = vadd.f32 %v82, %v172
  %v174 = vpop.f32.mrb[0].mxu0
  %175 = vmatprep.mubr.f32.mxu0 0.0
  %176 = vmatmul.mubr.f32.gmra.mrb[0].mxu0 %v89
  %v177 = vpop.f32.mrb[0].mxu0
  %v178 = vadd.f32 %v82, %v177
  %v179 = vpop.f32.mrb[0].mxu0
  %180 = vmatprep.mubr.f32.mxu0 0.0
  %181 = vmatmul.mubr.f32.gmra.mrb[0].mxu0 %v92
  %v182 = vpop.f32.mrb[0].mxu0
  %v183 = vadd.f32 %v82, %v182
  %v184 = vpop.f32.mrb[0].mxu0
  %185 = vmatprep.mubr.f32.mxu0 0.0
  %186 = vmatmul.mubr.f32.gmra.mrb[0].mxu0 %v95
  %v187 = vpop.f32.mrb[0].mxu0
  %v188 = vadd.f32 %v82, %v187
  %v189 = vpop.f32.mrb[0].mxu0
  %190 = vmatprep.mubr.f32.mxu0 0.0
  %191 = vmatmul.mubr.f32.gmra.mrb[0].mxu0 %v98
  %v192 = vpop.f32.mrb[0].mxu0
  %v193 = vadd.f32 %v82, %v192
  %v194 = vpop.f32.mrb[0].mxu0
  %195 = vmatprep.mubr.f32.mxu0 0.0
  %196 = vmatmul.mubr.f32.gmra.mrb[0].mxu0 %v101
  %v197 = vpop.f32.mrb[0].mxu0
  %v198 = vadd.f32 %v82, %v197
  %v199 = vpop.f32.mrb[0].mxu0
  %200 = vmatprep.mubr.f32.mxu0 0.0
  %201 = vmatmul.mubr.f32.gmra.mrb[0].mxu0 %v104
  %v202 = vpop.f32.mrb[0].mxu0
  %v203 = vadd.f32 %v82, %v202
  %v204 = vpop.f32.mrb[0].mxu0
  %205 = vdwg.mxu0
  %v206 = vld [vmem:[%s0] sm:$0xff]
  %v207 = vld [vmem:[%s0 + $0x8] sm:$0xf]
  %v208 = vlaneseq
  %v209 = vand.u32 %v208, 127
  %210 = vset.pattern.permute.xlu0 0
  %211 = vperm.xlu0 %210, %v206
  %v212 = vpop.permute.xlu0 %211
  %213 = vset.pattern.permute.xlu0 0
  %214 = vperm.xlu0 %213, %v207
  %v215 = vpop.permute.xlu0 %214
  %vm216 = vcmp.eq.s32.totalorder %v212, %v209
  %vm217 = vcmp.eq.s32.totalorder %v215, %v209
  %v218 = vsel %vm216, 1, 0
  %v219 = vsel %vm217, 1, 0
  %v220 = vcvt.s32.f32 %v218
  %v221 = vcvt.s32.f32 %v219
  %vm222 = vcmask 408576
  %v224 = vsel %vm222, %v220, 0
  %v227 = vsel %vm222, %v221, 0
  %vm229 = vcmask 1041408
  %v231 = vsel %vm229, %v203, 0
  %233 = vmatprep.subr.mxu0 0.0
  %234 = vmatpush1.msra.mxu0 %v173
  %235 = vmatprep.subr.mxu0 0.0
  %236 = vmatpush1.msra.mxu0 %v178
  %237 = vmatprep.subr.mxu0 0.0
  %238 = vmatpush1.msra.mxu0 %v183
  %239 = vmatprep.subr.mxu0 0.0
  %240 = vmatpush1.msra.mxu0 %v188
  %241 = vmatprep.subr.mxu0 0.0
  %242 = vmatpush1.msra.mxu0 %v193
  %243 = vmatprep.subr.mxu0 0.0
  %244 = vmatpush1.msra.mxu0 %v198
  %245 = vmatprep.subr.mxu0 0.0
  %246 = vmatpush1.msra.mxu0 %v231
  %247 = vmatprep.subr.mxu0 0.0
  %248 = vmatpush1.msra.mxu0 0.0
  %249 = vmatprep.subr.mxu0 0.0
  %250 = vmatpush1.msra.mxu0 0.0
  %251 = vmatprep.subr.mxu0 0.0
  %252 = vmatpush1.msra.mxu0 0.0
  %253 = vmatprep.subr.mxu0 0.0
  %254 = vmatpush1.msra.mxu0 0.0
  %255 = vmatprep.subr.mxu0 0.0
  %256 = vmatpush1.msra.mxu0 0.0
  %257 = vmatprep.subr.mxu0 0.0
  %258 = vmatpush1.msra.mxu0 0.0
  %259 = vmatprep.subr.mxu0 0.0
  %260 = vmatpush1.msra.mxu0 0.0
  %261 = vmatprep.subr.mxu0 0.0
  %262 = vmatpush1.msra.mxu0 0.0
  %263 = vmatprep.subr.mxu0 0.0
  %264 = vmatpush1.msra.mxu0 0.0
  %265 = vmatprep.subr.mxu0 0.0
  %266 = vmatpush1.msra.mxu0 0.0
  %267 = vmatprep.subr.mxu0 0.0
  %268 = vmatpush1.msra.mxu0 0.0
  %269 = vmatprep.subr.mxu0 0.0
  %270 = vmatpush1.msra.mxu0 0.0
  %271 = vmatprep.subr.mxu0 0.0
  %272 = vmatpush1.msra.mxu0 0.0
  %273 = vmatprep.subr.mxu0 0.0
  %274 = vmatpush1.msra.mxu0 0.0
  %275 = vmatprep.subr.mxu0 0.0
  %276 = vmatpush1.msra.mxu0 0.0
  %277 = vmatprep.subr.mxu0 0.0
  %278 = vmatpush1.msra.mxu0 0.0
  %279 = vmatprep.subr.mxu0 0.0
  %280 = vmatpush1.msra.mxu0 0.0
  %281 = vmatprep.subr.mxu0 0.0
  %282 = vmatpush1.msra.mxu0 0.0
  %283 = vmatprep.subr.mxu0 0.0
  %284 = vmatpush1.msra.mxu0 0.0
  %285 = vmatprep.subr.mxu0 0.0
  %286 = vmatpush1.msra.mxu0 0.0
  %287 = vmatprep.subr.mxu0 0.0
  %288 = vmatpush1.msra.mxu0 0.0
  %289 = vmatprep.subr.mxu0 0.0
  %290 = vmatpush1.msra.mxu0 0.0
  %291 = vmatprep.subr.mxu0 0.0
  %292 = vmatpush1.msra.mxu0 0.0
  %293 = vmatprep.subr.mxu0 0.0
  %294 = vmatpush1.msra.mxu0 0.0
  %295 = vmatprep.subr.mxu0 0.0
  %296 = vmatpush1.msra.mxu0 0.0
  %297 = vmatprep.mubr.f32.mxu0 0.0
  %298 = vmatmul.mubr.f32.gmra.mrb[0].mxu0 %v224
  %v299 = vpop.f32.mrb[0].mxu0
  %v300 = vadd.f32 0.0, %v299
  %v301 = vpop.f32.mrb[0].mxu0
  %302 = vmatprep.mubr.f32.mxu0 0.0
  %303 = vmatmul.mubr.f32.gmra.mrb[0].mxu0 %v227
  %v304 = vpop.f32.mrb[0].mxu0
  %v305 = vadd.f32 0.0, %v304
  %v306 = vpop.f32.mrb[0].mxu0
  %307 = vdwg.mxu0
  %v308 = vld [vmem:[%s14] sm:$0xff]
  %v309 = vld [vmem:[%s14 + $0x8] sm:$0xff]
  %v310 = vld [vmem:[%s14 + $0x10] sm:$0xff]
  %v311 = vld [vmem:[%s14 + $0x18] sm:$0xff]
  %v312 = vld [vmem:[%s15] sm:$0xff]
  %v313 = vld [vmem:[%s15 + $0x8] sm:$0xff]
  %v314 = vld [vmem:[%s15 + $0x10] sm:$0xff]
  %v315 = vld [vmem:[%s15 + $0x18] sm:$0xff]
  %v316 = vld [vmem:[%s3] sm:$0xff]
  %v317 = vld [vmem:[%s3 + $0x8] sm:$0xff]
  %v318 = vld [vmem:[%s3 + $0x10] sm:$0xff]
  %v319 = vld [vmem:[%s3 + $0x18] sm:$0xff]
  %v320 = vld [vmem:[%s3 + $0x20] sm:$0xff]
  %v321 = vld [vmem:[%s3 + $0x28] sm:$0xff]
  %323 = vset.pattern.permute.xlu0 0
  %324 = vperm.xlu0 %323, %v312
  %v325 = vpop.permute.xlu0 %324
  %328 = vset.pattern.permute.xlu0 0
  %329 = vperm.xlu0 %328, %v313
  %v330 = vpop.permute.xlu0 %329
  %333 = vset.pattern.permute.xlu0 0
  %334 = vperm.xlu0 %333, %v314
  %v335 = vpop.permute.xlu0 %334
  %338 = vset.pattern.permute.xlu0 0
  %339 = vperm.xlu0 %338, %v315
  %v340 = vpop.permute.xlu0 %339
  %vm342 = vcmask 392192
  %v344 = vsel %vm342, %v308, 0
  %v347 = vsel %vm342, %v309, 0
  %v350 = vsel %vm342, %v310, 0
  %v353 = vsel %vm342, %v311, 0
  %355 = vmatprep.subr.mxu0 0.0
  %356 = vmatpush1.msra.mxu0 %v316
  %357 = vmatprep.subr.mxu0 0.0
  %358 = vmatpush1.msra.mxu0 %v317
  %359 = vmatprep.subr.mxu0 0.0
  %360 = vmatpush1.msra.mxu0 %v318
  %361 = vmatprep.subr.mxu0 0.0
  %362 = vmatpush1.msra.mxu0 %v319
  %363 = vmatprep.subr.mxu0 0.0
  %364 = vmatpush1.msra.mxu0 %v320
  %365 = vmatprep.subr.mxu0 0.0
  %366 = vmatpush1.msra.mxu0 %v321
  %367 = vmatprep.subr.mxu0 0.0
  %368 = vmatpush1.msra.mxu0 0.0
  %369 = vmatprep.subr.mxu0 0.0
  %370 = vmatpush1.msra.mxu0 0.0
  %371 = vmatprep.subr.mxu0 0.0
  %372 = vmatpush1.msra.mxu0 0.0
  %373 = vmatprep.subr.mxu0 0.0
  %374 = vmatpush1.msra.mxu0 0.0
  %375 = vmatprep.subr.mxu0 0.0
  %376 = vmatpush1.msra.mxu0 0.0
  %377 = vmatprep.subr.mxu0 0.0
  %378 = vmatpush1.msra.mxu0 0.0
  %379 = vmatprep.subr.mxu0 0.0
  %380 = vmatpush1.msra.mxu0 0.0
  %381 = vmatprep.subr.mxu0 0.0
  %382 = vmatpush1.msra.mxu0 0.0
  %383 = vmatprep.subr.mxu0 0.0
  %384 = vmatpush1.msra.mxu0 0.0
  %385 = vmatprep.subr.mxu0 0.0
  %386 = vmatpush1.msra.mxu0 0.0
  %387 = vmatprep.subr.mxu0 0.0
  %388 = vmatpush1.msra.mxu0 0.0
  %389 = vmatprep.subr.mxu0 0.0
  %390 = vmatpush1.msra.mxu0 0.0
  %391 = vmatprep.subr.mxu0 0.0
  %392 = vmatpush1.msra.mxu0 0.0
  %393 = vmatprep.subr.mxu0 0.0
  %394 = vmatpush1.msra.mxu0 0.0
  %395 = vmatprep.subr.mxu0 0.0
  %396 = vmatpush1.msra.mxu0 0.0
  %397 = vmatprep.subr.mxu0 0.0
  %398 = vmatpush1.msra.mxu0 0.0
  %399 = vmatprep.subr.mxu0 0.0
  %400 = vmatpush1.msra.mxu0 0.0
  %401 = vmatprep.subr.mxu0 0.0
  %402 = vmatpush1.msra.mxu0 0.0
  %403 = vmatprep.subr.mxu0 0.0
  %404 = vmatpush1.msra.mxu0 0.0
  %405 = vmatprep.subr.mxu0 0.0
  %406 = vmatpush1.msra.mxu0 0.0
  %407 = vmatprep.subr.mxu0 0.0
  %408 = vmatpush1.msra.mxu0 0.0
  %409 = vmatprep.subr.mxu0 0.0
  %410 = vmatpush1.msra.mxu0 0.0
  %411 = vmatprep.subr.mxu0 0.0
  %412 = vmatpush1.msra.mxu0 0.0
  %413 = vmatprep.subr.mxu0 0.0
  %414 = vmatpush1.msra.mxu0 0.0
  %415 = vmatprep.subr.mxu0 0.0
  %416 = vmatpush1.msra.mxu0 0.0
  %417 = vmatprep.subr.mxu0 0.0
  %418 = vmatpush1.msra.mxu0 0.0
  %419 = vmatprep.mubr.f32.mxu0 0.0
  %420 = vmatmul.mubr.f32.gmra.mrb[0].mxu0 %v344
  %v421 = vpop.f32.mrb[0].mxu0
  %v422 = vadd.f32 %v325, %v421
  %v423 = vpop.f32.mrb[0].mxu0
  %424 = vmatprep.mubr.f32.mxu0 0.0
  %425 = vmatmul.mubr.f32.gmra.mrb[0].mxu0 %v347
  %v426 = vpop.f32.mrb[0].mxu0
  %v427 = vadd.f32 %v330, %v426
  %v428 = vpop.f32.mrb[0].mxu0
  %429 = vmatprep.mubr.f32.mxu0 0.0
  %430 = vmatmul.mubr.f32.gmra.mrb[0].mxu0 %v350
  %v431 = vpop.f32.mrb[0].mxu0
  %v432 = vadd.f32 %v335, %v431
  %v433 = vpop.f32.mrb[0].mxu0
  %434 = vmatprep.mubr.f32.mxu0 0.0
  %435 = vmatmul.mubr.f32.gmra.mrb[0].mxu0 %v353
  %v436 = vpop.f32.mrb[0].mxu0
  %v437 = vadd.f32 %v340, %v436
  %v438 = vpop.f32.mrb[0].mxu0
  %439 = vdwg.mxu0
  %s440 = scalar_lea.vmem %s3, 48
  %v441 = vld [vmem:[%s440] sm:$0xff]
  %v442 = vld [vmem:[%s440 + $0x8] sm:$0xff]
  %v443 = vld [vmem:[%s440 + $0x10] sm:$0xff]
  %v444 = vld [vmem:[%s440 + $0x18] sm:$0xff]
  %v445 = vld [vmem:[%s440 + $0x20] sm:$0xff]
  %v446 = vld [vmem:[%s440 + $0x28] sm:$0xff]
  %447 = vmatprep.subr.mxu0 0.0
  %448 = vmatpush1.msra.mxu0 %v441
  %449 = vmatprep.subr.mxu0 0.0
  %450 = vmatpush1.msra.mxu0 %v442
  %451 = vmatprep.subr.mxu0 0.0
  %452 = vmatpush1.msra.mxu0 %v443
  %453 = vmatprep.subr.mxu0 0.0
  %454 = vmatpush1.msra.mxu0 %v444
  %455 = vmatprep.subr.mxu0 0.0
  %456 = vmatpush1.msra.mxu0 %v445
  %457 = vmatprep.subr.mxu0 0.0
  %458 = vmatpush1.msra.mxu0 %v446
  %459 = vmatprep.subr.mxu0 0.0
  %460 = vmatpush1.msra.mxu0 0.0
  %461 = vmatprep.subr.mxu0 0.0
  %462 = vmatpush1.msra.mxu0 0.0
  %463 = vmatprep.subr.mxu0 0.0
  %464 = vmatpush1.msra.mxu0 0.0
  %465 = vmatprep.subr.mxu0 0.0
  %466 = vmatpush1.msra.mxu0 0.0
  %467 = vmatprep.subr.mxu0 0.0
  %468 = vmatpush1.msra.mxu0 0.0
  %469 = vmatprep.subr.mxu0 0.0
  %470 = vmatpush1.msra.mxu0 0.0
  %471 = vmatprep.subr.mxu0 0.0
  %472 = vmatpush1.msra.mxu0 0.0
  %473 = vmatprep.subr.mxu0 0.0
  %474 = vmatpush1.msra.mxu0 0.0
  %475 = vmatprep.subr.mxu0 0.0
  %476 = vmatpush1.msra.mxu0 0.0
  %477 = vmatprep.subr.mxu0 0.0
  %478 = vmatpush1.msra.mxu0 0.0
  %479 = vmatprep.subr.mxu0 0.0
  %480 = vmatpush1.msra.mxu0 0.0
  %481 = vmatprep.subr.mxu0 0.0
  %482 = vmatpush1.msra.mxu0 0.0
  %483 = vmatprep.subr.mxu0 0.0
  %484 = vmatpush1.msra.mxu0 0.0
  %485 = vmatprep.subr.mxu0 0.0
  %486 = vmatpush1.msra.mxu0 0.0
  %487 = vmatprep.subr.mxu0 0.0
  %488 = vmatpush1.msra.mxu0 0.0
  %489 = vmatprep.subr.mxu0 0.0
  %490 = vmatpush1.msra.mxu0 0.0
  %491 = vmatprep.subr.mxu0 0.0
  %492 = vmatpush1.msra.mxu0 0.0
  %493 = vmatprep.subr.mxu0 0.0
  %494 = vmatpush1.msra.mxu0 0.0
  %495 = vmatprep.subr.mxu0 0.0
  %496 = vmatpush1.msra.mxu0 0.0
  %497 = vmatprep.subr.mxu0 0.0
  %498 = vmatpush1.msra.mxu0 0.0
  %499 = vmatprep.subr.mxu0 0.0
  %500 = vmatpush1.msra.mxu0 0.0
  %501 = vmatprep.subr.mxu0 0.0
  %502 = vmatpush1.msra.mxu0 0.0
  %503 = vmatprep.subr.mxu0 0.0
  %504 = vmatpush1.msra.mxu0 0.0
  %505 = vmatprep.subr.mxu0 0.0
  %506 = vmatpush1.msra.mxu0 0.0
  %507 = vmatprep.subr.mxu0 0.0
  %508 = vmatpush1.msra.mxu0 0.0
  %509 = vmatprep.subr.mxu0 0.0
  %510 = vmatpush1.msra.mxu0 0.0
  %511 = vmatprep.mubr.f32.mxu0 0.0
  %512 = vmatmul.mubr.f32.gmra.mrb[0].mxu0 %v344
  %v513 = vpop.f32.mrb[0].mxu0
  %v514 = vadd.f32 %v325, %v513
  %v515 = vpop.f32.mrb[0].mxu0
  %516 = vmatprep.mubr.f32.mxu0 0.0
  %517 = vmatmul.mubr.f32.gmra.mrb[0].mxu0 %v347
  %v518 = vpop.f32.mrb[0].mxu0
  %v519 = vadd.f32 %v330, %v518
  %v520 = vpop.f32.mrb[0].mxu0
  %521 = vmatprep.mubr.f32.mxu0 0.0
  %522 = vmatmul.mubr.f32.gmra.mrb[0].mxu0 %v350
  %v523 = vpop.f32.mrb[0].mxu0
  %v524 = vadd.f32 %v335, %v523
  %v525 = vpop.f32.mrb[0].mxu0
  %526 = vmatprep.mubr.f32.mxu0 0.0
  %527 = vmatmul.mubr.f32.gmra.mrb[0].mxu0 %v353
  %v528 = vpop.f32.mrb[0].mxu0
  %v529 = vadd.f32 %v340, %v528
  %v530 = vpop.f32.mrb[0].mxu0
  %531 = vdwg.mxu0
  %v532 = vld [vmem:[%s2] sm:$0xff]
  %v533 = vld [vmem:[%s2 + $0x8] sm:$0xff]
  %v534 = vld [vmem:[%s4] sm:$0x3]
  %v535 = vld [vmem:[%s9] sm:$0xff]
  %v536 = vld [vmem:[%s9 + $0x8] sm:$0xff]
  %v537 = vld [vmem:[%s9 + $0x10] sm:$0xff]
  %v538 = vld [vmem:[%s9 + $0x18] sm:$0xff]
  %v539 = vld [vmem:[%s10] sm:$0xff]
  %v540 = vld [vmem:[%s10 + $0x8] sm:$0xff]
  %v541 = vld [vmem:[%s10 + $0x10] sm:$0xff]
  %v542 = vld [vmem:[%s10 + $0x18] sm:$0xff]
  %v543 = vld [vmem:[%s10 + $0x20] sm:$0xff]
  %v544 = vld [vmem:[%s10 + $0x28] sm:$0xff]
  %v545 = vld [vmem:[%s10 + $0x30] sm:$0xff]
  %v546 = vld [vmem:[%s10 + $0x38] sm:$0xff]
  %v547 = vld [vmem:[%s11] sm:$0x1]
  %v548 = vld [vmem:[%s12] sm:$0xff]
  %v549 = vld [vmem:[%s12 + $0x8] sm:$0xff]
  %v550 = vld [vmem:[%s12 + $0x10] sm:$0xff]
  %v551 = vld [vmem:[%s12 + $0x18] sm:$0xff]
  %v552 = vld [vmem:[%s12 + $0x20] sm:$0xff]
  %v553 = vld [vmem:[%s12 + $0x28] sm:$0xff]
  %v554 = vld [vmem:[%s12 + $0x30] sm:$0xff]
  %v555 = vld [vmem:[%s12 + $0x38] sm:$0xff]
  %v556 = vld [vmem:[%s13] sm:$0x1]
  %v557 = vld [vmem:[%s16] sm:$0xff]
  %v558 = vld [vmem:[%s16 + $0x8] sm:$0xff]
  %v559 = vld [vmem:[%s16 + $0x10] sm:$0xff]
  %v560 = vld [vmem:[%s16 + $0x18] sm:$0xff]
  %v561 = vld [vmem:[%s16 + $0x20] sm:$0xff]
  %v562 = vld [vmem:[%s16 + $0x28] sm:$0xff]
  %v563 = vld [vmem:[%s17] sm:$0xff]
  %v564 = vld [vmem:[%s17 + $0x8] sm:$0xff]
  %v565 = vld [vmem:[%s17 + $0x10] sm:$0xff]
  %v566 = vld [vmem:[%s17 + $0x18] sm:$0xff]
  %v567 = vld [vmem:[%s18] sm:$0x1]
  %v568 = vld [vmem:[%s19] sm:$0xff]
  %v569 = vld [vmem:[%s19 + $0x8] sm:$0xff]
  %v570 = vld [vmem:[%s19 + $0x10] sm:$0xff]
  %v571 = vld [vmem:[%s19 + $0x18] sm:$0xff]
  %v572 = vld [vmem:[%s20] sm:$0x1]
  %v573 = vld [vmem:[%s5] sm:$0x3]
  %v574 = vld [vmem:[%s6] sm:$0x3]
  %s575 = scalar_lea.vmem %s5, 2
  %v576 = vld [vmem:[%s575] sm:$0x3]
  %s577 = scalar_lea.vmem %s6, 2
  %v578 = vld [vmem:[%s577] sm:$0x3]
  %s579 = scalar_lea.vmem %s5, 4
  %v580 = vld [vmem:[%s579] sm:$0x3]
  %s581 = scalar_lea.vmem %s6, 4
  %v582 = vld [vmem:[%s581] sm:$0x3]
  %vm583 = vcmask 261120
  %v585 = vsel %vm583, %v573, 0
  %587 = vmatprep.subr.mxu0 0.0
  %588 = vmatpush1.msra.mxu0 %v535
  %589 = vmatprep.subr.mxu0 0.0
  %590 = vmatpush1.msra.mxu0 %v536
  %591 = vmatprep.subr.mxu0 0.0
  %592 = vmatpush1.msra.mxu0 %v537
  %593 = vmatprep.subr.mxu0 0.0
  %594 = vmatpush1.msra.mxu0 %v538
  %595 = vmatprep.subr.mxu0 0.0
  %596 = vmatpush1.msra.mxu0 0.0
  %597 = vmatprep.subr.mxu0 0.0
  %598 = vmatpush1.msra.mxu0 0.0
  %599 = vmatprep.subr.mxu0 0.0
  %600 = vmatpush1.msra.mxu0 0.0
  %601 = vmatprep.subr.mxu0 0.0
  %602 = vmatpush1.msra.mxu0 0.0
  %603 = vmatprep.subr.mxu0 0.0
  %604 = vmatpush1.msra.mxu0 0.0
  %605 = vmatprep.subr.mxu0 0.0
  %606 = vmatpush1.msra.mxu0 0.0
  %607 = vmatprep.subr.mxu0 0.0
  %608 = vmatpush1.msra.mxu0 0.0
  %609 = vmatprep.subr.mxu0 0.0
  %610 = vmatpush1.msra.mxu0 0.0
  %611 = vmatprep.subr.mxu0 0.0
  %612 = vmatpush1.msra.mxu0 0.0
  %613 = vmatprep.subr.mxu0 0.0
  %614 = vmatpush1.msra.mxu0 0.0
  %615 = vmatprep.subr.mxu0 0.0
  %616 = vmatpush1.msra.mxu0 0.0
  %617 = vmatprep.subr.mxu0 0.0
  %618 = vmatpush1.msra.mxu0 0.0
  %619 = vmatprep.subr.mxu0 0.0
  %620 = vmatpush1.msra.mxu0 0.0
  %621 = vmatprep.subr.mxu0 0.0
  %622 = vmatpush1.msra.mxu0 0.0
  %623 = vmatprep.subr.mxu0 0.0
  %624 = vmatpush1.msra.mxu0 0.0
  %625 = vmatprep.subr.mxu0 0.0
  %626 = vmatpush1.msra.mxu0 0.0
  %627 = vmatprep.subr.mxu0 0.0
  %628 = vmatpush1.msra.mxu0 0.0
  %629 = vmatprep.subr.mxu0 0.0
  %630 = vmatpush1.msra.mxu0 0.0
  %631 = vmatprep.subr.mxu0 0.0
  %632 = vmatpush1.msra.mxu0 0.0
  %633 = vmatprep.subr.mxu0 0.0
  %634 = vmatpush1.msra.mxu0 0.0
  %635 = vmatprep.subr.mxu0 0.0
  %636 = vmatpush1.msra.mxu0 0.0
  %637 = vmatprep.subr.mxu0 0.0
  %638 = vmatpush1.msra.mxu0 0.0
  %639 = vmatprep.subr.mxu0 0.0
  %640 = vmatpush1.msra.mxu0 0.0
  %641 = vmatprep.subr.mxu0 0.0
  %642 = vmatpush1.msra.mxu0 0.0
  %643 = vmatprep.subr.mxu0 0.0
  %644 = vmatpush1.msra.mxu0 0.0
  %645 = vmatprep.subr.mxu0 0.0
  %646 = vmatpush1.msra.mxu0 0.0
  %647 = vmatprep.subr.mxu0 0.0
  %648 = vmatpush1.msra.mxu0 0.0
  %649 = vmatprep.subr.mxu0 0.0
  %650 = vmatpush1.msra.mxu0 0.0
  %651 = vmatprep.mubr.f32.mxu0 0.0
  %652 = vmatmul.mubr.f32.gmra.mrb[0].mxu0 %v585
  %v653 = vpop.f32.mrb[0].mxu0
  %v654 = vadd.f32 0.0, %v653
  %v655 = vpop.f32.mrb[0].mxu0
  %656 = vdwg.mxu0
  %v657 = vadd.f32 %v300, %v654
  %v658 = vxor.u32 %v657, 2147483648
  %v659 = vmul.f32 %v658, 1.442695
  %v660 = vpow.pop %v659
  %v661 = vadd.f32 %v660, 1.0
  %v662 = vrcp.pop %v661
  %v663 = vmul.f32 1.0, %v662
  %v664 = vtanh.pop %v657
  %666 = vrot.lane.b32.xlu0 %v574, 32
  %v667 = vpop.permute.xlu0 %666
  %v669 = vmul.f32 %v663, %v667
  %671 = vrot.lane.b32.xlu0 %v664, 64
  %v672 = vpop.permute.xlu0 %671
  %v674 = vmul.f32 %v663, %v672
  %676 = vrot.lane.b32.xlu0 %v674, 32
  %v677 = vpop.permute.xlu0 %676
  %v679 = vadd.f32 %v669, %v677
  %v680 = vtanh.pop %v679
  %682 = vrot.lane.b32.xlu0 %v680, 64
  %v683 = vpop.permute.xlu0 %682
  %v685 = vmul.f32 %v663, %v683
  %687 = vrot.lane.b32.xlu0 %v685, 32
  %v688 = vpop.permute.xlu0 %687
  %691 = vrot.lane.b32.xlu0 %v576, 32
  %v692 = vpop.permute.xlu0 %691
  %v694 = vsel %vm583, %v688, %v692
  %v696 = vlaneseq
  %v697 = vshrl.u32 %v696, 7
  %v698 = vsub.s32 0, %v697
  %v699 = vrot.slane %v547, %v698
  %vm701 = vcmask 523264
  %v703 = vsel %vm701, %v694, 0
  %705 = vmatprep.subr.mxu0 0.0
  %706 = vmatpush1.msra.mxu0 %v539
  %707 = vmatprep.subr.mxu0 0.0
  %708 = vmatpush1.msra.mxu0 %v540
  %709 = vmatprep.subr.mxu0 0.0
  %710 = vmatpush1.msra.mxu0 %v541
  %711 = vmatprep.subr.mxu0 0.0
  %712 = vmatpush1.msra.mxu0 %v542
  %713 = vmatprep.subr.mxu0 0.0
  %714 = vmatpush1.msra.mxu0 %v543
  %715 = vmatprep.subr.mxu0 0.0
  %716 = vmatpush1.msra.mxu0 %v544
  %717 = vmatprep.subr.mxu0 0.0
  %718 = vmatpush1.msra.mxu0 %v545
  %719 = vmatprep.subr.mxu0 0.0
  %720 = vmatpush1.msra.mxu0 %v546
  %721 = vmatprep.subr.mxu0 0.0
  %722 = vmatpush1.msra.mxu0 0.0
  %723 = vmatprep.subr.mxu0 0.0
  %724 = vmatpush1.msra.mxu0 0.0
  %725 = vmatprep.subr.mxu0 0.0
  %726 = vmatpush1.msra.mxu0 0.0
  %727 = vmatprep.subr.mxu0 0.0
  %728 = vmatpush1.msra.mxu0 0.0
  %729 = vmatprep.subr.mxu0 0.0
  %730 = vmatpush1.msra.mxu0 0.0
  %731 = vmatprep.subr.mxu0 0.0
  %732 = vmatpush1.msra.mxu0 0.0
  %733 = vmatprep.subr.mxu0 0.0
  %734 = vmatpush1.msra.mxu0 0.0
  %735 = vmatprep.subr.mxu0 0.0
  %736 = vmatpush1.msra.mxu0 0.0
  %737 = vmatprep.subr.mxu0 0.0
  %738 = vmatpush1.msra.mxu0 0.0
  %739 = vmatprep.subr.mxu0 0.0
  %740 = vmatpush1.msra.mxu0 0.0
  %741 = vmatprep.subr.mxu0 0.0
  %742 = vmatpush1.msra.mxu0 0.0
  %743 = vmatprep.subr.mxu0 0.0
  %744 = vmatpush1.msra.mxu0 0.0
  %745 = vmatprep.subr.mxu0 0.0
  %746 = vmatpush1.msra.mxu0 0.0
  %747 = vmatprep.subr.mxu0 0.0
  %748 = vmatpush1.msra.mxu0 0.0
  %749 = vmatprep.subr.mxu0 0.0
  %750 = vmatpush1.msra.mxu0 0.0
  %751 = vmatprep.subr.mxu0 0.0
  %752 = vmatpush1.msra.mxu0 0.0
  %753 = vmatprep.subr.mxu0 0.0
  %754 = vmatpush1.msra.mxu0 0.0
  %755 = vmatprep.subr.mxu0 0.0
  %756 = vmatpush1.msra.mxu0 0.0
  %757 = vmatprep.subr.mxu0 0.0
  %758 = vmatpush1.msra.mxu0 0.0
  %759 = vmatprep.subr.mxu0 0.0
  %760 = vmatpush1.msra.mxu0 0.0
  %761 = vmatprep.subr.mxu0 0.0
  %762 = vmatpush1.msra.mxu0 0.0
  %763 = vmatprep.subr.mxu0 0.0
  %764 = vmatpush1.msra.mxu0 0.0
  %765 = vmatprep.subr.mxu0 0.0
  %766 = vmatpush1.msra.mxu0 0.0
  %767 = vmatprep.subr.mxu0 0.0
  %768 = vmatpush1.msra.mxu0 0.0
  %769 = vmatprep.mubr.f32.mxu0 0.0
  %770 = vmatmul.mubr.f32.gmra.mrb[0].mxu0 %v703
  %v771 = vpop.f32.mrb[0].mxu0
  %v772 = vadd.f32 %v699, %v771
  %v773 = vpop.f32.mrb[0].mxu0
  %774 = vdwg.mxu0
  %v775 = vxor.u32 %v772, 2147483648
  %v776 = vmul.f32 %v775, 1.442695
  %v777 = vpow.pop %v776
  %v778 = vadd.f32 %v777, 1.0
  %v779 = vrcp.pop %v778
  %v780 = vmul.f32 1.0, %v779
  %v781 = vtanh.pop %v772
  %783 = vrot.lane.b32.xlu0 %v578, 32
  %v784 = vpop.permute.xlu0 %783
  %v786 = vmul.f32 %v780, %v784
  %788 = vrot.lane.b32.xlu0 %v781, 64
  %v789 = vpop.permute.xlu0 %788
  %v791 = vmul.f32 %v780, %v789
  %793 = vrot.lane.b32.xlu0 %v791, 32
  %v794 = vpop.permute.xlu0 %793
  %v796 = vadd.f32 %v786, %v794
  %v797 = vtanh.pop %v796
  %799 = vrot.lane.b32.xlu0 %v797, 64
  %v800 = vpop.permute.xlu0 %799
  %v802 = vmul.f32 %v780, %v800
  %804 = vrot.lane.b32.xlu0 %v802, 32
  %v805 = vpop.permute.xlu0 %804
  %808 = vrot.lane.b32.xlu0 %v580, 32
  %v809 = vpop.permute.xlu0 %808
  %v811 = vsel %vm583, %v805, %v809
  %v813 = vlaneseq
  %v814 = vshrl.u32 %v813, 7
  %v815 = vsub.s32 0, %v814
  %v816 = vrot.slane %v556, %v815
  %v819 = vsel %vm701, %v811, 0
  %821 = vmatprep.subr.mxu0 0.0
  %822 = vmatpush1.msra.mxu0 %v548
  %823 = vmatprep.subr.mxu0 0.0
  %824 = vmatpush1.msra.mxu0 %v549
  %825 = vmatprep.subr.mxu0 0.0
  %826 = vmatpush1.msra.mxu0 %v550
  %827 = vmatprep.subr.mxu0 0.0
  %828 = vmatpush1.msra.mxu0 %v551
  %829 = vmatprep.subr.mxu0 0.0
  %830 = vmatpush1.msra.mxu0 %v552
  %831 = vmatprep.subr.mxu0 0.0
  %832 = vmatpush1.msra.mxu0 %v553
  %833 = vmatprep.subr.mxu0 0.0
  %834 = vmatpush1.msra.mxu0 %v554
  %835 = vmatprep.subr.mxu0 0.0
  %836 = vmatpush1.msra.mxu0 %v555
  %837 = vmatprep.subr.mxu0 0.0
  %838 = vmatpush1.msra.mxu0 0.0
  %839 = vmatprep.subr.mxu0 0.0
  %840 = vmatpush1.msra.mxu0 0.0
  %841 = vmatprep.subr.mxu0 0.0
  %842 = vmatpush1.msra.mxu0 0.0
  %843 = vmatprep.subr.mxu0 0.0
  %844 = vmatpush1.msra.mxu0 0.0
  %845 = vmatprep.subr.mxu0 0.0
  %846 = vmatpush1.msra.mxu0 0.0
  %847 = vmatprep.subr.mxu0 0.0
  %848 = vmatpush1.msra.mxu0 0.0
  %849 = vmatprep.subr.mxu0 0.0
  %850 = vmatpush1.msra.mxu0 0.0
  %851 = vmatprep.subr.mxu0 0.0
  %852 = vmatpush1.msra.mxu0 0.0
  %853 = vmatprep.subr.mxu0 0.0
  %854 = vmatpush1.msra.mxu0 0.0
  %855 = vmatprep.subr.mxu0 0.0
  %856 = vmatpush1.msra.mxu0 0.0
  %857 = vmatprep.subr.mxu0 0.0
  %858 = vmatpush1.msra.mxu0 0.0
  %859 = vmatprep.subr.mxu0 0.0
  %860 = vmatpush1.msra.mxu0 0.0
  %861 = vmatprep.subr.mxu0 0.0
  %862 = vmatpush1.msra.mxu0 0.0
  %863 = vmatprep.subr.mxu0 0.0
  %864 = vmatpush1.msra.mxu0 0.0
  %865 = vmatprep.subr.mxu0 0.0
  %866 = vmatpush1.msra.mxu0 0.0
  %867 = vmatprep.subr.mxu0 0.0
  %868 = vmatpush1.msra.mxu0 0.0
  %869 = vmatprep.subr.mxu0 0.0
  %870 = vmatpush1.msra.mxu0 0.0
  %871 = vmatprep.subr.mxu0 0.0
  %872 = vmatpush1.msra.mxu0 0.0
  %873 = vmatprep.subr.mxu0 0.0
  %874 = vmatpush1.msra.mxu0 0.0
  %875 = vmatprep.subr.mxu0 0.0
  %876 = vmatpush1.msra.mxu0 0.0
  %877 = vmatprep.subr.mxu0 0.0
  %878 = vmatpush1.msra.mxu0 0.0
  %879 = vmatprep.subr.mxu0 0.0
  %880 = vmatpush1.msra.mxu0 0.0
  %881 = vmatprep.subr.mxu0 0.0
  %882 = vmatpush1.msra.mxu0 0.0
  %883 = vmatprep.subr.mxu0 0.0
  %884 = vmatpush1.msra.mxu0 0.0
  %885 = vmatprep.mubr.f32.mxu0 0.0
  %886 = vmatmul.mubr.f32.gmra.mrb[0].mxu0 %v819
  %v887 = vpop.f32.mrb[0].mxu0
  %v888 = vadd.f32 %v816, %v887
  %v889 = vpop.f32.mrb[0].mxu0
  %890 = vdwg.mxu0
  %v891 = vxor.u32 %v888, 2147483648
  %v892 = vmul.f32 %v891, 1.442695
  %v893 = vpow.pop %v892
  %v894 = vadd.f32 %v893, 1.0
  %v895 = vrcp.pop %v894
  %v896 = vmul.f32 1.0, %v895
  %v897 = vtanh.pop %v888
  %899 = vrot.lane.b32.xlu0 %v582, 32
  %v900 = vpop.permute.xlu0 %899
  %v902 = vmul.f32 %v896, %v900
  %904 = vrot.lane.b32.xlu0 %v897, 64
  %v905 = vpop.permute.xlu0 %904
  %v907 = vmul.f32 %v896, %v905
  %909 = vrot.lane.b32.xlu0 %v907, 32
  %v910 = vpop.permute.xlu0 %909
  %v912 = vadd.f32 %v902, %v910
  %v913 = vtanh.pop %v912
  %915 = vrot.lane.b32.xlu0 %v913, 64
  %v916 = vpop.permute.xlu0 %915
  %v918 = vmul.f32 %v896, %v916
  %920 = vrot.lane.b32.xlu0 %v918, 32
  %v921 = vpop.permute.xlu0 %920
  %v922 = vsel %vm583, %v921, 0
  %924 = vmatprep.subr.mxu0 0.0
  %925 = vmatpush1.msra.mxu0 %v422
  %926 = vmatprep.subr.mxu0 0.0
  %927 = vmatpush1.msra.mxu0 %v427
  %928 = vmatprep.subr.mxu0 0.0
  %929 = vmatpush1.msra.mxu0 %v432
  %930 = vmatprep.subr.mxu0 0.0
  %931 = vmatpush1.msra.mxu0 %v437
  %932 = vmatprep.subr.mxu0 0.0
  %933 = vmatpush1.msra.mxu0 0.0
  %934 = vmatprep.subr.mxu0 0.0
  %935 = vmatpush1.msra.mxu0 0.0
  %936 = vmatprep.subr.mxu0 0.0
  %937 = vmatpush1.msra.mxu0 0.0
  %938 = vmatprep.subr.mxu0 0.0
  %939 = vmatpush1.msra.mxu0 0.0
  %940 = vmatprep.subr.mxu0 0.0
  %941 = vmatpush1.msra.mxu0 0.0
  %942 = vmatprep.subr.mxu0 0.0
  %943 = vmatpush1.msra.mxu0 0.0
  %944 = vmatprep.subr.mxu0 0.0
  %945 = vmatpush1.msra.mxu0 0.0
  %946 = vmatprep.subr.mxu0 0.0
  %947 = vmatpush1.msra.mxu0 0.0
  %948 = vmatprep.subr.mxu0 0.0
  %949 = vmatpush1.msra.mxu0 0.0
  %950 = vmatprep.subr.mxu0 0.0
  %951 = vmatpush1.msra.mxu0 0.0
  %952 = vmatprep.subr.mxu0 0.0
  %953 = vmatpush1.msra.mxu0 0.0
  %954 = vmatprep.subr.mxu0 0.0
  %955 = vmatpush1.msra.mxu0 0.0
  %956 = vmatprep.subr.mxu0 0.0
  %957 = vmatpush1.msra.mxu0 0.0
  %958 = vmatprep.subr.mxu0 0.0
  %959 = vmatpush1.msra.mxu0 0.0
  %960 = vmatprep.subr.mxu0 0.0
  %961 = vmatpush1.msra.mxu0 0.0
  %962 = vmatprep.subr.mxu0 0.0
  %963 = vmatpush1.msra.mxu0 0.0
  %964 = vmatprep.subr.mxu0 0.0
  %965 = vmatpush1.msra.mxu0 0.0
  %966 = vmatprep.subr.mxu0 0.0
  %967 = vmatpush1.msra.mxu0 0.0
  %968 = vmatprep.subr.mxu0 0.0
  %969 = vmatpush1.msra.mxu0 0.0
  %970 = vmatprep.subr.mxu0 0.0
  %971 = vmatpush1.msra.mxu0 0.0
  %972 = vmatprep.subr.mxu0 0.0
  %973 = vmatpush1.msra.mxu0 0.0
  %974 = vmatprep.subr.mxu0 0.0
  %975 = vmatpush1.msra.mxu0 0.0
  %976 = vmatprep.subr.mxu0 0.0
  %977 = vmatpush1.msra.mxu0 0.0
  %978 = vmatprep.subr.mxu0 0.0
  %979 = vmatpush1.msra.mxu0 0.0
  %980 = vmatprep.subr.mxu0 0.0
  %981 = vmatpush1.msra.mxu0 0.0
  %982 = vmatprep.subr.mxu0 0.0
  %983 = vmatpush1.msra.mxu0 0.0
  %984 = vmatprep.subr.mxu0 0.0
  %985 = vmatpush1.msra.mxu0 0.0
  %986 = vmatprep.subr.mxu0 0.0
  %987 = vmatpush1.msra.mxu0 0.0
  %988 = vmatprep.mubr.f32.mxu0 0.0
  %989 = vmatmul.mubr.f32.gmra.mrb[0].mxu0 %v922
  %v990 = vpop.f32.mrb[0].mxu0
  %v991 = vadd.f32 %v534, %v990
  %v992 = vpop.f32.mrb[0].mxu0
  %993 = vdwg.mxu0
  %vm994 = vcmask 57344
  %v995 = vsel %vm994, %v991, -inf
  %996 = vmax.xlane.f32.xlu0 %v995
  %v997 = vpop.xlane.xlu0 %996
  %v998 = vsub.f32 %v991, %v997
  %v999 = vmul.f32 %v998, 1.442695
  %v1000 = vpow.pop %v999
  %v1001 = vsel %vm994, %v1000, 0.0
  %1002 = vadd.xlane.f32.xlu0 %v1001
  %v1003 = vpop.xlane.xlu0 %1002
  %v1004 = vrcp.pop %v1003
  %v1005 = vmul.f32 %v1000, %v1004
  %vm1006 = vcmask 64512
  %v1008 = vsel %vm1006, %v1005, 0
  %1010 = vmatprep.subr.mxu0 0.0
  %1011 = vmatpush1.msra.mxu0 %v532
  %1012 = vmatprep.subr.mxu0 0.0
  %1013 = vmatpush1.msra.mxu0 0.0
  %1014 = vmatprep.subr.mxu0 0.0
  %1015 = vmatpush1.msra.mxu0 0.0
  %1016 = vmatprep.subr.mxu0 0.0
  %1017 = vmatpush1.msra.mxu0 0.0
  %1018 = vmatprep.subr.mxu0 0.0
  %1019 = vmatpush1.msra.mxu0 0.0
  %1020 = vmatprep.subr.mxu0 0.0
  %1021 = vmatpush1.msra.mxu0 0.0
  %1022 = vmatprep.subr.mxu0 0.0
  %1023 = vmatpush1.msra.mxu0 0.0
  %1024 = vmatprep.subr.mxu0 0.0
  %1025 = vmatpush1.msra.mxu0 0.0
  %1026 = vmatprep.subr.mxu0 0.0
  %1027 = vmatpush1.msra.mxu0 0.0
  %1028 = vmatprep.subr.mxu0 0.0
  %1029 = vmatpush1.msra.mxu0 0.0
  %1030 = vmatprep.subr.mxu0 0.0
  %1031 = vmatpush1.msra.mxu0 0.0
  %1032 = vmatprep.subr.mxu0 0.0
  %1033 = vmatpush1.msra.mxu0 0.0
  %1034 = vmatprep.subr.mxu0 0.0
  %1035 = vmatpush1.msra.mxu0 0.0
  %1036 = vmatprep.subr.mxu0 0.0
  %1037 = vmatpush1.msra.mxu0 0.0
  %1038 = vmatprep.subr.mxu0 0.0
  %1039 = vmatpush1.msra.mxu0 0.0
  %1040 = vmatprep.subr.mxu0 0.0
  %1041 = vmatpush1.msra.mxu0 0.0
  %1042 = vmatprep.subr.mxu0 0.0
  %1043 = vmatpush1.msra.mxu0 0.0
  %1044 = vmatprep.subr.mxu0 0.0
  %1045 = vmatpush1.msra.mxu0 0.0
  %1046 = vmatprep.subr.mxu0 0.0
  %1047 = vmatpush1.msra.mxu0 0.0
  %1048 = vmatprep.subr.mxu0 0.0
  %1049 = vmatpush1.msra.mxu0 0.0
  %1050 = vmatprep.subr.mxu0 0.0
  %1051 = vmatpush1.msra.mxu0 0.0
  %1052 = vmatprep.subr.mxu0 0.0
  %1053 = vmatpush1.msra.mxu0 0.0
  %1054 = vmatprep.subr.mxu0 0.0
  %1055 = vmatpush1.msra.mxu0 0.0
  %1056 = vmatprep.subr.mxu0 0.0
  %1057 = vmatpush1.msra.mxu0 0.0
  %1058 = vmatprep.subr.mxu0 0.0
  %1059 = vmatpush1.msra.mxu0 0.0
  %1060 = vmatprep.subr.mxu0 0.0
  %1061 = vmatpush1.msra.mxu0 0.0
  %1062 = vmatprep.subr.mxu0 0.0
  %1063 = vmatpush1.msra.mxu0 0.0
  %1064 = vmatprep.subr.mxu0 0.0
  %1065 = vmatpush1.msra.mxu0 0.0
  %1066 = vmatprep.subr.mxu0 0.0
  %1067 = vmatpush1.msra.mxu0 0.0
  %1068 = vmatprep.subr.mxu0 0.0
  %1069 = vmatpush1.msra.mxu0 0.0
  %1070 = vmatprep.subr.mxu0 0.0
  %1071 = vmatpush1.msra.mxu0 0.0
  %1072 = vmatprep.subr.mxu0 0.0
  %1073 = vmatpush1.msra.mxu0 0.0
  %1074 = vmatprep.mubr.f32.mxu0 0.0
  %1075 = vmatmul.mubr.f32.gmra.mrb[0].mxu0 %v1008
  %v1076 = vpop.f32.mrb[0].mxu0
  %v1077 = vadd.f32 0.0, %v1076
  %v1078 = vpop.f32.mrb[0].mxu0
  %1079 = vdwg.mxu0
  %v1080 = vrot.slane %v918, 1
  %1081 = vrot.lane.b32.xlu0 %v1080, 32
  %v1082 = vpop.permute.xlu0 %1081
  %v1084 = vrot.slane %v534, 1
  %v1086 = vsel %vm583, %v1082, 0
  %1088 = vmatprep.subr.mxu0 0.0
  %1089 = vmatpush1.msra.mxu0 %v514
  %1090 = vmatprep.subr.mxu0 0.0
  %1091 = vmatpush1.msra.mxu0 %v519
  %1092 = vmatprep.subr.mxu0 0.0
  %1093 = vmatpush1.msra.mxu0 %v524
  %1094 = vmatprep.subr.mxu0 0.0
  %1095 = vmatpush1.msra.mxu0 %v529
  %1096 = vmatprep.subr.mxu0 0.0
  %1097 = vmatpush1.msra.mxu0 0.0
  %1098 = vmatprep.subr.mxu0 0.0
  %1099 = vmatpush1.msra.mxu0 0.0
  %1100 = vmatprep.subr.mxu0 0.0
  %1101 = vmatpush1.msra.mxu0 0.0
  %1102 = vmatprep.subr.mxu0 0.0
  %1103 = vmatpush1.msra.mxu0 0.0
  %1104 = vmatprep.subr.mxu0 0.0
  %1105 = vmatpush1.msra.mxu0 0.0
  %1106 = vmatprep.subr.mxu0 0.0
  %1107 = vmatpush1.msra.mxu0 0.0
  %1108 = vmatprep.subr.mxu0 0.0
  %1109 = vmatpush1.msra.mxu0 0.0
  %1110 = vmatprep.subr.mxu0 0.0
  %1111 = vmatpush1.msra.mxu0 0.0
  %1112 = vmatprep.subr.mxu0 0.0
  %1113 = vmatpush1.msra.mxu0 0.0
  %1114 = vmatprep.subr.mxu0 0.0
  %1115 = vmatpush1.msra.mxu0 0.0
  %1116 = vmatprep.subr.mxu0 0.0
  %1117 = vmatpush1.msra.mxu0 0.0
  %1118 = vmatprep.subr.mxu0 0.0
  %1119 = vmatpush1.msra.mxu0 0.0
  %1120 = vmatprep.subr.mxu0 0.0
  %1121 = vmatpush1.msra.mxu0 0.0
  %1122 = vmatprep.subr.mxu0 0.0
  %1123 = vmatpush1.msra.mxu0 0.0
  %1124 = vmatprep.subr.mxu0 0.0
  %1125 = vmatpush1.msra.mxu0 0.0
  %1126 = vmatprep.subr.mxu0 0.0
  %1127 = vmatpush1.msra.mxu0 0.0
  %1128 = vmatprep.subr.mxu0 0.0
  %1129 = vmatpush1.msra.mxu0 0.0
  %1130 = vmatprep.subr.mxu0 0.0
  %1131 = vmatpush1.msra.mxu0 0.0
  %1132 = vmatprep.subr.mxu0 0.0
  %1133 = vmatpush1.msra.mxu0 0.0
  %1134 = vmatprep.subr.mxu0 0.0
  %1135 = vmatpush1.msra.mxu0 0.0
  %1136 = vmatprep.subr.mxu0 0.0
  %1137 = vmatpush1.msra.mxu0 0.0
  %1138 = vmatprep.subr.mxu0 0.0
  %1139 = vmatpush1.msra.mxu0 0.0
  %1140 = vmatprep.subr.mxu0 0.0
  %1141 = vmatpush1.msra.mxu0 0.0
  %1142 = vmatprep.subr.mxu0 0.0
  %1143 = vmatpush1.msra.mxu0 0.0
  %1144 = vmatprep.subr.mxu0 0.0
  %1145 = vmatpush1.msra.mxu0 0.0
  %1146 = vmatprep.subr.mxu0 0.0
  %1147 = vmatpush1.msra.mxu0 0.0
  %1148 = vmatprep.subr.mxu0 0.0
  %1149 = vmatpush1.msra.mxu0 0.0
  %1150 = vmatprep.subr.mxu0 0.0
  %1151 = vmatpush1.msra.mxu0 0.0
  %1152 = vmatprep.mubr.f32.mxu0 0.0
  %1153 = vmatmul.mubr.f32.gmra.mrb[0].mxu0 %v1086
  %v1154 = vpop.f32.mrb[0].mxu0
  %v1155 = vadd.f32 %v1084, %v1154
  %v1156 = vpop.f32.mrb[0].mxu0
  %1157 = vdwg.mxu0
  %v1158 = vsel %vm994, %v1155, -inf
  %1159 = vmax.xlane.f32.xlu0 %v1158
  %v1160 = vpop.xlane.xlu0 %1159
  %v1161 = vsub.f32 %v1155, %v1160
  %v1162 = vmul.f32 %v1161, 1.442695
  %v1163 = vpow.pop %v1162
  %v1164 = vsel %vm994, %v1163, 0.0
  %1165 = vadd.xlane.f32.xlu0 %v1164
  %v1166 = vpop.xlane.xlu0 %1165
  %v1167 = vrcp.pop %v1166
  %v1168 = vmul.f32 %v1163, %v1167
  %v1170 = vsel %vm1006, %v1168, 0
  %1172 = vmatprep.subr.mxu0 0.0
  %1173 = vmatpush1.msra.mxu0 %v533
  %1174 = vmatprep.subr.mxu0 0.0
  %1175 = vmatpush1.msra.mxu0 0.0
  %1176 = vmatprep.subr.mxu0 0.0
  %1177 = vmatpush1.msra.mxu0 0.0
  %1178 = vmatprep.subr.mxu0 0.0
  %1179 = vmatpush1.msra.mxu0 0.0
  %1180 = vmatprep.subr.mxu0 0.0
  %1181 = vmatpush1.msra.mxu0 0.0
  %1182 = vmatprep.subr.mxu0 0.0
  %1183 = vmatpush1.msra.mxu0 0.0
  %1184 = vmatprep.subr.mxu0 0.0
  %1185 = vmatpush1.msra.mxu0 0.0
  %1186 = vmatprep.subr.mxu0 0.0
  %1187 = vmatpush1.msra.mxu0 0.0
  %1188 = vmatprep.subr.mxu0 0.0
  %1189 = vmatpush1.msra.mxu0 0.0
  %1190 = vmatprep.subr.mxu0 0.0
  %1191 = vmatpush1.msra.mxu0 0.0
  %1192 = vmatprep.subr.mxu0 0.0
  %1193 = vmatpush1.msra.mxu0 0.0
  %1194 = vmatprep.subr.mxu0 0.0
  %1195 = vmatpush1.msra.mxu0 0.0
  %1196 = vmatprep.subr.mxu0 0.0
  %1197 = vmatpush1.msra.mxu0 0.0
  %1198 = vmatprep.subr.mxu0 0.0
  %1199 = vmatpush1.msra.mxu0 0.0
  %1200 = vmatprep.subr.mxu0 0.0
  %1201 = vmatpush1.msra.mxu0 0.0
  %1202 = vmatprep.subr.mxu0 0.0
  %1203 = vmatpush1.msra.mxu0 0.0
  %1204 = vmatprep.subr.mxu0 0.0
  %1205 = vmatpush1.msra.mxu0 0.0
  %1206 = vmatprep.subr.mxu0 0.0
  %1207 = vmatpush1.msra.mxu0 0.0
  %1208 = vmatprep.subr.mxu0 0.0
  %1209 = vmatpush1.msra.mxu0 0.0
  %1210 = vmatprep.subr.mxu0 0.0
  %1211 = vmatpush1.msra.mxu0 0.0
  %1212 = vmatprep.subr.mxu0 0.0
  %1213 = vmatpush1.msra.mxu0 0.0
  %1214 = vmatprep.subr.mxu0 0.0
  %1215 = vmatpush1.msra.mxu0 0.0
  %1216 = vmatprep.subr.mxu0 0.0
  %1217 = vmatpush1.msra.mxu0 0.0
  %1218 = vmatprep.subr.mxu0 0.0
  %1219 = vmatpush1.msra.mxu0 0.0
  %1220 = vmatprep.subr.mxu0 0.0
  %1221 = vmatpush1.msra.mxu0 0.0
  %1222 = vmatprep.subr.mxu0 0.0
  %1223 = vmatpush1.msra.mxu0 0.0
  %1224 = vmatprep.subr.mxu0 0.0
  %1225 = vmatpush1.msra.mxu0 0.0
  %1226 = vmatprep.subr.mxu0 0.0
  %1227 = vmatpush1.msra.mxu0 0.0
  %1228 = vmatprep.subr.mxu0 0.0
  %1229 = vmatpush1.msra.mxu0 0.0
  %1230 = vmatprep.subr.mxu0 0.0
  %1231 = vmatpush1.msra.mxu0 0.0
  %1232 = vmatprep.subr.mxu0 0.0
  %1233 = vmatpush1.msra.mxu0 0.0
  %1234 = vmatprep.subr.mxu0 0.0
  %1235 = vmatpush1.msra.mxu0 0.0
  %1236 = vmatprep.mubr.f32.mxu0 0.0
  %1237 = vmatmul.mubr.f32.gmra.mrb[0].mxu0 %v1170
  %v1238 = vpop.f32.mrb[0].mxu0
  %v1239 = vadd.f32 0.0, %v1238
  %v1240 = vpop.f32.mrb[0].mxu0
  %1241 = vdwg.mxu0
  %v1243 = vrot.slane %v1239, 7
  %vm1245 = vcmask 1040384
  %v1246 = vsel %vm1245, %v1077, %v1243
  %1247 = vmatprep.subr.mxu0 0.0
  %1248 = vmatpush1.msra.mxu0 %v563
  %1249 = vmatprep.subr.mxu0 0.0
  %1250 = vmatpush1.msra.mxu0 %v564
  %1251 = vmatprep.subr.mxu0 0.0
  %1252 = vmatpush1.msra.mxu0 %v565
  %1253 = vmatprep.subr.mxu0 0.0
  %1254 = vmatpush1.msra.mxu0 %v566
  %1255 = vmatprep.subr.mxu0 0.0
  %1256 = vmatpush1.msra.mxu0 0.0
  %1257 = vmatprep.subr.mxu0 0.0
  %1258 = vmatpush1.msra.mxu0 0.0
  %1259 = vmatprep.subr.mxu0 0.0
  %1260 = vmatpush1.msra.mxu0 0.0
  %1261 = vmatprep.subr.mxu0 0.0
  %1262 = vmatpush1.msra.mxu0 0.0
  %1263 = vmatprep.subr.mxu0 0.0
  %1264 = vmatpush1.msra.mxu0 0.0
  %1265 = vmatprep.subr.mxu0 0.0
  %1266 = vmatpush1.msra.mxu0 0.0
  %1267 = vmatprep.subr.mxu0 0.0
  %1268 = vmatpush1.msra.mxu0 0.0
  %1269 = vmatprep.subr.mxu0 0.0
  %1270 = vmatpush1.msra.mxu0 0.0
  %1271 = vmatprep.subr.mxu0 0.0
  %1272 = vmatpush1.msra.mxu0 0.0
  %1273 = vmatprep.subr.mxu0 0.0
  %1274 = vmatpush1.msra.mxu0 0.0
  %1275 = vmatprep.subr.mxu0 0.0
  %1276 = vmatpush1.msra.mxu0 0.0
  %1277 = vmatprep.subr.mxu0 0.0
  %1278 = vmatpush1.msra.mxu0 0.0
  %1279 = vmatprep.subr.mxu0 0.0
  %1280 = vmatpush1.msra.mxu0 0.0
  %1281 = vmatprep.subr.mxu0 0.0
  %1282 = vmatpush1.msra.mxu0 0.0
  %1283 = vmatprep.subr.mxu0 0.0
  %1284 = vmatpush1.msra.mxu0 0.0
  %1285 = vmatprep.subr.mxu0 0.0
  %1286 = vmatpush1.msra.mxu0 0.0
  %1287 = vmatprep.subr.mxu0 0.0
  %1288 = vmatpush1.msra.mxu0 0.0
  %1289 = vmatprep.subr.mxu0 0.0
  %1290 = vmatpush1.msra.mxu0 0.0
  %1291 = vmatprep.subr.mxu0 0.0
  %1292 = vmatpush1.msra.mxu0 0.0
  %1293 = vmatprep.subr.mxu0 0.0
  %1294 = vmatpush1.msra.mxu0 0.0
  %1295 = vmatprep.subr.mxu0 0.0
  %1296 = vmatpush1.msra.mxu0 0.0
  %1297 = vmatprep.subr.mxu0 0.0
  %1298 = vmatpush1.msra.mxu0 0.0
  %1299 = vmatprep.subr.mxu0 0.0
  %1300 = vmatpush1.msra.mxu0 0.0
  %1301 = vmatprep.subr.mxu0 0.0
  %1302 = vmatpush1.msra.mxu0 0.0
  %1303 = vmatprep.subr.mxu0 0.0
  %1304 = vmatpush1.msra.mxu0 0.0
  %1305 = vmatprep.subr.mxu0 0.0
  %1306 = vmatpush1.msra.mxu0 0.0
  %1307 = vmatprep.subr.mxu0 0.0
  %1308 = vmatpush1.msra.mxu0 0.0
  %1309 = vmatprep.subr.mxu0 0.0
  %1310 = vmatpush1.msra.mxu0 0.0
  %1311 = vmatprep.mubr.f32.mxu0 0.0
  %1312 = vmatmul.mubr.f32.gmra.mrb[0].mxu0 %v922
  %v1313 = vpop.f32.mrb[0].mxu0
  %v1314 = vadd.f32 0.0, %v1313
  %v1315 = vpop.f32.mrb[0].mxu0
  %1316 = vdwg.mxu0
  %v1318 = vsel %vm342, %v1246, 0
  %1320 = vmatprep.subr.mxu0 0.0
  %1321 = vmatpush1.msra.mxu0 %v557
  %1322 = vmatprep.subr.mxu0 0.0
  %1323 = vmatpush1.msra.mxu0 %v558
  %1324 = vmatprep.subr.mxu0 0.0
  %1325 = vmatpush1.msra.mxu0 %v559
  %1326 = vmatprep.subr.mxu0 0.0
  %1327 = vmatpush1.msra.mxu0 %v560
  %1328 = vmatprep.subr.mxu0 0.0
  %1329 = vmatpush1.msra.mxu0 %v561
  %1330 = vmatprep.subr.mxu0 0.0
  %1331 = vmatpush1.msra.mxu0 %v562
  %1332 = vmatprep.subr.mxu0 0.0
  %1333 = vmatpush1.msra.mxu0 0.0
  %1334 = vmatprep.subr.mxu0 0.0
  %1335 = vmatpush1.msra.mxu0 0.0
  %1336 = vmatprep.subr.mxu0 0.0
  %1337 = vmatpush1.msra.mxu0 0.0
  %1338 = vmatprep.subr.mxu0 0.0
  %1339 = vmatpush1.msra.mxu0 0.0
  %1340 = vmatprep.subr.mxu0 0.0
  %1341 = vmatpush1.msra.mxu0 0.0
  %1342 = vmatprep.subr.mxu0 0.0
  %1343 = vmatpush1.msra.mxu0 0.0
  %1344 = vmatprep.subr.mxu0 0.0
  %1345 = vmatpush1.msra.mxu0 0.0
  %1346 = vmatprep.subr.mxu0 0.0
  %1347 = vmatpush1.msra.mxu0 0.0
  %1348 = vmatprep.subr.mxu0 0.0
  %1349 = vmatpush1.msra.mxu0 0.0
  %1350 = vmatprep.subr.mxu0 0.0
  %1351 = vmatpush1.msra.mxu0 0.0
  %1352 = vmatprep.subr.mxu0 0.0
  %1353 = vmatpush1.msra.mxu0 0.0
  %1354 = vmatprep.subr.mxu0 0.0
  %1355 = vmatpush1.msra.mxu0 0.0
  %1356 = vmatprep.subr.mxu0 0.0
  %1357 = vmatpush1.msra.mxu0 0.0
  %1358 = vmatprep.subr.mxu0 0.0
  %1359 = vmatpush1.msra.mxu0 0.0
  %1360 = vmatprep.subr.mxu0 0.0
  %1361 = vmatpush1.msra.mxu0 0.0
  %1362 = vmatprep.subr.mxu0 0.0
  %1363 = vmatpush1.msra.mxu0 0.0
  %1364 = vmatprep.subr.mxu0 0.0
  %1365 = vmatpush1.msra.mxu0 0.0
  %1366 = vmatprep.subr.mxu0 0.0
  %1367 = vmatpush1.msra.mxu0 0.0
  %1368 = vmatprep.subr.mxu0 0.0
  %1369 = vmatpush1.msra.mxu0 0.0
  %1370 = vmatprep.subr.mxu0 0.0
  %1371 = vmatpush1.msra.mxu0 0.0
  %1372 = vmatprep.subr.mxu0 0.0
  %1373 = vmatpush1.msra.mxu0 0.0
  %1374 = vmatprep.subr.mxu0 0.0
  %1375 = vmatpush1.msra.mxu0 0.0
  %1376 = vmatprep.subr.mxu0 0.0
  %1377 = vmatpush1.msra.mxu0 0.0
  %1378 = vmatprep.subr.mxu0 0.0
  %1379 = vmatpush1.msra.mxu0 0.0
  %1380 = vmatprep.subr.mxu0 0.0
  %1381 = vmatpush1.msra.mxu0 0.0
  %1382 = vmatprep.subr.mxu0 0.0
  %1383 = vmatpush1.msra.mxu0 0.0
  %1384 = vmatprep.mubr.f32.mxu0 0.0
  %1385 = vmatmul.mubr.f32.gmra.mrb[0].mxu0 %v1318
  %v1386 = vpop.f32.mrb[0].mxu0
  %v1387 = vadd.f32 %v1314, %v1386
  %v1388 = vpop.f32.mrb[0].mxu0
  %1389 = vdwg.mxu0
  %v1391 = vlaneseq
  %v1392 = vshrl.u32 %v1391, 7
  %v1393 = vsub.s32 0, %v1392
  %v1394 = vrot.slane %v567, %v1393
  %v1396 = vadd.f32 %v1387, %v1394
  %v1397 = vtanh.pop %v1396
  %v1399 = vlaneseq
  %v1400 = vshrl.u32 %v1399, 7
  %v1401 = vsub.s32 0, %v1400
  %v1402 = vrot.slane %v572, %v1401
  %v1405 = vsel %vm583, %v1397, 0
  %1407 = vmatprep.subr.mxu0 0.0
  %1408 = vmatpush1.msra.mxu0 %v568
  %1409 = vmatprep.subr.mxu0 0.0
  %1410 = vmatpush1.msra.mxu0 %v569
  %1411 = vmatprep.subr.mxu0 0.0
  %1412 = vmatpush1.msra.mxu0 %v570
  %1413 = vmatprep.subr.mxu0 0.0
  %1414 = vmatpush1.msra.mxu0 %v571
  %1415 = vmatprep.subr.mxu0 0.0
  %1416 = vmatpush1.msra.mxu0 0.0
  %1417 = vmatprep.subr.mxu0 0.0
  %1418 = vmatpush1.msra.mxu0 0.0
  %1419 = vmatprep.subr.mxu0 0.0
  %1420 = vmatpush1.msra.mxu0 0.0
  %1421 = vmatprep.subr.mxu0 0.0
  %1422 = vmatpush1.msra.mxu0 0.0
  %1423 = vmatprep.subr.mxu0 0.0
  %1424 = vmatpush1.msra.mxu0 0.0
  %1425 = vmatprep.subr.mxu0 0.0
  %1426 = vmatpush1.msra.mxu0 0.0
  %1427 = vmatprep.subr.mxu0 0.0
  %1428 = vmatpush1.msra.mxu0 0.0
  %1429 = vmatprep.subr.mxu0 0.0
  %1430 = vmatpush1.msra.mxu0 0.0
  %1431 = vmatprep.subr.mxu0 0.0
  %1432 = vmatpush1.msra.mxu0 0.0
  %1433 = vmatprep.subr.mxu0 0.0
  %1434 = vmatpush1.msra.mxu0 0.0
  %1435 = vmatprep.subr.mxu0 0.0
  %1436 = vmatpush1.msra.mxu0 0.0
  %1437 = vmatprep.subr.mxu0 0.0
  %1438 = vmatpush1.msra.mxu0 0.0
  %1439 = vmatprep.subr.mxu0 0.0
  %1440 = vmatpush1.msra.mxu0 0.0
  %1441 = vmatprep.subr.mxu0 0.0
  %1442 = vmatpush1.msra.mxu0 0.0
  %1443 = vmatprep.subr.mxu0 0.0
  %1444 = vmatpush1.msra.mxu0 0.0
  %1445 = vmatprep.subr.mxu0 0.0
  %1446 = vmatpush1.msra.mxu0 0.0
  %1447 = vmatprep.subr.mxu0 0.0
  %1448 = vmatpush1.msra.mxu0 0.0
  %1449 = vmatprep.subr.mxu0 0.0
  %1450 = vmatpush1.msra.mxu0 0.0
  %1451 = vmatprep.subr.mxu0 0.0
  %1452 = vmatpush1.msra.mxu0 0.0
  %1453 = vmatprep.subr.mxu0 0.0
  %1454 = vmatpush1.msra.mxu0 0.0
  %1455 = vmatprep.subr.mxu0 0.0
  %1456 = vmatpush1.msra.mxu0 0.0
  %1457 = vmatprep.subr.mxu0 0.0
  %1458 = vmatpush1.msra.mxu0 0.0
  %1459 = vmatprep.subr.mxu0 0.0
  %1460 = vmatpush1.msra.mxu0 0.0
  %1461 = vmatprep.subr.mxu0 0.0
  %1462 = vmatpush1.msra.mxu0 0.0
  %1463 = vmatprep.subr.mxu0 0.0
  %1464 = vmatpush1.msra.mxu0 0.0
  %1465 = vmatprep.subr.mxu0 0.0
  %1466 = vmatpush1.msra.mxu0 0.0
  %1467 = vmatprep.subr.mxu0 0.0
  %1468 = vmatpush1.msra.mxu0 0.0
  %1469 = vmatprep.subr.mxu0 0.0
  %1470 = vmatpush1.msra.mxu0 0.0
  %1471 = vmatprep.mubr.f32.mxu0 0.0
  %1472 = vmatmul.mubr.f32.gmra.mrb[0].mxu0 %v1405
  %v1473 = vpop.f32.mrb[0].mxu0
  %v1474 = vadd.f32 %v1402, %v1473
  %v1475 = vpop.f32.mrb[0].mxu0
  %1476 = vdwg.mxu0
  %v1477 = vsel %vm229, %v1474, -inf
  %1478 = vmax.xlane.f32.xlu0 %v1477
  %v1479 = vpop.xlane.xlu0 %1478
  %v1480 = vsub.f32 %v1474, %v1479
  %v1481 = vmul.f32 %v1480, 1.442695
  %v1482 = vpow.pop %v1481
  %v1483 = vsel %vm229, %v1482, 0.0
  %1484 = vadd.xlane.f32.xlu0 %v1483
  %v1485 = vpop.xlane.xlu0 %1484
  %v1486 = vlog2.pop %v1485
  %v1487 = vmul.f32 %v1486, 0.6931472
  %v1488 = vsub.f32 %v1480, %v1487
  %1489 = vst [vmem:[%s21] sm:$0x3] %v1488
  %v1490 = vsel %vm583, %v688, 0
  %1492 = vmatprep.subr.mxu0 0.0
  %1493 = vmatpush1.msra.mxu0 %v535
  %1494 = vmatprep.subr.mxu0 0.0
  %1495 = vmatpush1.msra.mxu0 %v536
  %1496 = vmatprep.subr.mxu0 0.0
  %1497 = vmatpush1.msra.mxu0 %v537
  %1498 = vmatprep.subr.mxu0 0.0
  %1499 = vmatpush1.msra.mxu0 %v538
  %1500 = vmatprep.subr.mxu0 0.0
  %1501 = vmatpush1.msra.mxu0 0.0
  %1502 = vmatprep.subr.mxu0 0.0
  %1503 = vmatpush1.msra.mxu0 0.0
  %1504 = vmatprep.subr.mxu0 0.0
  %1505 = vmatpush1.msra.mxu0 0.0
  %1506 = vmatprep.subr.mxu0 0.0
  %1507 = vmatpush1.msra.mxu0 0.0
  %1508 = vmatprep.subr.mxu0 0.0
  %1509 = vmatpush1.msra.mxu0 0.0
  %1510 = vmatprep.subr.mxu0 0.0
  %1511 = vmatpush1.msra.mxu0 0.0
  %1512 = vmatprep.subr.mxu0 0.0
  %1513 = vmatpush1.msra.mxu0 0.0
  %1514 = vmatprep.subr.mxu0 0.0
  %1515 = vmatpush1.msra.mxu0 0.0
  %1516 = vmatprep.subr.mxu0 0.0
  %1517 = vmatpush1.msra.mxu0 0.0
  %1518 = vmatprep.subr.mxu0 0.0
  %1519 = vmatpush1.msra.mxu0 0.0
  %1520 = vmatprep.subr.mxu0 0.0
  %1521 = vmatpush1.msra.mxu0 0.0
  %1522 = vmatprep.subr.mxu0 0.0
  %1523 = vmatpush1.msra.mxu0 0.0
  %1524 = vmatprep.subr.mxu0 0.0
  %1525 = vmatpush1.msra.mxu0 0.0
  %1526 = vmatprep.subr.mxu0 0.0
  %1527 = vmatpush1.msra.mxu0 0.0
  %1528 = vmatprep.subr.mxu0 0.0
  %1529 = vmatpush1.msra.mxu0 0.0
  %1530 = vmatprep.subr.mxu0 0.0
  %1531 = vmatpush1.msra.mxu0 0.0
  %1532 = vmatprep.subr.mxu0 0.0
  %1533 = vmatpush1.msra.mxu0 0.0
  %1534 = vmatprep.subr.mxu0 0.0
  %1535 = vmatpush1.msra.mxu0 0.0
  %1536 = vmatprep.subr.mxu0 0.0
  %1537 = vmatpush1.msra.mxu0 0.0
  %1538 = vmatprep.subr.mxu0 0.0
  %1539 = vmatpush1.msra.mxu0 0.0
  %1540 = vmatprep.subr.mxu0 0.0
  %1541 = vmatpush1.msra.mxu0 0.0
  %1542 = vmatprep.subr.mxu0 0.0
  %1543 = vmatpush1.msra.mxu0 0.0
  %1544 = vmatprep.subr.mxu0 0.0
  %1545 = vmatpush1.msra.mxu0 0.0
  %1546 = vmatprep.subr.mxu0 0.0
  %1547 = vmatpush1.msra.mxu0 0.0
  %1548 = vmatprep.subr.mxu0 0.0
  %1549 = vmatpush1.msra.mxu0 0.0
  %1550 = vmatprep.subr.mxu0 0.0
  %1551 = vmatpush1.msra.mxu0 0.0
  %1552 = vmatprep.subr.mxu0 0.0
  %1553 = vmatpush1.msra.mxu0 0.0
  %1554 = vmatprep.subr.mxu0 0.0
  %1555 = vmatpush1.msra.mxu0 0.0
  %1556 = vmatprep.mubr.f32.mxu0 0.0
  %1557 = vmatmul.mubr.f32.gmra.mrb[0].mxu0 %v1490
  %v1558 = vpop.f32.mrb[0].mxu0
  %v1559 = vadd.f32 0.0, %v1558
  %v1560 = vpop.f32.mrb[0].mxu0
  %1561 = vdwg.mxu0
  %v1563 = vrot.slane %v1559, 6
  %v1565 = vadd.f32 %v300, %v1563
  %v1566 = vxor.u32 %v1565, 2147483648
  %v1567 = vmul.f32 %v1566, 1.442695
  %v1568 = vpow.pop %v1567
  %v1569 = vadd.f32 %v1568, 1.0
  %v1570 = vrcp.pop %v1569
  %v1571 = vmul.f32 1.0, %v1570
  %v1572 = vtanh.pop %v1565
  %v1574 = vrot.slane %v679, 6
  %v1576 = vmul.f32 %v1571, %v1574
  %1578 = vrot.lane.b32.xlu0 %v1572, 64
  %v1579 = vpop.permute.xlu0 %1578
  %v1581 = vmul.f32 %v1571, %v1579
  %1583 = vrot.lane.b32.xlu0 %v1581, 32
  %v1584 = vpop.permute.xlu0 %1583
  %v1586 = vadd.f32 %v1576, %v1584
  %v1587 = vtanh.pop %v1586
  %1589 = vrot.lane.b32.xlu0 %v1587, 64
  %v1590 = vpop.permute.xlu0 %1589
  %v1592 = vmul.f32 %v1571, %v1590
  %1594 = vrot.lane.b32.xlu0 %v1592, 32
  %v1595 = vpop.permute.xlu0 %1594
  %v1597 = vrot.slane %v802, 6
  %1598 = vrot.lane.b32.xlu0 %v1597, 64
  %v1599 = vpop.permute.xlu0 %1598
  %v1601 = vsel %vm583, %v1595, %v1599
  %v1603 = vrot.slane %v1601, 2
  %v1604 = vsel %vm701, %v1603, 0
  %1606 = vmatprep.subr.mxu0 0.0
  %1607 = vmatpush1.msra.mxu0 %v539
  %1608 = vmatprep.subr.mxu0 0.0
  %1609 = vmatpush1.msra.mxu0 %v540
  %1610 = vmatprep.subr.mxu0 0.0
  %1611 = vmatpush1.msra.mxu0 %v541
  %1612 = vmatprep.subr.mxu0 0.0
  %1613 = vmatpush1.msra.mxu0 %v542
  %1614 = vmatprep.subr.mxu0 0.0
  %1615 = vmatpush1.msra.mxu0 %v543
  %1616 = vmatprep.subr.mxu0 0.0
  %1617 = vmatpush1.msra.mxu0 %v544
  %1618 = vmatprep.subr.mxu0 0.0
  %1619 = vmatpush1.msra.mxu0 %v545
  %1620 = vmatprep.subr.mxu0 0.0
  %1621 = vmatpush1.msra.mxu0 %v546
  %1622 = vmatprep.subr.mxu0 0.0
  %1623 = vmatpush1.msra.mxu0 0.0
  %1624 = vmatprep.subr.mxu0 0.0
  %1625 = vmatpush1.msra.mxu0 0.0
  %1626 = vmatprep.subr.mxu0 0.0
  %1627 = vmatpush1.msra.mxu0 0.0
  %1628 = vmatprep.subr.mxu0 0.0
  %1629 = vmatpush1.msra.mxu0 0.0
  %1630 = vmatprep.subr.mxu0 0.0
  %1631 = vmatpush1.msra.mxu0 0.0
  %1632 = vmatprep.subr.mxu0 0.0
  %1633 = vmatpush1.msra.mxu0 0.0
  %1634 = vmatprep.subr.mxu0 0.0
  %1635 = vmatpush1.msra.mxu0 0.0
  %1636 = vmatprep.subr.mxu0 0.0
  %1637 = vmatpush1.msra.mxu0 0.0
  %1638 = vmatprep.subr.mxu0 0.0
  %1639 = vmatpush1.msra.mxu0 0.0
  %1640 = vmatprep.subr.mxu0 0.0
  %1641 = vmatpush1.msra.mxu0 0.0
  %1642 = vmatprep.subr.mxu0 0.0
  %1643 = vmatpush1.msra.mxu0 0.0
  %1644 = vmatprep.subr.mxu0 0.0
  %1645 = vmatpush1.msra.mxu0 0.0
  %1646 = vmatprep.subr.mxu0 0.0
  %1647 = vmatpush1.msra.mxu0 0.0
  %1648 = vmatprep.subr.mxu0 0.0
  %1649 = vmatpush1.msra.mxu0 0.0
  %1650 = vmatprep.subr.mxu0 0.0
  %1651 = vmatpush1.msra.mxu0 0.0
  %1652 = vmatprep.subr.mxu0 0.0
  %1653 = vmatpush1.msra.mxu0 0.0
  %1654 = vmatprep.subr.mxu0 0.0
  %1655 = vmatpush1.msra.mxu0 0.0
  %1656 = vmatprep.subr.mxu0 0.0
  %1657 = vmatpush1.msra.mxu0 0.0
  %1658 = vmatprep.subr.mxu0 0.0
  %1659 = vmatpush1.msra.mxu0 0.0
  %1660 = vmatprep.subr.mxu0 0.0
  %1661 = vmatpush1.msra.mxu0 0.0
  %1662 = vmatprep.subr.mxu0 0.0
  %1663 = vmatpush1.msra.mxu0 0.0
  %1664 = vmatprep.subr.mxu0 0.0
  %1665 = vmatpush1.msra.mxu0 0.0
  %1666 = vmatprep.subr.mxu0 0.0
  %1667 = vmatpush1.msra.mxu0 0.0
  %1668 = vmatprep.subr.mxu0 0.0
  %1669 = vmatpush1.msra.mxu0 0.0
  %1670 = vmatprep.mubr.f32.mxu0 0.0
  %1671 = vmatmul.mubr.f32.gmra.mrb[0].mxu0 %v1604
  %v1672 = vpop.f32.mrb[0].mxu0
  %v1673 = vadd.f32 %v699, %v1672
  %v1674 = vpop.f32.mrb[0].mxu0
  %1675 = vdwg.mxu0
  %v1676 = vxor.u32 %v1673, 2147483648
  %v1677 = vmul.f32 %v1676, 1.442695
  %v1678 = vpow.pop %v1677
  %v1679 = vadd.f32 %v1678, 1.0
  %v1680 = vrcp.pop %v1679
  %v1681 = vmul.f32 1.0, %v1680
  %v1682 = vtanh.pop %v1673
  %v1683 = vmul.f32 %v1681, %v796
  %1685 = vrot.lane.b32.xlu0 %v1682, 64
  %v1686 = vpop.permute.xlu0 %1685
  %v1688 = vmul.f32 %v1681, %v1686
  %1690 = vrot.lane.b32.xlu0 %v1688, 32
  %v1691 = vpop.permute.xlu0 %1690
  %v1693 = vadd.f32 %v1683, %v1691
  %v1694 = vtanh.pop %v1693
  %1696 = vrot.lane.b32.xlu0 %v1694, 64
  %v1697 = vpop.permute.xlu0 %1696
  %v1699 = vmul.f32 %v1681, %v1697
  %1701 = vrot.lane.b32.xlu0 %v1699, 32
  %v1702 = vpop.permute.xlu0 %1701
  %1704 = vrot.lane.b32.xlu0 %v918, 64
  %v1705 = vpop.permute.xlu0 %1704
  %v1707 = vsel %vm583, %v1702, %v1705
  %v1709 = vsel %vm701, %v1707, 0
  %1711 = vmatprep.subr.mxu0 0.0
  %1712 = vmatpush1.msra.mxu0 %v548
  %1713 = vmatprep.subr.mxu0 0.0
  %1714 = vmatpush1.msra.mxu0 %v549
  %1715 = vmatprep.subr.mxu0 0.0
  %1716 = vmatpush1.msra.mxu0 %v550
  %1717 = vmatprep.subr.mxu0 0.0
  %1718 = vmatpush1.msra.mxu0 %v551
  %1719 = vmatprep.subr.mxu0 0.0
  %1720 = vmatpush1.msra.mxu0 %v552
  %1721 = vmatprep.subr.mxu0 0.0
  %1722 = vmatpush1.msra.mxu0 %v553
  %1723 = vmatprep.subr.mxu0 0.0
  %1724 = vmatpush1.msra.mxu0 %v554
  %1725 = vmatprep.subr.mxu0 0.0
  %1726 = vmatpush1.msra.mxu0 %v555
  %1727 = vmatprep.subr.mxu0 0.0
  %1728 = vmatpush1.msra.mxu0 0.0
  %1729 = vmatprep.subr.mxu0 0.0
  %1730 = vmatpush1.msra.mxu0 0.0
  %1731 = vmatprep.subr.mxu0 0.0
  %1732 = vmatpush1.msra.mxu0 0.0
  %1733 = vmatprep.subr.mxu0 0.0
  %1734 = vmatpush1.msra.mxu0 0.0
  %1735 = vmatprep.subr.mxu0 0.0
  %1736 = vmatpush1.msra.mxu0 0.0
  %1737 = vmatprep.subr.mxu0 0.0
  %1738 = vmatpush1.msra.mxu0 0.0
  %1739 = vmatprep.subr.mxu0 0.0
  %1740 = vmatpush1.msra.mxu0 0.0
  %1741 = vmatprep.subr.mxu0 0.0
  %1742 = vmatpush1.msra.mxu0 0.0
  %1743 = vmatprep.subr.mxu0 0.0
  %1744 = vmatpush1.msra.mxu0 0.0
  %1745 = vmatprep.subr.mxu0 0.0
  %1746 = vmatpush1.msra.mxu0 0.0
  %1747 = vmatprep.subr.mxu0 0.0
  %1748 = vmatpush1.msra.mxu0 0.0
  %1749 = vmatprep.subr.mxu0 0.0
  %1750 = vmatpush1.msra.mxu0 0.0
  %1751 = vmatprep.subr.mxu0 0.0
  %1752 = vmatpush1.msra.mxu0 0.0
  %1753 = vmatprep.subr.mxu0 0.0
  %1754 = vmatpush1.msra.mxu0 0.0
  %1755 = vmatprep.subr.mxu0 0.0
  %1756 = vmatpush1.msra.mxu0 0.0
  %1757 = vmatprep.subr.mxu0 0.0
  %1758 = vmatpush1.msra.mxu0 0.0
  %1759 = vmatprep.subr.mxu0 0.0
  %1760 = vmatpush1.msra.mxu0 0.0
  %1761 = vmatprep.subr.mxu0 0.0
  %1762 = vmatpush1.msra.mxu0 0.0
  %1763 = vmatprep.subr.mxu0 0.0
  %1764 = vmatpush1.msra.mxu0 0.0
  %1765 = vmatprep.subr.mxu0 0.0
  %1766 = vmatpush1.msra.mxu0 0.0
  %1767 = vmatprep.subr.mxu0 0.0
  %1768 = vmatpush1.msra.mxu0 0.0
  %1769 = vmatprep.subr.mxu0 0.0
  %1770 = vmatpush1.msra.mxu0 0.0
  %1771 = vmatprep.subr.mxu0 0.0
  %1772 = vmatpush1.msra.mxu0 0.0
  %1773 = vmatprep.subr.mxu0 0.0
  %1774 = vmatpush1.msra.mxu0 0.0
  %1775 = vmatprep.mubr.f32.mxu0 0.0
  %1776 = vmatmul.mubr.f32.gmra.mrb[0].mxu0 %v1709
  %v1777 = vpop.f32.mrb[0].mxu0
  %v1778 = vadd.f32 %v816, %v1777
  %v1779 = vpop.f32.mrb[0].mxu0
  %1780 = vdwg.mxu0
  %v1781 = vxor.u32 %v1778, 2147483648
  %v1782 = vmul.f32 %v1781, 1.442695
  %v1783 = vpow.pop %v1782
  %v1784 = vadd.f32 %v1783, 1.0
  %v1785 = vrcp.pop %v1784
  %v1786 = vmul.f32 1.0, %v1785
  %v1787 = vtanh.pop %v1778
  %v1788 = vmul.f32 %v1786, %v912
  %1790 = vrot.lane.b32.xlu0 %v1787, 64
  %v1791 = vpop.permute.xlu0 %1790
  %v1793 = vmul.f32 %v1786, %v1791
  %1795 = vrot.lane.b32.xlu0 %v1793, 32
  %v1796 = vpop.permute.xlu0 %1795
  %v1798 = vadd.f32 %v1788, %v1796
  %v1799 = vtanh.pop %v1798
  %1801 = vrot.lane.b32.xlu0 %v1799, 64
  %v1802 = vpop.permute.xlu0 %1801
  %v1804 = vmul.f32 %v1786, %v1802
  %1806 = vrot.lane.b32.xlu0 %v1804, 32
  %v1807 = vpop.permute.xlu0 %1806
  %v1808 = vsel %vm583, %v1807, 0
  %1810 = vmatprep.subr.mxu0 0.0
  %1811 = vmatpush1.msra.mxu0 %v422
  %1812 = vmatprep.subr.mxu0 0.0
  %1813 = vmatpush1.msra.mxu0 %v427
  %1814 = vmatprep.subr.mxu0 0.0
  %1815 = vmatpush1.msra.mxu0 %v432
  %1816 = vmatprep.subr.mxu0 0.0
  %1817 = vmatpush1.msra.mxu0 %v437
  %1818 = vmatprep.subr.mxu0 0.0
  %1819 = vmatpush1.msra.mxu0 0.0
  %1820 = vmatprep.subr.mxu0 0.0
  %1821 = vmatpush1.msra.mxu0 0.0
  %1822 = vmatprep.subr.mxu0 0.0
  %1823 = vmatpush1.msra.mxu0 0.0
  %1824 = vmatprep.subr.mxu0 0.0
  %1825 = vmatpush1.msra.mxu0 0.0
  %1826 = vmatprep.subr.mxu0 0.0
  %1827 = vmatpush1.msra.mxu0 0.0
  %1828 = vmatprep.subr.mxu0 0.0
  %1829 = vmatpush1.msra.mxu0 0.0
  %1830 = vmatprep.subr.mxu0 0.0
  %1831 = vmatpush1.msra.mxu0 0.0
  %1832 = vmatprep.subr.mxu0 0.0
  %1833 = vmatpush1.msra.mxu0 0.0
  %1834 = vmatprep.subr.mxu0 0.0
  %1835 = vmatpush1.msra.mxu0 0.0
  %1836 = vmatprep.subr.mxu0 0.0
  %1837 = vmatpush1.msra.mxu0 0.0
  %1838 = vmatprep.subr.mxu0 0.0
  %1839 = vmatpush1.msra.mxu0 0.0
  %1840 = vmatprep.subr.mxu0 0.0
  %1841 = vmatpush1.msra.mxu0 0.0
  %1842 = vmatprep.subr.mxu0 0.0
  %1843 = vmatpush1.msra.mxu0 0.0
  %1844 = vmatprep.subr.mxu0 0.0
  %1845 = vmatpush1.msra.mxu0 0.0
  %1846 = vmatprep.subr.mxu0 0.0
  %1847 = vmatpush1.msra.mxu0 0.0
  %1848 = vmatprep.subr.mxu0 0.0
  %1849 = vmatpush1.msra.mxu0 0.0
  %1850 = vmatprep.subr.mxu0 0.0
  %1851 = vmatpush1.msra.mxu0 0.0
  %1852 = vmatprep.subr.mxu0 0.0
  %1853 = vmatpush1.msra.mxu0 0.0
  %1854 = vmatprep.subr.mxu0 0.0
  %1855 = vmatpush1.msra.mxu0 0.0
  %1856 = vmatprep.subr.mxu0 0.0
  %1857 = vmatpush1.msra.mxu0 0.0
  %1858 = vmatprep.subr.mxu0 0.0
  %1859 = vmatpush1.msra.mxu0 0.0
  %1860 = vmatprep.subr.mxu0 0.0
  %1861 = vmatpush1.msra.mxu0 0.0
  %1862 = vmatprep.subr.mxu0 0.0
  %1863 = vmatpush1.msra.mxu0 0.0
  %1864 = vmatprep.subr.mxu0 0.0
  %1865 = vmatpush1.msra.mxu0 0.0
  %1866 = vmatprep.subr.mxu0 0.0
  %1867 = vmatpush1.msra.mxu0 0.0
  %1868 = vmatprep.subr.mxu0 0.0
  %1869 = vmatpush1.msra.mxu0 0.0
  %1870 = vmatprep.subr.mxu0 0.0
  %1871 = vmatpush1.msra.mxu0 0.0
  %1872 = vmatprep.subr.mxu0 0.0
  %1873 = vmatpush1.msra.mxu0 0.0
  %1874 = vmatprep.mubr.f32.mxu0 0.0
  %1875 = vmatmul.mubr.f32.gmra.mrb[0].mxu0 %v1808
  %v1876 = vpop.f32.mrb[0].mxu0
  %v1877 = vadd.f32 %v534, %v1876
  %v1878 = vpop.f32.mrb[0].mxu0
  %1879 = vdwg.mxu0
  %v1880 = vsel %vm994, %v1877, -inf
  %1881 = vmax.xlane.f32.xlu0 %v1880
  %v1882 = vpop.xlane.xlu0 %1881
  %v1883 = vsub.f32 %v1877, %v1882
  %v1884 = vmul.f32 %v1883, 1.442695
  %v1885 = vpow.pop %v1884
  %v1886 = vsel %vm994, %v1885, 0.0
  %1887 = vadd.xlane.f32.xlu0 %v1886
  %v1888 = vpop.xlane.xlu0 %1887
  %v1889 = vrcp.pop %v1888
  %v1890 = vmul.f32 %v1885, %v1889
  %v1892 = vsel %vm1006, %v1890, 0
  %1894 = vmatprep.subr.mxu0 0.0
  %1895 = vmatpush1.msra.mxu0 %v532
  %1896 = vmatprep.subr.mxu0 0.0
  %1897 = vmatpush1.msra.mxu0 0.0
  %1898 = vmatprep.subr.mxu0 0.0
  %1899 = vmatpush1.msra.mxu0 0.0
  %1900 = vmatprep.subr.mxu0 0.0
  %1901 = vmatpush1.msra.mxu0 0.0
  %1902 = vmatprep.subr.mxu0 0.0
  %1903 = vmatpush1.msra.mxu0 0.0
  %1904 = vmatprep.subr.mxu0 0.0
  %1905 = vmatpush1.msra.mxu0 0.0
  %1906 = vmatprep.subr.mxu0 0.0
  %1907 = vmatpush1.msra.mxu0 0.0
  %1908 = vmatprep.subr.mxu0 0.0
  %1909 = vmatpush1.msra.mxu0 0.0
  %1910 = vmatprep.subr.mxu0 0.0
  %1911 = vmatpush1.msra.mxu0 0.0
  %1912 = vmatprep.subr.mxu0 0.0
  %1913 = vmatpush1.msra.mxu0 0.0
  %1914 = vmatprep.subr.mxu0 0.0
  %1915 = vmatpush1.msra.mxu0 0.0
  %1916 = vmatprep.subr.mxu0 0.0
  %1917 = vmatpush1.msra.mxu0 0.0
  %1918 = vmatprep.subr.mxu0 0.0
  %1919 = vmatpush1.msra.mxu0 0.0
  %1920 = vmatprep.subr.mxu0 0.0
  %1921 = vmatpush1.msra.mxu0 0.0
  %1922 = vmatprep.subr.mxu0 0.0
  %1923 = vmatpush1.msra.mxu0 0.0
  %1924 = vmatprep.subr.mxu0 0.0
  %1925 = vmatpush1.msra.mxu0 0.0
  %1926 = vmatprep.subr.mxu0 0.0
  %1927 = vmatpush1.msra.mxu0 0.0
  %1928 = vmatprep.subr.mxu0 0.0
  %1929 = vmatpush1.msra.mxu0 0.0
  %1930 = vmatprep.subr.mxu0 0.0
  %1931 = vmatpush1.msra.mxu0 0.0
  %1932 = vmatprep.subr.mxu0 0.0
  %1933 = vmatpush1.msra.mxu0 0.0
  %1934 = vmatprep.subr.mxu0 0.0
  %1935 = vmatpush1.msra.mxu0 0.0
  %1936 = vmatprep.subr.mxu0 0.0
  %1937 = vmatpush1.msra.mxu0 0.0
  %1938 = vmatprep.subr.mxu0 0.0
  %1939 = vmatpush1.msra.mxu0 0.0
  %1940 = vmatprep.subr.mxu0 0.0
  %1941 = vmatpush1.msra.mxu0 0.0
  %1942 = vmatprep.subr.mxu0 0.0
  %1943 = vmatpush1.msra.mxu0 0.0
  %1944 = vmatprep.subr.mxu0 0.0
  %1945 = vmatpush1.msra.mxu0 0.0
  %1946 = vmatprep.subr.mxu0 0.0
  %1947 = vmatpush1.msra.mxu0 0.0
  %1948 = vmatprep.subr.mxu0 0.0
  %1949 = vmatpush1.msra.mxu0 0.0
  %1950 = vmatprep.subr.mxu0 0.0
  %1951 = vmatpush1.msra.mxu0 0.0
  %1952 = vmatprep.subr.mxu0 0.0
  %1953 = vmatpush1.msra.mxu0 0.0
  %1954 = vmatprep.subr.mxu0 0.0
  %1955 = vmatpush1.msra.mxu0 0.0
  %1956 = vmatprep.subr.mxu0 0.0
  %1957 = vmatpush1.msra.mxu0 0.0
  %1958 = vmatprep.mubr.f32.mxu0 0.0
  %1959 = vmatmul.mubr.f32.gmra.mrb[0].mxu0 %v1892
  %v1960 = vpop.f32.mrb[0].mxu0
  %v1961 = vadd.f32 0.0, %v1960
  %v1962 = vpop.f32.mrb[0].mxu0
  %1963 = vdwg.mxu0
  %v1964 = vrot.slane %v1804, 1
  %1965 = vrot.lane.b32.xlu0 %v1964, 32
  %v1966 = vpop.permute.xlu0 %1965
  %v1967 = vsel %vm583, %v1966, 0
  %1969 = vmatprep.subr.mxu0 0.0
  %1970 = vmatpush1.msra.mxu0 %v514
  %1971 = vmatprep.subr.mxu0 0.0
  %1972 = vmatpush1.msra.mxu0 %v519
  %1973 = vmatprep.subr.mxu0 0.0
  %1974 = vmatpush1.msra.mxu0 %v524
  %1975 = vmatprep.subr.mxu0 0.0
  %1976 = vmatpush1.msra.mxu0 %v529
  %1977 = vmatprep.subr.mxu0 0.0
  %1978 = vmatpush1.msra.mxu0 0.0
  %1979 = vmatprep.subr.mxu0 0.0
  %1980 = vmatpush1.msra.mxu0 0.0
  %1981 = vmatprep.subr.mxu0 0.0
  %1982 = vmatpush1.msra.mxu0 0.0
  %1983 = vmatprep.subr.mxu0 0.0
  %1984 = vmatpush1.msra.mxu0 0.0
  %1985 = vmatprep.subr.mxu0 0.0
  %1986 = vmatpush1.msra.mxu0 0.0
  %1987 = vmatprep.subr.mxu0 0.0
  %1988 = vmatpush1.msra.mxu0 0.0
  %1989 = vmatprep.subr.mxu0 0.0
  %1990 = vmatpush1.msra.mxu0 0.0
  %1991 = vmatprep.subr.mxu0 0.0
  %1992 = vmatpush1.msra.mxu0 0.0
  %1993 = vmatprep.subr.mxu0 0.0
  %1994 = vmatpush1.msra.mxu0 0.0
  %1995 = vmatprep.subr.mxu0 0.0
  %1996 = vmatpush1.msra.mxu0 0.0
  %1997 = vmatprep.subr.mxu0 0.0
  %1998 = vmatpush1.msra.mxu0 0.0
  %1999 = vmatprep.subr.mxu0 0.0
  %2000 = vmatpush1.msra.mxu0 0.0
  %2001 = vmatprep.subr.mxu0 0.0
  %2002 = vmatpush1.msra.mxu0 0.0
  %2003 = vmatprep.subr.mxu0 0.0
  %2004 = vmatpush1.msra.mxu0 0.0
  %2005 = vmatprep.subr.mxu0 0.0
  %2006 = vmatpush1.msra.mxu0 0.0
  %2007 = vmatprep.subr.mxu0 0.0
  %2008 = vmatpush1.msra.mxu0 0.0
  %2009 = vmatprep.subr.mxu0 0.0
  %2010 = vmatpush1.msra.mxu0 0.0
  %2011 = vmatprep.subr.mxu0 0.0
  %2012 = vmatpush1.msra.mxu0 0.0
  %2013 = vmatprep.subr.mxu0 0.0
  %2014 = vmatpush1.msra.mxu0 0.0
  %2015 = vmatprep.subr.mxu0 0.0
  %2016 = vmatpush1.msra.mxu0 0.0
  %2017 = vmatprep.subr.mxu0 0.0
  %2018 = vmatpush1.msra.mxu0 0.0
  %2019 = vmatprep.subr.mxu0 0.0
  %2020 = vmatpush1.msra.mxu0 0.0
  %2021 = vmatprep.subr.mxu0 0.0
  %2022 = vmatpush1.msra.mxu0 0.0
  %2023 = vmatprep.subr.mxu0 0.0
  %2024 = vmatpush1.msra.mxu0 0.0
  %2025 = vmatprep.subr.mxu0 0.0
  %2026 = vmatpush1.msra.mxu0 0.0
  %2027 = vmatprep.subr.mxu0 0.0
  %2028 = vmatpush1.msra.mxu0 0.0
  %2029 = vmatprep.subr.mxu0 0.0
  %2030 = vmatpush1.msra.mxu0 0.0
  %2031 = vmatprep.subr.mxu0 0.0
  %2032 = vmatpush1.msra.mxu0 0.0
  %2033 = vmatprep.mubr.f32.mxu0 0.0
  %2034 = vmatmul.mubr.f32.gmra.mrb[0].mxu0 %v1967
  %v2035 = vpop.f32.mrb[0].mxu0
  %v2036 = vadd.f32 %v1084, %v2035
  %v2037 = vpop.f32.mrb[0].mxu0
  %2038 = vdwg.mxu0
  %v2039 = vsel %vm994, %v2036, -inf
  %2040 = vmax.xlane.f32.xlu0 %v2039
  %v2041 = vpop.xlane.xlu0 %2040
  %v2042 = vsub.f32 %v2036, %v2041
  %v2043 = vmul.f32 %v2042, 1.442695
  %v2044 = vpow.pop %v2043
  %v2045 = vsel %vm994, %v2044, 0.0
  %2046 = vadd.xlane.f32.xlu0 %v2045
  %v2047 = vpop.xlane.xlu0 %2046
  %v2048 = vrcp.pop %v2047
  %v2049 = vmul.f32 %v2044, %v2048
  %v2051 = vsel %vm1006, %v2049, 0
  %2053 = vmatprep.subr.mxu0 0.0
  %2054 = vmatpush1.msra.mxu0 %v533
  %2055 = vmatprep.subr.mxu0 0.0
  %2056 = vmatpush1.msra.mxu0 0.0
  %2057 = vmatprep.subr.mxu0 0.0
  %2058 = vmatpush1.msra.mxu0 0.0
  %2059 = vmatprep.subr.mxu0 0.0
  %2060 = vmatpush1.msra.mxu0 0.0
  %2061 = vmatprep.subr.mxu0 0.0
  %2062 = vmatpush1.msra.mxu0 0.0
  %2063 = vmatprep.subr.mxu0 0.0
  %2064 = vmatpush1.msra.mxu0 0.0
  %2065 = vmatprep.subr.mxu0 0.0
  %2066 = vmatpush1.msra.mxu0 0.0
  %2067 = vmatprep.subr.mxu0 0.0
  %2068 = vmatpush1.msra.mxu0 0.0
  %2069 = vmatprep.subr.mxu0 0.0
  %2070 = vmatpush1.msra.mxu0 0.0
  %2071 = vmatprep.subr.mxu0 0.0
  %2072 = vmatpush1.msra.mxu0 0.0
  %2073 = vmatprep.subr.mxu0 0.0
  %2074 = vmatpush1.msra.mxu0 0.0
  %2075 = vmatprep.subr.mxu0 0.0
  %2076 = vmatpush1.msra.mxu0 0.0
  %2077 = vmatprep.subr.mxu0 0.0
  %2078 = vmatpush1.msra.mxu0 0.0
  %2079 = vmatprep.subr.mxu0 0.0
  %2080 = vmatpush1.msra.mxu0 0.0
  %2081 = vmatprep.subr.mxu0 0.0
  %2082 = vmatpush1.msra.mxu0 0.0
  %2083 = vmatprep.subr.mxu0 0.0
  %2084 = vmatpush1.msra.mxu0 0.0
  %2085 = vmatprep.subr.mxu0 0.0
  %2086 = vmatpush1.msra.mxu0 0.0
  %2087 = vmatprep.subr.mxu0 0.0
  %2088 = vmatpush1.msra.mxu0 0.0
  %2089 = vmatprep.subr.mxu0 0.0
  %2090 = vmatpush1.msra.mxu0 0.0
  %2091 = vmatprep.subr.mxu0 0.0
  %2092 = vmatpush1.msra.mxu0 0.0
  %2093 = vmatprep.subr.mxu0 0.0
  %2094 = vmatpush1.msra.mxu0 0.0
  %2095 = vmatprep.subr.mxu0 0.0
  %2096 = vmatpush1.msra.mxu0 0.0
  %2097 = vmatprep.subr.mxu0 0.0
  %2098 = vmatpush1.msra.mxu0 0.0
  %2099 = vmatprep.subr.mxu0 0.0
  %2100 = vmatpush1.msra.mxu0 0.0
  %2101 = vmatprep.subr.mxu0 0.0
  %2102 = vmatpush1.msra.mxu0 0.0
  %2103 = vmatprep.subr.mxu0 0.0
  %2104 = vmatpush1.msra.mxu0 0.0
  %2105 = vmatprep.subr.mxu0 0.0
  %2106 = vmatpush1.msra.mxu0 0.0
  %2107 = vmatprep.subr.mxu0 0.0
  %2108 = vmatpush1.msra.mxu0 0.0
  %2109 = vmatprep.subr.mxu0 0.0
  %2110 = vmatpush1.msra.mxu0 0.0
  %2111 = vmatprep.subr.mxu0 0.0
  %2112 = vmatpush1.msra.mxu0 0.0
  %2113 = vmatprep.subr.mxu0 0.0
  %2114 = vmatpush1.msra.mxu0 0.0
  %2115 = vmatprep.subr.mxu0 0.0
  %2116 = vmatpush1.msra.mxu0 0.0
  %2117 = vmatprep.mubr.f32.mxu0 0.0
  %2118 = vmatmul.mubr.f32.gmra.mrb[0].mxu0 %v2051
  %v2119 = vpop.f32.mrb[0].mxu0
  %v2120 = vadd.f32 0.0, %v2119
  %v2121 = vpop.f32.mrb[0].mxu0
  %2122 = vdwg.mxu0
  %v2124 = vrot.slane %v2120, 7
  %v2126 = vsel %vm1245, %v1961, %v2124
  %2127 = vmatprep.subr.mxu0 0.0
  %2128 = vmatpush1.msra.mxu0 %v563
  %2129 = vmatprep.subr.mxu0 0.0
  %2130 = vmatpush1.msra.mxu0 %v564
  %2131 = vmatprep.subr.mxu0 0.0
  %2132 = vmatpush1.msra.mxu0 %v565
  %2133 = vmatprep.subr.mxu0 0.0
  %2134 = vmatpush1.msra.mxu0 %v566
  %2135 = vmatprep.subr.mxu0 0.0
  %2136 = vmatpush1.msra.mxu0 0.0
  %2137 = vmatprep.subr.mxu0 0.0
  %2138 = vmatpush1.msra.mxu0 0.0
  %2139 = vmatprep.subr.mxu0 0.0
  %2140 = vmatpush1.msra.mxu0 0.0
  %2141 = vmatprep.subr.mxu0 0.0
  %2142 = vmatpush1.msra.mxu0 0.0
  %2143 = vmatprep.subr.mxu0 0.0
  %2144 = vmatpush1.msra.mxu0 0.0
  %2145 = vmatprep.subr.mxu0 0.0
  %2146 = vmatpush1.msra.mxu0 0.0
  %2147 = vmatprep.subr.mxu0 0.0
  %2148 = vmatpush1.msra.mxu0 0.0
  %2149 = vmatprep.subr.mxu0 0.0
  %2150 = vmatpush1.msra.mxu0 0.0
  %2151 = vmatprep.subr.mxu0 0.0
  %2152 = vmatpush1.msra.mxu0 0.0
  %2153 = vmatprep.subr.mxu0 0.0
  %2154 = vmatpush1.msra.mxu0 0.0
  %2155 = vmatprep.subr.mxu0 0.0
  %2156 = vmatpush1.msra.mxu0 0.0
  %2157 = vmatprep.subr.mxu0 0.0
  %2158 = vmatpush1.msra.mxu0 0.0
  %2159 = vmatprep.subr.mxu0 0.0
  %2160 = vmatpush1.msra.mxu0 0.0
  %2161 = vmatprep.subr.mxu0 0.0
  %2162 = vmatpush1.msra.mxu0 0.0
  %2163 = vmatprep.subr.mxu0 0.0
  %2164 = vmatpush1.msra.mxu0 0.0
  %2165 = vmatprep.subr.mxu0 0.0
  %2166 = vmatpush1.msra.mxu0 0.0
  %2167 = vmatprep.subr.mxu0 0.0
  %2168 = vmatpush1.msra.mxu0 0.0
  %2169 = vmatprep.subr.mxu0 0.0
  %2170 = vmatpush1.msra.mxu0 0.0
  %2171 = vmatprep.subr.mxu0 0.0
  %2172 = vmatpush1.msra.mxu0 0.0
  %2173 = vmatprep.subr.mxu0 0.0
  %2174 = vmatpush1.msra.mxu0 0.0
  %2175 = vmatprep.subr.mxu0 0.0
  %2176 = vmatpush1.msra.mxu0 0.0
  %2177 = vmatprep.subr.mxu0 0.0
  %2178 = vmatpush1.msra.mxu0 0.0
  %2179 = vmatprep.subr.mxu0 0.0
  %2180 = vmatpush1.msra.mxu0 0.0
  %2181 = vmatprep.subr.mxu0 0.0
  %2182 = vmatpush1.msra.mxu0 0.0
  %2183 = vmatprep.subr.mxu0 0.0
  %2184 = vmatpush1.msra.mxu0 0.0
  %2185 = vmatprep.subr.mxu0 0.0
  %2186 = vmatpush1.msra.mxu0 0.0
  %2187 = vmatprep.subr.mxu0 0.0
  %2188 = vmatpush1.msra.mxu0 0.0
  %2189 = vmatprep.subr.mxu0 0.0
  %2190 = vmatpush1.msra.mxu0 0.0
  %2191 = vmatprep.mubr.f32.mxu0 0.0
  %2192 = vmatmul.mubr.f32.gmra.mrb[0].mxu0 %v1808
  %v2193 = vpop.f32.mrb[0].mxu0
  %v2194 = vadd.f32 0.0, %v2193
  %v2195 = vpop.f32.mrb[0].mxu0
  %2196 = vdwg.mxu0
  %v2198 = vsel %vm342, %v2126, 0
  %2200 = vmatprep.subr.mxu0 0.0
  %2201 = vmatpush1.msra.mxu0 %v557
  %2202 = vmatprep.subr.mxu0 0.0
  %2203 = vmatpush1.msra.mxu0 %v558
  %2204 = vmatprep.subr.mxu0 0.0
  %2205 = vmatpush1.msra.mxu0 %v559
  %2206 = vmatprep.subr.mxu0 0.0
  %2207 = vmatpush1.msra.mxu0 %v560
  %2208 = vmatprep.subr.mxu0 0.0
  %2209 = vmatpush1.msra.mxu0 %v561
  %2210 = vmatprep.subr.mxu0 0.0
  %2211 = vmatpush1.msra.mxu0 %v562
  %2212 = vmatprep.subr.mxu0 0.0
  %2213 = vmatpush1.msra.mxu0 0.0
  %2214 = vmatprep.subr.mxu0 0.0
  %2215 = vmatpush1.msra.mxu0 0.0
  %2216 = vmatprep.subr.mxu0 0.0
  %2217 = vmatpush1.msra.mxu0 0.0
  %2218 = vmatprep.subr.mxu0 0.0
  %2219 = vmatpush1.msra.mxu0 0.0
  %2220 = vmatprep.subr.mxu0 0.0
  %2221 = vmatpush1.msra.mxu0 0.0
  %2222 = vmatprep.subr.mxu0 0.0
  %2223 = vmatpush1.msra.mxu0 0.0
  %2224 = vmatprep.subr.mxu0 0.0
  %2225 = vmatpush1.msra.mxu0 0.0
  %2226 = vmatprep.subr.mxu0 0.0
  %2227 = vmatpush1.msra.mxu0 0.0
  %2228 = vmatprep.subr.mxu0 0.0
  %2229 = vmatpush1.msra.mxu0 0.0
  %2230 = vmatprep.subr.mxu0 0.0
  %2231 = vmatpush1.msra.mxu0 0.0
  %2232 = vmatprep.subr.mxu0 0.0
  %2233 = vmatpush1.msra.mxu0 0.0
  %2234 = vmatprep.subr.mxu0 0.0
  %2235 = vmatpush1.msra.mxu0 0.0
  %2236 = vmatprep.subr.mxu0 0.0
  %2237 = vmatpush1.msra.mxu0 0.0
  %2238 = vmatprep.subr.mxu0 0.0
  %2239 = vmatpush1.msra.mxu0 0.0
  %2240 = vmatprep.subr.mxu0 0.0
  %2241 = vmatpush1.msra.mxu0 0.0
  %2242 = vmatprep.subr.mxu0 0.0
  %2243 = vmatpush1.msra.mxu0 0.0
  %2244 = vmatprep.subr.mxu0 0.0
  %2245 = vmatpush1.msra.mxu0 0.0
  %2246 = vmatprep.subr.mxu0 0.0
  %2247 = vmatpush1.msra.mxu0 0.0
  %2248 = vmatprep.subr.mxu0 0.0
  %2249 = vmatpush1.msra.mxu0 0.0
  %2250 = vmatprep.subr.mxu0 0.0
  %2251 = vmatpush1.msra.mxu0 0.0
  %2252 = vmatprep.subr.mxu0 0.0
  %2253 = vmatpush1.msra.mxu0 0.0
  %2254 = vmatprep.subr.mxu0 0.0
  %2255 = vmatpush1.msra.mxu0 0.0
  %2256 = vmatprep.subr.mxu0 0.0
  %2257 = vmatpush1.msra.mxu0 0.0
  %2258 = vmatprep.subr.mxu0 0.0
  %2259 = vmatpush1.msra.mxu0 0.0
  %2260 = vmatprep.subr.mxu0 0.0
  %2261 = vmatpush1.msra.mxu0 0.0
  %2262 = vmatprep.subr.mxu0 0.0
  %2263 = vmatpush1.msra.mxu0 0.0
  %2264 = vmatprep.mubr.f32.mxu0 0.0
  %2265 = vmatmul.mubr.f32.gmra.mrb[0].mxu0 %v2198
  %v2266 = vpop.f32.mrb[0].mxu0
  %v2267 = vadd.f32 %v2194, %v2266
  %v2268 = vpop.f32.mrb[0].mxu0
  %2269 = vdwg.mxu0
  %v2270 = vadd.f32 %v2267, %v1394
  %v2271 = vtanh.pop %v2270
  %v2273 = vsel %vm583, %v2271, 0
  %2275 = vmatprep.subr.mxu0 0.0
  %2276 = vmatpush1.msra.mxu0 %v568
  %2277 = vmatprep.subr.mxu0 0.0
  %2278 = vmatpush1.msra.mxu0 %v569
  %2279 = vmatprep.subr.mxu0 0.0
  %2280 = vmatpush1.msra.mxu0 %v570
  %2281 = vmatprep.subr.mxu0 0.0
  %2282 = vmatpush1.msra.mxu0 %v571
  %2283 = vmatprep.subr.mxu0 0.0
  %2284 = vmatpush1.msra.mxu0 0.0
  %2285 = vmatprep.subr.mxu0 0.0
  %2286 = vmatpush1.msra.mxu0 0.0
  %2287 = vmatprep.subr.mxu0 0.0
  %2288 = vmatpush1.msra.mxu0 0.0
  %2289 = vmatprep.subr.mxu0 0.0
  %2290 = vmatpush1.msra.mxu0 0.0
  %2291 = vmatprep.subr.mxu0 0.0
  %2292 = vmatpush1.msra.mxu0 0.0
  %2293 = vmatprep.subr.mxu0 0.0
  %2294 = vmatpush1.msra.mxu0 0.0
  %2295 = vmatprep.subr.mxu0 0.0
  %2296 = vmatpush1.msra.mxu0 0.0
  %2297 = vmatprep.subr.mxu0 0.0
  %2298 = vmatpush1.msra.mxu0 0.0
  %2299 = vmatprep.subr.mxu0 0.0
  %2300 = vmatpush1.msra.mxu0 0.0
  %2301 = vmatprep.subr.mxu0 0.0
  %2302 = vmatpush1.msra.mxu0 0.0
  %2303 = vmatprep.subr.mxu0 0.0
  %2304 = vmatpush1.msra.mxu0 0.0
  %2305 = vmatprep.subr.mxu0 0.0
  %2306 = vmatpush1.msra.mxu0 0.0
  %2307 = vmatprep.subr.mxu0 0.0
  %2308 = vmatpush1.msra.mxu0 0.0
  %2309 = vmatprep.subr.mxu0 0.0
  %2310 = vmatpush1.msra.mxu0 0.0
  %2311 = vmatprep.subr.mxu0 0.0
  %2312 = vmatpush1.msra.mxu0 0.0
  %2313 = vmatprep.subr.mxu0 0.0
  %2314 = vmatpush1.msra.mxu0 0.0
  %2315 = vmatprep.subr.mxu0 0.0
  %2316 = vmatpush1.msra.mxu0 0.0
  %2317 = vmatprep.subr.mxu0 0.0
  %2318 = vmatpush1.msra.mxu0 0.0
  %2319 = vmatprep.subr.mxu0 0.0
  %2320 = vmatpush1.msra.mxu0 0.0
  %2321 = vmatprep.subr.mxu0 0.0
  %2322 = vmatpush1.msra.mxu0 0.0
  %2323 = vmatprep.subr.mxu0 0.0
  %2324 = vmatpush1.msra.mxu0 0.0
  %2325 = vmatprep.subr.mxu0 0.0
  %2326 = vmatpush1.msra.mxu0 0.0
  %2327 = vmatprep.subr.mxu0 0.0
  %2328 = vmatpush1.msra.mxu0 0.0
  %2329 = vmatprep.subr.mxu0 0.0
  %2330 = vmatpush1.msra.mxu0 0.0
  %2331 = vmatprep.subr.mxu0 0.0
  %2332 = vmatpush1.msra.mxu0 0.0
  %2333 = vmatprep.subr.mxu0 0.0
  %2334 = vmatpush1.msra.mxu0 0.0
  %2335 = vmatprep.subr.mxu0 0.0
  %2336 = vmatpush1.msra.mxu0 0.0
  %2337 = vmatprep.subr.mxu0 0.0
  %2338 = vmatpush1.msra.mxu0 0.0
  %2339 = vmatprep.mubr.f32.mxu0 0.0
  %2340 = vmatmul.mubr.f32.gmra.mrb[0].mxu0 %v2273
  %v2341 = vpop.f32.mrb[0].mxu0
  %v2342 = vadd.f32 %v1402, %v2341
  %v2343 = vpop.f32.mrb[0].mxu0
  %2344 = vdwg.mxu0
  %v2345 = vsel %vm229, %v2342, -inf
  %2346 = vmax.xlane.f32.xlu0 %v2345
  %v2347 = vpop.xlane.xlu0 %2346
  %v2348 = vsub.f32 %v2342, %v2347
  %v2349 = vmul.f32 %v2348, 1.442695
  %v2350 = vpow.pop %v2349
  %v2351 = vsel %vm229, %v2350, 0.0
  %2352 = vadd.xlane.f32.xlu0 %v2351
  %v2353 = vpop.xlane.xlu0 %2352
  %v2354 = vlog2.pop %v2353
  %v2355 = vmul.f32 %v2354, 0.6931472
  %v2356 = vsub.f32 %v2348, %v2355
  %s2357 = scalar_lea.vmem %s21, 2
  %2358 = vst [vmem:[%s2357] sm:$0x3] %v2356
  %v2359 = vrot.slane %v1592, 2
  %2360 = vrot.lane.b32.xlu0 %v2359, 32
  %v2361 = vpop.permute.xlu0 %2360
  %v2362 = vsel %vm583, %v2361, 0
  %2364 = vmatprep.subr.mxu0 0.0
  %2365 = vmatpush1.msra.mxu0 %v535
  %2366 = vmatprep.subr.mxu0 0.0
  %2367 = vmatpush1.msra.mxu0 %v536
  %2368 = vmatprep.subr.mxu0 0.0
  %2369 = vmatpush1.msra.mxu0 %v537
  %2370 = vmatprep.subr.mxu0 0.0
  %2371 = vmatpush1.msra.mxu0 %v538
  %2372 = vmatprep.subr.mxu0 0.0
  %2373 = vmatpush1.msra.mxu0 0.0
  %2374 = vmatprep.subr.mxu0 0.0
  %2375 = vmatpush1.msra.mxu0 0.0
  %2376 = vmatprep.subr.mxu0 0.0
  %2377 = vmatpush1.msra.mxu0 0.0
  %2378 = vmatprep.subr.mxu0 0.0
  %2379 = vmatpush1.msra.mxu0 0.0
  %2380 = vmatprep.subr.mxu0 0.0
  %2381 = vmatpush1.msra.mxu0 0.0
  %2382 = vmatprep.subr.mxu0 0.0
  %2383 = vmatpush1.msra.mxu0 0.0
  %2384 = vmatprep.subr.mxu0 0.0
  %2385 = vmatpush1.msra.mxu0 0.0
  %2386 = vmatprep.subr.mxu0 0.0
  %2387 = vmatpush1.msra.mxu0 0.0
  %2388 = vmatprep.subr.mxu0 0.0
  %2389 = vmatpush1.msra.mxu0 0.0
  %2390 = vmatprep.subr.mxu0 0.0
  %2391 = vmatpush1.msra.mxu0 0.0
  %2392 = vmatprep.subr.mxu0 0.0
  %2393 = vmatpush1.msra.mxu0 0.0
  %2394 = vmatprep.subr.mxu0 0.0
  %2395 = vmatpush1.msra.mxu0 0.0
  %2396 = vmatprep.subr.mxu0 0.0
  %2397 = vmatpush1.msra.mxu0 0.0
  %2398 = vmatprep.subr.mxu0 0.0
  %2399 = vmatpush1.msra.mxu0 0.0
  %2400 = vmatprep.subr.mxu0 0.0
  %2401 = vmatpush1.msra.mxu0 0.0
  %2402 = vmatprep.subr.mxu0 0.0
  %2403 = vmatpush1.msra.mxu0 0.0
  %2404 = vmatprep.subr.mxu0 0.0
  %2405 = vmatpush1.msra.mxu0 0.0
  %2406 = vmatprep.subr.mxu0 0.0
  %2407 = vmatpush1.msra.mxu0 0.0
  %2408 = vmatprep.subr.mxu0 0.0
  %2409 = vmatpush1.msra.mxu0 0.0
  %2410 = vmatprep.subr.mxu0 0.0
  %2411 = vmatpush1.msra.mxu0 0.0
  %2412 = vmatprep.subr.mxu0 0.0
  %2413 = vmatpush1.msra.mxu0 0.0
  %2414 = vmatprep.subr.mxu0 0.0
  %2415 = vmatpush1.msra.mxu0 0.0
  %2416 = vmatprep.subr.mxu0 0.0
  %2417 = vmatpush1.msra.mxu0 0.0
  %2418 = vmatprep.subr.mxu0 0.0
  %2419 = vmatpush1.msra.mxu0 0.0
  %2420 = vmatprep.subr.mxu0 0.0
  %2421 = vmatpush1.msra.mxu0 0.0
  %2422 = vmatprep.subr.mxu0 0.0
  %2423 = vmatpush1.msra.mxu0 0.0
  %2424 = vmatprep.subr.mxu0 0.0
  %2425 = vmatpush1.msra.mxu0 0.0
  %2426 = vmatprep.subr.mxu0 0.0
  %2427 = vmatpush1.msra.mxu0 0.0
  %2428 = vmatprep.mubr.f32.mxu0 0.0
  %2429 = vmatmul.mubr.f32.gmra.mrb[0].mxu0 %v2362
  %v2430 = vpop.f32.mrb[0].mxu0
  %v2431 = vadd.f32 0.0, %v2430
  %v2432 = vpop.f32.mrb[0].mxu0
  %2433 = vdwg.mxu0
  %v2435 = vrot.slane %v2431, 4
  %v2437 = vadd.f32 %v300, %v2435
  %v2438 = vxor.u32 %v2437, 2147483648
  %v2439 = vmul.f32 %v2438, 1.442695
  %v2440 = vpow.pop %v2439
  %v2441 = vadd.f32 %v2440, 1.0
  %v2442 = vrcp.pop %v2441
  %v2443 = vmul.f32 1.0, %v2442
  %v2444 = vtanh.pop %v2437
  %v2446 = vrot.slane %v1586, 6
  %v2448 = vmul.f32 %v2443, %v2446
  %2450 = vrot.lane.b32.xlu0 %v2444, 64
  %v2451 = vpop.permute.xlu0 %2450
  %v2453 = vmul.f32 %v2443, %v2451
  %2455 = vrot.lane.b32.xlu0 %v2453, 32
  %v2456 = vpop.permute.xlu0 %2455
  %v2458 = vadd.f32 %v2448, %v2456
  %v2459 = vtanh.pop %v2458
  %2461 = vrot.lane.b32.xlu0 %v2459, 64
  %v2462 = vpop.permute.xlu0 %2461
  %v2464 = vmul.f32 %v2443, %v2462
  %2466 = vrot.lane.b32.xlu0 %v2464, 32
  %v2467 = vpop.permute.xlu0 %2466
  %v2469 = vrot.slane %v1699, 4
  %2470 = vrot.lane.b32.xlu0 %v2469, 64
  %v2471 = vpop.permute.xlu0 %2470
  %v2473 = vsel %vm583, %v2467, %v2471
  %v2475 = vrot.slane %v2473, 4
  %v2476 = vsel %vm701, %v2475, 0
  %2478 = vmatprep.subr.mxu0 0.0
  %2479 = vmatpush1.msra.mxu0 %v539
  %2480 = vmatprep.subr.mxu0 0.0
  %2481 = vmatpush1.msra.mxu0 %v540
  %2482 = vmatprep.subr.mxu0 0.0
  %2483 = vmatpush1.msra.mxu0 %v541
  %2484 = vmatprep.subr.mxu0 0.0
  %2485 = vmatpush1.msra.mxu0 %v542
  %2486 = vmatprep.subr.mxu0 0.0
  %2487 = vmatpush1.msra.mxu0 %v543
  %2488 = vmatprep.subr.mxu0 0.0
  %2489 = vmatpush1.msra.mxu0 %v544
  %2490 = vmatprep.subr.mxu0 0.0
  %2491 = vmatpush1.msra.mxu0 %v545
  %2492 = vmatprep.subr.mxu0 0.0
  %2493 = vmatpush1.msra.mxu0 %v546
  %2494 = vmatprep.subr.mxu0 0.0
  %2495 = vmatpush1.msra.mxu0 0.0
  %2496 = vmatprep.subr.mxu0 0.0
  %2497 = vmatpush1.msra.mxu0 0.0
  %2498 = vmatprep.subr.mxu0 0.0
  %2499 = vmatpush1.msra.mxu0 0.0
  %2500 = vmatprep.subr.mxu0 0.0
  %2501 = vmatpush1.msra.mxu0 0.0
  %2502 = vmatprep.subr.mxu0 0.0
  %2503 = vmatpush1.msra.mxu0 0.0
  %2504 = vmatprep.subr.mxu0 0.0
  %2505 = vmatpush1.msra.mxu0 0.0
  %2506 = vmatprep.subr.mxu0 0.0
  %2507 = vmatpush1.msra.mxu0 0.0
  %2508 = vmatprep.subr.mxu0 0.0
  %2509 = vmatpush1.msra.mxu0 0.0
  %2510 = vmatprep.subr.mxu0 0.0
  %2511 = vmatpush1.msra.mxu0 0.0
  %2512 = vmatprep.subr.mxu0 0.0
  %2513 = vmatpush1.msra.mxu0 0.0
  %2514 = vmatprep.subr.mxu0 0.0
  %2515 = vmatpush1.msra.mxu0 0.0
  %2516 = vmatprep.subr.mxu0 0.0
  %2517 = vmatpush1.msra.mxu0 0.0
  %2518 = vmatprep.subr.mxu0 0.0
  %2519 = vmatpush1.msra.mxu0 0.0
  %2520 = vmatprep.subr.mxu0 0.0
  %2521 = vmatpush1.msra.mxu0 0.0
  %2522 = vmatprep.subr.mxu0 0.0
  %2523 = vmatpush1.msra.mxu0 0.0
  %2524 = vmatprep.subr.mxu0 0.0
  %2525 = vmatpush1.msra.mxu0 0.0
  %2526 = vmatprep.subr.mxu0 0.0
  %2527 = vmatpush1.msra.mxu0 0.0
  %2528 = vmatprep.subr.mxu0 0.0
  %2529 = vmatpush1.msra.mxu0 0.0
  %2530 = vmatprep.subr.mxu0 0.0
  %2531 = vmatpush1.msra.mxu0 0.0
  %2532 = vmatprep.subr.mxu0 0.0
  %2533 = vmatpush1.msra.mxu0 0.0
  %2534 = vmatprep.subr.mxu0 0.0
  %2535 = vmatpush1.msra.mxu0 0.0
  %2536 = vmatprep.subr.mxu0 0.0
  %2537 = vmatpush1.msra.mxu0 0.0
  %2538 = vmatprep.subr.mxu0 0.0
  %2539 = vmatpush1.msra.mxu0 0.0
  %2540 = vmatprep.subr.mxu0 0.0
  %2541 = vmatpush1.msra.mxu0 0.0
  %2542 = vmatprep.mubr.f32.mxu0 0.0
  %2543 = vmatmul.mubr.f32.gmra.mrb[0].mxu0 %v2476
  %v2544 = vpop.f32.mrb[0].mxu0
  %v2545 = vadd.f32 %v699, %v2544
  %v2546 = vpop.f32.mrb[0].mxu0
  %2547 = vdwg.mxu0
  %v2548 = vxor.u32 %v2545, 2147483648
  %v2549 = vmul.f32 %v2548, 1.442695
  %v2550 = vpow.pop %v2549
  %v2551 = vadd.f32 %v2550, 1.0
  %v2552 = vrcp.pop %v2551
  %v2553 = vmul.f32 1.0, %v2552
  %v2554 = vtanh.pop %v2545
  %v2555 = vmul.f32 %v2553, %v1693
  %2557 = vrot.lane.b32.xlu0 %v2554, 64
  %v2558 = vpop.permute.xlu0 %2557
  %v2560 = vmul.f32 %v2553, %v2558
  %2562 = vrot.lane.b32.xlu0 %v2560, 32
  %v2563 = vpop.permute.xlu0 %2562
  %v2565 = vadd.f32 %v2555, %v2563
  %v2566 = vtanh.pop %v2565
  %2568 = vrot.lane.b32.xlu0 %v2566, 64
  %v2569 = vpop.permute.xlu0 %2568
  %v2571 = vmul.f32 %v2553, %v2569
  %2573 = vrot.lane.b32.xlu0 %v2571, 32
  %v2574 = vpop.permute.xlu0 %2573
  %2576 = vrot.lane.b32.xlu0 %v1804, 64
  %v2577 = vpop.permute.xlu0 %2576
  %v2579 = vsel %vm583, %v2574, %v2577
  %v2581 = vsel %vm701, %v2579, 0
  %2583 = vmatprep.subr.mxu0 0.0
  %2584 = vmatpush1.msra.mxu0 %v548
  %2585 = vmatprep.subr.mxu0 0.0
  %2586 = vmatpush1.msra.mxu0 %v549
  %2587 = vmatprep.subr.mxu0 0.0
  %2588 = vmatpush1.msra.mxu0 %v550
  %2589 = vmatprep.subr.mxu0 0.0
  %2590 = vmatpush1.msra.mxu0 %v551
  %2591 = vmatprep.subr.mxu0 0.0
  %2592 = vmatpush1.msra.mxu0 %v552
  %2593 = vmatprep.subr.mxu0 0.0
  %2594 = vmatpush1.msra.mxu0 %v553
  %2595 = vmatprep.subr.mxu0 0.0
  %2596 = vmatpush1.msra.mxu0 %v554
  %2597 = vmatprep.subr.mxu0 0.0
  %2598 = vmatpush1.msra.mxu0 %v555
  %2599 = vmatprep.subr.mxu0 0.0
  %2600 = vmatpush1.msra.mxu0 0.0
  %2601 = vmatprep.subr.mxu0 0.0
  %2602 = vmatpush1.msra.mxu0 0.0
  %2603 = vmatprep.subr.mxu0 0.0
  %2604 = vmatpush1.msra.mxu0 0.0
  %2605 = vmatprep.subr.mxu0 0.0
  %2606 = vmatpush1.msra.mxu0 0.0
  %2607 = vmatprep.subr.mxu0 0.0
  %2608 = vmatpush1.msra.mxu0 0.0
  %2609 = vmatprep.subr.mxu0 0.0
  %2610 = vmatpush1.msra.mxu0 0.0
  %2611 = vmatprep.subr.mxu0 0.0
  %2612 = vmatpush1.msra.mxu0 0.0
  %2613 = vmatprep.subr.mxu0 0.0
  %2614 = vmatpush1.msra.mxu0 0.0
  %2615 = vmatprep.subr.mxu0 0.0
  %2616 = vmatpush1.msra.mxu0 0.0
  %2617 = vmatprep.subr.mxu0 0.0
  %2618 = vmatpush1.msra.mxu0 0.0
  %2619 = vmatprep.subr.mxu0 0.0
  %2620 = vmatpush1.msra.mxu0 0.0
  %2621 = vmatprep.subr.mxu0 0.0
  %2622 = vmatpush1.msra.mxu0 0.0
  %2623 = vmatprep.subr.mxu0 0.0
  %2624 = vmatpush1.msra.mxu0 0.0
  %2625 = vmatprep.subr.mxu0 0.0
  %2626 = vmatpush1.msra.mxu0 0.0
  %2627 = vmatprep.subr.mxu0 0.0
  %2628 = vmatpush1.msra.mxu0 0.0
  %2629 = vmatprep.subr.mxu0 0.0
  %2630 = vmatpush1.msra.mxu0 0.0
  %2631 = vmatprep.subr.mxu0 0.0
  %2632 = vmatpush1.msra.mxu0 0.0
  %2633 = vmatprep.subr.mxu0 0.0
  %2634 = vmatpush1.msra.mxu0 0.0
  %2635 = vmatprep.subr.mxu0 0.0
  %2636 = vmatpush1.msra.mxu0 0.0
  %2637 = vmatprep.subr.mxu0 0.0
  %2638 = vmatpush1.msra.mxu0 0.0
  %2639 = vmatprep.subr.mxu0 0.0
  %2640 = vmatpush1.msra.mxu0 0.0
  %2641 = vmatprep.subr.mxu0 0.0
  %2642 = vmatpush1.msra.mxu0 0.0
  %2643 = vmatprep.subr.mxu0 0.0
  %2644 = vmatpush1.msra.mxu0 0.0
  %2645 = vmatprep.subr.mxu0 0.0
  %2646 = vmatpush1.msra.mxu0 0.0
  %2647 = vmatprep.mubr.f32.mxu0 0.0
  %2648 = vmatmul.mubr.f32.gmra.mrb[0].mxu0 %v2581
  %v2649 = vpop.f32.mrb[0].mxu0
  %v2650 = vadd.f32 %v816, %v2649
  %v2651 = vpop.f32.mrb[0].mxu0
  %2652 = vdwg.mxu0
  %v2653 = vxor.u32 %v2650, 2147483648
  %v2654 = vmul.f32 %v2653, 1.442695
  %v2655 = vpow.pop %v2654
  %v2656 = vadd.f32 %v2655, 1.0
  %v2657 = vrcp.pop %v2656
  %v2658 = vmul.f32 1.0, %v2657
  %v2659 = vtanh.pop %v2650
  %v2660 = vmul.f32 %v2658, %v1798
  %2662 = vrot.lane.b32.xlu0 %v2659, 64
  %v2663 = vpop.permute.xlu0 %2662
  %v2665 = vmul.f32 %v2658, %v2663
  %2667 = vrot.lane.b32.xlu0 %v2665, 32
  %v2668 = vpop.permute.xlu0 %2667
  %v2670 = vadd.f32 %v2660, %v2668
  %v2671 = vtanh.pop %v2670
  %2673 = vrot.lane.b32.xlu0 %v2671, 64
  %v2674 = vpop.permute.xlu0 %2673
  %v2676 = vmul.f32 %v2658, %v2674
  %2678 = vrot.lane.b32.xlu0 %v2676, 32
  %v2679 = vpop.permute.xlu0 %2678
  %v2680 = vsel %vm583, %v2679, 0
  %2682 = vmatprep.subr.mxu0 0.0
  %2683 = vmatpush1.msra.mxu0 %v422
  %2684 = vmatprep.subr.mxu0 0.0
  %2685 = vmatpush1.msra.mxu0 %v427
  %2686 = vmatprep.subr.mxu0 0.0
  %2687 = vmatpush1.msra.mxu0 %v432
  %2688 = vmatprep.subr.mxu0 0.0
  %2689 = vmatpush1.msra.mxu0 %v437
  %2690 = vmatprep.subr.mxu0 0.0
  %2691 = vmatpush1.msra.mxu0 0.0
  %2692 = vmatprep.subr.mxu0 0.0
  %2693 = vmatpush1.msra.mxu0 0.0
  %2694 = vmatprep.subr.mxu0 0.0
  %2695 = vmatpush1.msra.mxu0 0.0
  %2696 = vmatprep.subr.mxu0 0.0
  %2697 = vmatpush1.msra.mxu0 0.0
  %2698 = vmatprep.subr.mxu0 0.0
  %2699 = vmatpush1.msra.mxu0 0.0
  %2700 = vmatprep.subr.mxu0 0.0
  %2701 = vmatpush1.msra.mxu0 0.0
  %2702 = vmatprep.subr.mxu0 0.0
  %2703 = vmatpush1.msra.mxu0 0.0
  %2704 = vmatprep.subr.mxu0 0.0
  %2705 = vmatpush1.msra.mxu0 0.0
  %2706 = vmatprep.subr.mxu0 0.0
  %2707 = vmatpush1.msra.mxu0 0.0
  %2708 = vmatprep.subr.mxu0 0.0
  %2709 = vmatpush1.msra.mxu0 0.0
  %2710 = vmatprep.subr.mxu0 0.0
  %2711 = vmatpush1.msra.mxu0 0.0
  %2712 = vmatprep.subr.mxu0 0.0
  %2713 = vmatpush1.msra.mxu0 0.0
  %2714 = vmatprep.subr.mxu0 0.0
  %2715 = vmatpush1.msra.mxu0 0.0
  %2716 = vmatprep.subr.mxu0 0.0
  %2717 = vmatpush1.msra.mxu0 0.0
  %2718 = vmatprep.subr.mxu0 0.0
  %2719 = vmatpush1.msra.mxu0 0.0
  %2720 = vmatprep.subr.mxu0 0.0
  %2721 = vmatpush1.msra.mxu0 0.0
  %2722 = vmatprep.subr.mxu0 0.0
  %2723 = vmatpush1.msra.mxu0 0.0
  %2724 = vmatprep.subr.mxu0 0.0
  %2725 = vmatpush1.msra.mxu0 0.0
  %2726 = vmatprep.subr.mxu0 0.0
  %2727 = vmatpush1.msra.mxu0 0.0
  %2728 = vmatprep.subr.mxu0 0.0
  %2729 = vmatpush1.msra.mxu0 0.0
  %2730 = vmatprep.subr.mxu0 0.0
  %2731 = vmatpush1.msra.mxu0 0.0
  %2732 = vmatprep.subr.mxu0 0.0
  %2733 = vmatpush1.msra.mxu0 0.0
  %2734 = vmatprep.subr.mxu0 0.0
  %2735 = vmatpush1.msra.mxu0 0.0
  %2736 = vmatprep.subr.mxu0 0.0
  %2737 = vmatpush1.msra.mxu0 0.0
  %2738 = vmatprep.subr.mxu0 0.0
  %2739 = vmatpush1.msra.mxu0 0.0
  %2740 = vmatprep.subr.mxu0 0.0
  %2741 = vmatpush1.msra.mxu0 0.0
  %2742 = vmatprep.subr.mxu0 0.0
  %2743 = vmatpush1.msra.mxu0 0.0
  %2744 = vmatprep.subr.mxu0 0.0
  %2745 = vmatpush1.msra.mxu0 0.0
  %2746 = vmatprep.mubr.f32.mxu0 0.0
  %2747 = vmatmul.mubr.f32.gmra.mrb[0].mxu0 %v2680
  %v2748 = vpop.f32.mrb[0].mxu0
  %v2749 = vadd.f32 %v534, %v2748
  %v2750 = vpop.f32.mrb[0].mxu0
  %2751 = vdwg.mxu0
  %v2752 = vsel %vm994, %v2749, -inf
  %2753 = vmax.xlane.f32.xlu0 %v2752
  %v2754 = vpop.xlane.xlu0 %2753
  %v2755 = vsub.f32 %v2749, %v2754
  %v2756 = vmul.f32 %v2755, 1.442695
  %v2757 = vpow.pop %v2756
  %v2758 = vsel %vm994, %v2757, 0.0
  %2759 = vadd.xlane.f32.xlu0 %v2758
  %v2760 = vpop.xlane.xlu0 %2759
  %v2761 = vrcp.pop %v2760
  %v2762 = vmul.f32 %v2757, %v2761
  %v2764 = vsel %vm1006, %v2762, 0
  %2766 = vmatprep.subr.mxu0 0.0
  %2767 = vmatpush1.msra.mxu0 %v532
  %2768 = vmatprep.subr.mxu0 0.0
  %2769 = vmatpush1.msra.mxu0 0.0
  %2770 = vmatprep.subr.mxu0 0.0
  %2771 = vmatpush1.msra.mxu0 0.0
  %2772 = vmatprep.subr.mxu0 0.0
  %2773 = vmatpush1.msra.mxu0 0.0
  %2774 = vmatprep.subr.mxu0 0.0
  %2775 = vmatpush1.msra.mxu0 0.0
  %2776 = vmatprep.subr.mxu0 0.0
  %2777 = vmatpush1.msra.mxu0 0.0
  %2778 = vmatprep.subr.mxu0 0.0
  %2779 = vmatpush1.msra.mxu0 0.0
  %2780 = vmatprep.subr.mxu0 0.0
  %2781 = vmatpush1.msra.mxu0 0.0
  %2782 = vmatprep.subr.mxu0 0.0
  %2783 = vmatpush1.msra.mxu0 0.0
  %2784 = vmatprep.subr.mxu0 0.0
  %2785 = vmatpush1.msra.mxu0 0.0
  %2786 = vmatprep.subr.mxu0 0.0
  %2787 = vmatpush1.msra.mxu0 0.0
  %2788 = vmatprep.subr.mxu0 0.0
  %2789 = vmatpush1.msra.mxu0 0.0
  %2790 = vmatprep.subr.mxu0 0.0
  %2791 = vmatpush1.msra.mxu0 0.0
  %2792 = vmatprep.subr.mxu0 0.0
  %2793 = vmatpush1.msra.mxu0 0.0
  %2794 = vmatprep.subr.mxu0 0.0
  %2795 = vmatpush1.msra.mxu0 0.0
  %2796 = vmatprep.subr.mxu0 0.0
  %2797 = vmatpush1.msra.mxu0 0.0
  %2798 = vmatprep.subr.mxu0 0.0
  %2799 = vmatpush1.msra.mxu0 0.0
  %2800 = vmatprep.subr.mxu0 0.0
  %2801 = vmatpush1.msra.mxu0 0.0
  %2802 = vmatprep.subr.mxu0 0.0
  %2803 = vmatpush1.msra.mxu0 0.0
  %2804 = vmatprep.subr.mxu0 0.0
  %2805 = vmatpush1.msra.mxu0 0.0
  %2806 = vmatprep.subr.mxu0 0.0
  %2807 = vmatpush1.msra.mxu0 0.0
  %2808 = vmatprep.subr.mxu0 0.0
  %2809 = vmatpush1.msra.mxu0 0.0
  %2810 = vmatprep.subr.mxu0 0.0
  %2811 = vmatpush1.msra.mxu0 0.0
  %2812 = vmatprep.subr.mxu0 0.0
  %2813 = vmatpush1.msra.mxu0 0.0
  %2814 = vmatprep.subr.mxu0 0.0
  %2815 = vmatpush1.msra.mxu0 0.0
  %2816 = vmatprep.subr.mxu0 0.0
  %2817 = vmatpush1.msra.mxu0 0.0
  %2818 = vmatprep.subr.mxu0 0.0
  %2819 = vmatpush1.msra.mxu0 0.0
  %2820 = vmatprep.subr.mxu0 0.0
  %2821 = vmatpush1.msra.mxu0 0.0
  %2822 = vmatprep.subr.mxu0 0.0
  %2823 = vmatpush1.msra.mxu0 0.0
  %2824 = vmatprep.subr.mxu0 0.0
  %2825 = vmatpush1.msra.mxu0 0.0
  %2826 = vmatprep.subr.mxu0 0.0
  %2827 = vmatpush1.msra.mxu0 0.0
  %2828 = vmatprep.subr.mxu0 0.0
  %2829 = vmatpush1.msra.mxu0 0.0
  %2830 = vmatprep.mubr.f32.mxu0 0.0
  %2831 = vmatmul.mubr.f32.gmra.mrb[0].mxu0 %v2764
  %v2832 = vpop.f32.mrb[0].mxu0
  %v2833 = vadd.f32 0.0, %v2832
  %v2834 = vpop.f32.mrb[0].mxu0
  %2835 = vdwg.mxu0
  %v2836 = vrot.slane %v2676, 1
  %2837 = vrot.lane.b32.xlu0 %v2836, 32
  %v2838 = vpop.permute.xlu0 %2837
  %v2839 = vsel %vm583, %v2838, 0
  %2841 = vmatprep.subr.mxu0 0.0
  %2842 = vmatpush1.msra.mxu0 %v514
  %2843 = vmatprep.subr.mxu0 0.0
  %2844 = vmatpush1.msra.mxu0 %v519
  %2845 = vmatprep.subr.mxu0 0.0
  %2846 = vmatpush1.msra.mxu0 %v524
  %2847 = vmatprep.subr.mxu0 0.0
  %2848 = vmatpush1.msra.mxu0 %v529
  %2849 = vmatprep.subr.mxu0 0.0
  %2850 = vmatpush1.msra.mxu0 0.0
  %2851 = vmatprep.subr.mxu0 0.0
  %2852 = vmatpush1.msra.mxu0 0.0
  %2853 = vmatprep.subr.mxu0 0.0
  %2854 = vmatpush1.msra.mxu0 0.0
  %2855 = vmatprep.subr.mxu0 0.0
  %2856 = vmatpush1.msra.mxu0 0.0
  %2857 = vmatprep.subr.mxu0 0.0
  %2858 = vmatpush1.msra.mxu0 0.0
  %2859 = vmatprep.subr.mxu0 0.0
  %2860 = vmatpush1.msra.mxu0 0.0
  %2861 = vmatprep.subr.mxu0 0.0
  %2862 = vmatpush1.msra.mxu0 0.0
  %2863 = vmatprep.subr.mxu0 0.0
  %2864 = vmatpush1.msra.mxu0 0.0
  %2865 = vmatprep.subr.mxu0 0.0
  %2866 = vmatpush1.msra.mxu0 0.0
  %2867 = vmatprep.subr.mxu0 0.0
  %2868 = vmatpush1.msra.mxu0 0.0
  %2869 = vmatprep.subr.mxu0 0.0
  %2870 = vmatpush1.msra.mxu0 0.0
  %2871 = vmatprep.subr.mxu0 0.0
  %2872 = vmatpush1.msra.mxu0 0.0
  %2873 = vmatprep.subr.mxu0 0.0
  %2874 = vmatpush1.msra.mxu0 0.0
  %2875 = vmatprep.subr.mxu0 0.0
  %2876 = vmatpush1.msra.mxu0 0.0
  %2877 = vmatprep.subr.mxu0 0.0
  %2878 = vmatpush1.msra.mxu0 0.0
  %2879 = vmatprep.subr.mxu0 0.0
  %2880 = vmatpush1.msra.mxu0 0.0
  %2881 = vmatprep.subr.mxu0 0.0
  %2882 = vmatpush1.msra.mxu0 0.0
  %2883 = vmatprep.subr.mxu0 0.0
  %2884 = vmatpush1.msra.mxu0 0.0
  %2885 = vmatprep.subr.mxu0 0.0
  %2886 = vmatpush1.msra.mxu0 0.0
  %2887 = vmatprep.subr.mxu0 0.0
  %2888 = vmatpush1.msra.mxu0 0.0
  %2889 = vmatprep.subr.mxu0 0.0
  %2890 = vmatpush1.msra.mxu0 0.0
  %2891 = vmatprep.subr.mxu0 0.0
  %2892 = vmatpush1.msra.mxu0 0.0
  %2893 = vmatprep.subr.mxu0 0.0
  %2894 = vmatpush1.msra.mxu0 0.0
  %2895 = vmatprep.subr.mxu0 0.0
  %2896 = vmatpush1.msra.mxu0 0.0
  %2897 = vmatprep.subr.mxu0 0.0
  %2898 = vmatpush1.msra.mxu0 0.0
  %2899 = vmatprep.subr.mxu0 0.0
  %2900 = vmatpush1.msra.mxu0 0.0
  %2901 = vmatprep.subr.mxu0 0.0
  %2902 = vmatpush1.msra.mxu0 0.0
  %2903 = vmatprep.subr.mxu0 0.0
  %2904 = vmatpush1.msra.mxu0 0.0
  %2905 = vmatprep.mubr.f32.mxu0 0.0
  %2906 = vmatmul.mubr.f32.gmra.mrb[0].mxu0 %v2839
  %v2907 = vpop.f32.mrb[0].mxu0
  %v2908 = vadd.f32 %v1084, %v2907
  %v2909 = vpop.f32.mrb[0].mxu0
  %2910 = vdwg.mxu0
  %v2911 = vsel %vm994, %v2908, -inf
  %2912 = vmax.xlane.f32.xlu0 %v2911
  %v2913 = vpop.xlane.xlu0 %2912
  %v2914 = vsub.f32 %v2908, %v2913
  %v2915 = vmul.f32 %v2914, 1.442695
  %v2916 = vpow.pop %v2915
  %v2917 = vsel %vm994, %v2916, 0.0
  %2918 = vadd.xlane.f32.xlu0 %v2917
  %v2919 = vpop.xlane.xlu0 %2918
  %v2920 = vrcp.pop %v2919
  %v2921 = vmul.f32 %v2916, %v2920
  %v2923 = vsel %vm1006, %v2921, 0
  %2925 = vmatprep.subr.mxu0 0.0
  %2926 = vmatpush1.msra.mxu0 %v533
  %2927 = vmatprep.subr.mxu0 0.0
  %2928 = vmatpush1.msra.mxu0 0.0
  %2929 = vmatprep.subr.mxu0 0.0
  %2930 = vmatpush1.msra.mxu0 0.0
  %2931 = vmatprep.subr.mxu0 0.0
  %2932 = vmatpush1.msra.mxu0 0.0
  %2933 = vmatprep.subr.mxu0 0.0
  %2934 = vmatpush1.msra.mxu0 0.0
  %2935 = vmatprep.subr.mxu0 0.0
  %2936 = vmatpush1.msra.mxu0 0.0
  %2937 = vmatprep.subr.mxu0 0.0
  %2938 = vmatpush1.msra.mxu0 0.0
  %2939 = vmatprep.subr.mxu0 0.0
  %2940 = vmatpush1.msra.mxu0 0.0
  %2941 = vmatprep.subr.mxu0 0.0
  %2942 = vmatpush1.msra.mxu0 0.0
  %2943 = vmatprep.subr.mxu0 0.0
  %2944 = vmatpush1.msra.mxu0 0.0
  %2945 = vmatprep.subr.mxu0 0.0
  %2946 = vmatpush1.msra.mxu0 0.0
  %2947 = vmatprep.subr.mxu0 0.0
  %2948 = vmatpush1.msra.mxu0 0.0
  %2949 = vmatprep.subr.mxu0 0.0
  %2950 = vmatpush1.msra.mxu0 0.0
  %2951 = vmatprep.subr.mxu0 0.0
  %2952 = vmatpush1.msra.mxu0 0.0
  %2953 = vmatprep.subr.mxu0 0.0
  %2954 = vmatpush1.msra.mxu0 0.0
  %2955 = vmatprep.subr.mxu0 0.0
  %2956 = vmatpush1.msra.mxu0 0.0
  %2957 = vmatprep.subr.mxu0 0.0
  %2958 = vmatpush1.msra.mxu0 0.0
  %2959 = vmatprep.subr.mxu0 0.0
  %2960 = vmatpush1.msra.mxu0 0.0
  %2961 = vmatprep.subr.mxu0 0.0
  %2962 = vmatpush1.msra.mxu0 0.0
  %2963 = vmatprep.subr.mxu0 0.0
  %2964 = vmatpush1.msra.mxu0 0.0
  %2965 = vmatprep.subr.mxu0 0.0
  %2966 = vmatpush1.msra.mxu0 0.0
  %2967 = vmatprep.subr.mxu0 0.0
  %2968 = vmatpush1.msra.mxu0 0.0
  %2969 = vmatprep.subr.mxu0 0.0
  %2970 = vmatpush1.msra.mxu0 0.0
  %2971 = vmatprep.subr.mxu0 0.0
  %2972 = vmatpush1.msra.mxu0 0.0
  %2973 = vmatprep.subr.mxu0 0.0
  %2974 = vmatpush1.msra.mxu0 0.0
  %2975 = vmatprep.subr.mxu0 0.0
  %2976 = vmatpush1.msra.mxu0 0.0
  %2977 = vmatprep.subr.mxu0 0.0
  %2978 = vmatpush1.msra.mxu0 0.0
  %2979 = vmatprep.subr.mxu0 0.0
  %2980 = vmatpush1.msra.mxu0 0.0
  %2981 = vmatprep.subr.mxu0 0.0
  %2982 = vmatpush1.msra.mxu0 0.0
  %2983 = vmatprep.subr.mxu0 0.0
  %2984 = vmatpush1.msra.mxu0 0.0
  %2985 = vmatprep.subr.mxu0 0.0
  %2986 = vmatpush1.msra.mxu0 0.0
  %2987 = vmatprep.subr.mxu0 0.0
  %2988 = vmatpush1.msra.mxu0 0.0
  %2989 = vmatprep.mubr.f32.mxu0 0.0
  %2990 = vmatmul.mubr.f32.gmra.mrb[0].mxu0 %v2923
  %v2991 = vpop.f32.mrb[0].mxu0
  %v2992 = vadd.f32 0.0, %v2991
  %v2993 = vpop.f32.mrb[0].mxu0
  %2994 = vdwg.mxu0
  %v2996 = vrot.slane %v2992, 7
  %v2998 = vsel %vm1245, %v2833, %v2996
  %2999 = vmatprep.subr.mxu0 0.0
  %3000 = vmatpush1.msra.mxu0 %v563
  %3001 = vmatprep.subr.mxu0 0.0
  %3002 = vmatpush1.msra.mxu0 %v564
  %3003 = vmatprep.subr.mxu0 0.0
  %3004 = vmatpush1.msra.mxu0 %v565
  %3005 = vmatprep.subr.mxu0 0.0
  %3006 = vmatpush1.msra.mxu0 %v566
  %3007 = vmatprep.subr.mxu0 0.0
  %3008 = vmatpush1.msra.mxu0 0.0
  %3009 = vmatprep.subr.mxu0 0.0
  %3010 = vmatpush1.msra.mxu0 0.0
  %3011 = vmatprep.subr.mxu0 0.0
  %3012 = vmatpush1.msra.mxu0 0.0
  %3013 = vmatprep.subr.mxu0 0.0
  %3014 = vmatpush1.msra.mxu0 0.0
  %3015 = vmatprep.subr.mxu0 0.0
  %3016 = vmatpush1.msra.mxu0 0.0
  %3017 = vmatprep.subr.mxu0 0.0
  %3018 = vmatpush1.msra.mxu0 0.0
  %3019 = vmatprep.subr.mxu0 0.0
  %3020 = vmatpush1.msra.mxu0 0.0
  %3021 = vmatprep.subr.mxu0 0.0
  %3022 = vmatpush1.msra.mxu0 0.0
  %3023 = vmatprep.subr.mxu0 0.0
  %3024 = vmatpush1.msra.mxu0 0.0
  %3025 = vmatprep.subr.mxu0 0.0
  %3026 = vmatpush1.msra.mxu0 0.0
  %3027 = vmatprep.subr.mxu0 0.0
  %3028 = vmatpush1.msra.mxu0 0.0
  %3029 = vmatprep.subr.mxu0 0.0
  %3030 = vmatpush1.msra.mxu0 0.0
  %3031 = vmatprep.subr.mxu0 0.0
  %3032 = vmatpush1.msra.mxu0 0.0
  %3033 = vmatprep.subr.mxu0 0.0
  %3034 = vmatpush1.msra.mxu0 0.0
  %3035 = vmatprep.subr.mxu0 0.0
  %3036 = vmatpush1.msra.mxu0 0.0
  %3037 = vmatprep.subr.mxu0 0.0
  %3038 = vmatpush1.msra.mxu0 0.0
  %3039 = vmatprep.subr.mxu0 0.0
  %3040 = vmatpush1.msra.mxu0 0.0
  %3041 = vmatprep.subr.mxu0 0.0
  %3042 = vmatpush1.msra.mxu0 0.0
  %3043 = vmatprep.subr.mxu0 0.0
  %3044 = vmatpush1.msra.mxu0 0.0
  %3045 = vmatprep.subr.mxu0 0.0
  %3046 = vmatpush1.msra.mxu0 0.0
  %3047 = vmatprep.subr.mxu0 0.0
  %3048 = vmatpush1.msra.mxu0 0.0
  %3049 = vmatprep.subr.mxu0 0.0
  %3050 = vmatpush1.msra.mxu0 0.0
  %3051 = vmatprep.subr.mxu0 0.0
  %3052 = vmatpush1.msra.mxu0 0.0
  %3053 = vmatprep.subr.mxu0 0.0
  %3054 = vmatpush1.msra.mxu0 0.0
  %3055 = vmatprep.subr.mxu0 0.0
  %3056 = vmatpush1.msra.mxu0 0.0
  %3057 = vmatprep.subr.mxu0 0.0
  %3058 = vmatpush1.msra.mxu0 0.0
  %3059 = vmatprep.subr.mxu0 0.0
  %3060 = vmatpush1.msra.mxu0 0.0
  %3061 = vmatprep.subr.mxu0 0.0
  %3062 = vmatpush1.msra.mxu0 0.0
  %3063 = vmatprep.mubr.f32.mxu0 0.0
  %3064 = vmatmul.mubr.f32.gmra.mrb[0].mxu0 %v2680
  %v3065 = vpop.f32.mrb[0].mxu0
  %v3066 = vadd.f32 0.0, %v3065
  %v3067 = vpop.f32.mrb[0].mxu0
  %3068 = vdwg.mxu0
  %v3070 = vsel %vm342, %v2998, 0
  %3072 = vmatprep.subr.mxu0 0.0
  %3073 = vmatpush1.msra.mxu0 %v557
  %3074 = vmatprep.subr.mxu0 0.0
  %3075 = vmatpush1.msra.mxu0 %v558
  %3076 = vmatprep.subr.mxu0 0.0
  %3077 = vmatpush1.msra.mxu0 %v559
  %3078 = vmatprep.subr.mxu0 0.0
  %3079 = vmatpush1.msra.mxu0 %v560
  %3080 = vmatprep.subr.mxu0 0.0
  %3081 = vmatpush1.msra.mxu0 %v561
  %3082 = vmatprep.subr.mxu0 0.0
  %3083 = vmatpush1.msra.mxu0 %v562
  %3084 = vmatprep.subr.mxu0 0.0
  %3085 = vmatpush1.msra.mxu0 0.0
  %3086 = vmatprep.subr.mxu0 0.0
  %3087 = vmatpush1.msra.mxu0 0.0
  %3088 = vmatprep.subr.mxu0 0.0
  %3089 = vmatpush1.msra.mxu0 0.0
  %3090 = vmatprep.subr.mxu0 0.0
  %3091 = vmatpush1.msra.mxu0 0.0
  %3092 = vmatprep.subr.mxu0 0.0
  %3093 = vmatpush1.msra.mxu0 0.0
  %3094 = vmatprep.subr.mxu0 0.0
  %3095 = vmatpush1.msra.mxu0 0.0
  %3096 = vmatprep.subr.mxu0 0.0
  %3097 = vmatpush1.msra.mxu0 0.0
  %3098 = vmatprep.subr.mxu0 0.0
  %3099 = vmatpush1.msra.mxu0 0.0
  %3100 = vmatprep.subr.mxu0 0.0
  %3101 = vmatpush1.msra.mxu0 0.0
  %3102 = vmatprep.subr.mxu0 0.0
  %3103 = vmatpush1.msra.mxu0 0.0
  %3104 = vmatprep.subr.mxu0 0.0
  %3105 = vmatpush1.msra.mxu0 0.0
  %3106 = vmatprep.subr.mxu0 0.0
  %3107 = vmatpush1.msra.mxu0 0.0
  %3108 = vmatprep.subr.mxu0 0.0
  %3109 = vmatpush1.msra.mxu0 0.0
  %3110 = vmatprep.subr.mxu0 0.0
  %3111 = vmatpush1.msra.mxu0 0.0
  %3112 = vmatprep.subr.mxu0 0.0
  %3113 = vmatpush1.msra.mxu0 0.0
  %3114 = vmatprep.subr.mxu0 0.0
  %3115 = vmatpush1.msra.mxu0 0.0
  %3116 = vmatprep.subr.mxu0 0.0
  %3117 = vmatpush1.msra.mxu0 0.0
  %3118 = vmatprep.subr.mxu0 0.0
  %3119 = vmatpush1.msra.mxu0 0.0
  %3120 = vmatprep.subr.mxu0 0.0
  %3121 = vmatpush1.msra.mxu0 0.0
  %3122 = vmatprep.subr.mxu0 0.0
  %3123 = vmatpush1.msra.mxu0 0.0
  %3124 = vmatprep.subr.mxu0 0.0
  %3125 = vmatpush1.msra.mxu0 0.0
  %3126 = vmatprep.subr.mxu0 0.0
  %3127 = vmatpush1.msra.mxu0 0.0
  %3128 = vmatprep.subr.mxu0 0.0
  %3129 = vmatpush1.msra.mxu0 0.0
  %3130 = vmatprep.subr.mxu0 0.0
  %3131 = vmatpush1.msra.mxu0 0.0
  %3132 = vmatprep.subr.mxu0 0.0
  %3133 = vmatpush1.msra.mxu0 0.0
  %3134 = vmatprep.subr.mxu0 0.0
  %3135 = vmatpush1.msra.mxu0 0.0
  %3136 = vmatprep.mubr.f32.mxu0 0.0
  %3137 = vmatmul.mubr.f32.gmra.mrb[0].mxu0 %v3070
  %v3138 = vpop.f32.mrb[0].mxu0
  %v3139 = vadd.f32 %v3066, %v3138
  %v3140 = vpop.f32.mrb[0].mxu0
  %3141 = vdwg.mxu0
  %v3142 = vadd.f32 %v3139, %v1394
  %v3143 = vtanh.pop %v3142
  %v3145 = vsel %vm583, %v3143, 0
  %3147 = vmatprep.subr.mxu0 0.0
  %3148 = vmatpush1.msra.mxu0 %v568
  %3149 = vmatprep.subr.mxu0 0.0
  %3150 = vmatpush1.msra.mxu0 %v569
  %3151 = vmatprep.subr.mxu0 0.0
  %3152 = vmatpush1.msra.mxu0 %v570
  %3153 = vmatprep.subr.mxu0 0.0
  %3154 = vmatpush1.msra.mxu0 %v571
  %3155 = vmatprep.subr.mxu0 0.0
  %3156 = vmatpush1.msra.mxu0 0.0
  %3157 = vmatprep.subr.mxu0 0.0
  %3158 = vmatpush1.msra.mxu0 0.0
  %3159 = vmatprep.subr.mxu0 0.0
  %3160 = vmatpush1.msra.mxu0 0.0
  %3161 = vmatprep.subr.mxu0 0.0
  %3162 = vmatpush1.msra.mxu0 0.0
  %3163 = vmatprep.subr.mxu0 0.0
  %3164 = vmatpush1.msra.mxu0 0.0
  %3165 = vmatprep.subr.mxu0 0.0
  %3166 = vmatpush1.msra.mxu0 0.0
  %3167 = vmatprep.subr.mxu0 0.0
  %3168 = vmatpush1.msra.mxu0 0.0
  %3169 = vmatprep.subr.mxu0 0.0
  %3170 = vmatpush1.msra.mxu0 0.0
  %3171 = vmatprep.subr.mxu0 0.0
  %3172 = vmatpush1.msra.mxu0 0.0
  %3173 = vmatprep.subr.mxu0 0.0
  %3174 = vmatpush1.msra.mxu0 0.0
  %3175 = vmatprep.subr.mxu0 0.0
  %3176 = vmatpush1.msra.mxu0 0.0
  %3177 = vmatprep.subr.mxu0 0.0
  %3178 = vmatpush1.msra.mxu0 0.0
  %3179 = vmatprep.subr.mxu0 0.0
  %3180 = vmatpush1.msra.mxu0 0.0
  %3181 = vmatprep.subr.mxu0 0.0
  %3182 = vmatpush1.msra.mxu0 0.0
  %3183 = vmatprep.subr.mxu0 0.0
  %3184 = vmatpush1.msra.mxu0 0.0
  %3185 = vmatprep.subr.mxu0 0.0
  %3186 = vmatpush1.msra.mxu0 0.0
  %3187 = vmatprep.subr.mxu0 0.0
  %3188 = vmatpush1.msra.mxu0 0.0
  %3189 = vmatprep.subr.mxu0 0.0
  %3190 = vmatpush1.msra.mxu0 0.0
  %3191 = vmatprep.subr.mxu0 0.0
  %3192 = vmatpush1.msra.mxu0 0.0
  %3193 = vmatprep.subr.mxu0 0.0
  %3194 = vmatpush1.msra.mxu0 0.0
  %3195 = vmatprep.subr.mxu0 0.0
  %3196 = vmatpush1.msra.mxu0 0.0
  %3197 = vmatprep.subr.mxu0 0.0
  %3198 = vmatpush1.msra.mxu0 0.0
  %3199 = vmatprep.subr.mxu0 0.0
  %3200 = vmatpush1.msra.mxu0 0.0
  %3201 = vmatprep.subr.mxu0 0.0
  %3202 = vmatpush1.msra.mxu0 0.0
  %3203 = vmatprep.subr.mxu0 0.0
  %3204 = vmatpush1.msra.mxu0 0.0
  %3205 = vmatprep.subr.mxu0 0.0
  %3206 = vmatpush1.msra.mxu0 0.0
  %3207 = vmatprep.subr.mxu0 0.0
  %3208 = vmatpush1.msra.mxu0 0.0
  %3209 = vmatprep.subr.mxu0 0.0
  %3210 = vmatpush1.msra.mxu0 0.0
  %3211 = vmatprep.mubr.f32.mxu0 0.0
  %3212 = vmatmul.mubr.f32.gmra.mrb[0].mxu0 %v3145
  %v3213 = vpop.f32.mrb[0].mxu0
  %v3214 = vadd.f32 %v1402, %v3213
  %v3215 = vpop.f32.mrb[0].mxu0
  %3216 = vdwg.mxu0
  %v3217 = vsel %vm229, %v3214, -inf
  %3218 = vmax.xlane.f32.xlu0 %v3217
  %v3219 = vpop.xlane.xlu0 %3218
  %v3220 = vsub.f32 %v3214, %v3219
  %v3221 = vmul.f32 %v3220, 1.442695
  %v3222 = vpow.pop %v3221
  %v3223 = vsel %vm229, %v3222, 0.0
  %3224 = vadd.xlane.f32.xlu0 %v3223
  %v3225 = vpop.xlane.xlu0 %3224
  %v3226 = vlog2.pop %v3225
  %v3227 = vmul.f32 %v3226, 0.6931472
  %v3228 = vsub.f32 %v3220, %v3227
  %s3229 = scalar_lea.vmem %s21, 4
  %3230 = vst [vmem:[%s3229] sm:$0x3] %v3228
  %v3231 = vrot.slane %v2464, 4
  %3232 = vrot.lane.b32.xlu0 %v3231, 32
  %v3233 = vpop.permute.xlu0 %3232
  %v3234 = vsel %vm583, %v3233, 0
  %3236 = vmatprep.subr.mxu0 0.0
  %3237 = vmatpush1.msra.mxu0 %v535
  %3238 = vmatprep.subr.mxu0 0.0
  %3239 = vmatpush1.msra.mxu0 %v536
  %3240 = vmatprep.subr.mxu0 0.0
  %3241 = vmatpush1.msra.mxu0 %v537
  %3242 = vmatprep.subr.mxu0 0.0
  %3243 = vmatpush1.msra.mxu0 %v538
  %3244 = vmatprep.subr.mxu0 0.0
  %3245 = vmatpush1.msra.mxu0 0.0
  %3246 = vmatprep.subr.mxu0 0.0
  %3247 = vmatpush1.msra.mxu0 0.0
  %3248 = vmatprep.subr.mxu0 0.0
  %3249 = vmatpush1.msra.mxu0 0.0
  %3250 = vmatprep.subr.mxu0 0.0
  %3251 = vmatpush1.msra.mxu0 0.0
  %3252 = vmatprep.subr.mxu0 0.0
  %3253 = vmatpush1.msra.mxu0 0.0
  %3254 = vmatprep.subr.mxu0 0.0
  %3255 = vmatpush1.msra.mxu0 0.0
  %3256 = vmatprep.subr.mxu0 0.0
  %3257 = vmatpush1.msra.mxu0 0.0
  %3258 = vmatprep.subr.mxu0 0.0
  %3259 = vmatpush1.msra.mxu0 0.0
  %3260 = vmatprep.subr.mxu0 0.0
  %3261 = vmatpush1.msra.mxu0 0.0
  %3262 = vmatprep.subr.mxu0 0.0
  %3263 = vmatpush1.msra.mxu0 0.0
  %3264 = vmatprep.subr.mxu0 0.0
  %3265 = vmatpush1.msra.mxu0 0.0
  %3266 = vmatprep.subr.mxu0 0.0
  %3267 = vmatpush1.msra.mxu0 0.0
  %3268 = vmatprep.subr.mxu0 0.0
  %3269 = vmatpush1.msra.mxu0 0.0
  %3270 = vmatprep.subr.mxu0 0.0
  %3271 = vmatpush1.msra.mxu0 0.0
  %3272 = vmatprep.subr.mxu0 0.0
  %3273 = vmatpush1.msra.mxu0 0.0
  %3274 = vmatprep.subr.mxu0 0.0
  %3275 = vmatpush1.msra.mxu0 0.0
  %3276 = vmatprep.subr.mxu0 0.0
  %3277 = vmatpush1.msra.mxu0 0.0
  %3278 = vmatprep.subr.mxu0 0.0
  %3279 = vmatpush1.msra.mxu0 0.0
  %3280 = vmatprep.subr.mxu0 0.0
  %3281 = vmatpush1.msra.mxu0 0.0
  %3282 = vmatprep.subr.mxu0 0.0
  %3283 = vmatpush1.msra.mxu0 0.0
  %3284 = vmatprep.subr.mxu0 0.0
  %3285 = vmatpush1.msra.mxu0 0.0
  %3286 = vmatprep.subr.mxu0 0.0
  %3287 = vmatpush1.msra.mxu0 0.0
  %3288 = vmatprep.subr.mxu0 0.0
  %3289 = vmatpush1.msra.mxu0 0.0
  %3290 = vmatprep.subr.mxu0 0.0
  %3291 = vmatpush1.msra.mxu0 0.0
  %3292 = vmatprep.subr.mxu0 0.0
  %3293 = vmatpush1.msra.mxu0 0.0
  %3294 = vmatprep.subr.mxu0 0.0
  %3295 = vmatpush1.msra.mxu0 0.0
  %3296 = vmatprep.subr.mxu0 0.0
  %3297 = vmatpush1.msra.mxu0 0.0
  %3298 = vmatprep.subr.mxu0 0.0
  %3299 = vmatpush1.msra.mxu0 0.0
  %3300 = vmatprep.mubr.f32.mxu0 0.0
  %3301 = vmatmul.mubr.f32.gmra.mrb[0].mxu0 %v3234
  %v3302 = vpop.f32.mrb[0].mxu0
  %v3303 = vadd.f32 0.0, %v3302
  %v3304 = vpop.f32.mrb[0].mxu0
  %3305 = vdwg.mxu0
  %v3307 = vrot.slane %v3303, 2
  %v3309 = vadd.f32 %v300, %v3307
  %v3310 = vxor.u32 %v3309, 2147483648
  %v3311 = vmul.f32 %v3310, 1.442695
  %v3312 = vpow.pop %v3311
  %v3313 = vadd.f32 %v3312, 1.0
  %v3314 = vrcp.pop %v3313
  %v3315 = vmul.f32 1.0, %v3314
  %v3316 = vtanh.pop %v3309
  %v3318 = vrot.slane %v2458, 6
  %v3320 = vmul.f32 %v3315, %v3318
  %3322 = vrot.lane.b32.xlu0 %v3316, 64
  %v3323 = vpop.permute.xlu0 %3322
  %v3325 = vmul.f32 %v3315, %v3323
  %3327 = vrot.lane.b32.xlu0 %v3325, 32
  %v3328 = vpop.permute.xlu0 %3327
  %v3330 = vadd.f32 %v3320, %v3328
  %v3331 = vtanh.pop %v3330
  %3333 = vrot.lane.b32.xlu0 %v3331, 64
  %v3334 = vpop.permute.xlu0 %3333
  %v3336 = vmul.f32 %v3315, %v3334
  %3338 = vrot.lane.b32.xlu0 %v3336, 32
  %v3339 = vpop.permute.xlu0 %3338
  %v3341 = vrot.slane %v2571, 2
  %3342 = vrot.lane.b32.xlu0 %v3341, 64
  %v3343 = vpop.permute.xlu0 %3342
  %v3345 = vsel %vm583, %v3339, %v3343
  %v3347 = vrot.slane %v3345, 6
  %v3348 = vsel %vm701, %v3347, 0
  %3350 = vmatprep.subr.mxu0 0.0
  %3351 = vmatpush1.msra.mxu0 %v539
  %3352 = vmatprep.subr.mxu0 0.0
  %3353 = vmatpush1.msra.mxu0 %v540
  %3354 = vmatprep.subr.mxu0 0.0
  %3355 = vmatpush1.msra.mxu0 %v541
  %3356 = vmatprep.subr.mxu0 0.0
  %3357 = vmatpush1.msra.mxu0 %v542
  %3358 = vmatprep.subr.mxu0 0.0
  %3359 = vmatpush1.msra.mxu0 %v543
  %3360 = vmatprep.subr.mxu0 0.0
  %3361 = vmatpush1.msra.mxu0 %v544
  %3362 = vmatprep.subr.mxu0 0.0
  %3363 = vmatpush1.msra.mxu0 %v545
  %3364 = vmatprep.subr.mxu0 0.0
  %3365 = vmatpush1.msra.mxu0 %v546
  %3366 = vmatprep.subr.mxu0 0.0
  %3367 = vmatpush1.msra.mxu0 0.0
  %3368 = vmatprep.subr.mxu0 0.0
  %3369 = vmatpush1.msra.mxu0 0.0
  %3370 = vmatprep.subr.mxu0 0.0
  %3371 = vmatpush1.msra.mxu0 0.0
  %3372 = vmatprep.subr.mxu0 0.0
  %3373 = vmatpush1.msra.mxu0 0.0
  %3374 = vmatprep.subr.mxu0 0.0
  %3375 = vmatpush1.msra.mxu0 0.0
  %3376 = vmatprep.subr.mxu0 0.0
  %3377 = vmatpush1.msra.mxu0 0.0
  %3378 = vmatprep.subr.mxu0 0.0
  %3379 = vmatpush1.msra.mxu0 0.0
  %3380 = vmatprep.subr.mxu0 0.0
  %3381 = vmatpush1.msra.mxu0 0.0
  %3382 = vmatprep.subr.mxu0 0.0
  %3383 = vmatpush1.msra.mxu0 0.0
  %3384 = vmatprep.subr.mxu0 0.0
  %3385 = vmatpush1.msra.mxu0 0.0
  %3386 = vmatprep.subr.mxu0 0.0
  %3387 = vmatpush1.msra.mxu0 0.0
  %3388 = vmatprep.subr.mxu0 0.0
  %3389 = vmatpush1.msra.mxu0 0.0
  %3390 = vmatprep.subr.mxu0 0.0
  %3391 = vmatpush1.msra.mxu0 0.0
  %3392 = vmatprep.subr.mxu0 0.0
  %3393 = vmatpush1.msra.mxu0 0.0
  %3394 = vmatprep.subr.mxu0 0.0
  %3395 = vmatpush1.msra.mxu0 0.0
  %3396 = vmatprep.subr.mxu0 0.0
  %3397 = vmatpush1.msra.mxu0 0.0
  %3398 = vmatprep.subr.mxu0 0.0
  %3399 = vmatpush1.msra.mxu0 0.0
  %3400 = vmatprep.subr.mxu0 0.0
  %3401 = vmatpush1.msra.mxu0 0.0
  %3402 = vmatprep.subr.mxu0 0.0
  %3403 = vmatpush1.msra.mxu0 0.0
  %3404 = vmatprep.subr.mxu0 0.0
  %3405 = vmatpush1.msra.mxu0 0.0
  %3406 = vmatprep.subr.mxu0 0.0
  %3407 = vmatpush1.msra.mxu0 0.0
  %3408 = vmatprep.subr.mxu0 0.0
  %3409 = vmatpush1.msra.mxu0 0.0
  %3410 = vmatprep.subr.mxu0 0.0
  %3411 = vmatpush1.msra.mxu0 0.0
  %3412 = vmatprep.subr.mxu0 0.0
  %3413 = vmatpush1.msra.mxu0 0.0
  %3414 = vmatprep.mubr.f32.mxu0 0.0
  %3415 = vmatmul.mubr.f32.gmra.mrb[0].mxu0 %v3348
  %v3416 = vpop.f32.mrb[0].mxu0
  %v3417 = vadd.f32 %v699, %v3416
  %v3418 = vpop.f32.mrb[0].mxu0
  %3419 = vdwg.mxu0
  %v3420 = vxor.u32 %v3417, 2147483648
  %v3421 = vmul.f32 %v3420, 1.442695
  %v3422 = vpow.pop %v3421
  %v3423 = vadd.f32 %v3422, 1.0
  %v3424 = vrcp.pop %v3423
  %v3425 = vmul.f32 1.0, %v3424
  %v3426 = vtanh.pop %v3417
  %v3427 = vmul.f32 %v3425, %v2565
  %3429 = vrot.lane.b32.xlu0 %v3426, 64
  %v3430 = vpop.permute.xlu0 %3429
  %v3432 = vmul.f32 %v3425, %v3430
  %3434 = vrot.lane.b32.xlu0 %v3432, 32
  %v3435 = vpop.permute.xlu0 %3434
  %v3437 = vadd.f32 %v3427, %v3435
  %v3438 = vtanh.pop %v3437
  %3440 = vrot.lane.b32.xlu0 %v3438, 64
  %v3441 = vpop.permute.xlu0 %3440
  %v3443 = vmul.f32 %v3425, %v3441
  %3445 = vrot.lane.b32.xlu0 %v3443, 32
  %v3446 = vpop.permute.xlu0 %3445
  %3448 = vrot.lane.b32.xlu0 %v2676, 64
  %v3449 = vpop.permute.xlu0 %3448
  %v3451 = vsel %vm583, %v3446, %v3449
  %v3453 = vsel %vm701, %v3451, 0
  %3455 = vmatprep.subr.mxu0 0.0
  %3456 = vmatpush1.msra.mxu0 %v548
  %3457 = vmatprep.subr.mxu0 0.0
  %3458 = vmatpush1.msra.mxu0 %v549
  %3459 = vmatprep.subr.mxu0 0.0
  %3460 = vmatpush1.msra.mxu0 %v550
  %3461 = vmatprep.subr.mxu0 0.0
  %3462 = vmatpush1.msra.mxu0 %v551
  %3463 = vmatprep.subr.mxu0 0.0
  %3464 = vmatpush1.msra.mxu0 %v552
  %3465 = vmatprep.subr.mxu0 0.0
  %3466 = vmatpush1.msra.mxu0 %v553
  %3467 = vmatprep.subr.mxu0 0.0
  %3468 = vmatpush1.msra.mxu0 %v554
  %3469 = vmatprep.subr.mxu0 0.0
  %3470 = vmatpush1.msra.mxu0 %v555
  %3471 = vmatprep.subr.mxu0 0.0
  %3472 = vmatpush1.msra.mxu0 0.0
  %3473 = vmatprep.subr.mxu0 0.0
  %3474 = vmatpush1.msra.mxu0 0.0
  %3475 = vmatprep.subr.mxu0 0.0
  %3476 = vmatpush1.msra.mxu0 0.0
  %3477 = vmatprep.subr.mxu0 0.0
  %3478 = vmatpush1.msra.mxu0 0.0
  %3479 = vmatprep.subr.mxu0 0.0
  %3480 = vmatpush1.msra.mxu0 0.0
  %3481 = vmatprep.subr.mxu0 0.0
  %3482 = vmatpush1.msra.mxu0 0.0
  %3483 = vmatprep.subr.mxu0 0.0
  %3484 = vmatpush1.msra.mxu0 0.0
  %3485 = vmatprep.subr.mxu0 0.0
  %3486 = vmatpush1.msra.mxu0 0.0
  %3487 = vmatprep.subr.mxu0 0.0
  %3488 = vmatpush1.msra.mxu0 0.0
  %3489 = vmatprep.subr.mxu0 0.0
  %3490 = vmatpush1.msra.mxu0 0.0
  %3491 = vmatprep.subr.mxu0 0.0
  %3492 = vmatpush1.msra.mxu0 0.0
  %3493 = vmatprep.subr.mxu0 0.0
  %3494 = vmatpush1.msra.mxu0 0.0
  %3495 = vmatprep.subr.mxu0 0.0
  %3496 = vmatpush1.msra.mxu0 0.0
  %3497 = vmatprep.subr.mxu0 0.0
  %3498 = vmatpush1.msra.mxu0 0.0
  %3499 = vmatprep.subr.mxu0 0.0
  %3500 = vmatpush1.msra.mxu0 0.0
  %3501 = vmatprep.subr.mxu0 0.0
  %3502 = vmatpush1.msra.mxu0 0.0
  %3503 = vmatprep.subr.mxu0 0.0
  %3504 = vmatpush1.msra.mxu0 0.0
  %3505 = vmatprep.subr.mxu0 0.0
  %3506 = vmatpush1.msra.mxu0 0.0
  %3507 = vmatprep.subr.mxu0 0.0
  %3508 = vmatpush1.msra.mxu0 0.0
  %3509 = vmatprep.subr.mxu0 0.0
  %3510 = vmatpush1.msra.mxu0 0.0
  %3511 = vmatprep.subr.mxu0 0.0
  %3512 = vmatpush1.msra.mxu0 0.0
  %3513 = vmatprep.subr.mxu0 0.0
  %3514 = vmatpush1.msra.mxu0 0.0
  %3515 = vmatprep.subr.mxu0 0.0
  %3516 = vmatpush1.msra.mxu0 0.0
  %3517 = vmatprep.subr.mxu0 0.0
  %3518 = vmatpush1.msra.mxu0 0.0
  %3519 = vmatprep.mubr.f32.mxu0 0.0
  %3520 = vmatmul.mubr.f32.gmra.mrb[0].mxu0 %v3453
  %v3521 = vpop.f32.mrb[0].mxu0
  %v3522 = vadd.f32 %v816, %v3521
  %v3523 = vpop.f32.mrb[0].mxu0
  %3524 = vdwg.mxu0
  %v3525 = vxor.u32 %v3522, 2147483648
  %v3526 = vmul.f32 %v3525, 1.442695
  %v3527 = vpow.pop %v3526
  %v3528 = vadd.f32 %v3527, 1.0
  %v3529 = vrcp.pop %v3528
  %v3530 = vmul.f32 1.0, %v3529
  %v3531 = vtanh.pop %v3522
  %v3532 = vmul.f32 %v3530, %v2670
  %3534 = vrot.lane.b32.xlu0 %v3531, 64
  %v3535 = vpop.permute.xlu0 %3534
  %v3537 = vmul.f32 %v3530, %v3535
  %3539 = vrot.lane.b32.xlu0 %v3537, 32
  %v3540 = vpop.permute.xlu0 %3539
  %v3542 = vadd.f32 %v3532, %v3540
  %v3543 = vtanh.pop %v3542
  %3545 = vrot.lane.b32.xlu0 %v3543, 64
  %v3546 = vpop.permute.xlu0 %3545
  %v3548 = vmul.f32 %v3530, %v3546
  %3550 = vrot.lane.b32.xlu0 %v3548, 32
  %v3551 = vpop.permute.xlu0 %3550
  %v3552 = vsel %vm583, %v3551, 0
  %3554 = vmatprep.subr.mxu0 0.0
  %3555 = vmatpush1.msra.mxu0 %v422
  %3556 = vmatprep.subr.mxu0 0.0
  %3557 = vmatpush1.msra.mxu0 %v427
  %3558 = vmatprep.subr.mxu0 0.0
  %3559 = vmatpush1.msra.mxu0 %v432
  %3560 = vmatprep.subr.mxu0 0.0
  %3561 = vmatpush1.msra.mxu0 %v437
  %3562 = vmatprep.subr.mxu0 0.0
  %3563 = vmatpush1.msra.mxu0 0.0
  %3564 = vmatprep.subr.mxu0 0.0
  %3565 = vmatpush1.msra.mxu0 0.0
  %3566 = vmatprep.subr.mxu0 0.0
  %3567 = vmatpush1.msra.mxu0 0.0
  %3568 = vmatprep.subr.mxu0 0.0
  %3569 = vmatpush1.msra.mxu0 0.0
  %3570 = vmatprep.subr.mxu0 0.0
  %3571 = vmatpush1.msra.mxu0 0.0
  %3572 = vmatprep.subr.mxu0 0.0
  %3573 = vmatpush1.msra.mxu0 0.0
  %3574 = vmatprep.subr.mxu0 0.0
  %3575 = vmatpush1.msra.mxu0 0.0
  %3576 = vmatprep.subr.mxu0 0.0
  %3577 = vmatpush1.msra.mxu0 0.0
  %3578 = vmatprep.subr.mxu0 0.0
  %3579 = vmatpush1.msra.mxu0 0.0
  %3580 = vmatprep.subr.mxu0 0.0
  %3581 = vmatpush1.msra.mxu0 0.0
  %3582 = vmatprep.subr.mxu0 0.0
  %3583 = vmatpush1.msra.mxu0 0.0
  %3584 = vmatprep.subr.mxu0 0.0
  %3585 = vmatpush1.msra.mxu0 0.0
  %3586 = vmatprep.subr.mxu0 0.0
  %3587 = vmatpush1.msra.mxu0 0.0
  %3588 = vmatprep.subr.mxu0 0.0
  %3589 = vmatpush1.msra.mxu0 0.0
  %3590 = vmatprep.subr.mxu0 0.0
  %3591 = vmatpush1.msra.mxu0 0.0
  %3592 = vmatprep.subr.mxu0 0.0
  %3593 = vmatpush1.msra.mxu0 0.0
  %3594 = vmatprep.subr.mxu0 0.0
  %3595 = vmatpush1.msra.mxu0 0.0
  %3596 = vmatprep.subr.mxu0 0.0
  %3597 = vmatpush1.msra.mxu0 0.0
  %3598 = vmatprep.subr.mxu0 0.0
  %3599 = vmatpush1.msra.mxu0 0.0
  %3600 = vmatprep.subr.mxu0 0.0
  %3601 = vmatpush1.msra.mxu0 0.0
  %3602 = vmatprep.subr.mxu0 0.0
  %3603 = vmatpush1.msra.mxu0 0.0
  %3604 = vmatprep.subr.mxu0 0.0
  %3605 = vmatpush1.msra.mxu0 0.0
  %3606 = vmatprep.subr.mxu0 0.0
  %3607 = vmatpush1.msra.mxu0 0.0
  %3608 = vmatprep.subr.mxu0 0.0
  %3609 = vmatpush1.msra.mxu0 0.0
  %3610 = vmatprep.subr.mxu0 0.0
  %3611 = vmatpush1.msra.mxu0 0.0
  %3612 = vmatprep.subr.mxu0 0.0
  %3613 = vmatpush1.msra.mxu0 0.0
  %3614 = vmatprep.subr.mxu0 0.0
  %3615 = vmatpush1.msra.mxu0 0.0
  %3616 = vmatprep.subr.mxu0 0.0
  %3617 = vmatpush1.msra.mxu0 0.0
  %3618 = vmatprep.mubr.f32.mxu0 0.0
  %3619 = vmatmul.mubr.f32.gmra.mrb[0].mxu0 %v3552
  %v3620 = vpop.f32.mrb[0].mxu0
  %v3621 = vadd.f32 %v534, %v3620
  %v3622 = vpop.f32.mrb[0].mxu0
  %3623 = vdwg.mxu0
  %v3624 = vsel %vm994, %v3621, -inf
  %3625 = vmax.xlane.f32.xlu0 %v3624
  %v3626 = vpop.xlane.xlu0 %3625
  %v3627 = vsub.f32 %v3621, %v3626
  %v3628 = vmul.f32 %v3627, 1.442695
  %v3629 = vpow.pop %v3628
  %v3630 = vsel %vm994, %v3629, 0.0
  %3631 = vadd.xlane.f32.xlu0 %v3630
  %v3632 = vpop.xlane.xlu0 %3631
  %v3633 = vrcp.pop %v3632
  %v3634 = vmul.f32 %v3629, %v3633
  %v3636 = vsel %vm1006, %v3634, 0
  %3638 = vmatprep.subr.mxu0 0.0
  %3639 = vmatpush1.msra.mxu0 %v532
  %3640 = vmatprep.subr.mxu0 0.0
  %3641 = vmatpush1.msra.mxu0 0.0
  %3642 = vmatprep.subr.mxu0 0.0
  %3643 = vmatpush1.msra.mxu0 0.0
  %3644 = vmatprep.subr.mxu0 0.0
  %3645 = vmatpush1.msra.mxu0 0.0
  %3646 = vmatprep.subr.mxu0 0.0
  %3647 = vmatpush1.msra.mxu0 0.0
  %3648 = vmatprep.subr.mxu0 0.0
  %3649 = vmatpush1.msra.mxu0 0.0
  %3650 = vmatprep.subr.mxu0 0.0
  %3651 = vmatpush1.msra.mxu0 0.0
  %3652 = vmatprep.subr.mxu0 0.0
  %3653 = vmatpush1.msra.mxu0 0.0
  %3654 = vmatprep.subr.mxu0 0.0
  %3655 = vmatpush1.msra.mxu0 0.0
  %3656 = vmatprep.subr.mxu0 0.0
  %3657 = vmatpush1.msra.mxu0 0.0
  %3658 = vmatprep.subr.mxu0 0.0
  %3659 = vmatpush1.msra.mxu0 0.0
  %3660 = vmatprep.subr.mxu0 0.0
  %3661 = vmatpush1.msra.mxu0 0.0
  %3662 = vmatprep.subr.mxu0 0.0
  %3663 = vmatpush1.msra.mxu0 0.0
  %3664 = vmatprep.subr.mxu0 0.0
  %3665 = vmatpush1.msra.mxu0 0.0
  %3666 = vmatprep.subr.mxu0 0.0
  %3667 = vmatpush1.msra.mxu0 0.0
  %3668 = vmatprep.subr.mxu0 0.0
  %3669 = vmatpush1.msra.mxu0 0.0
  %3670 = vmatprep.subr.mxu0 0.0
  %3671 = vmatpush1.msra.mxu0 0.0
  %3672 = vmatprep.subr.mxu0 0.0
  %3673 = vmatpush1.msra.mxu0 0.0
  %3674 = vmatprep.subr.mxu0 0.0
  %3675 = vmatpush1.msra.mxu0 0.0
  %3676 = vmatprep.subr.mxu0 0.0
  %3677 = vmatpush1.msra.mxu0 0.0
  %3678 = vmatprep.subr.mxu0 0.0
  %3679 = vmatpush1.msra.mxu0 0.0
  %3680 = vmatprep.subr.mxu0 0.0
  %3681 = vmatpush1.msra.mxu0 0.0
  %3682 = vmatprep.subr.mxu0 0.0
  %3683 = vmatpush1.msra.mxu0 0.0
  %3684 = vmatprep.subr.mxu0 0.0
  %3685 = vmatpush1.msra.mxu0 0.0
  %3686 = vmatprep.subr.mxu0 0.0
  %3687 = vmatpush1.msra.mxu0 0.0
  %3688 = vmatprep.subr.mxu0 0.0
  %3689 = vmatpush1.msra.mxu0 0.0
  %3690 = vmatprep.subr.mxu0 0.0
  %3691 = vmatpush1.msra.mxu0 0.0
  %3692 = vmatprep.subr.mxu0 0.0
  %3693 = vmatpush1.msra.mxu0 0.0
  %3694 = vmatprep.subr.mxu0 0.0
  %3695 = vmatpush1.msra.mxu0 0.0
  %3696 = vmatprep.subr.mxu0 0.0
  %3697 = vmatpush1.msra.mxu0 0.0
  %3698 = vmatprep.subr.mxu0 0.0
  %3699 = vmatpush1.msra.mxu0 0.0
  %3700 = vmatprep.subr.mxu0 0.0
  %3701 = vmatpush1.msra.mxu0 0.0
  %3702 = vmatprep.mubr.f32.mxu0 0.0
  %3703 = vmatmul.mubr.f32.gmra.mrb[0].mxu0 %v3636
  %v3704 = vpop.f32.mrb[0].mxu0
  %v3705 = vadd.f32 0.0, %v3704
  %v3706 = vpop.f32.mrb[0].mxu0
  %3707 = vdwg.mxu0
  %v3708 = vrot.slane %v3548, 1
  %3709 = vrot.lane.b32.xlu0 %v3708, 32
  %v3710 = vpop.permute.xlu0 %3709
  %v3711 = vsel %vm583, %v3710, 0
  %3713 = vmatprep.subr.mxu0 0.0
  %3714 = vmatpush1.msra.mxu0 %v514
  %3715 = vmatprep.subr.mxu0 0.0
  %3716 = vmatpush1.msra.mxu0 %v519
  %3717 = vmatprep.subr.mxu0 0.0
  %3718 = vmatpush1.msra.mxu0 %v524
  %3719 = vmatprep.subr.mxu0 0.0
  %3720 = vmatpush1.msra.mxu0 %v529
  %3721 = vmatprep.subr.mxu0 0.0
  %3722 = vmatpush1.msra.mxu0 0.0
  %3723 = vmatprep.subr.mxu0 0.0
  %3724 = vmatpush1.msra.mxu0 0.0
  %3725 = vmatprep.subr.mxu0 0.0
  %3726 = vmatpush1.msra.mxu0 0.0
  %3727 = vmatprep.subr.mxu0 0.0
  %3728 = vmatpush1.msra.mxu0 0.0
  %3729 = vmatprep.subr.mxu0 0.0
  %3730 = vmatpush1.msra.mxu0 0.0
  %3731 = vmatprep.subr.mxu0 0.0
  %3732 = vmatpush1.msra.mxu0 0.0
  %3733 = vmatprep.subr.mxu0 0.0
  %3734 = vmatpush1.msra.mxu0 0.0
  %3735 = vmatprep.subr.mxu0 0.0
  %3736 = vmatpush1.msra.mxu0 0.0
  %3737 = vmatprep.subr.mxu0 0.0
  %3738 = vmatpush1.msra.mxu0 0.0
  %3739 = vmatprep.subr.mxu0 0.0
  %3740 = vmatpush1.msra.mxu0 0.0
  %3741 = vmatprep.subr.mxu0 0.0
  %3742 = vmatpush1.msra.mxu0 0.0
  %3743 = vmatprep.subr.mxu0 0.0
  %3744 = vmatpush1.msra.mxu0 0.0
  %3745 = vmatprep.subr.mxu0 0.0
  %3746 = vmatpush1.msra.mxu0 0.0
  %3747 = vmatprep.subr.mxu0 0.0
  %3748 = vmatpush1.msra.mxu0 0.0
  %3749 = vmatprep.subr.mxu0 0.0
  %3750 = vmatpush1.msra.mxu0 0.0
  %3751 = vmatprep.subr.mxu0 0.0
  %3752 = vmatpush1.msra.mxu0 0.0
  %3753 = vmatprep.subr.mxu0 0.0
  %3754 = vmatpush1.msra.mxu0 0.0
  %3755 = vmatprep.subr.mxu0 0.0
  %3756 = vmatpush1.msra.mxu0 0.0
  %3757 = vmatprep.subr.mxu0 0.0
  %3758 = vmatpush1.msra.mxu0 0.0
  %3759 = vmatprep.subr.mxu0 0.0
  %3760 = vmatpush1.msra.mxu0 0.0
  %3761 = vmatprep.subr.mxu0 0.0
  %3762 = vmatpush1.msra.mxu0 0.0
  %3763 = vmatprep.subr.mxu0 0.0
  %3764 = vmatpush1.msra.mxu0 0.0
  %3765 = vmatprep.subr.mxu0 0.0
  %3766 = vmatpush1.msra.mxu0 0.0
  %3767 = vmatprep.subr.mxu0 0.0
  %3768 = vmatpush1.msra.mxu0 0.0
  %3769 = vmatprep.subr.mxu0 0.0
  %3770 = vmatpush1.msra.mxu0 0.0
  %3771 = vmatprep.subr.mxu0 0.0
  %3772 = vmatpush1.msra.mxu0 0.0
  %3773 = vmatprep.subr.mxu0 0.0
  %3774 = vmatpush1.msra.mxu0 0.0
  %3775 = vmatprep.subr.mxu0 0.0
  %3776 = vmatpush1.msra.mxu0 0.0
  %3777 = vmatprep.mubr.f32.mxu0 0.0
  %3778 = vmatmul.mubr.f32.gmra.mrb[0].mxu0 %v3711
  %v3779 = vpop.f32.mrb[0].mxu0
  %v3780 = vadd.f32 %v1084, %v3779
  %v3781 = vpop.f32.mrb[0].mxu0
  %3782 = vdwg.mxu0
  %v3783 = vsel %vm994, %v3780, -inf
  %3784 = vmax.xlane.f32.xlu0 %v3783
  %v3785 = vpop.xlane.xlu0 %3784
  %v3786 = vsub.f32 %v3780, %v3785
  %v3787 = vmul.f32 %v3786, 1.442695
  %v3788 = vpow.pop %v3787
  %v3789 = vsel %vm994, %v3788, 0.0
  %3790 = vadd.xlane.f32.xlu0 %v3789
  %v3791 = vpop.xlane.xlu0 %3790
  %v3792 = vrcp.pop %v3791
  %v3793 = vmul.f32 %v3788, %v3792
  %v3795 = vsel %vm1006, %v3793, 0
  %3797 = vmatprep.subr.mxu0 0.0
  %3798 = vmatpush1.msra.mxu0 %v533
  %3799 = vmatprep.subr.mxu0 0.0
  %3800 = vmatpush1.msra.mxu0 0.0
  %3801 = vmatprep.subr.mxu0 0.0
  %3802 = vmatpush1.msra.mxu0 0.0
  %3803 = vmatprep.subr.mxu0 0.0
  %3804 = vmatpush1.msra.mxu0 0.0
  %3805 = vmatprep.subr.mxu0 0.0
  %3806 = vmatpush1.msra.mxu0 0.0
  %3807 = vmatprep.subr.mxu0 0.0
  %3808 = vmatpush1.msra.mxu0 0.0
  %3809 = vmatprep.subr.mxu0 0.0
  %3810 = vmatpush1.msra.mxu0 0.0
  %3811 = vmatprep.subr.mxu0 0.0
  %3812 = vmatpush1.msra.mxu0 0.0
  %3813 = vmatprep.subr.mxu0 0.0
  %3814 = vmatpush1.msra.mxu0 0.0
  %3815 = vmatprep.subr.mxu0 0.0
  %3816 = vmatpush1.msra.mxu0 0.0
  %3817 = vmatprep.subr.mxu0 0.0
  %3818 = vmatpush1.msra.mxu0 0.0
  %3819 = vmatprep.subr.mxu0 0.0
  %3820 = vmatpush1.msra.mxu0 0.0
  %3821 = vmatprep.subr.mxu0 0.0
  %3822 = vmatpush1.msra.mxu0 0.0
  %3823 = vmatprep.subr.mxu0 0.0
  %3824 = vmatpush1.msra.mxu0 0.0
  %3825 = vmatprep.subr.mxu0 0.0
  %3826 = vmatpush1.msra.mxu0 0.0
  %3827 = vmatprep.subr.mxu0 0.0
  %3828 = vmatpush1.msra.mxu0 0.0
  %3829 = vmatprep.subr.mxu0 0.0
  %3830 = vmatpush1.msra.mxu0 0.0
  %3831 = vmatprep.subr.mxu0 0.0
  %3832 = vmatpush1.msra.mxu0 0.0
  %3833 = vmatprep.subr.mxu0 0.0
  %3834 = vmatpush1.msra.mxu0 0.0
  %3835 = vmatprep.subr.mxu0 0.0
  %3836 = vmatpush1.msra.mxu0 0.0
  %3837 = vmatprep.subr.mxu0 0.0
  %3838 = vmatpush1.msra.mxu0 0.0
  %3839 = vmatprep.subr.mxu0 0.0
  %3840 = vmatpush1.msra.mxu0 0.0
  %3841 = vmatprep.subr.mxu0 0.0
  %3842 = vmatpush1.msra.mxu0 0.0
  %3843 = vmatprep.subr.mxu0 0.0
  %3844 = vmatpush1.msra.mxu0 0.0
  %3845 = vmatprep.subr.mxu0 0.0
  %3846 = vmatpush1.msra.mxu0 0.0
  %3847 = vmatprep.subr.mxu0 0.0
  %3848 = vmatpush1.msra.mxu0 0.0
  %3849 = vmatprep.subr.mxu0 0.0
  %3850 = vmatpush1.msra.mxu0 0.0
  %3851 = vmatprep.subr.mxu0 0.0
  %3852 = vmatpush1.msra.mxu0 0.0
  %3853 = vmatprep.subr.mxu0 0.0
  %3854 = vmatpush1.msra.mxu0 0.0
  %3855 = vmatprep.subr.mxu0 0.0
  %3856 = vmatpush1.msra.mxu0 0.0
  %3857 = vmatprep.subr.mxu0 0.0
  %3858 = vmatpush1.msra.mxu0 0.0
  %3859 = vmatprep.subr.mxu0 0.0
  %3860 = vmatpush1.msra.mxu0 0.0
  %3861 = vmatprep.mubr.f32.mxu0 0.0
  %3862 = vmatmul.mubr.f32.gmra.mrb[0].mxu0 %v3795
  %v3863 = vpop.f32.mrb[0].mxu0
  %v3864 = vadd.f32 0.0, %v3863
  %v3865 = vpop.f32.mrb[0].mxu0
  %3866 = vdwg.mxu0
  %v3868 = vrot.slane %v3864, 7
  %v3870 = vsel %vm1245, %v3705, %v3868
  %3871 = vmatprep.subr.mxu0 0.0
  %3872 = vmatpush1.msra.mxu0 %v563
  %3873 = vmatprep.subr.mxu0 0.0
  %3874 = vmatpush1.msra.mxu0 %v564
  %3875 = vmatprep.subr.mxu0 0.0
  %3876 = vmatpush1.msra.mxu0 %v565
  %3877 = vmatprep.subr.mxu0 0.0
  %3878 = vmatpush1.msra.mxu0 %v566
  %3879 = vmatprep.subr.mxu0 0.0
  %3880 = vmatpush1.msra.mxu0 0.0
  %3881 = vmatprep.subr.mxu0 0.0
  %3882 = vmatpush1.msra.mxu0 0.0
  %3883 = vmatprep.subr.mxu0 0.0
  %3884 = vmatpush1.msra.mxu0 0.0
  %3885 = vmatprep.subr.mxu0 0.0
  %3886 = vmatpush1.msra.mxu0 0.0
  %3887 = vmatprep.subr.mxu0 0.0
  %3888 = vmatpush1.msra.mxu0 0.0
  %3889 = vmatprep.subr.mxu0 0.0
  %3890 = vmatpush1.msra.mxu0 0.0
  %3891 = vmatprep.subr.mxu0 0.0
  %3892 = vmatpush1.msra.mxu0 0.0
  %3893 = vmatprep.subr.mxu0 0.0
  %3894 = vmatpush1.msra.mxu0 0.0
  %3895 = vmatprep.subr.mxu0 0.0
  %3896 = vmatpush1.msra.mxu0 0.0
  %3897 = vmatprep.subr.mxu0 0.0
  %3898 = vmatpush1.msra.mxu0 0.0
  %3899 = vmatprep.subr.mxu0 0.0
  %3900 = vmatpush1.msra.mxu0 0.0
  %3901 = vmatprep.subr.mxu0 0.0
  %3902 = vmatpush1.msra.mxu0 0.0
  %3903 = vmatprep.subr.mxu0 0.0
  %3904 = vmatpush1.msra.mxu0 0.0
  %3905 = vmatprep.subr.mxu0 0.0
  %3906 = vmatpush1.msra.mxu0 0.0
  %3907 = vmatprep.subr.mxu0 0.0
  %3908 = vmatpush1.msra.mxu0 0.0
  %3909 = vmatprep.subr.mxu0 0.0
  %3910 = vmatpush1.msra.mxu0 0.0
  %3911 = vmatprep.subr.mxu0 0.0
  %3912 = vmatpush1.msra.mxu0 0.0
  %3913 = vmatprep.subr.mxu0 0.0
  %3914 = vmatpush1.msra.mxu0 0.0
  %3915 = vmatprep.subr.mxu0 0.0
  %3916 = vmatpush1.msra.mxu0 0.0
  %3917 = vmatprep.subr.mxu0 0.0
  %3918 = vmatpush1.msra.mxu0 0.0
  %3919 = vmatprep.subr.mxu0 0.0
  %3920 = vmatpush1.msra.mxu0 0.0
  %3921 = vmatprep.subr.mxu0 0.0
  %3922 = vmatpush1.msra.mxu0 0.0
  %3923 = vmatprep.subr.mxu0 0.0
  %3924 = vmatpush1.msra.mxu0 0.0
  %3925 = vmatprep.subr.mxu0 0.0
  %3926 = vmatpush1.msra.mxu0 0.0
  %3927 = vmatprep.subr.mxu0 0.0
  %3928 = vmatpush1.msra.mxu0 0.0
  %3929 = vmatprep.subr.mxu0 0.0
  %3930 = vmatpush1.msra.mxu0 0.0
  %3931 = vmatprep.subr.mxu0 0.0
  %3932 = vmatpush1.msra.mxu0 0.0
  %3933 = vmatprep.subr.mxu0 0.0
  %3934 = vmatpush1.msra.mxu0 0.0
  %3935 = vmatprep.mubr.f32.mxu0 0.0
  %3936 = vmatmul.mubr.f32.gmra.mrb[0].mxu0 %v3552
  %v3937 = vpop.f32.mrb[0].mxu0
  %v3938 = vadd.f32 0.0, %v3937
  %v3939 = vpop.f32.mrb[0].mxu0
  %3940 = vdwg.mxu0
  %v3942 = vsel %vm342, %v3870, 0
  %3944 = vmatprep.subr.mxu0 0.0
  %3945 = vmatpush1.msra.mxu0 %v557
  %3946 = vmatprep.subr.mxu0 0.0
  %3947 = vmatpush1.msra.mxu0 %v558
  %3948 = vmatprep.subr.mxu0 0.0
  %3949 = vmatpush1.msra.mxu0 %v559
  %3950 = vmatprep.subr.mxu0 0.0
  %3951 = vmatpush1.msra.mxu0 %v560
  %3952 = vmatprep.subr.mxu0 0.0
  %3953 = vmatpush1.msra.mxu0 %v561
  %3954 = vmatprep.subr.mxu0 0.0
  %3955 = vmatpush1.msra.mxu0 %v562
  %3956 = vmatprep.subr.mxu0 0.0
  %3957 = vmatpush1.msra.mxu0 0.0
  %3958 = vmatprep.subr.mxu0 0.0
  %3959 = vmatpush1.msra.mxu0 0.0
  %3960 = vmatprep.subr.mxu0 0.0
  %3961 = vmatpush1.msra.mxu0 0.0
  %3962 = vmatprep.subr.mxu0 0.0
  %3963 = vmatpush1.msra.mxu0 0.0
  %3964 = vmatprep.subr.mxu0 0.0
  %3965 = vmatpush1.msra.mxu0 0.0
  %3966 = vmatprep.subr.mxu0 0.0
  %3967 = vmatpush1.msra.mxu0 0.0
  %3968 = vmatprep.subr.mxu0 0.0
  %3969 = vmatpush1.msra.mxu0 0.0
  %3970 = vmatprep.subr.mxu0 0.0
  %3971 = vmatpush1.msra.mxu0 0.0
  %3972 = vmatprep.subr.mxu0 0.0
  %3973 = vmatpush1.msra.mxu0 0.0
  %3974 = vmatprep.subr.mxu0 0.0
  %3975 = vmatpush1.msra.mxu0 0.0
  %3976 = vmatprep.subr.mxu0 0.0
  %3977 = vmatpush1.msra.mxu0 0.0
  %3978 = vmatprep.subr.mxu0 0.0
  %3979 = vmatpush1.msra.mxu0 0.0
  %3980 = vmatprep.subr.mxu0 0.0
  %3981 = vmatpush1.msra.mxu0 0.0
  %3982 = vmatprep.subr.mxu0 0.0
  %3983 = vmatpush1.msra.mxu0 0.0
  %3984 = vmatprep.subr.mxu0 0.0
  %3985 = vmatpush1.msra.mxu0 0.0
  %3986 = vmatprep.subr.mxu0 0.0
  %3987 = vmatpush1.msra.mxu0 0.0
  %3988 = vmatprep.subr.mxu0 0.0
  %3989 = vmatpush1.msra.mxu0 0.0
  %3990 = vmatprep.subr.mxu0 0.0
  %3991 = vmatpush1.msra.mxu0 0.0
  %3992 = vmatprep.subr.mxu0 0.0
  %3993 = vmatpush1.msra.mxu0 0.0
  %3994 = vmatprep.subr.mxu0 0.0
  %3995 = vmatpush1.msra.mxu0 0.0
  %3996 = vmatprep.subr.mxu0 0.0
  %3997 = vmatpush1.msra.mxu0 0.0
  %3998 = vmatprep.subr.mxu0 0.0
  %3999 = vmatpush1.msra.mxu0 0.0
  %4000 = vmatprep.subr.mxu0 0.0
  %4001 = vmatpush1.msra.mxu0 0.0
  %4002 = vmatprep.subr.mxu0 0.0
  %4003 = vmatpush1.msra.mxu0 0.0
  %4004 = vmatprep.subr.mxu0 0.0
  %4005 = vmatpush1.msra.mxu0 0.0
  %4006 = vmatprep.subr.mxu0 0.0
  %4007 = vmatpush1.msra.mxu0 0.0
  %4008 = vmatprep.mubr.f32.mxu0 0.0
  %4009 = vmatmul.mubr.f32.gmra.mrb[0].mxu0 %v3942
  %v4010 = vpop.f32.mrb[0].mxu0
  %v4011 = vadd.f32 %v3938, %v4010
  %v4012 = vpop.f32.mrb[0].mxu0
  %4013 = vdwg.mxu0
  %v4014 = vadd.f32 %v4011, %v1394
  %v4015 = vtanh.pop %v4014
  %v4017 = vsel %vm583, %v4015, 0
  %4019 = vmatprep.subr.mxu0 0.0
  %4020 = vmatpush1.msra.mxu0 %v568
  %4021 = vmatprep.subr.mxu0 0.0
  %4022 = vmatpush1.msra.mxu0 %v569
  %4023 = vmatprep.subr.mxu0 0.0
  %4024 = vmatpush1.msra.mxu0 %v570
  %4025 = vmatprep.subr.mxu0 0.0
  %4026 = vmatpush1.msra.mxu0 %v571
  %4027 = vmatprep.subr.mxu0 0.0
  %4028 = vmatpush1.msra.mxu0 0.0
  %4029 = vmatprep.subr.mxu0 0.0
  %4030 = vmatpush1.msra.mxu0 0.0
  %4031 = vmatprep.subr.mxu0 0.0
  %4032 = vmatpush1.msra.mxu0 0.0
  %4033 = vmatprep.subr.mxu0 0.0
  %4034 = vmatpush1.msra.mxu0 0.0
  %4035 = vmatprep.subr.mxu0 0.0
  %4036 = vmatpush1.msra.mxu0 0.0
  %4037 = vmatprep.subr.mxu0 0.0
  %4038 = vmatpush1.msra.mxu0 0.0
  %4039 = vmatprep.subr.mxu0 0.0
  %4040 = vmatpush1.msra.mxu0 0.0
  %4041 = vmatprep.subr.mxu0 0.0
  %4042 = vmatpush1.msra.mxu0 0.0
  %4043 = vmatprep.subr.mxu0 0.0
  %4044 = vmatpush1.msra.mxu0 0.0
  %4045 = vmatprep.subr.mxu0 0.0
  %4046 = vmatpush1.msra.mxu0 0.0
  %4047 = vmatprep.subr.mxu0 0.0
  %4048 = vmatpush1.msra.mxu0 0.0
  %4049 = vmatprep.subr.mxu0 0.0
  %4050 = vmatpush1.msra.mxu0 0.0
  %4051 = vmatprep.subr.mxu0 0.0
  %4052 = vmatpush1.msra.mxu0 0.0
  %4053 = vmatprep.subr.mxu0 0.0
  %4054 = vmatpush1.msra.mxu0 0.0
  %4055 = vmatprep.subr.mxu0 0.0
  %4056 = vmatpush1.msra.mxu0 0.0
  %4057 = vmatprep.subr.mxu0 0.0
  %4058 = vmatpush1.msra.mxu0 0.0
  %4059 = vmatprep.subr.mxu0 0.0
  %4060 = vmatpush1.msra.mxu0 0.0
  %4061 = vmatprep.subr.mxu0 0.0
  %4062 = vmatpush1.msra.mxu0 0.0
  %4063 = vmatprep.subr.mxu0 0.0
  %4064 = vmatpush1.msra.mxu0 0.0
  %4065 = vmatprep.subr.mxu0 0.0
  %4066 = vmatpush1.msra.mxu0 0.0
  %4067 = vmatprep.subr.mxu0 0.0
  %4068 = vmatpush1.msra.mxu0 0.0
  %4069 = vmatprep.subr.mxu0 0.0
  %4070 = vmatpush1.msra.mxu0 0.0
  %4071 = vmatprep.subr.mxu0 0.0
  %4072 = vmatpush1.msra.mxu0 0.0
  %4073 = vmatprep.subr.mxu0 0.0
  %4074 = vmatpush1.msra.mxu0 0.0
  %4075 = vmatprep.subr.mxu0 0.0
  %4076 = vmatpush1.msra.mxu0 0.0
  %4077 = vmatprep.subr.mxu0 0.0
  %4078 = vmatpush1.msra.mxu0 0.0
  %4079 = vmatprep.subr.mxu0 0.0
  %4080 = vmatpush1.msra.mxu0 0.0
  %4081 = vmatprep.subr.mxu0 0.0
  %4082 = vmatpush1.msra.mxu0 0.0
  %4083 = vmatprep.mubr.f32.mxu0 0.0
  %4084 = vmatmul.mubr.f32.gmra.mrb[0].mxu0 %v4017
  %v4085 = vpop.f32.mrb[0].mxu0
  %v4086 = vadd.f32 %v1402, %v4085
  %v4087 = vpop.f32.mrb[0].mxu0
  %4088 = vdwg.mxu0
  %v4089 = vsel %vm229, %v4086, -inf
  %4090 = vmax.xlane.f32.xlu0 %v4089
  %v4091 = vpop.xlane.xlu0 %4090
  %v4092 = vsub.f32 %v4086, %v4091
  %v4093 = vmul.f32 %v4092, 1.442695
  %v4094 = vpow.pop %v4093
  %v4095 = vsel %vm229, %v4094, 0.0
  %4096 = vadd.xlane.f32.xlu0 %v4095
  %v4097 = vpop.xlane.xlu0 %4096
  %v4098 = vlog2.pop %v4097
  %v4099 = vmul.f32 %v4098, 0.6931472
  %v4100 = vsub.f32 %v4092, %v4099
  %s4101 = scalar_lea.vmem %s21, 6
  %4102 = vst [vmem:[%s4101] sm:$0x3] %v4100
  %v4103 = vrot.slane %v3336, 6
  %4104 = vrot.lane.b32.xlu0 %v4103, 32
  %v4105 = vpop.permute.xlu0 %4104
  %v4106 = vsel %vm583, %v4105, 0
  %4108 = vmatprep.subr.mxu0 0.0
  %4109 = vmatpush1.msra.mxu0 %v535
  %4110 = vmatprep.subr.mxu0 0.0
  %4111 = vmatpush1.msra.mxu0 %v536
  %4112 = vmatprep.subr.mxu0 0.0
  %4113 = vmatpush1.msra.mxu0 %v537
  %4114 = vmatprep.subr.mxu0 0.0
  %4115 = vmatpush1.msra.mxu0 %v538
  %4116 = vmatprep.subr.mxu0 0.0
  %4117 = vmatpush1.msra.mxu0 0.0
  %4118 = vmatprep.subr.mxu0 0.0
  %4119 = vmatpush1.msra.mxu0 0.0
  %4120 = vmatprep.subr.mxu0 0.0
  %4121 = vmatpush1.msra.mxu0 0.0
  %4122 = vmatprep.subr.mxu0 0.0
  %4123 = vmatpush1.msra.mxu0 0.0
  %4124 = vmatprep.subr.mxu0 0.0
  %4125 = vmatpush1.msra.mxu0 0.0
  %4126 = vmatprep.subr.mxu0 0.0
  %4127 = vmatpush1.msra.mxu0 0.0
  %4128 = vmatprep.subr.mxu0 0.0
  %4129 = vmatpush1.msra.mxu0 0.0
  %4130 = vmatprep.subr.mxu0 0.0
  %4131 = vmatpush1.msra.mxu0 0.0
  %4132 = vmatprep.subr.mxu0 0.0
  %4133 = vmatpush1.msra.mxu0 0.0
  %4134 = vmatprep.subr.mxu0 0.0
  %4135 = vmatpush1.msra.mxu0 0.0
  %4136 = vmatprep.subr.mxu0 0.0
  %4137 = vmatpush1.msra.mxu0 0.0
  %4138 = vmatprep.subr.mxu0 0.0
  %4139 = vmatpush1.msra.mxu0 0.0
  %4140 = vmatprep.subr.mxu0 0.0
  %4141 = vmatpush1.msra.mxu0 0.0
  %4142 = vmatprep.subr.mxu0 0.0
  %4143 = vmatpush1.msra.mxu0 0.0
  %4144 = vmatprep.subr.mxu0 0.0
  %4145 = vmatpush1.msra.mxu0 0.0
  %4146 = vmatprep.subr.mxu0 0.0
  %4147 = vmatpush1.msra.mxu0 0.0
  %4148 = vmatprep.subr.mxu0 0.0
  %4149 = vmatpush1.msra.mxu0 0.0
  %4150 = vmatprep.subr.mxu0 0.0
  %4151 = vmatpush1.msra.mxu0 0.0
  %4152 = vmatprep.subr.mxu0 0.0
  %4153 = vmatpush1.msra.mxu0 0.0
  %4154 = vmatprep.subr.mxu0 0.0
  %4155 = vmatpush1.msra.mxu0 0.0
  %4156 = vmatprep.subr.mxu0 0.0
  %4157 = vmatpush1.msra.mxu0 0.0
  %4158 = vmatprep.subr.mxu0 0.0
  %4159 = vmatpush1.msra.mxu0 0.0
  %4160 = vmatprep.subr.mxu0 0.0
  %4161 = vmatpush1.msra.mxu0 0.0
  %4162 = vmatprep.subr.mxu0 0.0
  %4163 = vmatpush1.msra.mxu0 0.0
  %4164 = vmatprep.subr.mxu0 0.0
  %4165 = vmatpush1.msra.mxu0 0.0
  %4166 = vmatprep.subr.mxu0 0.0
  %4167 = vmatpush1.msra.mxu0 0.0
  %4168 = vmatprep.subr.mxu0 0.0
  %4169 = vmatpush1.msra.mxu0 0.0
  %4170 = vmatprep.subr.mxu0 0.0
  %4171 = vmatpush1.msra.mxu0 0.0
  %4172 = vmatprep.mubr.f32.mxu0 0.0
  %4173 = vmatmul.mubr.f32.gmra.mrb[0].mxu0 %v4106
  %v4174 = vpop.f32.mrb[0].mxu0
  %v4175 = vadd.f32 0.0, %v4174
  %v4176 = vpop.f32.mrb[0].mxu0
  %4177 = vdwg.mxu0
  %v4178 = vadd.f32 %v305, %v4175
  %v4179 = vxor.u32 %v4178, 2147483648
  %v4180 = vmul.f32 %v4179, 1.442695
  %v4181 = vpow.pop %v4180
  %v4182 = vadd.f32 %v4181, 1.0
  %v4183 = vrcp.pop %v4182
  %v4184 = vmul.f32 1.0, %v4183
  %v4185 = vtanh.pop %v4178
  %v4187 = vrot.slane %v3330, 6
  %v4189 = vmul.f32 %v4184, %v4187
  %4191 = vrot.lane.b32.xlu0 %v4185, 64
  %v4192 = vpop.permute.xlu0 %4191
  %v4194 = vmul.f32 %v4184, %v4192
  %4196 = vrot.lane.b32.xlu0 %v4194, 32
  %v4197 = vpop.permute.xlu0 %4196
  %v4199 = vadd.f32 %v4189, %v4197
  %v4200 = vtanh.pop %v4199
  %4202 = vrot.lane.b32.xlu0 %v4200, 64
  %v4203 = vpop.permute.xlu0 %4202
  %v4205 = vmul.f32 %v4184, %v4203
  %4207 = vrot.lane.b32.xlu0 %v4205, 32
  %v4208 = vpop.permute.xlu0 %4207
  %4210 = vrot.lane.b32.xlu0 %v3443, 64
  %v4211 = vpop.permute.xlu0 %4210
  %v4213 = vsel %vm583, %v4208, %v4211
  %v4215 = vsel %vm701, %v4213, 0
  %4217 = vmatprep.subr.mxu0 0.0
  %4218 = vmatpush1.msra.mxu0 %v539
  %4219 = vmatprep.subr.mxu0 0.0
  %4220 = vmatpush1.msra.mxu0 %v540
  %4221 = vmatprep.subr.mxu0 0.0
  %4222 = vmatpush1.msra.mxu0 %v541
  %4223 = vmatprep.subr.mxu0 0.0
  %4224 = vmatpush1.msra.mxu0 %v542
  %4225 = vmatprep.subr.mxu0 0.0
  %4226 = vmatpush1.msra.mxu0 %v543
  %4227 = vmatprep.subr.mxu0 0.0
  %4228 = vmatpush1.msra.mxu0 %v544
  %4229 = vmatprep.subr.mxu0 0.0
  %4230 = vmatpush1.msra.mxu0 %v545
  %4231 = vmatprep.subr.mxu0 0.0
  %4232 = vmatpush1.msra.mxu0 %v546
  %4233 = vmatprep.subr.mxu0 0.0
  %4234 = vmatpush1.msra.mxu0 0.0
  %4235 = vmatprep.subr.mxu0 0.0
  %4236 = vmatpush1.msra.mxu0 0.0
  %4237 = vmatprep.subr.mxu0 0.0
  %4238 = vmatpush1.msra.mxu0 0.0
  %4239 = vmatprep.subr.mxu0 0.0
  %4240 = vmatpush1.msra.mxu0 0.0
  %4241 = vmatprep.subr.mxu0 0.0
  %4242 = vmatpush1.msra.mxu0 0.0
  %4243 = vmatprep.subr.mxu0 0.0
  %4244 = vmatpush1.msra.mxu0 0.0
  %4245 = vmatprep.subr.mxu0 0.0
  %4246 = vmatpush1.msra.mxu0 0.0
  %4247 = vmatprep.subr.mxu0 0.0
  %4248 = vmatpush1.msra.mxu0 0.0
  %4249 = vmatprep.subr.mxu0 0.0
  %4250 = vmatpush1.msra.mxu0 0.0
  %4251 = vmatprep.subr.mxu0 0.0
  %4252 = vmatpush1.msra.mxu0 0.0
  %4253 = vmatprep.subr.mxu0 0.0
  %4254 = vmatpush1.msra.mxu0 0.0
  %4255 = vmatprep.subr.mxu0 0.0
  %4256 = vmatpush1.msra.mxu0 0.0
  %4257 = vmatprep.subr.mxu0 0.0
  %4258 = vmatpush1.msra.mxu0 0.0
  %4259 = vmatprep.subr.mxu0 0.0
  %4260 = vmatpush1.msra.mxu0 0.0
  %4261 = vmatprep.subr.mxu0 0.0
  %4262 = vmatpush1.msra.mxu0 0.0
  %4263 = vmatprep.subr.mxu0 0.0
  %4264 = vmatpush1.msra.mxu0 0.0
  %4265 = vmatprep.subr.mxu0 0.0
  %4266 = vmatpush1.msra.mxu0 0.0
  %4267 = vmatprep.subr.mxu0 0.0
  %4268 = vmatpush1.msra.mxu0 0.0
  %4269 = vmatprep.subr.mxu0 0.0
  %4270 = vmatpush1.msra.mxu0 0.0
  %4271 = vmatprep.subr.mxu0 0.0
  %4272 = vmatpush1.msra.mxu0 0.0
  %4273 = vmatprep.subr.mxu0 0.0
  %4274 = vmatpush1.msra.mxu0 0.0
  %4275 = vmatprep.subr.mxu0 0.0
  %4276 = vmatpush1.msra.mxu0 0.0
  %4277 = vmatprep.subr.mxu0 0.0
  %4278 = vmatpush1.msra.mxu0 0.0
  %4279 = vmatprep.subr.mxu0 0.0
  %4280 = vmatpush1.msra.mxu0 0.0
  %4281 = vmatprep.mubr.f32.mxu0 0.0
  %4282 = vmatmul.mubr.f32.gmra.mrb[0].mxu0 %v4215
  %v4283 = vpop.f32.mrb[0].mxu0
  %v4284 = vadd.f32 %v699, %v4283
  %v4285 = vpop.f32.mrb[0].mxu0
  %4286 = vdwg.mxu0
  %v4287 = vxor.u32 %v4284, 2147483648
  %v4288 = vmul.f32 %v4287, 1.442695
  %v4289 = vpow.pop %v4288
  %v4290 = vadd.f32 %v4289, 1.0
  %v4291 = vrcp.pop %v4290
  %v4292 = vmul.f32 1.0, %v4291
  %v4293 = vtanh.pop %v4284
  %v4294 = vmul.f32 %v4292, %v3437
  %4296 = vrot.lane.b32.xlu0 %v4293, 64
  %v4297 = vpop.permute.xlu0 %4296
  %v4299 = vmul.f32 %v4292, %v4297
  %4301 = vrot.lane.b32.xlu0 %v4299, 32
  %v4302 = vpop.permute.xlu0 %4301
  %v4304 = vadd.f32 %v4294, %v4302
  %v4305 = vtanh.pop %v4304
  %4307 = vrot.lane.b32.xlu0 %v4305, 64
  %v4308 = vpop.permute.xlu0 %4307
  %v4310 = vmul.f32 %v4292, %v4308
  %4312 = vrot.lane.b32.xlu0 %v4310, 32
  %v4313 = vpop.permute.xlu0 %4312
  %4315 = vrot.lane.b32.xlu0 %v3548, 64
  %v4316 = vpop.permute.xlu0 %4315
  %v4318 = vsel %vm583, %v4313, %v4316
  %v4320 = vsel %vm701, %v4318, 0
  %4322 = vmatprep.subr.mxu0 0.0
  %4323 = vmatpush1.msra.mxu0 %v548
  %4324 = vmatprep.subr.mxu0 0.0
  %4325 = vmatpush1.msra.mxu0 %v549
  %4326 = vmatprep.subr.mxu0 0.0
  %4327 = vmatpush1.msra.mxu0 %v550
  %4328 = vmatprep.subr.mxu0 0.0
  %4329 = vmatpush1.msra.mxu0 %v551
  %4330 = vmatprep.subr.mxu0 0.0
  %4331 = vmatpush1.msra.mxu0 %v552
  %4332 = vmatprep.subr.mxu0 0.0
  %4333 = vmatpush1.msra.mxu0 %v553
  %4334 = vmatprep.subr.mxu0 0.0
  %4335 = vmatpush1.msra.mxu0 %v554
  %4336 = vmatprep.subr.mxu0 0.0
  %4337 = vmatpush1.msra.mxu0 %v555
  %4338 = vmatprep.subr.mxu0 0.0
  %4339 = vmatpush1.msra.mxu0 0.0
  %4340 = vmatprep.subr.mxu0 0.0
  %4341 = vmatpush1.msra.mxu0 0.0
  %4342 = vmatprep.subr.mxu0 0.0
  %4343 = vmatpush1.msra.mxu0 0.0
  %4344 = vmatprep.subr.mxu0 0.0
  %4345 = vmatpush1.msra.mxu0 0.0
  %4346 = vmatprep.subr.mxu0 0.0
  %4347 = vmatpush1.msra.mxu0 0.0
  %4348 = vmatprep.subr.mxu0 0.0
  %4349 = vmatpush1.msra.mxu0 0.0
  %4350 = vmatprep.subr.mxu0 0.0
  %4351 = vmatpush1.msra.mxu0 0.0
  %4352 = vmatprep.subr.mxu0 0.0
  %4353 = vmatpush1.msra.mxu0 0.0
  %4354 = vmatprep.subr.mxu0 0.0
  %4355 = vmatpush1.msra.mxu0 0.0
  %4356 = vmatprep.subr.mxu0 0.0
  %4357 = vmatpush1.msra.mxu0 0.0
  %4358 = vmatprep.subr.mxu0 0.0
  %4359 = vmatpush1.msra.mxu0 0.0
  %4360 = vmatprep.subr.mxu0 0.0
  %4361 = vmatpush1.msra.mxu0 0.0
  %4362 = vmatprep.subr.mxu0 0.0
  %4363 = vmatpush1.msra.mxu0 0.0
  %4364 = vmatprep.subr.mxu0 0.0
  %4365 = vmatpush1.msra.mxu0 0.0
  %4366 = vmatprep.subr.mxu0 0.0
  %4367 = vmatpush1.msra.mxu0 0.0
  %4368 = vmatprep.subr.mxu0 0.0
  %4369 = vmatpush1.msra.mxu0 0.0
  %4370 = vmatprep.subr.mxu0 0.0
  %4371 = vmatpush1.msra.mxu0 0.0
  %4372 = vmatprep.subr.mxu0 0.0
  %4373 = vmatpush1.msra.mxu0 0.0
  %4374 = vmatprep.subr.mxu0 0.0
  %4375 = vmatpush1.msra.mxu0 0.0
  %4376 = vmatprep.subr.mxu0 0.0
  %4377 = vmatpush1.msra.mxu0 0.0
  %4378 = vmatprep.subr.mxu0 0.0
  %4379 = vmatpush1.msra.mxu0 0.0
  %4380 = vmatprep.subr.mxu0 0.0
  %4381 = vmatpush1.msra.mxu0 0.0
  %4382 = vmatprep.subr.mxu0 0.0
  %4383 = vmatpush1.msra.mxu0 0.0
  %4384 = vmatprep.subr.mxu0 0.0
  %4385 = vmatpush1.msra.mxu0 0.0
  %4386 = vmatprep.mubr.f32.mxu0 0.0
  %4387 = vmatmul.mubr.f32.gmra.mrb[0].mxu0 %v4320
  %v4388 = vpop.f32.mrb[0].mxu0
  %v4389 = vadd.f32 %v816, %v4388
  %v4390 = vpop.f32.mrb[0].mxu0
  %4391 = vdwg.mxu0
  %v4392 = vxor.u32 %v4389, 2147483648
  %v4393 = vmul.f32 %v4392, 1.442695
  %v4394 = vpow.pop %v4393
  %v4395 = vadd.f32 %v4394, 1.0
  %v4396 = vrcp.pop %v4395
  %v4397 = vmul.f32 1.0, %v4396
  %v4398 = vtanh.pop %v4389
  %v4399 = vmul.f32 %v4397, %v3542
  %4401 = vrot.lane.b32.xlu0 %v4398, 64
  %v4402 = vpop.permute.xlu0 %4401
  %v4404 = vmul.f32 %v4397, %v4402
  %4406 = vrot.lane.b32.xlu0 %v4404, 32
  %v4407 = vpop.permute.xlu0 %4406
  %v4409 = vadd.f32 %v4399, %v4407
  %v4410 = vtanh.pop %v4409
  %4412 = vrot.lane.b32.xlu0 %v4410, 64
  %v4413 = vpop.permute.xlu0 %4412
  %v4415 = vmul.f32 %v4397, %v4413
  %4417 = vrot.lane.b32.xlu0 %v4415, 32
  %v4418 = vpop.permute.xlu0 %4417
  %v4419 = vsel %vm583, %v4418, 0
  %4421 = vmatprep.subr.mxu0 0.0
  %4422 = vmatpush1.msra.mxu0 %v422
  %4423 = vmatprep.subr.mxu0 0.0
  %4424 = vmatpush1.msra.mxu0 %v427
  %4425 = vmatprep.subr.mxu0 0.0
  %4426 = vmatpush1.msra.mxu0 %v432
  %4427 = vmatprep.subr.mxu0 0.0
  %4428 = vmatpush1.msra.mxu0 %v437
  %4429 = vmatprep.subr.mxu0 0.0
  %4430 = vmatpush1.msra.mxu0 0.0
  %4431 = vmatprep.subr.mxu0 0.0
  %4432 = vmatpush1.msra.mxu0 0.0
  %4433 = vmatprep.subr.mxu0 0.0
  %4434 = vmatpush1.msra.mxu0 0.0
  %4435 = vmatprep.subr.mxu0 0.0
  %4436 = vmatpush1.msra.mxu0 0.0
  %4437 = vmatprep.subr.mxu0 0.0
  %4438 = vmatpush1.msra.mxu0 0.0
  %4439 = vmatprep.subr.mxu0 0.0
  %4440 = vmatpush1.msra.mxu0 0.0
  %4441 = vmatprep.subr.mxu0 0.0
  %4442 = vmatpush1.msra.mxu0 0.0
  %4443 = vmatprep.subr.mxu0 0.0
  %4444 = vmatpush1.msra.mxu0 0.0
  %4445 = vmatprep.subr.mxu0 0.0
  %4446 = vmatpush1.msra.mxu0 0.0
  %4447 = vmatprep.subr.mxu0 0.0
  %4448 = vmatpush1.msra.mxu0 0.0
  %4449 = vmatprep.subr.mxu0 0.0
  %4450 = vmatpush1.msra.mxu0 0.0
  %4451 = vmatprep.subr.mxu0 0.0
  %4452 = vmatpush1.msra.mxu0 0.0
  %4453 = vmatprep.subr.mxu0 0.0
  %4454 = vmatpush1.msra.mxu0 0.0
  %4455 = vmatprep.subr.mxu0 0.0
  %4456 = vmatpush1.msra.mxu0 0.0
  %4457 = vmatprep.subr.mxu0 0.0
  %4458 = vmatpush1.msra.mxu0 0.0
  %4459 = vmatprep.subr.mxu0 0.0
  %4460 = vmatpush1.msra.mxu0 0.0
  %4461 = vmatprep.subr.mxu0 0.0
  %4462 = vmatpush1.msra.mxu0 0.0
  %4463 = vmatprep.subr.mxu0 0.0
  %4464 = vmatpush1.msra.mxu0 0.0
  %4465 = vmatprep.subr.mxu0 0.0
  %4466 = vmatpush1.msra.mxu0 0.0
  %4467 = vmatprep.subr.mxu0 0.0
  %4468 = vmatpush1.msra.mxu0 0.0
  %4469 = vmatprep.subr.mxu0 0.0
  %4470 = vmatpush1.msra.mxu0 0.0
  %4471 = vmatprep.subr.mxu0 0.0
  %4472 = vmatpush1.msra.mxu0 0.0
  %4473 = vmatprep.subr.mxu0 0.0
  %4474 = vmatpush1.msra.mxu0 0.0
  %4475 = vmatprep.subr.mxu0 0.0
  %4476 = vmatpush1.msra.mxu0 0.0
  %4477 = vmatprep.subr.mxu0 0.0
  %4478 = vmatpush1.msra.mxu0 0.0
  %4479 = vmatprep.subr.mxu0 0.0
  %4480 = vmatpush1.msra.mxu0 0.0
  %4481 = vmatprep.subr.mxu0 0.0
  %4482 = vmatpush1.msra.mxu0 0.0
  %4483 = vmatprep.subr.mxu0 0.0
  %4484 = vmatpush1.msra.mxu0 0.0
  %4485 = vmatprep.mubr.f32.mxu0 0.0
  %4486 = vmatmul.mubr.f32.gmra.mrb[0].mxu0 %v4419
  %v4487 = vpop.f32.mrb[0].mxu0
  %v4488 = vadd.f32 %v534, %v4487
  %v4489 = vpop.f32.mrb[0].mxu0
  %4490 = vdwg.mxu0
  %v4491 = vsel %vm994, %v4488, -inf
  %4492 = vmax.xlane.f32.xlu0 %v4491
  %v4493 = vpop.xlane.xlu0 %4492
  %v4494 = vsub.f32 %v4488, %v4493
  %v4495 = vmul.f32 %v4494, 1.442695
  %v4496 = vpow.pop %v4495
  %v4497 = vsel %vm994, %v4496, 0.0
  %4498 = vadd.xlane.f32.xlu0 %v4497
  %v4499 = vpop.xlane.xlu0 %4498
  %v4500 = vrcp.pop %v4499
  %v4501 = vmul.f32 %v4496, %v4500
  %v4503 = vsel %vm1006, %v4501, 0
  %4505 = vmatprep.subr.mxu0 0.0
  %4506 = vmatpush1.msra.mxu0 %v532
  %4507 = vmatprep.subr.mxu0 0.0
  %4508 = vmatpush1.msra.mxu0 0.0
  %4509 = vmatprep.subr.mxu0 0.0
  %4510 = vmatpush1.msra.mxu0 0.0
  %4511 = vmatprep.subr.mxu0 0.0
  %4512 = vmatpush1.msra.mxu0 0.0
  %4513 = vmatprep.subr.mxu0 0.0
  %4514 = vmatpush1.msra.mxu0 0.0
  %4515 = vmatprep.subr.mxu0 0.0
  %4516 = vmatpush1.msra.mxu0 0.0
  %4517 = vmatprep.subr.mxu0 0.0
  %4518 = vmatpush1.msra.mxu0 0.0
  %4519 = vmatprep.subr.mxu0 0.0
  %4520 = vmatpush1.msra.mxu0 0.0
  %4521 = vmatprep.subr.mxu0 0.0
  %4522 = vmatpush1.msra.mxu0 0.0
  %4523 = vmatprep.subr.mxu0 0.0
  %4524 = vmatpush1.msra.mxu0 0.0
  %4525 = vmatprep.subr.mxu0 0.0
  %4526 = vmatpush1.msra.mxu0 0.0
  %4527 = vmatprep.subr.mxu0 0.0
  %4528 = vmatpush1.msra.mxu0 0.0
  %4529 = vmatprep.subr.mxu0 0.0
  %4530 = vmatpush1.msra.mxu0 0.0
  %4531 = vmatprep.subr.mxu0 0.0
  %4532 = vmatpush1.msra.mxu0 0.0
  %4533 = vmatprep.subr.mxu0 0.0
  %4534 = vmatpush1.msra.mxu0 0.0
  %4535 = vmatprep.subr.mxu0 0.0
  %4536 = vmatpush1.msra.mxu0 0.0
  %4537 = vmatprep.subr.mxu0 0.0
  %4538 = vmatpush1.msra.mxu0 0.0
  %4539 = vmatprep.subr.mxu0 0.0
  %4540 = vmatpush1.msra.mxu0 0.0
  %4541 = vmatprep.subr.mxu0 0.0
  %4542 = vmatpush1.msra.mxu0 0.0
  %4543 = vmatprep.subr.mxu0 0.0
  %4544 = vmatpush1.msra.mxu0 0.0
  %4545 = vmatprep.subr.mxu0 0.0
  %4546 = vmatpush1.msra.mxu0 0.0
  %4547 = vmatprep.subr.mxu0 0.0
  %4548 = vmatpush1.msra.mxu0 0.0
  %4549 = vmatprep.subr.mxu0 0.0
  %4550 = vmatpush1.msra.mxu0 0.0
  %4551 = vmatprep.subr.mxu0 0.0
  %4552 = vmatpush1.msra.mxu0 0.0
  %4553 = vmatprep.subr.mxu0 0.0
  %4554 = vmatpush1.msra.mxu0 0.0
  %4555 = vmatprep.subr.mxu0 0.0
  %4556 = vmatpush1.msra.mxu0 0.0
  %4557 = vmatprep.subr.mxu0 0.0
  %4558 = vmatpush1.msra.mxu0 0.0
  %4559 = vmatprep.subr.mxu0 0.0
  %4560 = vmatpush1.msra.mxu0 0.0
  %4561 = vmatprep.subr.mxu0 0.0
  %4562 = vmatpush1.msra.mxu0 0.0
  %4563 = vmatprep.subr.mxu0 0.0
  %4564 = vmatpush1.msra.mxu0 0.0
  %4565 = vmatprep.subr.mxu0 0.0
  %4566 = vmatpush1.msra.mxu0 0.0
  %4567 = vmatprep.subr.mxu0 0.0
  %4568 = vmatpush1.msra.mxu0 0.0
  %4569 = vmatprep.mubr.f32.mxu0 0.0
  %4570 = vmatmul.mubr.f32.gmra.mrb[0].mxu0 %v4503
  %v4571 = vpop.f32.mrb[0].mxu0
  %v4572 = vadd.f32 0.0, %v4571
  %v4573 = vpop.f32.mrb[0].mxu0
  %4574 = vdwg.mxu0
  %v4575 = vrot.slane %v4415, 1
  %4576 = vrot.lane.b32.xlu0 %v4575, 32
  %v4577 = vpop.permute.xlu0 %4576
  %v4578 = vsel %vm583, %v4577, 0
  %4580 = vmatprep.subr.mxu0 0.0
  %4581 = vmatpush1.msra.mxu0 %v514
  %4582 = vmatprep.subr.mxu0 0.0
  %4583 = vmatpush1.msra.mxu0 %v519
  %4584 = vmatprep.subr.mxu0 0.0
  %4585 = vmatpush1.msra.mxu0 %v524
  %4586 = vmatprep.subr.mxu0 0.0
  %4587 = vmatpush1.msra.mxu0 %v529
  %4588 = vmatprep.subr.mxu0 0.0
  %4589 = vmatpush1.msra.mxu0 0.0
  %4590 = vmatprep.subr.mxu0 0.0
  %4591 = vmatpush1.msra.mxu0 0.0
  %4592 = vmatprep.subr.mxu0 0.0
  %4593 = vmatpush1.msra.mxu0 0.0
  %4594 = vmatprep.subr.mxu0 0.0
  %4595 = vmatpush1.msra.mxu0 0.0
  %4596 = vmatprep.subr.mxu0 0.0
  %4597 = vmatpush1.msra.mxu0 0.0
  %4598 = vmatprep.subr.mxu0 0.0
  %4599 = vmatpush1.msra.mxu0 0.0
  %4600 = vmatprep.subr.mxu0 0.0
  %4601 = vmatpush1.msra.mxu0 0.0
  %4602 = vmatprep.subr.mxu0 0.0
  %4603 = vmatpush1.msra.mxu0 0.0
  %4604 = vmatprep.subr.mxu0 0.0
  %4605 = vmatpush1.msra.mxu0 0.0
  %4606 = vmatprep.subr.mxu0 0.0
  %4607 = vmatpush1.msra.mxu0 0.0
  %4608 = vmatprep.subr.mxu0 0.0
  %4609 = vmatpush1.msra.mxu0 0.0
  %4610 = vmatprep.subr.mxu0 0.0
  %4611 = vmatpush1.msra.mxu0 0.0
  %4612 = vmatprep.subr.mxu0 0.0
  %4613 = vmatpush1.msra.mxu0 0.0
  %4614 = vmatprep.subr.mxu0 0.0
  %4615 = vmatpush1.msra.mxu0 0.0
  %4616 = vmatprep.subr.mxu0 0.0
  %4617 = vmatpush1.msra.mxu0 0.0
  %4618 = vmatprep.subr.mxu0 0.0
  %4619 = vmatpush1.msra.mxu0 0.0
  %4620 = vmatprep.subr.mxu0 0.0
  %4621 = vmatpush1.msra.mxu0 0.0
  %4622 = vmatprep.subr.mxu0 0.0
  %4623 = vmatpush1.msra.mxu0 0.0
  %4624 = vmatprep.subr.mxu0 0.0
  %4625 = vmatpush1.msra.mxu0 0.0
  %4626 = vmatprep.subr.mxu0 0.0
  %4627 = vmatpush1.msra.mxu0 0.0
  %4628 = vmatprep.subr.mxu0 0.0
  %4629 = vmatpush1.msra.mxu0 0.0
  %4630 = vmatprep.subr.mxu0 0.0
  %4631 = vmatpush1.msra.mxu0 0.0
  %4632 = vmatprep.subr.mxu0 0.0
  %4633 = vmatpush1.msra.mxu0 0.0
  %4634 = vmatprep.subr.mxu0 0.0
  %4635 = vmatpush1.msra.mxu0 0.0
  %4636 = vmatprep.subr.mxu0 0.0
  %4637 = vmatpush1.msra.mxu0 0.0
  %4638 = vmatprep.subr.mxu0 0.0
  %4639 = vmatpush1.msra.mxu0 0.0
  %4640 = vmatprep.subr.mxu0 0.0
  %4641 = vmatpush1.msra.mxu0 0.0
  %4642 = vmatprep.subr.mxu0 0.0
  %4643 = vmatpush1.msra.mxu0 0.0
  %4644 = vmatprep.mubr.f32.mxu0 0.0
  %4645 = vmatmul.mubr.f32.gmra.mrb[0].mxu0 %v4578
  %v4646 = vpop.f32.mrb[0].mxu0
  %v4647 = vadd.f32 %v1084, %v4646
  %v4648 = vpop.f32.mrb[0].mxu0
  %4649 = vdwg.mxu0
  %v4650 = vsel %vm994, %v4647, -inf
  %4651 = vmax.xlane.f32.xlu0 %v4650
  %v4652 = vpop.xlane.xlu0 %4651
  %v4653 = vsub.f32 %v4647, %v4652
  %v4654 = vmul.f32 %v4653, 1.442695
  %v4655 = vpow.pop %v4654
  %v4656 = vsel %vm994, %v4655, 0.0
  %4657 = vadd.xlane.f32.xlu0 %v4656
  %v4658 = vpop.xlane.xlu0 %4657
  %v4659 = vrcp.pop %v4658
  %v4660 = vmul.f32 %v4655, %v4659
  %v4662 = vsel %vm1006, %v4660, 0
  %4664 = vmatprep.subr.mxu0 0.0
  %4665 = vmatpush1.msra.mxu0 %v533
  %4666 = vmatprep.subr.mxu0 0.0
  %4667 = vmatpush1.msra.mxu0 0.0
  %4668 = vmatprep.subr.mxu0 0.0
  %4669 = vmatpush1.msra.mxu0 0.0
  %4670 = vmatprep.subr.mxu0 0.0
  %4671 = vmatpush1.msra.mxu0 0.0
  %4672 = vmatprep.subr.mxu0 0.0
  %4673 = vmatpush1.msra.mxu0 0.0
  %4674 = vmatprep.subr.mxu0 0.0
  %4675 = vmatpush1.msra.mxu0 0.0
  %4676 = vmatprep.subr.mxu0 0.0
  %4677 = vmatpush1.msra.mxu0 0.0
  %4678 = vmatprep.subr.mxu0 0.0
  %4679 = vmatpush1.msra.mxu0 0.0
  %4680 = vmatprep.subr.mxu0 0.0
  %4681 = vmatpush1.msra.mxu0 0.0
  %4682 = vmatprep.subr.mxu0 0.0
  %4683 = vmatpush1.msra.mxu0 0.0
  %4684 = vmatprep.subr.mxu0 0.0
  %4685 = vmatpush1.msra.mxu0 0.0
  %4686 = vmatprep.subr.mxu0 0.0
  %4687 = vmatpush1.msra.mxu0 0.0
  %4688 = vmatprep.subr.mxu0 0.0
  %4689 = vmatpush1.msra.mxu0 0.0
  %4690 = vmatprep.subr.mxu0 0.0
  %4691 = vmatpush1.msra.mxu0 0.0
  %4692 = vmatprep.subr.mxu0 0.0
  %4693 = vmatpush1.msra.mxu0 0.0
  %4694 = vmatprep.subr.mxu0 0.0
  %4695 = vmatpush1.msra.mxu0 0.0
  %4696 = vmatprep.subr.mxu0 0.0
  %4697 = vmatpush1.msra.mxu0 0.0
  %4698 = vmatprep.subr.mxu0 0.0
  %4699 = vmatpush1.msra.mxu0 0.0
  %4700 = vmatprep.subr.mxu0 0.0
  %4701 = vmatpush1.msra.mxu0 0.0
  %4702 = vmatprep.subr.mxu0 0.0
  %4703 = vmatpush1.msra.mxu0 0.0
  %4704 = vmatprep.subr.mxu0 0.0
  %4705 = vmatpush1.msra.mxu0 0.0
  %4706 = vmatprep.subr.mxu0 0.0
  %4707 = vmatpush1.msra.mxu0 0.0
  %4708 = vmatprep.subr.mxu0 0.0
  %4709 = vmatpush1.msra.mxu0 0.0
  %4710 = vmatprep.subr.mxu0 0.0
  %4711 = vmatpush1.msra.mxu0 0.0
  %4712 = vmatprep.subr.mxu0 0.0
  %4713 = vmatpush1.msra.mxu0 0.0
  %4714 = vmatprep.subr.mxu0 0.0
  %4715 = vmatpush1.msra.mxu0 0.0
  %4716 = vmatprep.subr.mxu0 0.0
  %4717 = vmatpush1.msra.mxu0 0.0
  %4718 = vmatprep.subr.mxu0 0.0
  %4719 = vmatpush1.msra.mxu0 0.0
  %4720 = vmatprep.subr.mxu0 0.0
  %4721 = vmatpush1.msra.mxu0 0.0
  %4722 = vmatprep.subr.mxu0 0.0
  %4723 = vmatpush1.msra.mxu0 0.0
  %4724 = vmatprep.subr.mxu0 0.0
  %4725 = vmatpush1.msra.mxu0 0.0
  %4726 = vmatprep.subr.mxu0 0.0
  %4727 = vmatpush1.msra.mxu0 0.0
  %4728 = vmatprep.mubr.f32.mxu0 0.0
  %4729 = vmatmul.mubr.f32.gmra.mrb[0].mxu0 %v4662
  %v4730 = vpop.f32.mrb[0].mxu0
  %v4731 = vadd.f32 0.0, %v4730
  %v4732 = vpop.f32.mrb[0].mxu0
  %4733 = vdwg.mxu0
  %v4735 = vrot.slane %v4731, 7
  %v4737 = vsel %vm1245, %v4572, %v4735
  %4738 = vmatprep.subr.mxu0 0.0
  %4739 = vmatpush1.msra.mxu0 %v563
  %4740 = vmatprep.subr.mxu0 0.0
  %4741 = vmatpush1.msra.mxu0 %v564
  %4742 = vmatprep.subr.mxu0 0.0
  %4743 = vmatpush1.msra.mxu0 %v565
  %4744 = vmatprep.subr.mxu0 0.0
  %4745 = vmatpush1.msra.mxu0 %v566
  %4746 = vmatprep.subr.mxu0 0.0
  %4747 = vmatpush1.msra.mxu0 0.0
  %4748 = vmatprep.subr.mxu0 0.0
  %4749 = vmatpush1.msra.mxu0 0.0
  %4750 = vmatprep.subr.mxu0 0.0
  %4751 = vmatpush1.msra.mxu0 0.0
  %4752 = vmatprep.subr.mxu0 0.0
  %4753 = vmatpush1.msra.mxu0 0.0
  %4754 = vmatprep.subr.mxu0 0.0
  %4755 = vmatpush1.msra.mxu0 0.0
  %4756 = vmatprep.subr.mxu0 0.0
  %4757 = vmatpush1.msra.mxu0 0.0
  %4758 = vmatprep.subr.mxu0 0.0
  %4759 = vmatpush1.msra.mxu0 0.0
  %4760 = vmatprep.subr.mxu0 0.0
  %4761 = vmatpush1.msra.mxu0 0.0
  %4762 = vmatprep.subr.mxu0 0.0
  %4763 = vmatpush1.msra.mxu0 0.0
  %4764 = vmatprep.subr.mxu0 0.0
  %4765 = vmatpush1.msra.mxu0 0.0
  %4766 = vmatprep.subr.mxu0 0.0
  %4767 = vmatpush1.msra.mxu0 0.0
  %4768 = vmatprep.subr.mxu0 0.0
  %4769 = vmatpush1.msra.mxu0 0.0
  %4770 = vmatprep.subr.mxu0 0.0
  %4771 = vmatpush1.msra.mxu0 0.0
  %4772 = vmatprep.subr.mxu0 0.0
  %4773 = vmatpush1.msra.mxu0 0.0
  %4774 = vmatprep.subr.mxu0 0.0
  %4775 = vmatpush1.msra.mxu0 0.0
  %4776 = vmatprep.subr.mxu0 0.0
  %4777 = vmatpush1.msra.mxu0 0.0
  %4778 = vmatprep.subr.mxu0 0.0
  %4779 = vmatpush1.msra.mxu0 0.0
  %4780 = vmatprep.subr.mxu0 0.0
  %4781 = vmatpush1.msra.mxu0 0.0
  %4782 = vmatprep.subr.mxu0 0.0
  %4783 = vmatpush1.msra.mxu0 0.0
  %4784 = vmatprep.subr.mxu0 0.0
  %4785 = vmatpush1.msra.mxu0 0.0
  %4786 = vmatprep.subr.mxu0 0.0
  %4787 = vmatpush1.msra.mxu0 0.0
  %4788 = vmatprep.subr.mxu0 0.0
  %4789 = vmatpush1.msra.mxu0 0.0
  %4790 = vmatprep.subr.mxu0 0.0
  %4791 = vmatpush1.msra.mxu0 0.0
  %4792 = vmatprep.subr.mxu0 0.0
  %4793 = vmatpush1.msra.mxu0 0.0
  %4794 = vmatprep.subr.mxu0 0.0
  %4795 = vmatpush1.msra.mxu0 0.0
  %4796 = vmatprep.subr.mxu0 0.0
  %4797 = vmatpush1.msra.mxu0 0.0
  %4798 = vmatprep.subr.mxu0 0.0
  %4799 = vmatpush1.msra.mxu0 0.0
  %4800 = vmatprep.subr.mxu0 0.0
  %4801 = vmatpush1.msra.mxu0 0.0
  %4802 = vmatprep.mubr.f32.mxu0 0.0
  %4803 = vmatmul.mubr.f32.gmra.mrb[0].mxu0 %v4419
  %v4804 = vpop.f32.mrb[0].mxu0
  %v4805 = vadd.f32 0.0, %v4804
  %v4806 = vpop.f32.mrb[0].mxu0
  %4807 = vdwg.mxu0
  %v4809 = vsel %vm342, %v4737, 0
  %4811 = vmatprep.subr.mxu0 0.0
  %4812 = vmatpush1.msra.mxu0 %v557
  %4813 = vmatprep.subr.mxu0 0.0
  %4814 = vmatpush1.msra.mxu0 %v558
  %4815 = vmatprep.subr.mxu0 0.0
  %4816 = vmatpush1.msra.mxu0 %v559
  %4817 = vmatprep.subr.mxu0 0.0
  %4818 = vmatpush1.msra.mxu0 %v560
  %4819 = vmatprep.subr.mxu0 0.0
  %4820 = vmatpush1.msra.mxu0 %v561
  %4821 = vmatprep.subr.mxu0 0.0
  %4822 = vmatpush1.msra.mxu0 %v562
  %4823 = vmatprep.subr.mxu0 0.0
  %4824 = vmatpush1.msra.mxu0 0.0
  %4825 = vmatprep.subr.mxu0 0.0
  %4826 = vmatpush1.msra.mxu0 0.0
  %4827 = vmatprep.subr.mxu0 0.0
  %4828 = vmatpush1.msra.mxu0 0.0
  %4829 = vmatprep.subr.mxu0 0.0
  %4830 = vmatpush1.msra.mxu0 0.0
  %4831 = vmatprep.subr.mxu0 0.0
  %4832 = vmatpush1.msra.mxu0 0.0
  %4833 = vmatprep.subr.mxu0 0.0
  %4834 = vmatpush1.msra.mxu0 0.0
  %4835 = vmatprep.subr.mxu0 0.0
  %4836 = vmatpush1.msra.mxu0 0.0
  %4837 = vmatprep.subr.mxu0 0.0
  %4838 = vmatpush1.msra.mxu0 0.0
  %4839 = vmatprep.subr.mxu0 0.0
  %4840 = vmatpush1.msra.mxu0 0.0
  %4841 = vmatprep.subr.mxu0 0.0
  %4842 = vmatpush1.msra.mxu0 0.0
  %4843 = vmatprep.subr.mxu0 0.0
  %4844 = vmatpush1.msra.mxu0 0.0
  %4845 = vmatprep.subr.mxu0 0.0
  %4846 = vmatpush1.msra.mxu0 0.0
  %4847 = vmatprep.subr.mxu0 0.0
  %4848 = vmatpush1.msra.mxu0 0.0
  %4849 = vmatprep.subr.mxu0 0.0
  %4850 = vmatpush1.msra.mxu0 0.0
  %4851 = vmatprep.subr.mxu0 0.0
  %4852 = vmatpush1.msra.mxu0 0.0
  %4853 = vmatprep.subr.mxu0 0.0
  %4854 = vmatpush1.msra.mxu0 0.0
  %4855 = vmatprep.subr.mxu0 0.0
  %4856 = vmatpush1.msra.mxu0 0.0
  %4857 = vmatprep.subr.mxu0 0.0
  %4858 = vmatpush1.msra.mxu0 0.0
  %4859 = vmatprep.subr.mxu0 0.0
  %4860 = vmatpush1.msra.mxu0 0.0
  %4861 = vmatprep.subr.mxu0 0.0
  %4862 = vmatpush1.msra.mxu0 0.0
  %4863 = vmatprep.subr.mxu0 0.0
  %4864 = vmatpush1.msra.mxu0 0.0
  %4865 = vmatprep.subr.mxu0 0.0
  %4866 = vmatpush1.msra.mxu0 0.0
  %4867 = vmatprep.subr.mxu0 0.0
  %4868 = vmatpush1.msra.mxu0 0.0
  %4869 = vmatprep.subr.mxu0 0.0
  %4870 = vmatpush1.msra.mxu0 0.0
  %4871 = vmatprep.subr.mxu0 0.0
  %4872 = vmatpush1.msra.mxu0 0.0
  %4873 = vmatprep.subr.mxu0 0.0
  %4874 = vmatpush1.msra.mxu0 0.0
  %4875 = vmatprep.mubr.f32.mxu0 0.0
  %4876 = vmatmul.mubr.f32.gmra.mrb[0].mxu0 %v4809
  %v4877 = vpop.f32.mrb[0].mxu0
  %v4878 = vadd.f32 %v4805, %v4877
  %v4879 = vpop.f32.mrb[0].mxu0
  %4880 = vdwg.mxu0
  %v4881 = vadd.f32 %v4878, %v1394
  %v4882 = vtanh.pop %v4881
  %v4884 = vsel %vm583, %v4882, 0
  %4886 = vmatprep.subr.mxu0 0.0
  %4887 = vmatpush1.msra.mxu0 %v568
  %4888 = vmatprep.subr.mxu0 0.0
  %4889 = vmatpush1.msra.mxu0 %v569
  %4890 = vmatprep.subr.mxu0 0.0
  %4891 = vmatpush1.msra.mxu0 %v570
  %4892 = vmatprep.subr.mxu0 0.0
  %4893 = vmatpush1.msra.mxu0 %v571
  %4894 = vmatprep.subr.mxu0 0.0
  %4895 = vmatpush1.msra.mxu0 0.0
  %4896 = vmatprep.subr.mxu0 0.0
  %4897 = vmatpush1.msra.mxu0 0.0
  %4898 = vmatprep.subr.mxu0 0.0
  %4899 = vmatpush1.msra.mxu0 0.0
  %4900 = vmatprep.subr.mxu0 0.0
  %4901 = vmatpush1.msra.mxu0 0.0
  %4902 = vmatprep.subr.mxu0 0.0
  %4903 = vmatpush1.msra.mxu0 0.0
  %4904 = vmatprep.subr.mxu0 0.0
  %4905 = vmatpush1.msra.mxu0 0.0
  %4906 = vmatprep.subr.mxu0 0.0
  %4907 = vmatpush1.msra.mxu0 0.0
  %4908 = vmatprep.subr.mxu0 0.0
  %4909 = vmatpush1.msra.mxu0 0.0
  %4910 = vmatprep.subr.mxu0 0.0
  %4911 = vmatpush1.msra.mxu0 0.0
  %4912 = vmatprep.subr.mxu0 0.0
  %4913 = vmatpush1.msra.mxu0 0.0
  %4914 = vmatprep.subr.mxu0 0.0
  %4915 = vmatpush1.msra.mxu0 0.0
  %4916 = vmatprep.subr.mxu0 0.0
  %4917 = vmatpush1.msra.mxu0 0.0
  %4918 = vmatprep.subr.mxu0 0.0
  %4919 = vmatpush1.msra.mxu0 0.0
  %4920 = vmatprep.subr.mxu0 0.0
  %4921 = vmatpush1.msra.mxu0 0.0
  %4922 = vmatprep.subr.mxu0 0.0
  %4923 = vmatpush1.msra.mxu0 0.0
  %4924 = vmatprep.subr.mxu0 0.0
  %4925 = vmatpush1.msra.mxu0 0.0
  %4926 = vmatprep.subr.mxu0 0.0
  %4927 = vmatpush1.msra.mxu0 0.0
  %4928 = vmatprep.subr.mxu0 0.0
  %4929 = vmatpush1.msra.mxu0 0.0
  %4930 = vmatprep.subr.mxu0 0.0
  %4931 = vmatpush1.msra.mxu0 0.0
  %4932 = vmatprep.subr.mxu0 0.0
  %4933 = vmatpush1.msra.mxu0 0.0
  %4934 = vmatprep.subr.mxu0 0.0
  %4935 = vmatpush1.msra.mxu0 0.0
  %4936 = vmatprep.subr.mxu0 0.0
  %4937 = vmatpush1.msra.mxu0 0.0
  %4938 = vmatprep.subr.mxu0 0.0
  %4939 = vmatpush1.msra.mxu0 0.0
  %4940 = vmatprep.subr.mxu0 0.0
  %4941 = vmatpush1.msra.mxu0 0.0
  %4942 = vmatprep.subr.mxu0 0.0
  %4943 = vmatpush1.msra.mxu0 0.0
  %4944 = vmatprep.subr.mxu0 0.0
  %4945 = vmatpush1.msra.mxu0 0.0
  %4946 = vmatprep.subr.mxu0 0.0
  %4947 = vmatpush1.msra.mxu0 0.0
  %4948 = vmatprep.subr.mxu0 0.0
  %4949 = vmatpush1.msra.mxu0 0.0
  %4950 = vmatprep.mubr.f32.mxu0 0.0
  %4951 = vmatmul.mubr.f32.gmra.mrb[0].mxu0 %v4884
  %v4952 = vpop.f32.mrb[0].mxu0
  %v4953 = vadd.f32 %v1402, %v4952
  %v4954 = vpop.f32.mrb[0].mxu0
  %4955 = vdwg.mxu0
  %v4956 = vsel %vm229, %v4953, -inf
  %4957 = vmax.xlane.f32.xlu0 %v4956
  %v4958 = vpop.xlane.xlu0 %4957
  %v4959 = vsub.f32 %v4953, %v4958
  %v4960 = vmul.f32 %v4959, 1.442695
  %v4961 = vpow.pop %v4960
  %v4962 = vsel %vm229, %v4961, 0.0
  %4963 = vadd.xlane.f32.xlu0 %v4962
  %v4964 = vpop.xlane.xlu0 %4963
  %v4965 = vlog2.pop %v4964
  %v4966 = vmul.f32 %v4965, 0.6931472
  %v4967 = vsub.f32 %v4959, %v4966
  %s4968 = scalar_lea.vmem %s21, 8
  %4969 = vst [vmem:[%s4968] sm:$0x3] %v4967
  %v4970 = vsel %vm583, %v4208, 0
  %4972 = vmatprep.subr.mxu0 0.0
  %4973 = vmatpush1.msra.mxu0 %v535
  %4974 = vmatprep.subr.mxu0 0.0
  %4975 = vmatpush1.msra.mxu0 %v536
  %4976 = vmatprep.subr.mxu0 0.0
  %4977 = vmatpush1.msra.mxu0 %v537
  %4978 = vmatprep.subr.mxu0 0.0
  %4979 = vmatpush1.msra.mxu0 %v538
  %4980 = vmatprep.subr.mxu0 0.0
  %4981 = vmatpush1.msra.mxu0 0.0
  %4982 = vmatprep.subr.mxu0 0.0
  %4983 = vmatpush1.msra.mxu0 0.0
  %4984 = vmatprep.subr.mxu0 0.0
  %4985 = vmatpush1.msra.mxu0 0.0
  %4986 = vmatprep.subr.mxu0 0.0
  %4987 = vmatpush1.msra.mxu0 0.0
  %4988 = vmatprep.subr.mxu0 0.0
  %4989 = vmatpush1.msra.mxu0 0.0
  %4990 = vmatprep.subr.mxu0 0.0
  %4991 = vmatpush1.msra.mxu0 0.0
  %4992 = vmatprep.subr.mxu0 0.0
  %4993 = vmatpush1.msra.mxu0 0.0
  %4994 = vmatprep.subr.mxu0 0.0
  %4995 = vmatpush1.msra.mxu0 0.0
  %4996 = vmatprep.subr.mxu0 0.0
  %4997 = vmatpush1.msra.mxu0 0.0
  %4998 = vmatprep.subr.mxu0 0.0
  %4999 = vmatpush1.msra.mxu0 0.0
  %5000 = vmatprep.subr.mxu0 0.0
  %5001 = vmatpush1.msra.mxu0 0.0
  %5002 = vmatprep.subr.mxu0 0.0
  %5003 = vmatpush1.msra.mxu0 0.0
  %5004 = vmatprep.subr.mxu0 0.0
  %5005 = vmatpush1.msra.mxu0 0.0
  %5006 = vmatprep.subr.mxu0 0.0
  %5007 = vmatpush1.msra.mxu0 0.0
  %5008 = vmatprep.subr.mxu0 0.0
  %5009 = vmatpush1.msra.mxu0 0.0
  %5010 = vmatprep.subr.mxu0 0.0
  %5011 = vmatpush1.msra.mxu0 0.0
  %5012 = vmatprep.subr.mxu0 0.0
  %5013 = vmatpush1.msra.mxu0 0.0
  %5014 = vmatprep.subr.mxu0 0.0
  %5015 = vmatpush1.msra.mxu0 0.0
  %5016 = vmatprep.subr.mxu0 0.0
  %5017 = vmatpush1.msra.mxu0 0.0
  %5018 = vmatprep.subr.mxu0 0.0
  %5019 = vmatpush1.msra.mxu0 0.0
  %5020 = vmatprep.subr.mxu0 0.0
  %5021 = vmatpush1.msra.mxu0 0.0
  %5022 = vmatprep.subr.mxu0 0.0
  %5023 = vmatpush1.msra.mxu0 0.0
  %5024 = vmatprep.subr.mxu0 0.0
  %5025 = vmatpush1.msra.mxu0 0.0
  %5026 = vmatprep.subr.mxu0 0.0
  %5027 = vmatpush1.msra.mxu0 0.0
  %5028 = vmatprep.subr.mxu0 0.0
  %5029 = vmatpush1.msra.mxu0 0.0
  %5030 = vmatprep.subr.mxu0 0.0
  %5031 = vmatpush1.msra.mxu0 0.0
  %5032 = vmatprep.subr.mxu0 0.0
  %5033 = vmatpush1.msra.mxu0 0.0
  %5034 = vmatprep.subr.mxu0 0.0
  %5035 = vmatpush1.msra.mxu0 0.0
  %5036 = vmatprep.mubr.f32.mxu0 0.0
  %5037 = vmatmul.mubr.f32.gmra.mrb[0].mxu0 %v4970
  %v5038 = vpop.f32.mrb[0].mxu0
  %v5039 = vadd.f32 0.0, %v5038
  %v5040 = vpop.f32.mrb[0].mxu0
  %5041 = vdwg.mxu0
  %v5043 = vrot.slane %v5039, 6
  %v5045 = vadd.f32 %v305, %v5043
  %v5046 = vxor.u32 %v5045, 2147483648
  %v5047 = vmul.f32 %v5046, 1.442695
  %v5048 = vpow.pop %v5047
  %v5049 = vadd.f32 %v5048, 1.0
  %v5050 = vrcp.pop %v5049
  %v5051 = vmul.f32 1.0, %v5050
  %v5052 = vtanh.pop %v5045
  %v5054 = vrot.slane %v4199, 6
  %v5056 = vmul.f32 %v5051, %v5054
  %5058 = vrot.lane.b32.xlu0 %v5052, 64
  %v5059 = vpop.permute.xlu0 %5058
  %v5061 = vmul.f32 %v5051, %v5059
  %5063 = vrot.lane.b32.xlu0 %v5061, 32
  %v5064 = vpop.permute.xlu0 %5063
  %v5066 = vadd.f32 %v5056, %v5064
  %v5067 = vtanh.pop %v5066
  %5069 = vrot.lane.b32.xlu0 %v5067, 64
  %v5070 = vpop.permute.xlu0 %5069
  %v5072 = vmul.f32 %v5051, %v5070
  %5074 = vrot.lane.b32.xlu0 %v5072, 32
  %v5075 = vpop.permute.xlu0 %5074
  %v5077 = vrot.slane %v4310, 6
  %5078 = vrot.lane.b32.xlu0 %v5077, 64
  %v5079 = vpop.permute.xlu0 %5078
  %v5081 = vsel %vm583, %v5075, %v5079
  %v5083 = vrot.slane %v5081, 2
  %v5084 = vsel %vm701, %v5083, 0
  %5086 = vmatprep.subr.mxu0 0.0
  %5087 = vmatpush1.msra.mxu0 %v539
  %5088 = vmatprep.subr.mxu0 0.0
  %5089 = vmatpush1.msra.mxu0 %v540
  %5090 = vmatprep.subr.mxu0 0.0
  %5091 = vmatpush1.msra.mxu0 %v541
  %5092 = vmatprep.subr.mxu0 0.0
  %5093 = vmatpush1.msra.mxu0 %v542
  %5094 = vmatprep.subr.mxu0 0.0
  %5095 = vmatpush1.msra.mxu0 %v543
  %5096 = vmatprep.subr.mxu0 0.0
  %5097 = vmatpush1.msra.mxu0 %v544
  %5098 = vmatprep.subr.mxu0 0.0
  %5099 = vmatpush1.msra.mxu0 %v545
  %5100 = vmatprep.subr.mxu0 0.0
  %5101 = vmatpush1.msra.mxu0 %v546
  %5102 = vmatprep.subr.mxu0 0.0
  %5103 = vmatpush1.msra.mxu0 0.0
  %5104 = vmatprep.subr.mxu0 0.0
  %5105 = vmatpush1.msra.mxu0 0.0
  %5106 = vmatprep.subr.mxu0 0.0
  %5107 = vmatpush1.msra.mxu0 0.0
  %5108 = vmatprep.subr.mxu0 0.0
  %5109 = vmatpush1.msra.mxu0 0.0
  %5110 = vmatprep.subr.mxu0 0.0
  %5111 = vmatpush1.msra.mxu0 0.0
  %5112 = vmatprep.subr.mxu0 0.0
  %5113 = vmatpush1.msra.mxu0 0.0
  %5114 = vmatprep.subr.mxu0 0.0
  %5115 = vmatpush1.msra.mxu0 0.0
  %5116 = vmatprep.subr.mxu0 0.0
  %5117 = vmatpush1.msra.mxu0 0.0
  %5118 = vmatprep.subr.mxu0 0.0
  %5119 = vmatpush1.msra.mxu0 0.0
  %5120 = vmatprep.subr.mxu0 0.0
  %5121 = vmatpush1.msra.mxu0 0.0
  %5122 = vmatprep.subr.mxu0 0.0
  %5123 = vmatpush1.msra.mxu0 0.0
  %5124 = vmatprep.subr.mxu0 0.0
  %5125 = vmatpush1.msra.mxu0 0.0
  %5126 = vmatprep.subr.mxu0 0.0
  %5127 = vmatpush1.msra.mxu0 0.0
  %5128 = vmatprep.subr.mxu0 0.0
  %5129 = vmatpush1.msra.mxu0 0.0
  %5130 = vmatprep.subr.mxu0 0.0
  %5131 = vmatpush1.msra.mxu0 0.0
  %5132 = vmatprep.subr.mxu0 0.0
  %5133 = vmatpush1.msra.mxu0 0.0
  %5134 = vmatprep.subr.mxu0 0.0
  %5135 = vmatpush1.msra.mxu0 0.0
  %5136 = vmatprep.subr.mxu0 0.0
  %5137 = vmatpush1.msra.mxu0 0.0
  %5138 = vmatprep.subr.mxu0 0.0
  %5139 = vmatpush1.msra.mxu0 0.0
  %5140 = vmatprep.subr.mxu0 0.0
  %5141 = vmatpush1.msra.mxu0 0.0
  %5142 = vmatprep.subr.mxu0 0.0
  %5143 = vmatpush1.msra.mxu0 0.0
  %5144 = vmatprep.subr.mxu0 0.0
  %5145 = vmatpush1.msra.mxu0 0.0
  %5146 = vmatprep.subr.mxu0 0.0
  %5147 = vmatpush1.msra.mxu0 0.0
  %5148 = vmatprep.subr.mxu0 0.0
  %5149 = vmatpush1.msra.mxu0 0.0
  %5150 = vmatprep.mubr.f32.mxu0 0.0
  %5151 = vmatmul.mubr.f32.gmra.mrb[0].mxu0 %v5084
  %v5152 = vpop.f32.mrb[0].mxu0
  %v5153 = vadd.f32 %v699, %v5152
  %v5154 = vpop.f32.mrb[0].mxu0
  %5155 = vdwg.mxu0
  %v5156 = vxor.u32 %v5153, 2147483648
  %v5157 = vmul.f32 %v5156, 1.442695
  %v5158 = vpow.pop %v5157
  %v5159 = vadd.f32 %v5158, 1.0
  %v5160 = vrcp.pop %v5159
  %v5161 = vmul.f32 1.0, %v5160
  %v5162 = vtanh.pop %v5153
  %v5163 = vmul.f32 %v5161, %v4304
  %5165 = vrot.lane.b32.xlu0 %v5162, 64
  %v5166 = vpop.permute.xlu0 %5165
  %v5168 = vmul.f32 %v5161, %v5166
  %5170 = vrot.lane.b32.xlu0 %v5168, 32
  %v5171 = vpop.permute.xlu0 %5170
  %v5173 = vadd.f32 %v5163, %v5171
  %v5174 = vtanh.pop %v5173
  %5176 = vrot.lane.b32.xlu0 %v5174, 64
  %v5177 = vpop.permute.xlu0 %5176
  %v5179 = vmul.f32 %v5161, %v5177
  %5181 = vrot.lane.b32.xlu0 %v5179, 32
  %v5182 = vpop.permute.xlu0 %5181
  %5184 = vrot.lane.b32.xlu0 %v4415, 64
  %v5185 = vpop.permute.xlu0 %5184
  %v5187 = vsel %vm583, %v5182, %v5185
  %v5189 = vsel %vm701, %v5187, 0
  %5191 = vmatprep.subr.mxu0 0.0
  %5192 = vmatpush1.msra.mxu0 %v548
  %5193 = vmatprep.subr.mxu0 0.0
  %5194 = vmatpush1.msra.mxu0 %v549
  %5195 = vmatprep.subr.mxu0 0.0
  %5196 = vmatpush1.msra.mxu0 %v550
  %5197 = vmatprep.subr.mxu0 0.0
  %5198 = vmatpush1.msra.mxu0 %v551
  %5199 = vmatprep.subr.mxu0 0.0
  %5200 = vmatpush1.msra.mxu0 %v552
  %5201 = vmatprep.subr.mxu0 0.0
  %5202 = vmatpush1.msra.mxu0 %v553
  %5203 = vmatprep.subr.mxu0 0.0
  %5204 = vmatpush1.msra.mxu0 %v554
  %5205 = vmatprep.subr.mxu0 0.0
  %5206 = vmatpush1.msra.mxu0 %v555
  %5207 = vmatprep.subr.mxu0 0.0
  %5208 = vmatpush1.msra.mxu0 0.0
  %5209 = vmatprep.subr.mxu0 0.0
  %5210 = vmatpush1.msra.mxu0 0.0
  %5211 = vmatprep.subr.mxu0 0.0
  %5212 = vmatpush1.msra.mxu0 0.0
  %5213 = vmatprep.subr.mxu0 0.0
  %5214 = vmatpush1.msra.mxu0 0.0
  %5215 = vmatprep.subr.mxu0 0.0
  %5216 = vmatpush1.msra.mxu0 0.0
  %5217 = vmatprep.subr.mxu0 0.0
  %5218 = vmatpush1.msra.mxu0 0.0
  %5219 = vmatprep.subr.mxu0 0.0
  %5220 = vmatpush1.msra.mxu0 0.0
  %5221 = vmatprep.subr.mxu0 0.0
  %5222 = vmatpush1.msra.mxu0 0.0
  %5223 = vmatprep.subr.mxu0 0.0
  %5224 = vmatpush1.msra.mxu0 0.0
  %5225 = vmatprep.subr.mxu0 0.0
  %5226 = vmatpush1.msra.mxu0 0.0
  %5227 = vmatprep.subr.mxu0 0.0
  %5228 = vmatpush1.msra.mxu0 0.0
  %5229 = vmatprep.subr.mxu0 0.0
  %5230 = vmatpush1.msra.mxu0 0.0
  %5231 = vmatprep.subr.mxu0 0.0
  %5232 = vmatpush1.msra.mxu0 0.0
  %5233 = vmatprep.subr.mxu0 0.0
  %5234 = vmatpush1.msra.mxu0 0.0
  %5235 = vmatprep.subr.mxu0 0.0
  %5236 = vmatpush1.msra.mxu0 0.0
  %5237 = vmatprep.subr.mxu0 0.0
  %5238 = vmatpush1.msra.mxu0 0.0
  %5239 = vmatprep.subr.mxu0 0.0
  %5240 = vmatpush1.msra.mxu0 0.0
  %5241 = vmatprep.subr.mxu0 0.0
  %5242 = vmatpush1.msra.mxu0 0.0
  %5243 = vmatprep.subr.mxu0 0.0
  %5244 = vmatpush1.msra.mxu0 0.0
  %5245 = vmatprep.subr.mxu0 0.0
  %5246 = vmatpush1.msra.mxu0 0.0
  %5247 = vmatprep.subr.mxu0 0.0
  %5248 = vmatpush1.msra.mxu0 0.0
  %5249 = vmatprep.subr.mxu0 0.0
  %5250 = vmatpush1.msra.mxu0 0.0
  %5251 = vmatprep.subr.mxu0 0.0
  %5252 = vmatpush1.msra.mxu0 0.0
  %5253 = vmatprep.subr.mxu0 0.0
  %5254 = vmatpush1.msra.mxu0 0.0
  %5255 = vmatprep.mubr.f32.mxu0 0.0
  %5256 = vmatmul.mubr.f32.gmra.mrb[0].mxu0 %v5189
  %v5257 = vpop.f32.mrb[0].mxu0
  %v5258 = vadd.f32 %v816, %v5257
  %v5259 = vpop.f32.mrb[0].mxu0
  %5260 = vdwg.mxu0
  %v5261 = vxor.u32 %v5258, 2147483648
  %v5262 = vmul.f32 %v5261, 1.442695
  %v5263 = vpow.pop %v5262
  %v5264 = vadd.f32 %v5263, 1.0
  %v5265 = vrcp.pop %v5264
  %v5266 = vmul.f32 1.0, %v5265
  %v5267 = vtanh.pop %v5258
  %v5268 = vmul.f32 %v5266, %v4409
  %5270 = vrot.lane.b32.xlu0 %v5267, 64
  %v5271 = vpop.permute.xlu0 %5270
  %v5273 = vmul.f32 %v5266, %v5271
  %5275 = vrot.lane.b32.xlu0 %v5273, 32
  %v5276 = vpop.permute.xlu0 %5275
  %v5278 = vadd.f32 %v5268, %v5276
  %v5279 = vtanh.pop %v5278
  %5281 = vrot.lane.b32.xlu0 %v5279, 64
  %v5282 = vpop.permute.xlu0 %5281
  %v5284 = vmul.f32 %v5266, %v5282
  %5286 = vrot.lane.b32.xlu0 %v5284, 32
  %v5287 = vpop.permute.xlu0 %5286
  %v5288 = vsel %vm583, %v5287, 0
  %5290 = vmatprep.subr.mxu0 0.0
  %5291 = vmatpush1.msra.mxu0 %v422
  %5292 = vmatprep.subr.mxu0 0.0
  %5293 = vmatpush1.msra.mxu0 %v427
  %5294 = vmatprep.subr.mxu0 0.0
  %5295 = vmatpush1.msra.mxu0 %v432
  %5296 = vmatprep.subr.mxu0 0.0
  %5297 = vmatpush1.msra.mxu0 %v437
  %5298 = vmatprep.subr.mxu0 0.0
  %5299 = vmatpush1.msra.mxu0 0.0
  %5300 = vmatprep.subr.mxu0 0.0
  %5301 = vmatpush1.msra.mxu0 0.0
  %5302 = vmatprep.subr.mxu0 0.0
  %5303 = vmatpush1.msra.mxu0 0.0
  %5304 = vmatprep.subr.mxu0 0.0
  %5305 = vmatpush1.msra.mxu0 0.0
  %5306 = vmatprep.subr.mxu0 0.0
  %5307 = vmatpush1.msra.mxu0 0.0
  %5308 = vmatprep.subr.mxu0 0.0
  %5309 = vmatpush1.msra.mxu0 0.0
  %5310 = vmatprep.subr.mxu0 0.0
  %5311 = vmatpush1.msra.mxu0 0.0
  %5312 = vmatprep.subr.mxu0 0.0
  %5313 = vmatpush1.msra.mxu0 0.0
  %5314 = vmatprep.subr.mxu0 0.0
  %5315 = vmatpush1.msra.mxu0 0.0
  %5316 = vmatprep.subr.mxu0 0.0
  %5317 = vmatpush1.msra.mxu0 0.0
  %5318 = vmatprep.subr.mxu0 0.0
  %5319 = vmatpush1.msra.mxu0 0.0
  %5320 = vmatprep.subr.mxu0 0.0
  %5321 = vmatpush1.msra.mxu0 0.0
  %5322 = vmatprep.subr.mxu0 0.0
  %5323 = vmatpush1.msra.mxu0 0.0
  %5324 = vmatprep.subr.mxu0 0.0
  %5325 = vmatpush1.msra.mxu0 0.0
  %5326 = vmatprep.subr.mxu0 0.0
  %5327 = vmatpush1.msra.mxu0 0.0
  %5328 = vmatprep.subr.mxu0 0.0
  %5329 = vmatpush1.msra.mxu0 0.0
  %5330 = vmatprep.subr.mxu0 0.0
  %5331 = vmatpush1.msra.mxu0 0.0
  %5332 = vmatprep.subr.mxu0 0.0
  %5333 = vmatpush1.msra.mxu0 0.0
  %5334 = vmatprep.subr.mxu0 0.0
  %5335 = vmatpush1.msra.mxu0 0.0
  %5336 = vmatprep.subr.mxu0 0.0
  %5337 = vmatpush1.msra.mxu0 0.0
  %5338 = vmatprep.subr.mxu0 0.0
  %5339 = vmatpush1.msra.mxu0 0.0
  %5340 = vmatprep.subr.mxu0 0.0
  %5341 = vmatpush1.msra.mxu0 0.0
  %5342 = vmatprep.subr.mxu0 0.0
  %5343 = vmatpush1.msra.mxu0 0.0
  %5344 = vmatprep.subr.mxu0 0.0
  %5345 = vmatpush1.msra.mxu0 0.0
  %5346 = vmatprep.subr.mxu0 0.0
  %5347 = vmatpush1.msra.mxu0 0.0
  %5348 = vmatprep.subr.mxu0 0.0
  %5349 = vmatpush1.msra.mxu0 0.0
  %5350 = vmatprep.subr.mxu0 0.0
  %5351 = vmatpush1.msra.mxu0 0.0
  %5352 = vmatprep.subr.mxu0 0.0
  %5353 = vmatpush1.msra.mxu0 0.0
  %5354 = vmatprep.mubr.f32.mxu0 0.0
  %5355 = vmatmul.mubr.f32.gmra.mrb[0].mxu0 %v5288
  %v5356 = vpop.f32.mrb[0].mxu0
  %v5357 = vadd.f32 %v534, %v5356
  %v5358 = vpop.f32.mrb[0].mxu0
  %5359 = vdwg.mxu0
  %v5360 = vsel %vm994, %v5357, -inf
  %5361 = vmax.xlane.f32.xlu0 %v5360
  %v5362 = vpop.xlane.xlu0 %5361
  %v5363 = vsub.f32 %v5357, %v5362
  %v5364 = vmul.f32 %v5363, 1.442695
  %v5365 = vpow.pop %v5364
  %v5366 = vsel %vm994, %v5365, 0.0
  %5367 = vadd.xlane.f32.xlu0 %v5366
  %v5368 = vpop.xlane.xlu0 %5367
  %v5369 = vrcp.pop %v5368
  %v5370 = vmul.f32 %v5365, %v5369
  %v5372 = vsel %vm1006, %v5370, 0
  %5374 = vmatprep.subr.mxu0 0.0
  %5375 = vmatpush1.msra.mxu0 %v532
  %5376 = vmatprep.subr.mxu0 0.0
  %5377 = vmatpush1.msra.mxu0 0.0
  %5378 = vmatprep.subr.mxu0 0.0
  %5379 = vmatpush1.msra.mxu0 0.0
  %5380 = vmatprep.subr.mxu0 0.0
  %5381 = vmatpush1.msra.mxu0 0.0
  %5382 = vmatprep.subr.mxu0 0.0
  %5383 = vmatpush1.msra.mxu0 0.0
  %5384 = vmatprep.subr.mxu0 0.0
  %5385 = vmatpush1.msra.mxu0 0.0
  %5386 = vmatprep.subr.mxu0 0.0
  %5387 = vmatpush1.msra.mxu0 0.0
  %5388 = vmatprep.subr.mxu0 0.0
  %5389 = vmatpush1.msra.mxu0 0.0
  %5390 = vmatprep.subr.mxu0 0.0
  %5391 = vmatpush1.msra.mxu0 0.0
  %5392 = vmatprep.subr.mxu0 0.0
  %5393 = vmatpush1.msra.mxu0 0.0
  %5394 = vmatprep.subr.mxu0 0.0
  %5395 = vmatpush1.msra.mxu0 0.0
  %5396 = vmatprep.subr.mxu0 0.0
  %5397 = vmatpush1.msra.mxu0 0.0
  %5398 = vmatprep.subr.mxu0 0.0
  %5399 = vmatpush1.msra.mxu0 0.0
  %5400 = vmatprep.subr.mxu0 0.0
  %5401 = vmatpush1.msra.mxu0 0.0
  %5402 = vmatprep.subr.mxu0 0.0
  %5403 = vmatpush1.msra.mxu0 0.0
  %5404 = vmatprep.subr.mxu0 0.0
  %5405 = vmatpush1.msra.mxu0 0.0
  %5406 = vmatprep.subr.mxu0 0.0
  %5407 = vmatpush1.msra.mxu0 0.0
  %5408 = vmatprep.subr.mxu0 0.0
  %5409 = vmatpush1.msra.mxu0 0.0
  %5410 = vmatprep.subr.mxu0 0.0
  %5411 = vmatpush1.msra.mxu0 0.0
  %5412 = vmatprep.subr.mxu0 0.0
  %5413 = vmatpush1.msra.mxu0 0.0
  %5414 = vmatprep.subr.mxu0 0.0
  %5415 = vmatpush1.msra.mxu0 0.0
  %5416 = vmatprep.subr.mxu0 0.0
  %5417 = vmatpush1.msra.mxu0 0.0
  %5418 = vmatprep.subr.mxu0 0.0
  %5419 = vmatpush1.msra.mxu0 0.0
  %5420 = vmatprep.subr.mxu0 0.0
  %5421 = vmatpush1.msra.mxu0 0.0
  %5422 = vmatprep.subr.mxu0 0.0
  %5423 = vmatpush1.msra.mxu0 0.0
  %5424 = vmatprep.subr.mxu0 0.0
  %5425 = vmatpush1.msra.mxu0 0.0
  %5426 = vmatprep.subr.mxu0 0.0
  %5427 = vmatpush1.msra.mxu0 0.0
  %5428 = vmatprep.subr.mxu0 0.0
  %5429 = vmatpush1.msra.mxu0 0.0
  %5430 = vmatprep.subr.mxu0 0.0
  %5431 = vmatpush1.msra.mxu0 0.0
  %5432 = vmatprep.subr.mxu0 0.0
  %5433 = vmatpush1.msra.mxu0 0.0
  %5434 = vmatprep.subr.mxu0 0.0
  %5435 = vmatpush1.msra.mxu0 0.0
  %5436 = vmatprep.subr.mxu0 0.0
  %5437 = vmatpush1.msra.mxu0 0.0
  %5438 = vmatprep.mubr.f32.mxu0 0.0
  %5439 = vmatmul.mubr.f32.gmra.mrb[0].mxu0 %v5372
  %v5440 = vpop.f32.mrb[0].mxu0
  %v5441 = vadd.f32 0.0, %v5440
  %v5442 = vpop.f32.mrb[0].mxu0
  %5443 = vdwg.mxu0
  %v5444 = vrot.slane %v5284, 1
  %5445 = vrot.lane.b32.xlu0 %v5444, 32
  %v5446 = vpop.permute.xlu0 %5445
  %v5447 = vsel %vm583, %v5446, 0
  %5449 = vmatprep.subr.mxu0 0.0
  %5450 = vmatpush1.msra.mxu0 %v514
  %5451 = vmatprep.subr.mxu0 0.0
  %5452 = vmatpush1.msra.mxu0 %v519
  %5453 = vmatprep.subr.mxu0 0.0
  %5454 = vmatpush1.msra.mxu0 %v524
  %5455 = vmatprep.subr.mxu0 0.0
  %5456 = vmatpush1.msra.mxu0 %v529
  %5457 = vmatprep.subr.mxu0 0.0
  %5458 = vmatpush1.msra.mxu0 0.0
  %5459 = vmatprep.subr.mxu0 0.0
  %5460 = vmatpush1.msra.mxu0 0.0
  %5461 = vmatprep.subr.mxu0 0.0
  %5462 = vmatpush1.msra.mxu0 0.0
  %5463 = vmatprep.subr.mxu0 0.0
  %5464 = vmatpush1.msra.mxu0 0.0
  %5465 = vmatprep.subr.mxu0 0.0
  %5466 = vmatpush1.msra.mxu0 0.0
  %5467 = vmatprep.subr.mxu0 0.0
  %5468 = vmatpush1.msra.mxu0 0.0
  %5469 = vmatprep.subr.mxu0 0.0
  %5470 = vmatpush1.msra.mxu0 0.0
  %5471 = vmatprep.subr.mxu0 0.0
  %5472 = vmatpush1.msra.mxu0 0.0
  %5473 = vmatprep.subr.mxu0 0.0
  %5474 = vmatpush1.msra.mxu0 0.0
  %5475 = vmatprep.subr.mxu0 0.0
  %5476 = vmatpush1.msra.mxu0 0.0
  %5477 = vmatprep.subr.mxu0 0.0
  %5478 = vmatpush1.msra.mxu0 0.0
  %5479 = vmatprep.subr.mxu0 0.0
  %5480 = vmatpush1.msra.mxu0 0.0
  %5481 = vmatprep.subr.mxu0 0.0
  %5482 = vmatpush1.msra.mxu0 0.0
  %5483 = vmatprep.subr.mxu0 0.0
  %5484 = vmatpush1.msra.mxu0 0.0
  %5485 = vmatprep.subr.mxu0 0.0
  %5486 = vmatpush1.msra.mxu0 0.0
  %5487 = vmatprep.subr.mxu0 0.0
  %5488 = vmatpush1.msra.mxu0 0.0
  %5489 = vmatprep.subr.mxu0 0.0
  %5490 = vmatpush1.msra.mxu0 0.0
  %5491 = vmatprep.subr.mxu0 0.0
  %5492 = vmatpush1.msra.mxu0 0.0
  %5493 = vmatprep.subr.mxu0 0.0
  %5494 = vmatpush1.msra.mxu0 0.0
  %5495 = vmatprep.subr.mxu0 0.0
  %5496 = vmatpush1.msra.mxu0 0.0
  %5497 = vmatprep.subr.mxu0 0.0
  %5498 = vmatpush1.msra.mxu0 0.0
  %5499 = vmatprep.subr.mxu0 0.0
  %5500 = vmatpush1.msra.mxu0 0.0
  %5501 = vmatprep.subr.mxu0 0.0
  %5502 = vmatpush1.msra.mxu0 0.0
  %5503 = vmatprep.subr.mxu0 0.0
  %5504 = vmatpush1.msra.mxu0 0.0
  %5505 = vmatprep.subr.mxu0 0.0
  %5506 = vmatpush1.msra.mxu0 0.0
  %5507 = vmatprep.subr.mxu0 0.0
  %5508 = vmatpush1.msra.mxu0 0.0
  %5509 = vmatprep.subr.mxu0 0.0
  %5510 = vmatpush1.msra.mxu0 0.0
  %5511 = vmatprep.subr.mxu0 0.0
  %5512 = vmatpush1.msra.mxu0 0.0
  %5513 = vmatprep.mubr.f32.mxu0 0.0
  %5514 = vmatmul.mubr.f32.gmra.mrb[0].mxu0 %v5447
  %v5515 = vpop.f32.mrb[0].mxu0
  %v5516 = vadd.f32 %v1084, %v5515
  %v5517 = vpop.f32.mrb[0].mxu0
  %5518 = vdwg.mxu0
  %v5519 = vsel %vm994, %v5516, -inf
  %5520 = vmax.xlane.f32.xlu0 %v5519
  %v5521 = vpop.xlane.xlu0 %5520
  %v5522 = vsub.f32 %v5516, %v5521
  %v5523 = vmul.f32 %v5522, 1.442695
  %v5524 = vpow.pop %v5523
  %v5525 = vsel %vm994, %v5524, 0.0
  %5526 = vadd.xlane.f32.xlu0 %v5525
  %v5527 = vpop.xlane.xlu0 %5526
  %v5528 = vrcp.pop %v5527
  %v5529 = vmul.f32 %v5524, %v5528
  %v5531 = vsel %vm1006, %v5529, 0
  %5533 = vmatprep.subr.mxu0 0.0
  %5534 = vmatpush1.msra.mxu0 %v533
  %5535 = vmatprep.subr.mxu0 0.0
  %5536 = vmatpush1.msra.mxu0 0.0
  %5537 = vmatprep.subr.mxu0 0.0
  %5538 = vmatpush1.msra.mxu0 0.0
  %5539 = vmatprep.subr.mxu0 0.0
  %5540 = vmatpush1.msra.mxu0 0.0
  %5541 = vmatprep.subr.mxu0 0.0
  %5542 = vmatpush1.msra.mxu0 0.0
  %5543 = vmatprep.subr.mxu0 0.0
  %5544 = vmatpush1.msra.mxu0 0.0
  %5545 = vmatprep.subr.mxu0 0.0
  %5546 = vmatpush1.msra.mxu0 0.0
  %5547 = vmatprep.subr.mxu0 0.0
  %5548 = vmatpush1.msra.mxu0 0.0
  %5549 = vmatprep.subr.mxu0 0.0
  %5550 = vmatpush1.msra.mxu0 0.0
  %5551 = vmatprep.subr.mxu0 0.0
  %5552 = vmatpush1.msra.mxu0 0.0
  %5553 = vmatprep.subr.mxu0 0.0
  %5554 = vmatpush1.msra.mxu0 0.0
  %5555 = vmatprep.subr.mxu0 0.0
  %5556 = vmatpush1.msra.mxu0 0.0
  %5557 = vmatprep.subr.mxu0 0.0
  %5558 = vmatpush1.msra.mxu0 0.0
  %5559 = vmatprep.subr.mxu0 0.0
  %5560 = vmatpush1.msra.mxu0 0.0
  %5561 = vmatprep.subr.mxu0 0.0
  %5562 = vmatpush1.msra.mxu0 0.0
  %5563 = vmatprep.subr.mxu0 0.0
  %5564 = vmatpush1.msra.mxu0 0.0
  %5565 = vmatprep.subr.mxu0 0.0
  %5566 = vmatpush1.msra.mxu0 0.0
  %5567 = vmatprep.subr.mxu0 0.0
  %5568 = vmatpush1.msra.mxu0 0.0
  %5569 = vmatprep.subr.mxu0 0.0
  %5570 = vmatpush1.msra.mxu0 0.0
  %5571 = vmatprep.subr.mxu0 0.0
  %5572 = vmatpush1.msra.mxu0 0.0
  %5573 = vmatprep.subr.mxu0 0.0
  %5574 = vmatpush1.msra.mxu0 0.0
  %5575 = vmatprep.subr.mxu0 0.0
  %5576 = vmatpush1.msra.mxu0 0.0
  %5577 = vmatprep.subr.mxu0 0.0
  %5578 = vmatpush1.msra.mxu0 0.0
  %5579 = vmatprep.subr.mxu0 0.0
  %5580 = vmatpush1.msra.mxu0 0.0
  %5581 = vmatprep.subr.mxu0 0.0
  %5582 = vmatpush1.msra.mxu0 0.0
  %5583 = vmatprep.subr.mxu0 0.0
  %5584 = vmatpush1.msra.mxu0 0.0
  %5585 = vmatprep.subr.mxu0 0.0
  %5586 = vmatpush1.msra.mxu0 0.0
  %5587 = vmatprep.subr.mxu0 0.0
  %5588 = vmatpush1.msra.mxu0 0.0
  %5589 = vmatprep.subr.mxu0 0.0
  %5590 = vmatpush1.msra.mxu0 0.0
  %5591 = vmatprep.subr.mxu0 0.0
  %5592 = vmatpush1.msra.mxu0 0.0
  %5593 = vmatprep.subr.mxu0 0.0
  %5594 = vmatpush1.msra.mxu0 0.0
  %5595 = vmatprep.subr.mxu0 0.0
  %5596 = vmatpush1.msra.mxu0 0.0
  %5597 = vmatprep.mubr.f32.mxu0 0.0
  %5598 = vmatmul.mubr.f32.gmra.mrb[0].mxu0 %v5531
  %v5599 = vpop.f32.mrb[0].mxu0
  %v5600 = vadd.f32 0.0, %v5599
  %v5601 = vpop.f32.mrb[0].mxu0
  %5602 = vdwg.mxu0
  %v5604 = vrot.slane %v5600, 7
  %v5606 = vsel %vm1245, %v5441, %v5604
  %5607 = vmatprep.subr.mxu0 0.0
  %5608 = vmatpush1.msra.mxu0 %v563
  %5609 = vmatprep.subr.mxu0 0.0
  %5610 = vmatpush1.msra.mxu0 %v564
  %5611 = vmatprep.subr.mxu0 0.0
  %5612 = vmatpush1.msra.mxu0 %v565
  %5613 = vmatprep.subr.mxu0 0.0
  %5614 = vmatpush1.msra.mxu0 %v566
  %5615 = vmatprep.subr.mxu0 0.0
  %5616 = vmatpush1.msra.mxu0 0.0
  %5617 = vmatprep.subr.mxu0 0.0
  %5618 = vmatpush1.msra.mxu0 0.0
  %5619 = vmatprep.subr.mxu0 0.0
  %5620 = vmatpush1.msra.mxu0 0.0
  %5621 = vmatprep.subr.mxu0 0.0
  %5622 = vmatpush1.msra.mxu0 0.0
  %5623 = vmatprep.subr.mxu0 0.0
  %5624 = vmatpush1.msra.mxu0 0.0
  %5625 = vmatprep.subr.mxu0 0.0
  %5626 = vmatpush1.msra.mxu0 0.0
  %5627 = vmatprep.subr.mxu0 0.0
  %5628 = vmatpush1.msra.mxu0 0.0
  %5629 = vmatprep.subr.mxu0 0.0
  %5630 = vmatpush1.msra.mxu0 0.0
  %5631 = vmatprep.subr.mxu0 0.0
  %5632 = vmatpush1.msra.mxu0 0.0
  %5633 = vmatprep.subr.mxu0 0.0
  %5634 = vmatpush1.msra.mxu0 0.0
  %5635 = vmatprep.subr.mxu0 0.0
  %5636 = vmatpush1.msra.mxu0 0.0
  %5637 = vmatprep.subr.mxu0 0.0
  %5638 = vmatpush1.msra.mxu0 0.0
  %5639 = vmatprep.subr.mxu0 0.0
  %5640 = vmatpush1.msra.mxu0 0.0
  %5641 = vmatprep.subr.mxu0 0.0
  %5642 = vmatpush1.msra.mxu0 0.0
  %5643 = vmatprep.subr.mxu0 0.0
  %5644 = vmatpush1.msra.mxu0 0.0
  %5645 = vmatprep.subr.mxu0 0.0
  %5646 = vmatpush1.msra.mxu0 0.0
  %5647 = vmatprep.subr.mxu0 0.0
  %5648 = vmatpush1.msra.mxu0 0.0
  %5649 = vmatprep.subr.mxu0 0.0
  %5650 = vmatpush1.msra.mxu0 0.0
  %5651 = vmatprep.subr.mxu0 0.0
  %5652 = vmatpush1.msra.mxu0 0.0
  %5653 = vmatprep.subr.mxu0 0.0
  %5654 = vmatpush1.msra.mxu0 0.0
  %5655 = vmatprep.subr.mxu0 0.0
  %5656 = vmatpush1.msra.mxu0 0.0
  %5657 = vmatprep.subr.mxu0 0.0
  %5658 = vmatpush1.msra.mxu0 0.0
  %5659 = vmatprep.subr.mxu0 0.0
  %5660 = vmatpush1.msra.mxu0 0.0
  %5661 = vmatprep.subr.mxu0 0.0
  %5662 = vmatpush1.msra.mxu0 0.0
  %5663 = vmatprep.subr.mxu0 0.0
  %5664 = vmatpush1.msra.mxu0 0.0
  %5665 = vmatprep.subr.mxu0 0.0
  %5666 = vmatpush1.msra.mxu0 0.0
  %5667 = vmatprep.subr.mxu0 0.0
  %5668 = vmatpush1.msra.mxu0 0.0
  %5669 = vmatprep.subr.mxu0 0.0
  %5670 = vmatpush1.msra.mxu0 0.0
  %5671 = vmatprep.mubr.f32.mxu0 0.0
  %5672 = vmatmul.mubr.f32.gmra.mrb[0].mxu0 %v5288
  %v5673 = vpop.f32.mrb[0].mxu0
  %v5674 = vadd.f32 0.0, %v5673
  %v5675 = vpop.f32.mrb[0].mxu0
  %5676 = vdwg.mxu0
  %v5678 = vsel %vm342, %v5606, 0
  %5680 = vmatprep.subr.mxu0 0.0
  %5681 = vmatpush1.msra.mxu0 %v557
  %5682 = vmatprep.subr.mxu0 0.0
  %5683 = vmatpush1.msra.mxu0 %v558
  %5684 = vmatprep.subr.mxu0 0.0
  %5685 = vmatpush1.msra.mxu0 %v559
  %5686 = vmatprep.subr.mxu0 0.0
  %5687 = vmatpush1.msra.mxu0 %v560
  %5688 = vmatprep.subr.mxu0 0.0
  %5689 = vmatpush1.msra.mxu0 %v561
  %5690 = vmatprep.subr.mxu0 0.0
  %5691 = vmatpush1.msra.mxu0 %v562
  %5692 = vmatprep.subr.mxu0 0.0
  %5693 = vmatpush1.msra.mxu0 0.0
  %5694 = vmatprep.subr.mxu0 0.0
  %5695 = vmatpush1.msra.mxu0 0.0
  %5696 = vmatprep.subr.mxu0 0.0
  %5697 = vmatpush1.msra.mxu0 0.0
  %5698 = vmatprep.subr.mxu0 0.0
  %5699 = vmatpush1.msra.mxu0 0.0
  %5700 = vmatprep.subr.mxu0 0.0
  %5701 = vmatpush1.msra.mxu0 0.0
  %5702 = vmatprep.subr.mxu0 0.0
  %5703 = vmatpush1.msra.mxu0 0.0
  %5704 = vmatprep.subr.mxu0 0.0
  %5705 = vmatpush1.msra.mxu0 0.0
  %5706 = vmatprep.subr.mxu0 0.0
  %5707 = vmatpush1.msra.mxu0 0.0
  %5708 = vmatprep.subr.mxu0 0.0
  %5709 = vmatpush1.msra.mxu0 0.0
  %5710 = vmatprep.subr.mxu0 0.0
  %5711 = vmatpush1.msra.mxu0 0.0
  %5712 = vmatprep.subr.mxu0 0.0
  %5713 = vmatpush1.msra.mxu0 0.0
  %5714 = vmatprep.subr.mxu0 0.0
  %5715 = vmatpush1.msra.mxu0 0.0
  %5716 = vmatprep.subr.mxu0 0.0
  %5717 = vmatpush1.msra.mxu0 0.0
  %5718 = vmatprep.subr.mxu0 0.0
  %5719 = vmatpush1.msra.mxu0 0.0
  %5720 = vmatprep.subr.mxu0 0.0
  %5721 = vmatpush1.msra.mxu0 0.0
  %5722 = vmatprep.subr.mxu0 0.0
  %5723 = vmatpush1.msra.mxu0 0.0
  %5724 = vmatprep.subr.mxu0 0.0
  %5725 = vmatpush1.msra.mxu0 0.0
  %5726 = vmatprep.subr.mxu0 0.0
  %5727 = vmatpush1.msra.mxu0 0.0
  %5728 = vmatprep.subr.mxu0 0.0
  %5729 = vmatpush1.msra.mxu0 0.0
  %5730 = vmatprep.subr.mxu0 0.0
  %5731 = vmatpush1.msra.mxu0 0.0
  %5732 = vmatprep.subr.mxu0 0.0
  %5733 = vmatpush1.msra.mxu0 0.0
  %5734 = vmatprep.subr.mxu0 0.0
  %5735 = vmatpush1.msra.mxu0 0.0
  %5736 = vmatprep.subr.mxu0 0.0
  %5737 = vmatpush1.msra.mxu0 0.0
  %5738 = vmatprep.subr.mxu0 0.0
  %5739 = vmatpush1.msra.mxu0 0.0
  %5740 = vmatprep.subr.mxu0 0.0
  %5741 = vmatpush1.msra.mxu0 0.0
  %5742 = vmatprep.subr.mxu0 0.0
  %5743 = vmatpush1.msra.mxu0 0.0
  %5744 = vmatprep.mubr.f32.mxu0 0.0
  %5745 = vmatmul.mubr.f32.gmra.mrb[0].mxu0 %v5678
  %v5746 = vpop.f32.mrb[0].mxu0
  %v5747 = vadd.f32 %v5674, %v5746
  %v5748 = vpop.f32.mrb[0].mxu0
  %5749 = vdwg.mxu0
  %v5750 = vadd.f32 %v5747, %v1394
  %v5751 = vtanh.pop %v5750
  %v5753 = vsel %vm583, %v5751, 0
  %5755 = vmatprep.subr.mxu0 0.0
  %5756 = vmatpush1.msra.mxu0 %v568
  %5757 = vmatprep.subr.mxu0 0.0
  %5758 = vmatpush1.msra.mxu0 %v569
  %5759 = vmatprep.subr.mxu0 0.0
  %5760 = vmatpush1.msra.mxu0 %v570
  %5761 = vmatprep.subr.mxu0 0.0
  %5762 = vmatpush1.msra.mxu0 %v571
  %5763 = vmatprep.subr.mxu0 0.0
  %5764 = vmatpush1.msra.mxu0 0.0
  %5765 = vmatprep.subr.mxu0 0.0
  %5766 = vmatpush1.msra.mxu0 0.0
  %5767 = vmatprep.subr.mxu0 0.0
  %5768 = vmatpush1.msra.mxu0 0.0
  %5769 = vmatprep.subr.mxu0 0.0
  %5770 = vmatpush1.msra.mxu0 0.0
  %5771 = vmatprep.subr.mxu0 0.0
  %5772 = vmatpush1.msra.mxu0 0.0
  %5773 = vmatprep.subr.mxu0 0.0
  %5774 = vmatpush1.msra.mxu0 0.0
  %5775 = vmatprep.subr.mxu0 0.0
  %5776 = vmatpush1.msra.mxu0 0.0
  %5777 = vmatprep.subr.mxu0 0.0
  %5778 = vmatpush1.msra.mxu0 0.0
  %5779 = vmatprep.subr.mxu0 0.0
  %5780 = vmatpush1.msra.mxu0 0.0
  %5781 = vmatprep.subr.mxu0 0.0
  %5782 = vmatpush1.msra.mxu0 0.0
  %5783 = vmatprep.subr.mxu0 0.0
  %5784 = vmatpush1.msra.mxu0 0.0
  %5785 = vmatprep.subr.mxu0 0.0
  %5786 = vmatpush1.msra.mxu0 0.0
  %5787 = vmatprep.subr.mxu0 0.0
  %5788 = vmatpush1.msra.mxu0 0.0
  %5789 = vmatprep.subr.mxu0 0.0
  %5790 = vmatpush1.msra.mxu0 0.0
  %5791 = vmatprep.subr.mxu0 0.0
  %5792 = vmatpush1.msra.mxu0 0.0
  %5793 = vmatprep.subr.mxu0 0.0
  %5794 = vmatpush1.msra.mxu0 0.0
  %5795 = vmatprep.subr.mxu0 0.0
  %5796 = vmatpush1.msra.mxu0 0.0
  %5797 = vmatprep.subr.mxu0 0.0
  %5798 = vmatpush1.msra.mxu0 0.0
  %5799 = vmatprep.subr.mxu0 0.0
  %5800 = vmatpush1.msra.mxu0 0.0
  %5801 = vmatprep.subr.mxu0 0.0
  %5802 = vmatpush1.msra.mxu0 0.0
  %5803 = vmatprep.subr.mxu0 0.0
  %5804 = vmatpush1.msra.mxu0 0.0
  %5805 = vmatprep.subr.mxu0 0.0
  %5806 = vmatpush1.msra.mxu0 0.0
  %5807 = vmatprep.subr.mxu0 0.0
  %5808 = vmatpush1.msra.mxu0 0.0
  %5809 = vmatprep.subr.mxu0 0.0
  %5810 = vmatpush1.msra.mxu0 0.0
  %5811 = vmatprep.subr.mxu0 0.0
  %5812 = vmatpush1.msra.mxu0 0.0
  %5813 = vmatprep.subr.mxu0 0.0
  %5814 = vmatpush1.msra.mxu0 0.0
  %5815 = vmatprep.subr.mxu0 0.0
  %5816 = vmatpush1.msra.mxu0 0.0
  %5817 = vmatprep.subr.mxu0 0.0
  %5818 = vmatpush1.msra.mxu0 0.0
  %5819 = vmatprep.mubr.f32.mxu0 0.0
  %5820 = vmatmul.mubr.f32.gmra.mrb[0].mxu0 %v5753
  %v5821 = vpop.f32.mrb[0].mxu0
  %v5822 = vadd.f32 %v1402, %v5821
  %v5823 = vpop.f32.mrb[0].mxu0
  %5824 = vdwg.mxu0
  %v5825 = vsel %vm229, %v5822, -inf
  %5826 = vmax.xlane.f32.xlu0 %v5825
  %v5827 = vpop.xlane.xlu0 %5826
  %v5828 = vsub.f32 %v5822, %v5827
  %v5829 = vmul.f32 %v5828, 1.442695
  %v5830 = vpow.pop %v5829
  %v5831 = vsel %vm229, %v5830, 0.0
  %5832 = vadd.xlane.f32.xlu0 %v5831
  %v5833 = vpop.xlane.xlu0 %5832
  %v5834 = vlog2.pop %v5833
  %v5835 = vmul.f32 %v5834, 0.6931472
  %v5836 = vsub.f32 %v5828, %v5835
  %s5837 = scalar_lea.vmem %s21, 10
  %5838 = vst [vmem:[%s5837] sm:$0x3] %v5836
  // Predicated region
  $region86: #{attn_decoder_forward.1} parent=0 // pred_check
    _
  $region87: #{attn_decoder_forward.1} parent=0 // pred_check_branch
    %5840 = sbr.rel (0) target = $region89
  $region88: #{attn_decoder_forward.1} parent=0 // pred_region
    _
  $region89: #{attn_decoder_forward.1} parent=0 // pred_fallthru
    _
  // Predicated region
  $region90: #{attn_decoder_forward.1} parent=0 // pred_check
    _
  $region91: #{attn_decoder_forward.1} parent=0 // pred_check_branch
    %5842 = sbr.rel (0) target = $region93
  $region92: #{attn_decoder_forward.1} parent=0 // pred_region
    _
  $region93: #{attn_decoder_forward.1} parent=0 // pred_fallthru
    _

</llo_original>
